<compile_context>
chip_gen: v6e
topology: v6e:2x2x1
jax: 0.10.0
libtpu: 0.0.40
codegen_flags: <defaults>
</compile_context>

<pallas_src>
import functools

import jax
import jax.numpy as jnp
from jax import lax
from jax.experimental import pallas as pl
from jax.experimental.pallas import tpu as pltpu

expansion = 4          # module-level constant used by the reference code
EPS = 1e-5             # nn.BatchNorm2d default eps


# ------------------------------ kernels ------------------------------------

def stats_a_kernel(x_ref, w1_ref, wd_ref, s1_ref, q1_ref, sd_ref, qd_ref):
    """Pass A: accumulate sum / sum-of-squares of conv1(x) and downsample(x)."""
    @pl.when(pl.program_id(0) == 0)
    def _():
        s1_ref[...] = jnp.zeros_like(s1_ref)
        q1_ref[...] = jnp.zeros_like(q1_ref)
        sd_ref[...] = jnp.zeros_like(sd_ref)
        qd_ref[...] = jnp.zeros_like(qd_ref)

    x = x_ref[...]                                              # (TM, Cin) bf16
    h = jnp.dot(x, w1_ref[...], preferred_element_type=jnp.float32)
    d = jnp.dot(x, wd_ref[...], preferred_element_type=jnp.float32)
    s1_ref[...] += jnp.sum(h, axis=0, keepdims=True)
    q1_ref[...] += jnp.sum(h * h, axis=0, keepdims=True)
    sd_ref[...] += jnp.sum(d, axis=0, keepdims=True)
    qd_ref[...] += jnp.sum(d * d, axis=0, keepdims=True)


def _make_conv_kernel(H, W):
    """Pass B: conv1x1 + BN1(affine) + ReLU fused with the 3x3 conv.

    One grid step = one image (HW rows).  h1 never leaves VMEM; the 3x3/pad=1
    conv is 9 statically shifted matmuls accumulating into an f32 register
    accumulator.  Also accumulates BN2 sum / sum-of-squares.
    """
    HW = H * W

    def kernel(x_ref, w1_ref, s1_ref, t1_ref, w2_ref, h2_ref, s2_ref, q2_ref):
        @pl.when(pl.program_id(0) == 0)
        def _():
            s2_ref[...] = jnp.zeros_like(s2_ref)
            q2_ref[...] = jnp.zeros_like(q2_ref)

        cin = x_ref.shape[1]
        cb = w2_ref.shape[1]

        # conv1 (1x1) + BN1 (precomputed affine) + ReLU, all in VMEM/vregs.
        h1 = jnp.dot(x_ref[...], w1_ref[...],
                     preferred_element_type=jnp.float32)
        h1 = jnp.maximum(h1 * s1_ref[...] + t1_ref[...], 0.0)   # (HW, Cin) f32

        # 3x3 conv (pad=1, stride=1) as 9 shifted matmuls.
        # Horizontal wrap across image rows is killed by zeroing the column the
        # shift would wrap onto; vertical out-of-range rows read the zero pad.
        col = lax.broadcasted_iota(jnp.int32, (HW, 1), 0) % W
        h1_by_dx = {
            -1: jnp.where(col == W - 1, 0.0, h1),    # taps reading (.., w-1)
            0: h1,
            1: jnp.where(col == 0, 0.0, h1),         # taps reading (.., w+1)
        }
        zpad = jnp.zeros((W + 1, cin), jnp.float32)
        padded = {dx: jnp.concatenate([zpad, v, zpad], axis=0)
                  for dx, v in h1_by_dx.items()}

        w2 = w2_ref[...]                                        # (9*Cin, Cb) bf16
        acc = jnp.zeros((HW, cb), jnp.float32)
        tap = 0
        for dy in (-1, 0, 1):
            for dx in (-1, 0, 1):
                start = (W + 1) + dy * W + dx                   # static offset
                v = padded[dx][start:start + HW, :]
                acc = acc + jnp.dot(v.astype(jnp.bfloat16),
                                    w2[tap * cin:(tap + 1) * cin, :],
                                    preferred_element_type=jnp.float32)
                tap += 1

        h2_ref[...] = acc                                       # raw conv2 out
        s2_ref[...] += jnp.sum(acc, axis=0, keepdims=True)
        q2_ref[...] += jnp.sum(acc * acc, axis=0, keepdims=True)

    return kernel


def stats_c_kernel(h2r_ref, s2_ref, t2_ref, w3_ref, s3_ref, q3_ref):
    """Pass C: apply BN2+ReLU, accumulate sum / sum-of-squares of conv3 output."""
    @pl.when(pl.program_id(0) == 0)
    def _():
        s3_ref[...] = jnp.zeros_like(s3_ref)
        q3_ref[...] = jnp.zeros_like(q3_ref)

    h2 = jnp.maximum(h2r_ref[...] * s2_ref[...] + t2_ref[...], 0.0)
    h3 = jnp.dot(h2.astype(jnp.bfloat16), w3_ref[...],
                 preferred_element_type=jnp.float32)
    s3_ref[...] += jnp.sum(h3, axis=0, keepdims=True)
    q3_ref[...] += jnp.sum(h3 * h3, axis=0, keepdims=True)


def final_kernel(h2r_ref, x_ref, s2_ref, t2_ref, w3_ref, s3_ref, t3_ref,
                 wd_ref, sd_ref, td_ref, out_ref):
    """Pass D: BN2+ReLU -> conv3+BN3, downsample conv+BNd, add, final ReLU."""
    h2 = jnp.maximum(h2r_ref[...] * s2_ref[...] + t2_ref[...], 0.0)
    y = jnp.dot(h2.astype(jnp.bfloat16), w3_ref[...],
                preferred_element_type=jnp.float32)
    y = y * s3_ref[...] + t3_ref[...]
    d = jnp.dot(x_ref[...], wd_ref[...],                        # x tile shared
                preferred_element_type=jnp.float32)
    d = d * sd_ref[...] + td_ref[...]
    out_ref[...] = jnp.maximum(y + d, 0.0)


# ------------------------------ wrapper -------------------------------------

def _row_tile(m, target=256):
    """Largest power-of-two-ish row tile (multiple of 8) that divides m."""
    if m <= target:
        return m
    t = target
    while t >= 8:
        if m % t == 0:
            return t
        t //= 2
    return m


def _bn_affine(s, q, gamma, beta, m):
    """Fold batch stats (sum, sum-of-squares) + gamma/beta into scale/shift."""
    mean = s / m
    var = jnp.maximum(q / m - mean * mean, 0.0)   # biased variance
    scale = gamma * lax.rsqrt(var + EPS)
    shift = beta - mean * scale
    return scale.astype(jnp.float32), shift.astype(jnp.float32)


def bottleneck_forward(x_nchw, params):
    """x_nchw: (N, Cin, H, W) float32 -> (N, Cout, H, W) float32."""
    N, Cin, H, W = x_nchw.shape
    Cb = params["w3"].shape[0]
    Cout = params["w3"].shape[1]
    HW = H * W
    M = N * HW
    assert HW % 8 == 0, "H*W must be a multiple of 8 (TPU sublane tiling)"

    f32 = jnp.float32
    bf16 = jnp.bfloat16

    # NCHW -> NHWC, flatten spatial; activations stored bf16 (halves DMA,
    # matmuls accumulate in f32, BN math stays f32).
    x = jnp.transpose(x_nchw, (0, 2, 3, 1)).astype(bf16)
    xf = x.reshape(M, Cin)

    w1b = params["w1"].astype(bf16)            # (Cin, Cin)
    w2b = params["w2"].astype(bf16)            # (9*Cin, Cb)
    w3b = params["w3"].astype(bf16)            # (Cb, Cout)
    wdb = params["wd"].astype(bf16)            # (Cin, Cout)

    TM = _row_tile(M)

    # ---- pass A: stats for BN1 and BN-downsample (reduction over M) --------
    s1, q1, sd, qd = pl.pallas_call(
        stats_a_kernel,
        grid=(M // TM,),
        in_specs=[
            pl.BlockSpec((TM, Cin), lambda i: (i, 0)),
            pl.BlockSpec((Cin, Cin), lambda i: (0, 0)),
            pl.BlockSpec((Cin, Cout), lambda i: (0, 0)),
        ],
        out_specs=(
            pl.BlockSpec((1, Cin), lambda i: (0, 0)),
            pl.BlockSpec((1, Cin), lambda i: (0, 0)),
            pl.BlockSpec((1, Cout), lambda i: (0, 0)),
            pl.BlockSpec((1, Cout), lambda i: (0, 0)),
        ),
        out_shape=(
            jax.ShapeDtypeStruct((1, Cin), f32),
            jax.ShapeDtypeStruct((1, Cin), f32),
            jax.ShapeDtypeStruct((1, Cout), f32),
            jax.ShapeDtypeStruct((1, Cout), f32),
        ),
        compiler_params=pltpu.CompilerParams(
            dimension_semantics=("arbitrary",)),
        cost_estimate=pl.CostEstimate(
            flops=2 * M * Cin * (Cin + Cout),
            transcendentals=0,
            bytes_accessed=M * Cin * 2),
    )(xf, w1b, wdb)

    s1v, t1v = _bn_affine(s1, q1, params["g1"], params["b1"], M)
    sdv, tdv = _bn_affine(sd, qd, params["gd"], params["bd"], M)

    # ---- pass B: conv1+BN1+ReLU fused with in-kernel 3x3 conv + BN2 stats ---
    # (h1 never written to HBM; no im2col; one image per grid step)
    h2_raw, s2, q2 = pl.pallas_call(
        _make_conv_kernel(H, W),
        grid=(N,),
        in_specs=[
            pl.BlockSpec((HW, Cin), lambda n: (n, 0)),
            pl.BlockSpec((Cin, Cin), lambda n: (0, 0)),
            pl.BlockSpec((1, Cin), lambda n: (0, 0)),
            pl.BlockSpec((1, Cin), lambda n: (0, 0)),
            pl.BlockSpec((9 * Cin, Cb), lambda n: (0, 0)),
        ],
        out_specs=(
            pl.BlockSpec((HW, Cb), lambda n: (n, 0)),
            pl.BlockSpec((1, Cb), lambda n: (0, 0)),
            pl.BlockSpec((1, Cb), lambda n: (0, 0)),
        ),
        out_shape=(
            jax.ShapeDtypeStruct((M, Cb), f32),
            jax.ShapeDtypeStruct((1, Cb), f32),
            jax.ShapeDtypeStruct((1, Cb), f32),
        ),
        compiler_params=pltpu.CompilerParams(
            dimension_semantics=("arbitrary",)),
        cost_estimate=pl.CostEstimate(
            flops=2 * M * Cin * (Cin + 9 * Cb),
            transcendentals=0,
            bytes_accessed=M * Cin * 2 + M * Cb * 4),
    )(xf, w1b, s1v, t1v, w2b)

    s2v, t2v = _bn_affine(s2, q2, params["g2"], params["b2"], M)

    # ---- pass C: BN2-apply + conv3 stats (reduction over M) -----------------
    s3, q3 = pl.pallas_call(
        stats_c_kernel,
        grid=(M // TM,),
        in_specs=[
            pl.BlockSpec((TM, Cb), lambda i: (i, 0)),
            pl.BlockSpec((1, Cb), lambda i: (0, 0)),
            pl.BlockSpec((1, Cb), lambda i: (0, 0)),
            pl.BlockSpec((Cb, Cout), lambda i: (0, 0)),
        ],
        out_specs=(
            pl.BlockSpec((1, Cout), lambda i: (0, 0)),
            pl.BlockSpec((1, Cout), lambda i: (0, 0)),
        ),
        out_shape=(
            jax.ShapeDtypeStruct((1, Cout), f32),
            jax.ShapeDtypeStruct((1, Cout), f32),
        ),
        compiler_params=pltpu.CompilerParams(
            dimension_semantics=("arbitrary",)),
    )(h2_raw, s2v, t2v, w3b)

    s3v, t3v = _bn_affine(s3, q3, params["g3"], params["b3"], M)

    # ---- pass D: conv3+BN3 + downsample+BNd + residual add + ReLU -----------
    # No cross-step dependency -> "parallel" (megacore on v7x).
    outf = pl.pallas_call(
        final_kernel,
        grid=(M // TM,),
        in_specs=[
            pl.BlockSpec((TM, Cb), lambda i: (i, 0)),
            pl.BlockSpec((TM, Cin), lambda i: (i, 0)),
            pl.BlockSpec((1, Cb), lambda i: (0, 0)),
            pl.BlockSpec((1, Cb), lambda i: (0, 0)),
            pl.BlockSpec((Cb, Cout), lambda i: (0, 0)),
            pl.BlockSpec((1, Cout), lambda i: (0, 0)),
            pl.BlockSpec((1, Cout), lambda i: (0, 0)),
            pl.BlockSpec((Cin, Cout), lambda i: (0, 0)),
            pl.BlockSpec((1, Cout), lambda i: (0, 0)),
            pl.BlockSpec((1, Cout), lambda i: (0, 0)),
        ],
        out_specs=pl.BlockSpec((TM, Cout), lambda i: (i, 0)),
        out_shape=jax.ShapeDtypeStruct((M, Cout), f32),
        compiler_params=pltpu.CompilerParams(
            dimension_semantics=("parallel",)),
        cost_estimate=pl.CostEstimate(
            flops=2 * M * Cout * (Cb + Cin),
            transcendentals=0,
            bytes_accessed=M * (Cb * 4 + Cin * 2 + Cout * 4)),
    )(h2_raw, xf, s2v, t2v, w3b, s3v, t3v, wdb, sdv, tdv)

    out = outf.reshape(N, H, W, Cout)
    return jnp.transpose(out, (0, 3, 1, 2))  # back to NCHW


# ------------------------------ reference (pure JAX) -------------------------

def reference_forward(x_nchw, params):
    Cin = x_nchw.shape[1]
    Cb = params["w3"].shape[0]
    x = jnp.transpose(x_nchw, (0, 2, 3, 1)).astype(jnp.float32)

    def bn4(h, g, b):
        m = jnp.mean(h, axis=(0, 1, 2), keepdims=True)
        v = jnp.mean((h - m) ** 2, axis=(0, 1, 2), keepdims=True)
        return (h - m) * lax.rsqrt(v + EPS) * g.reshape(1, 1, 1, -1) + b.reshape(1, 1, 1, -1)

    h = jnp.einsum("nhwc,cd->nhwd", x, params["w1"])
    h = jax.nn.relu(bn4(h, params["g1"], params["b1"]))
    w2 = params["w2"].reshape(3, 3, Cin, Cb)
    h = lax.conv_general_dilated(h, w2, (1, 1), "SAME",
                                 dimension_numbers=("NHWC", "HWIO", "NHWC"))
    h = jax.nn.relu(bn4(h, params["g2"], params["b2"]))
    h = jnp.einsum("nhwc,cd->nhwd", h, params["w3"])
    h = bn4(h, params["g3"], params["b3"])
    d = jnp.einsum("nhwc,cd->nhwd", x, params["wd"])
    d = bn4(d, params["gd"], params["bd"])
    out = jax.nn.relu(h + d)
    return jnp.transpose(out, (0, 3, 1, 2))


# ------------------------------ params / main -------------------------------

def init_params(key, in_channels, base_channels):
    out_channels = base_channels * expansion
    ks = jax.random.split(key, 16)
    f32 = jnp.float32
    p = {
        "w1": (jax.random.normal(ks[0], (in_channels, in_channels), f32) * 0.1),
        "g1": jax.random.uniform(ks[1], (1, in_channels), f32, 0.5, 1.5),
        "b1": jax.random.normal(ks[2], (1, in_channels), f32) * 0.1,
        "w2": (jax.random.normal(ks[3], (3, 3, in_channels, base_channels), f32)
               * 0.1).reshape(9 * in_channels, base_channels),
        "g2": jax.random.uniform(ks[4], (1, base_channels), f32, 0.5, 1.5),
        "b2": jax.random.normal(ks[5], (1, base_channels), f32) * 0.1,
        "w3": (jax.random.normal(ks[6], (base_channels, out_channels), f32) * 0.1),
        "g3": jax.random.uniform(ks[7], (1, out_channels), f32, 0.5, 1.5),
        "b3": jax.random.normal(ks[8], (1, out_channels), f32) * 0.1,
        "wd": (jax.random.normal(ks[9], (in_channels, out_channels), f32) * 0.1),
        "gd": jax.random.uniform(ks[10], (1, out_channels), f32, 0.5, 1.5),
        "bd": jax.random.normal(ks[11], (1, out_channels), f32) * 0.1,
    }
    return p


if __name__ == "__main__":
    N, Cin, H, W = 2, 16, 16, 16
    base_channels = 8                      # out_channels = 32

    key = jax.random.PRNGKey(0)
    kx, kp = jax.random.split(key)
    x = jax.random.normal(kx, (N, Cin, H, W), jnp.float32)
    params = init_params(kp, Cin, base_channels)

    fwd = jax.jit(bottleneck_forward)
    out = jax.block_until_ready(fwd(x, params))
    ref = jax.block_until_ready(reference_forward(x, params))

    assert out.shape == (N, base_channels * expansion, H, W), out.shape
    err = jnp.max(jnp.abs(out - ref))
    # Tolerance reflects bf16 MXU operands (f32 reference); BN stats/affine in f32.
    assert jnp.allclose(out, ref, atol=5e-2, rtol=5e-2), f"max abs diff {err}"
    print("KERNEL_OK")
</pallas_src>

<mosaic_0001>
module attributes {stable_mosaic.version = 11 : i64} {
  func.func @stats_a_kernel(%arg0: i32, %arg1: memref<256x16xbf16, #tpu.memory_space<vmem>>, %arg2: memref<16x16xbf16, #tpu.memory_space<vmem>>, %arg3: memref<16x32xbf16, #tpu.memory_space<vmem>>, %arg4: memref<1x16xf32, #tpu.memory_space<vmem>>, %arg5: memref<1x16xf32, #tpu.memory_space<vmem>>, %arg6: memref<1x32xf32, #tpu.memory_space<vmem>>, %arg7: memref<1x32xf32, #tpu.memory_space<vmem>>) attributes {dimension_semantics = [#tpu.dimension_semantics<arbitrary>], iteration_bounds = array<i64: 2>, scalar_prefetch = 0 : i64, scratch_operands = 0 : i64, tpu.core_type = #tpu.core_type<tc>, window_params = [{transform_indices = @transform_0, window_bounds = array<i64: 256, 16>}, {pipeline_mode = #tpu.pipeline_mode<synchronous>, transform_indices = @transform_1, window_bounds = array<i64: 16, 16>}, {pipeline_mode = #tpu.pipeline_mode<synchronous>, transform_indices = @transform_2, window_bounds = array<i64: 16, 32>}, {pipeline_mode = #tpu.pipeline_mode<synchronous>, transform_indices = @transform_3, window_bounds = array<i64: 1, 16>}, {pipeline_mode = #tpu.pipeline_mode<synchronous>, transform_indices = @transform_4, window_bounds = array<i64: 1, 16>}, {pipeline_mode = #tpu.pipeline_mode<synchronous>, transform_indices = @transform_5, window_bounds = array<i64: 1, 32>}, {pipeline_mode = #tpu.pipeline_mode<synchronous>, transform_indices = @transform_6, window_bounds = array<i64: 1, 32>}]} {
    %c0_i32 = arith.constant 0 : i32
    %0 = arith.cmpi eq, %arg0, %c0_i32 : i32
    %1 = arith.extui %0 : i1 to i32
    %c0_i32_0 = arith.constant 0 : i32
    %2 = arith.cmpi ne, %1, %c0_i32_0 : i32
    scf.if %2 {
      %cst_27 = arith.constant 0.000000e+00 : f32
      %30 = vector.broadcast %cst_27 : f32 to vector<1x16xf32>
      %c0_28 = arith.constant 0 : index
      %c0_29 = arith.constant 0 : index
      %31 = vector.load %arg4[%c0_28, %c0_29] : memref<1x16xf32, #tpu.memory_space<vmem>>, vector<1x16xf32>
      tpu.vector_store %arg4[%c0_28, %c0_29], %30 {strides = array<i32>} : memref<1x16xf32, #tpu.memory_space<vmem>>, vector<1x16xf32>,
      %cst_30 = arith.constant 0.000000e+00 : f32
      %32 = vector.broadcast %cst_30 : f32 to vector<1x16xf32>
      %c0_31 = arith.constant 0 : index
      %c0_32 = arith.constant 0 : index
      %33 = vector.load %arg5[%c0_31, %c0_32] : memref<1x16xf32, #tpu.memory_space<vmem>>, vector<1x16xf32>
      tpu.vector_store %arg5[%c0_31, %c0_32], %32 {strides = array<i32>} : memref<1x16xf32, #tpu.memory_space<vmem>>, vector<1x16xf32>,
      %cst_33 = arith.constant 0.000000e+00 : f32
      %34 = vector.broadcast %cst_33 : f32 to vector<1x32xf32>
      %c0_34 = arith.constant 0 : index
      %c0_35 = arith.constant 0 : index
      %35 = vector.load %arg6[%c0_34, %c0_35] : memref<1x32xf32, #tpu.memory_space<vmem>>, vector<1x32xf32>
      tpu.vector_store %arg6[%c0_34, %c0_35], %34 {strides = array<i32>} : memref<1x32xf32, #tpu.memory_space<vmem>>, vector<1x32xf32>,
      %cst_36 = arith.constant 0.000000e+00 : f32
      %36 = vector.broadcast %cst_36 : f32 to vector<1x32xf32>
      %c0_37 = arith.constant 0 : index
      %c0_38 = arith.constant 0 : index
      %37 = vector.load %arg7[%c0_37, %c0_38] : memref<1x32xf32, #tpu.memory_space<vmem>>, vector<1x32xf32>
      tpu.vector_store %arg7[%c0_37, %c0_38], %36 {strides = array<i32>} : memref<1x32xf32, #tpu.memory_space<vmem>>, vector<1x32xf32>,
    } else {
    }
    %c0 = arith.constant 0 : index
    %c0_1 = arith.constant 0 : index
    %3 = vector.load %arg1[%c0, %c0_1] : memref<256x16xbf16, #tpu.memory_space<vmem>>, vector<256x16xbf16>
    %c0_2 = arith.constant 0 : index
    %c0_3 = arith.constant 0 : index
    %4 = vector.load %arg2[%c0_2, %c0_3] : memref<16x16xbf16, #tpu.memory_space<vmem>>, vector<16x16xbf16>
    %cst = arith.constant dense<0.000000e+00> : vector<256x16xf32>
    %5 = tpu.matmul %3, %4, %cst {dimension_numbers = #tpu.dot_dimension_numbers<[1], [0], [0], [1], [0, 0, 1, 1], [], []>} : vector<256x16xbf16>, vector<16x16xbf16>, vector<256x16xf32> -> vector<256x16xf32>
    %c0_4 = arith.constant 0 : index
    %c0_5 = arith.constant 0 : index
    %6 = vector.load %arg3[%c0_4, %c0_5] : memref<16x32xbf16, #tpu.memory_space<vmem>>, vector<16x32xbf16>
    %cst_6 = arith.constant dense<0.000000e+00> : vector<256x32xf32>
    %7 = tpu.matmul %3, %6, %cst_6 {dimension_numbers = #tpu.dot_dimension_numbers<[1], [0], [0], [1], [0, 0, 1, 1], [], []>} : vector<256x16xbf16>, vector<16x32xbf16>, vector<256x32xf32> -> vector<256x32xf32>
    %c0_7 = arith.constant 0 : index
    %c0_8 = arith.constant 0 : index
    %8 = vector.load %arg4[%c0_7, %c0_8] : memref<1x16xf32, #tpu.memory_space<vmem>>, vector<1x16xf32>
    %cst_9 = arith.constant dense<0.000000e+00> : vector<16xf32>
    %9 = vector.multi_reduction <add>, %5, %cst_9 [0] : vector<256x16xf32> to vector<16xf32>
    %10 = vector.shape_cast %9 : vector<16xf32> to vector<1x16xf32>
    %11 = arith.addf %8, %10 : vector<1x16xf32>
    %c0_10 = arith.constant 0 : index
    %c0_11 = arith.constant 0 : index
    %12 = vector.load %arg4[%c0_10, %c0_11] : memref<1x16xf32, #tpu.memory_space<vmem>>, vector<1x16xf32>
    tpu.vector_store %arg4[%c0_10, %c0_11], %11 {strides = array<i32>} : memref<1x16xf32, #tpu.memory_space<vmem>>, vector<1x16xf32>,
    %c0_12 = arith.constant 0 : index
    %c0_13 = arith.constant 0 : index
    %13 = vector.load %arg5[%c0_12, %c0_13] : memref<1x16xf32, #tpu.memory_space<vmem>>, vector<1x16xf32>
    %14 = arith.mulf %5, %5 : vector<256x16xf32>
    %cst_14 = arith.constant dense<0.000000e+00> : vector<16xf32>
    %15 = vector.multi_reduction <add>, %14, %cst_14 [0] : vector<256x16xf32> to vector<16xf32>
    %16 = vector.shape_cast %15 : vector<16xf32> to vector<1x16xf32>
    %17 = arith.addf %13, %16 : vector<1x16xf32>
    %c0_15 = arith.constant 0 : index
    %c0_16 = arith.constant 0 : index
    %18 = vector.load %arg5[%c0_15, %c0_16] : memref<1x16xf32, #tpu.memory_space<vmem>>, vector<1x16xf32>
    tpu.vector_store %arg5[%c0_15, %c0_16], %17 {strides = array<i32>} : memref<1x16xf32, #tpu.memory_space<vmem>>, vector<1x16xf32>,
    %c0_17 = arith.constant 0 : index
    %c0_18 = arith.constant 0 : index
    %19 = vector.load %arg6[%c0_17, %c0_18] : memref<1x32xf32, #tpu.memory_space<vmem>>, vector<1x32xf32>
    %cst_19 = arith.constant dense<0.000000e+00> : vector<32xf32>
    %20 = vector.multi_reduction <add>, %7, %cst_19 [0] : vector<256x32xf32> to vector<32xf32>
    %21 = vector.shape_cast %20 : vector<32xf32> to vector<1x32xf32>
    %22 = arith.addf %19, %21 : vector<1x32xf32>
    %c0_20 = arith.constant 0 : index
    %c0_21 = arith.constant 0 : index
    %23 = vector.load %arg6[%c0_20, %c0_21] : memref<1x32xf32, #tpu.memory_space<vmem>>, vector<1x32xf32>
    tpu.vector_store %arg6[%c0_20, %c0_21], %22 {strides = array<i32>} : memref<1x32xf32, #tpu.memory_space<vmem>>, vector<1x32xf32>,
    %c0_22 = arith.constant 0 : index
    %c0_23 = arith.constant 0 : index
    %24 = vector.load %arg7[%c0_22, %c0_23] : memref<1x32xf32, #tpu.memory_space<vmem>>, vector<1x32xf32>
    %25 = arith.mulf %7, %7 : vector<256x32xf32>
    %cst_24 = arith.constant dense<0.000000e+00> : vector<32xf32>
    %26 = vector.multi_reduction <add>, %25, %cst_24 [0] : vector<256x32xf32> to vector<32xf32>
    %27 = vector.shape_cast %26 : vector<32xf32> to vector<1x32xf32>
    %28 = arith.addf %24, %27 : vector<1x32xf32>
    %c0_25 = arith.constant 0 : index
    %c0_26 = arith.constant 0 : index
    %29 = vector.load %arg7[%c0_25, %c0_26] : memref<1x32xf32, #tpu.memory_space<vmem>>, vector<1x32xf32>
    tpu.vector_store %arg7[%c0_25, %c0_26], %28 {strides = array<i32>} : memref<1x32xf32, #tpu.memory_space<vmem>>, vector<1x32xf32>,
    return
  }
  func.func @transform_0(%arg0: i32) -> (i32, i32) {
    %c0_i32 = arith.constant 0 : i32
    %c0_i32_0 = arith.constant 0 : i32
    return %arg0, %c0_i32 : i32, i32
  }
  func.func @transform_1(%arg0: i32) -> (i32, i32) {
    %c0_i32 = arith.constant 0 : i32
    %c0_i32_0 = arith.constant 0 : i32
    %c0_i32_1 = arith.constant 0 : i32
    return %c0_i32, %c0_i32_0 : i32, i32
  }
  func.func @transform_2(%arg0: i32) -> (i32, i32) {
    %c0_i32 = arith.constant 0 : i32
    %c0_i32_0 = arith.constant 0 : i32
    %c0_i32_1 = arith.constant 0 : i32
    return %c0_i32, %c0_i32_0 : i32, i32
  }
  func.func @transform_3(%arg0: i32) -> (i32, i32) {
    %c0_i32 = arith.constant 0 : i32
    %c0_i32_0 = arith.constant 0 : i32
    %c0_i32_1 = arith.constant 0 : i32
    return %c0_i32, %c0_i32_0 : i32, i32
  }
  func.func @transform_4(%arg0: i32) -> (i32, i32) {
    %c0_i32 = arith.constant 0 : i32
    %c0_i32_0 = arith.constant 0 : i32
    %c0_i32_1 = arith.constant 0 : i32
    return %c0_i32, %c0_i32_0 : i32, i32
  }
  func.func @transform_5(%arg0: i32) -> (i32, i32) {
    %c0_i32 = arith.constant 0 : i32
    %c0_i32_0 = arith.constant 0 : i32
    %c0_i32_1 = arith.constant 0 : i32
    return %c0_i32, %c0_i32_0 : i32, i32
  }
  func.func @transform_6(%arg0: i32) -> (i32, i32) {
    %c0_i32 = arith.constant 0 : i32
    %c0_i32_0 = arith.constant 0 : i32
    %c0_i32_1 = arith.constant 0 : i32
    return %c0_i32, %c0_i32_0 : i32, i32
  }
}

module attributes {stable_mosaic.version = 11 : i64} {
  func.func @kernel(%arg0: i32, %arg1: memref<256x16xbf16, #tpu.memory_space<vmem>>, %arg2: memref<16x16xbf16, #tpu.memory_space<vmem>>, %arg3: memref<1x16xf32, #tpu.memory_space<vmem>>, %arg4: memref<1x16xf32, #tpu.memory_space<vmem>>, %arg5: memref<144x8xbf16, #tpu.memory_space<vmem>>, %arg6: memref<256x8xf32, #tpu.memory_space<vmem>>, %arg7: memref<1x8xf32, #tpu.memory_space<vmem>>, %arg8: memref<1x8xf32, #tpu.memory_space<vmem>>) attributes {dimension_semantics = [#tpu.dimension_semantics<arbitrary>], iteration_bounds = array<i64: 2>, scalar_prefetch = 0 : i64, scratch_operands = 0 : i64, tpu.core_type = #tpu.core_type<tc>, window_params = [{transform_indices = @transform_0, window_bounds = array<i64: 256, 16>}, {pipeline_mode = #tpu.pipeline_mode<synchronous>, transform_indices = @transform_1, window_bounds = array<i64: 16, 16>}, {pipeline_mode = #tpu.pipeline_mode<synchronous>, transform_indices = @transform_2, window_bounds = array<i64: 1, 16>}, {pipeline_mode = #tpu.pipeline_mode<synchronous>, transform_indices = @transform_3, window_bounds = array<i64: 1, 16>}, {pipeline_mode = #tpu.pipeline_mode<synchronous>, transform_indices = @transform_4, window_bounds = array<i64: 144, 8>}, {transform_indices = @transform_5, window_bounds = array<i64: 256, 8>}, {pipeline_mode = #tpu.pipeline_mode<synchronous>, transform_indices = @transform_6, window_bounds = array<i64: 1, 8>}, {pipeline_mode = #tpu.pipeline_mode<synchronous>, transform_indices = @transform_7, window_bounds = array<i64: 1, 8>}]} {
    %c0_i32 = arith.constant 0 : i32
    %0 = arith.cmpi eq, %arg0, %c0_i32 : i32
    %1 = arith.extui %0 : i1 to i32
    %c0_i32_0 = arith.constant 0 : i32
    %2 = arith.cmpi ne, %1, %c0_i32_0 : i32
    scf.if %2 {
      %cst_41 = arith.constant 0.000000e+00 : f32
      %106 = vector.broadcast %cst_41 : f32 to vector<1x8xf32>
      %c0_42 = arith.constant 0 : index
      %c0_43 = arith.constant 0 : index
      %107 = vector.load %arg7[%c0_42, %c0_43] : memref<1x8xf32, #tpu.memory_space<vmem>>, vector<1x8xf32>
      tpu.vector_store %arg7[%c0_42, %c0_43], %106 {strides = array<i32>} : memref<1x8xf32, #tpu.memory_space<vmem>>, vector<1x8xf32>,
      %cst_44 = arith.constant 0.000000e+00 : f32
      %108 = vector.broadcast %cst_44 : f32 to vector<1x8xf32>
      %c0_45 = arith.constant 0 : index
      %c0_46 = arith.constant 0 : index
      %109 = vector.load %arg8[%c0_45, %c0_46] : memref<1x8xf32, #tpu.memory_space<vmem>>, vector<1x8xf32>
      tpu.vector_store %arg8[%c0_45, %c0_46], %108 {strides = array<i32>} : memref<1x8xf32, #tpu.memory_space<vmem>>, vector<1x8xf32>,
    } else {
    }
    %c0 = arith.constant 0 : index
    %c0_1 = arith.constant 0 : index
    %3 = vector.load %arg1[%c0, %c0_1] : memref<256x16xbf16, #tpu.memory_space<vmem>>, vector<256x16xbf16>
    %c0_2 = arith.constant 0 : index
    %c0_3 = arith.constant 0 : index
    %4 = vector.load %arg2[%c0_2, %c0_3] : memref<16x16xbf16, #tpu.memory_space<vmem>>, vector<16x16xbf16>
    %cst = arith.constant dense<0.000000e+00> : vector<256x16xf32>
    %5 = tpu.matmul %3, %4, %cst {dimension_numbers = #tpu.dot_dimension_numbers<[1], [0], [0], [1], [0, 0, 1, 1], [], []>} : vector<256x16xbf16>, vector<16x16xbf16>, vector<256x16xf32> -> vector<256x16xf32>
    %c0_4 = arith.constant 0 : index
    %c0_5 = arith.constant 0 : index
    %6 = vector.load %arg3[%c0_4, %c0_5] : memref<1x16xf32, #tpu.memory_space<vmem>>, vector<1x16xf32>
    %7 = vector.broadcast %6 : vector<1x16xf32> to vector<256x16xf32>
    %8 = arith.mulf %5, %7 : vector<256x16xf32>
    %c0_6 = arith.constant 0 : index
    %c0_7 = arith.constant 0 : index
    %9 = vector.load %arg4[%c0_6, %c0_7] : memref<1x16xf32, #tpu.memory_space<vmem>>, vector<1x16xf32>
    %10 = vector.broadcast %9 : vector<1x16xf32> to vector<256x16xf32>
    %11 = arith.addf %8, %10 : vector<256x16xf32>
    %cst_8 = arith.constant 0.000000e+00 : f32
    %12 = vector.broadcast %cst_8 : f32 to vector<256x16xf32>
    %13 = arith.maximumf %11, %12 : vector<256x16xf32>
    %14 = tpu.iota {dimensions = array<i32: 0>} : vector<256x1xi32>
    %c16_i32 = arith.constant 16 : i32
    %c0_i32_9 = arith.constant 0 : i32
    %15 = arith.cmpi eq, %c16_i32, %c0_i32_9 : i32
    %c1_i32 = arith.constant 1 : i32
    %16 = arith.select %15, %c1_i32, %c16_i32 : i32
    %17 = vector.broadcast %16 : i32 to vector<256x1xi32>
    %18 = arith.remsi %14, %17 : vector<256x1xi32>
    %c0_i32_10 = arith.constant 0 : i32
    %19 = vector.broadcast %c0_i32_10 : i32 to vector<256x1xi32>
    %20 = arith.cmpi ne, %18, %19 : vector<256x1xi32>
    %c0_i32_11 = arith.constant 0 : i32
    %21 = vector.broadcast %c0_i32_11 : i32 to vector<256x1xi32>
    %22 = arith.cmpi slt, %18, %21 : vector<256x1xi32>
    %c0_i32_12 = arith.constant 0 : i32
    %23 = arith.cmpi slt, %16, %c0_i32_12 : i32
    %24 = vector.broadcast %23 : i1 to vector<256x1xi1>
    %25 = vector.broadcast %24 : vector<256x1xi1> to vector<256x1xi1>
    %26 = arith.xori %22, %25 : vector<256x1xi1>
    %27 = arith.andi %26, %20 : vector<256x1xi1>
    %28 = vector.broadcast %16 : i32 to vector<256x1xi32>
    %29 = arith.addi %18, %28 : vector<256x1xi32>
    %30 = arith.select %27, %29, %18 : vector<256x1xi1>, vector<256x1xi32>
    %c15_i32 = arith.constant 15 : i32
    %31 = vector.broadcast %c15_i32 : i32 to vector<256x1xi32>
    %32 = arith.cmpi eq, %30, %31 : vector<256x1xi32>
    %cst_13 = arith.constant 0.000000e+00 : f32
    %33 = vector.shape_cast %32 : vector<256x1xi1> to vector<256x1xi1>
    %34 = vector.broadcast %33 : vector<256x1xi1> to vector<256x16xi1>
    %35 = vector.broadcast %cst_13 : f32 to vector<256x16xf32>
    %36 = arith.select %34, %35, %13 : vector<256x16xi1>, vector<256x16xf32>
    %c0_i32_14 = arith.constant 0 : i32
    %37 = vector.broadcast %c0_i32_14 : i32 to vector<256x1xi32>
    %38 = arith.cmpi eq, %30, %37 : vector<256x1xi32>
    %cst_15 = arith.constant 0.000000e+00 : f32
    %39 = vector.shape_cast %38 : vector<256x1xi1> to vector<256x1xi1>
    %40 = vector.broadcast %39 : vector<256x1xi1> to vector<256x16xi1>
    %41 = vector.broadcast %cst_15 : f32 to vector<256x16xf32>
    %42 = arith.select %40, %41, %13 : vector<256x16xi1>, vector<256x16xf32>
    %cst_16 = arith.constant 0.000000e+00 : f32
    %43 = vector.broadcast %cst_16 : f32 to vector<17x16xf32>
    %44 = tpu.concatenate %43, %36, %43 in 0 : vector<17x16xf32>, vector<256x16xf32>, vector<17x16xf32> -> vector<290x16xf32>
    %45 = tpu.concatenate %43, %13, %43 in 0 : vector<17x16xf32>, vector<256x16xf32>, vector<17x16xf32> -> vector<290x16xf32>
    %46 = tpu.concatenate %43, %42, %43 in 0 : vector<17x16xf32>, vector<256x16xf32>, vector<17x16xf32> -> vector<290x16xf32>
    %c0_17 = arith.constant 0 : index
    %c0_18 = arith.constant 0 : index
    %47 = vector.load %arg5[%c0_17, %c0_18] : memref<144x8xbf16, #tpu.memory_space<vmem>>, vector<144x8xbf16>
    %cst_19 = arith.constant 0.000000e+00 : f32
    %48 = vector.broadcast %cst_19 : f32 to vector<256x8xf32>
    %49 = vector.extract_strided_slice %44 {offsets = [0, 0], sizes = [256, 16], strides = [1, 1]} : vector<290x16xf32> to vector<256x16xf32>
    %50 = arith.truncf %49 : vector<256x16xf32> to vector<256x16xbf16>
    %51 = vector.extract_strided_slice %47 {offsets = [0, 0], sizes = [16, 8], strides = [1, 1]} : vector<144x8xbf16> to vector<16x8xbf16>
    %cst_20 = arith.constant dense<0.000000e+00> : vector<256x8xf32>
    %52 = tpu.matmul %50, %51, %cst_20 {dimension_numbers = #tpu.dot_dimension_numbers<[1], [0], [0], [1], [0, 0, 1, 1], [], []>} : vector<256x16xbf16>, vector<16x8xbf16>, vector<256x8xf32> -> vector<256x8xf32>
    %53 = arith.addf %48, %52 : vector<256x8xf32>
    %54 = vector.extract_strided_slice %45 {offsets = [1, 0], sizes = [256, 16], strides = [1, 1]} : vector<290x16xf32> to vector<256x16xf32>
    %55 = arith.truncf %54 : vector<256x16xf32> to vector<256x16xbf16>
    %56 = vector.extract_strided_slice %47 {offsets = [16, 0], sizes = [16, 8], strides = [1, 1]} : vector<144x8xbf16> to vector<16x8xbf16>
    %cst_21 = arith.constant dense<0.000000e+00> : vector<256x8xf32>
    %57 = tpu.matmul %55, %56, %cst_21 {dimension_numbers = #tpu.dot_dimension_numbers<[1], [0], [0], [1], [0, 0, 1, 1], [], []>} : vector<256x16xbf16>, vector<16x8xbf16>, vector<256x8xf32> -> vector<256x8xf32>
    %58 = arith.addf %53, %57 : vector<256x8xf32>
    %59 = vector.extract_strided_slice %46 {offsets = [2, 0], sizes = [256, 16], strides = [1, 1]} : vector<290x16xf32> to vector<256x16xf32>
    %60 = arith.truncf %59 : vector<256x16xf32> to vector<256x16xbf16>
    %61 = vector.extract_strided_slice %47 {offsets = [32, 0], sizes = [16, 8], strides = [1, 1]} : vector<144x8xbf16> to vector<16x8xbf16>
    %cst_22 = arith.constant dense<0.000000e+00> : vector<256x8xf32>
    %62 = tpu.matmul %60, %61, %cst_22 {dimension_numbers = #tpu.dot_dimension_numbers<[1], [0], [0], [1], [0, 0, 1, 1], [], []>} : vector<256x16xbf16>, vector<16x8xbf16>, vector<256x8xf32> -> vector<256x8xf32>
    %63 = arith.addf %58, %62 : vector<256x8xf32>
    %64 = vector.extract_strided_slice %44 {offsets = [16, 0], sizes = [256, 16], strides = [1, 1]} : vector<290x16xf32> to vector<256x16xf32>
    %65 = arith.truncf %64 : vector<256x16xf32> to vector<256x16xbf16>
    %66 = vector.extract_strided_slice %47 {offsets = [48, 0], sizes = [16, 8], strides = [1, 1]} : vector<144x8xbf16> to vector<16x8xbf16>
    %cst_23 = arith.constant dense<0.000000e+00> : vector<256x8xf32>
    %67 = tpu.matmul %65, %66, %cst_23 {dimension_numbers = #tpu.dot_dimension_numbers<[1], [0], [0], [1], [0, 0, 1, 1], [], []>} : vector<256x16xbf16>, vector<16x8xbf16>, vector<256x8xf32> -> vector<256x8xf32>
    %68 = arith.addf %63, %67 : vector<256x8xf32>
    %69 = vector.extract_strided_slice %45 {offsets = [17, 0], sizes = [256, 16], strides = [1, 1]} : vector<290x16xf32> to vector<256x16xf32>
    %70 = arith.truncf %69 : vector<256x16xf32> to vector<256x16xbf16>
    %71 = vector.extract_strided_slice %47 {offsets = [64, 0], sizes = [16, 8], strides = [1, 1]} : vector<144x8xbf16> to vector<16x8xbf16>
    %cst_24 = arith.constant dense<0.000000e+00> : vector<256x8xf32>
    %72 = tpu.matmul %70, %71, %cst_24 {dimension_numbers = #tpu.dot_dimension_numbers<[1], [0], [0], [1], [0, 0, 1, 1], [], []>} : vector<256x16xbf16>, vector<16x8xbf16>, vector<256x8xf32> -> vector<256x8xf32>
    %73 = arith.addf %68, %72 : vector<256x8xf32>
    %74 = vector.extract_strided_slice %46 {offsets = [18, 0], sizes = [256, 16], strides = [1, 1]} : vector<290x16xf32> to vector<256x16xf32>
    %75 = arith.truncf %74 : vector<256x16xf32> to vector<256x16xbf16>
    %76 = vector.extract_strided_slice %47 {offsets = [80, 0], sizes = [16, 8], strides = [1, 1]} : vector<144x8xbf16> to vector<16x8xbf16>
    %cst_25 = arith.constant dense<0.000000e+00> : vector<256x8xf32>
    %77 = tpu.matmul %75, %76, %cst_25 {dimension_numbers = #tpu.dot_dimension_numbers<[1], [0], [0], [1], [0, 0, 1, 1], [], []>} : vector<256x16xbf16>, vector<16x8xbf16>, vector<256x8xf32> -> vector<256x8xf32>
    %78 = arith.addf %73, %77 : vector<256x8xf32>
    %79 = vector.extract_strided_slice %44 {offsets = [32, 0], sizes = [256, 16], strides = [1, 1]} : vector<290x16xf32> to vector<256x16xf32>
    %80 = arith.truncf %79 : vector<256x16xf32> to vector<256x16xbf16>
    %81 = vector.extract_strided_slice %47 {offsets = [96, 0], sizes = [16, 8], strides = [1, 1]} : vector<144x8xbf16> to vector<16x8xbf16>
    %cst_26 = arith.constant dense<0.000000e+00> : vector<256x8xf32>
    %82 = tpu.matmul %80, %81, %cst_26 {dimension_numbers = #tpu.dot_dimension_numbers<[1], [0], [0], [1], [0, 0, 1, 1], [], []>} : vector<256x16xbf16>, vector<16x8xbf16>, vector<256x8xf32> -> vector<256x8xf32>
    %83 = arith.addf %78, %82 : vector<256x8xf32>
    %84 = vector.extract_strided_slice %45 {offsets = [33, 0], sizes = [256, 16], strides = [1, 1]} : vector<290x16xf32> to vector<256x16xf32>
    %85 = arith.truncf %84 : vector<256x16xf32> to vector<256x16xbf16>
    %86 = vector.extract_strided_slice %47 {offsets = [112, 0], sizes = [16, 8], strides = [1, 1]} : vector<144x8xbf16> to vector<16x8xbf16>
    %cst_27 = arith.constant dense<0.000000e+00> : vector<256x8xf32>
    %87 = tpu.matmul %85, %86, %cst_27 {dimension_numbers = #tpu.dot_dimension_numbers<[1], [0], [0], [1], [0, 0, 1, 1], [], []>} : vector<256x16xbf16>, vector<16x8xbf16>, vector<256x8xf32> -> vector<256x8xf32>
    %88 = arith.addf %83, %87 : vector<256x8xf32>
    %89 = vector.extract_strided_slice %46 {offsets = [34, 0], sizes = [256, 16], strides = [1, 1]} : vector<290x16xf32> to vector<256x16xf32>
    %90 = arith.truncf %89 : vector<256x16xf32> to vector<256x16xbf16>
    %91 = vector.extract_strided_slice %47 {offsets = [128, 0], sizes = [16, 8], strides = [1, 1]} : vector<144x8xbf16> to vector<16x8xbf16>
    %cst_28 = arith.constant dense<0.000000e+00> : vector<256x8xf32>
    %92 = tpu.matmul %90, %91, %cst_28 {dimension_numbers = #tpu.dot_dimension_numbers<[1], [0], [0], [1], [0, 0, 1, 1], [], []>} : vector<256x16xbf16>, vector<16x8xbf16>, vector<256x8xf32> -> vector<256x8xf32>
    %93 = arith.addf %88, %92 : vector<256x8xf32>
    %c0_29 = arith.constant 0 : index
    %c0_30 = arith.constant 0 : index
    %94 = vector.load %arg6[%c0_29, %c0_30] : memref<256x8xf32, #tpu.memory_space<vmem>>, vector<256x8xf32>
    tpu.vector_store %arg6[%c0_29, %c0_30], %93 {strides = array<i32>} : memref<256x8xf32, #tpu.memory_space<vmem>>, vector<256x8xf32>,
    %c0_31 = arith.constant 0 : index
    %c0_32 = arith.constant 0 : index
    %95 = vector.load %arg7[%c0_31, %c0_32] : memref<1x8xf32, #tpu.memory_space<vmem>>, vector<1x8xf32>
    %cst_33 = arith.constant dense<0.000000e+00> : vector<8xf32>
    %96 = vector.multi_reduction <add>, %93, %cst_33 [0] : vector<256x8xf32> to vector<8xf32>
    %97 = vector.shape_cast %96 : vector<8xf32> to vector<1x8xf32>
    %98 = arith.addf %95, %97 : vector<1x8xf32>
    %c0_34 = arith.constant 0 : index
    %c0_35 = arith.constant 0 : index
    %99 = vector.load %arg7[%c0_34, %c0_35] : memref<1x8xf32, #tpu.memory_space<vmem>>, vector<1x8xf32>
    tpu.vector_store %arg7[%c0_34, %c0_35], %98 {strides = array<i32>} : memref<1x8xf32, #tpu.memory_space<vmem>>, vector<1x8xf32>,
    %c0_36 = arith.constant 0 : index
    %c0_37 = arith.constant 0 : index
    %100 = vector.load %arg8[%c0_36, %c0_37] : memref<1x8xf32, #tpu.memory_space<vmem>>, vector<1x8xf32>
    %101 = arith.mulf %93, %93 : vector<256x8xf32>
    %cst_38 = arith.constant dense<0.000000e+00> : vector<8xf32>
    %102 = vector.multi_reduction <add>, %101, %cst_38 [0] : vector<256x8xf32> to vector<8xf32>
    %103 = vector.shape_cast %102 : vector<8xf32> to vector<1x8xf32>
    %104 = arith.addf %100, %103 : vector<1x8xf32>
    %c0_39 = arith.constant 0 : index
    %c0_40 = arith.constant 0 : index
    %105 = vector.load %arg8[%c0_39, %c0_40] : memref<1x8xf32, #tpu.memory_space<vmem>>, vector<1x8xf32>
    tpu.vector_store %arg8[%c0_39, %c0_40], %104 {strides = array<i32>} : memref<1x8xf32, #tpu.memory_space<vmem>>, vector<1x8xf32>,
    return
  }
  func.func @transform_0(%arg0: i32) -> (i32, i32) {
    %c0_i32 = arith.constant 0 : i32
    %c0_i32_0 = arith.constant 0 : i32
    return %arg0, %c0_i32 : i32, i32
  }
  func.func @transform_1(%arg0: i32) -> (i32, i32) {
    %c0_i32 = arith.constant 0 : i32
    %c0_i32_0 = arith.constant 0 : i32
    %c0_i32_1 = arith.constant 0 : i32
    return %c0_i32, %c0_i32_0 : i32, i32
  }
  func.func @transform_2(%arg0: i32) -> (i32, i32) {
    %c0_i32 = arith.constant 0 : i32
    %c0_i32_0 = arith.constant 0 : i32
    %c0_i32_1 = arith.constant 0 : i32
    return %c0_i32, %c0_i32_0 : i32, i32
  }
  func.func @transform_3(%arg0: i32) -> (i32, i32) {
    %c0_i32 = arith.constant 0 : i32
    %c0_i32_0 = arith.constant 0 : i32
    %c0_i32_1 = arith.constant 0 : i32
    return %c0_i32, %c0_i32_0 : i32, i32
  }
  func.func @transform_4(%arg0: i32) -> (i32, i32) {
    %c0_i32 = arith.constant 0 : i32
    %c0_i32_0 = arith.constant 0 : i32
    %c0_i32_1 = arith.constant 0 : i32
    return %c0_i32, %c0_i32_0 : i32, i32
  }
  func.func @transform_5(%arg0: i32) -> (i32, i32) {
    %c0_i32 = arith.constant 0 : i32
    %c0_i32_0 = arith.constant 0 : i32
    return %arg0, %c0_i32 : i32, i32
  }
  func.func @transform_6(%arg0: i32) -> (i32, i32) {
    %c0_i32 = arith.constant 0 : i32
    %c0_i32_0 = arith.constant 0 : i32
    %c0_i32_1 = arith.constant 0 : i32
    return %c0_i32, %c0_i32_0 : i32, i32
  }
  func.func @transform_7(%arg0: i32) -> (i32, i32) {
    %c0_i32 = arith.constant 0 : i32
    %c0_i32_0 = arith.constant 0 : i32
    %c0_i32_1 = arith.constant 0 : i32
    return %c0_i32, %c0_i32_0 : i32, i32
  }
}

module attributes {stable_mosaic.version = 11 : i64} {
  func.func @stats_c_kernel(%arg0: i32, %arg1: memref<256x8xf32, #tpu.memory_space<vmem>>, %arg2: memref<1x8xf32, #tpu.memory_space<vmem>>, %arg3: memref<1x8xf32, #tpu.memory_space<vmem>>, %arg4: memref<8x32xbf16, #tpu.memory_space<vmem>>, %arg5: memref<1x32xf32, #tpu.memory_space<vmem>>, %arg6: memref<1x32xf32, #tpu.memory_space<vmem>>) attributes {dimension_semantics = [#tpu.dimension_semantics<arbitrary>], iteration_bounds = array<i64: 2>, scalar_prefetch = 0 : i64, scratch_operands = 0 : i64, tpu.core_type = #tpu.core_type<tc>, window_params = [{transform_indices = @transform_0, window_bounds = array<i64: 256, 8>}, {pipeline_mode = #tpu.pipeline_mode<synchronous>, transform_indices = @transform_1, window_bounds = array<i64: 1, 8>}, {pipeline_mode = #tpu.pipeline_mode<synchronous>, transform_indices = @transform_2, window_bounds = array<i64: 1, 8>}, {pipeline_mode = #tpu.pipeline_mode<synchronous>, transform_indices = @transform_3, window_bounds = array<i64: 8, 32>}, {pipeline_mode = #tpu.pipeline_mode<synchronous>, transform_indices = @transform_4, window_bounds = array<i64: 1, 32>}, {pipeline_mode = #tpu.pipeline_mode<synchronous>, transform_indices = @transform_5, window_bounds = array<i64: 1, 32>}]} {
    %c0_i32 = arith.constant 0 : i32
    %0 = arith.cmpi eq, %arg0, %c0_i32 : i32
    %1 = arith.extui %0 : i1 to i32
    %c0_i32_0 = arith.constant 0 : i32
    %2 = arith.cmpi ne, %1, %c0_i32_0 : i32
    scf.if %2 {
      %cst_19 = arith.constant 0.000000e+00 : f32
      %26 = vector.broadcast %cst_19 : f32 to vector<1x32xf32>
      %c0_20 = arith.constant 0 : index
      %c0_21 = arith.constant 0 : index
      %27 = vector.load %arg5[%c0_20, %c0_21] : memref<1x32xf32, #tpu.memory_space<vmem>>, vector<1x32xf32>
      tpu.vector_store %arg5[%c0_20, %c0_21], %26 {strides = array<i32>} : memref<1x32xf32, #tpu.memory_space<vmem>>, vector<1x32xf32>,
      %cst_22 = arith.constant 0.000000e+00 : f32
      %28 = vector.broadcast %cst_22 : f32 to vector<1x32xf32>
      %c0_23 = arith.constant 0 : index
      %c0_24 = arith.constant 0 : index
      %29 = vector.load %arg6[%c0_23, %c0_24] : memref<1x32xf32, #tpu.memory_space<vmem>>, vector<1x32xf32>
      tpu.vector_store %arg6[%c0_23, %c0_24], %28 {strides = array<i32>} : memref<1x32xf32, #tpu.memory_space<vmem>>, vector<1x32xf32>,
    } else {
    }
    %c0 = arith.constant 0 : index
    %c0_1 = arith.constant 0 : index
    %3 = vector.load %arg1[%c0, %c0_1] : memref<256x8xf32, #tpu.memory_space<vmem>>, vector<256x8xf32>
    %c0_2 = arith.constant 0 : index
    %c0_3 = arith.constant 0 : index
    %4 = vector.load %arg2[%c0_2, %c0_3] : memref<1x8xf32, #tpu.memory_space<vmem>>, vector<1x8xf32>
    %5 = vector.broadcast %4 : vector<1x8xf32> to vector<256x8xf32>
    %6 = arith.mulf %3, %5 : vector<256x8xf32>
    %c0_4 = arith.constant 0 : index
    %c0_5 = arith.constant 0 : index
    %7 = vector.load %arg3[%c0_4, %c0_5] : memref<1x8xf32, #tpu.memory_space<vmem>>, vector<1x8xf32>
    %8 = vector.broadcast %7 : vector<1x8xf32> to vector<256x8xf32>
    %9 = arith.addf %6, %8 : vector<256x8xf32>
    %cst = arith.constant 0.000000e+00 : f32
    %10 = vector.broadcast %cst : f32 to vector<256x8xf32>
    %11 = arith.maximumf %9, %10 : vector<256x8xf32>
    %12 = arith.truncf %11 : vector<256x8xf32> to vector<256x8xbf16>
    %c0_6 = arith.constant 0 : index
    %c0_7 = arith.constant 0 : index
    %13 = vector.load %arg4[%c0_6, %c0_7] : memref<8x32xbf16, #tpu.memory_space<vmem>>, vector<8x32xbf16>
    %cst_8 = arith.constant dense<0.000000e+00> : vector<256x32xf32>
    %14 = tpu.matmul %12, %13, %cst_8 {dimension_numbers = #tpu.dot_dimension_numbers<[1], [0], [0], [1], [0, 0, 1, 1], [], []>} : vector<256x8xbf16>, vector<8x32xbf16>, vector<256x32xf32> -> vector<256x32xf32>
    %c0_9 = arith.constant 0 : index
    %c0_10 = arith.constant 0 : index
    %15 = vector.load %arg5[%c0_9, %c0_10] : memref<1x32xf32, #tpu.memory_space<vmem>>, vector<1x32xf32>
    %cst_11 = arith.constant dense<0.000000e+00> : vector<32xf32>
    %16 = vector.multi_reduction <add>, %14, %cst_11 [0] : vector<256x32xf32> to vector<32xf32>
    %17 = vector.shape_cast %16 : vector<32xf32> to vector<1x32xf32>
    %18 = arith.addf %15, %17 : vector<1x32xf32>
    %c0_12 = arith.constant 0 : index
    %c0_13 = arith.constant 0 : index
    %19 = vector.load %arg5[%c0_12, %c0_13] : memref<1x32xf32, #tpu.memory_space<vmem>>, vector<1x32xf32>
    tpu.vector_store %arg5[%c0_12, %c0_13], %18 {strides = array<i32>} : memref<1x32xf32, #tpu.memory_space<vmem>>, vector<1x32xf32>,
    %c0_14 = arith.constant 0 : index
    %c0_15 = arith.constant 0 : index
    %20 = vector.load %arg6[%c0_14, %c0_15] : memref<1x32xf32, #tpu.memory_space<vmem>>, vector<1x32xf32>
    %21 = arith.mulf %14, %14 : vector<256x32xf32>
    %cst_16 = arith.constant dense<0.000000e+00> : vector<32xf32>
    %22 = vector.multi_reduction <add>, %21, %cst_16 [0] : vector<256x32xf32> to vector<32xf32>
    %23 = vector.shape_cast %22 : vector<32xf32> to vector<1x32xf32>
    %24 = arith.addf %20, %23 : vector<1x32xf32>
    %c0_17 = arith.constant 0 : index
    %c0_18 = arith.constant 0 : index
    %25 = vector.load %arg6[%c0_17, %c0_18] : memref<1x32xf32, #tpu.memory_space<vmem>>, vector<1x32xf32>
    tpu.vector_store %arg6[%c0_17, %c0_18], %24 {strides = array<i32>} : memref<1x32xf32, #tpu.memory_space<vmem>>, vector<1x32xf32>,
    return
  }
  func.func @transform_0(%arg0: i32) -> (i32, i32) {
    %c0_i32 = arith.constant 0 : i32
    %c0_i32_0 = arith.constant 0 : i32
    return %arg0, %c0_i32 : i32, i32
  }
  func.func @transform_1(%arg0: i32) -> (i32, i32) {
    %c0_i32 = arith.constant 0 : i32
    %c0_i32_0 = arith.constant 0 : i32
    %c0_i32_1 = arith.constant 0 : i32
    return %c0_i32, %c0_i32_0 : i32, i32
  }
  func.func @transform_2(%arg0: i32) -> (i32, i32) {
    %c0_i32 = arith.constant 0 : i32
    %c0_i32_0 = arith.constant 0 : i32
    %c0_i32_1 = arith.constant 0 : i32
    return %c0_i32, %c0_i32_0 : i32, i32
  }
  func.func @transform_3(%arg0: i32) -> (i32, i32) {
    %c0_i32 = arith.constant 0 : i32
    %c0_i32_0 = arith.constant 0 : i32
    %c0_i32_1 = arith.constant 0 : i32
    return %c0_i32, %c0_i32_0 : i32, i32
  }
  func.func @transform_4(%arg0: i32) -> (i32, i32) {
    %c0_i32 = arith.constant 0 : i32
    %c0_i32_0 = arith.constant 0 : i32
    %c0_i32_1 = arith.constant 0 : i32
    return %c0_i32, %c0_i32_0 : i32, i32
  }
  func.func @transform_5(%arg0: i32) -> (i32, i32) {
    %c0_i32 = arith.constant 0 : i32
    %c0_i32_0 = arith.constant 0 : i32
    %c0_i32_1 = arith.constant 0 : i32
    return %c0_i32, %c0_i32_0 : i32, i32
  }
}

module attributes {stable_mosaic.version = 11 : i64} {
  func.func @final_kernel(%arg0: i32, %arg1: memref<256x8xf32, #tpu.memory_space<vmem>>, %arg2: memref<256x16xbf16, #tpu.memory_space<vmem>>, %arg3: memref<1x8xf32, #tpu.memory_space<vmem>>, %arg4: memref<1x8xf32, #tpu.memory_space<vmem>>, %arg5: memref<8x32xbf16, #tpu.memory_space<vmem>>, %arg6: memref<1x32xf32, #tpu.memory_space<vmem>>, %arg7: memref<1x32xf32, #tpu.memory_space<vmem>>, %arg8: memref<16x32xbf16, #tpu.memory_space<vmem>>, %arg9: memref<1x32xf32, #tpu.memory_space<vmem>>, %arg10: memref<1x32xf32, #tpu.memory_space<vmem>>, %arg11: memref<256x32xf32, #tpu.memory_space<vmem>>) attributes {dimension_semantics = [#tpu.dimension_semantics<parallel>], iteration_bounds = array<i64: 2>, scalar_prefetch = 0 : i64, scratch_operands = 0 : i64, tpu.core_type = #tpu.core_type<tc>, window_params = [{transform_indices = @transform_0, window_bounds = array<i64: 256, 8>}, {transform_indices = @transform_1, window_bounds = array<i64: 256, 16>}, {pipeline_mode = #tpu.pipeline_mode<synchronous>, transform_indices = @transform_2, window_bounds = array<i64: 1, 8>}, {pipeline_mode = #tpu.pipeline_mode<synchronous>, transform_indices = @transform_3, window_bounds = array<i64: 1, 8>}, {pipeline_mode = #tpu.pipeline_mode<synchronous>, transform_indices = @transform_4, window_bounds = array<i64: 8, 32>}, {pipeline_mode = #tpu.pipeline_mode<synchronous>, transform_indices = @transform_5, window_bounds = array<i64: 1, 32>}, {pipeline_mode = #tpu.pipeline_mode<synchronous>, transform_indices = @transform_6, window_bounds = array<i64: 1, 32>}, {pipeline_mode = #tpu.pipeline_mode<synchronous>, transform_indices = @transform_7, window_bounds = array<i64: 16, 32>}, {pipeline_mode = #tpu.pipeline_mode<synchronous>, transform_indices = @transform_8, window_bounds = array<i64: 1, 32>}, {pipeline_mode = #tpu.pipeline_mode<synchronous>, transform_indices = @transform_9, window_bounds = array<i64: 1, 32>}, {transform_indices = @transform_10, window_bounds = array<i64: 256, 32>}]} {
    %c0 = arith.constant 0 : index
    %c0_0 = arith.constant 0 : index
    %0 = vector.load %arg1[%c0, %c0_0] : memref<256x8xf32, #tpu.memory_space<vmem>>, vector<256x8xf32>
    %c0_1 = arith.constant 0 : index
    %c0_2 = arith.constant 0 : index
    %1 = vector.load %arg3[%c0_1, %c0_2] : memref<1x8xf32, #tpu.memory_space<vmem>>, vector<1x8xf32>
    %2 = vector.broadcast %1 : vector<1x8xf32> to vector<256x8xf32>
    %3 = arith.mulf %0, %2 : vector<256x8xf32>
    %c0_3 = arith.constant 0 : index
    %c0_4 = arith.constant 0 : index
    %4 = vector.load %arg4[%c0_3, %c0_4] : memref<1x8xf32, #tpu.memory_space<vmem>>, vector<1x8xf32>
    %5 = vector.broadcast %4 : vector<1x8xf32> to vector<256x8xf32>
    %6 = arith.addf %3, %5 : vector<256x8xf32>
    %cst = arith.constant 0.000000e+00 : f32
    %7 = vector.broadcast %cst : f32 to vector<256x8xf32>
    %8 = arith.maximumf %6, %7 : vector<256x8xf32>
    %9 = arith.truncf %8 : vector<256x8xf32> to vector<256x8xbf16>
    %c0_5 = arith.constant 0 : index
    %c0_6 = arith.constant 0 : index
    %10 = vector.load %arg5[%c0_5, %c0_6] : memref<8x32xbf16, #tpu.memory_space<vmem>>, vector<8x32xbf16>
    %cst_7 = arith.constant dense<0.000000e+00> : vector<256x32xf32>
    %11 = tpu.matmul %9, %10, %cst_7 {dimension_numbers = #tpu.dot_dimension_numbers<[1], [0], [0], [1], [0, 0, 1, 1], [], []>} : vector<256x8xbf16>, vector<8x32xbf16>, vector<256x32xf32> -> vector<256x32xf32>
    %c0_8 = arith.constant 0 : index
    %c0_9 = arith.constant 0 : index
    %12 = vector.load %arg6[%c0_8, %c0_9] : memref<1x32xf32, #tpu.memory_space<vmem>>, vector<1x32xf32>
    %13 = vector.broadcast %12 : vector<1x32xf32> to vector<256x32xf32>
    %14 = arith.mulf %11, %13 : vector<256x32xf32>
    %c0_10 = arith.constant 0 : index
    %c0_11 = arith.constant 0 : index
    %15 = vector.load %arg7[%c0_10, %c0_11] : memref<1x32xf32, #tpu.memory_space<vmem>>, vector<1x32xf32>
    %16 = vector.broadcast %15 : vector<1x32xf32> to vector<256x32xf32>
    %17 = arith.addf %14, %16 : vector<256x32xf32>
    %c0_12 = arith.constant 0 : index
    %c0_13 = arith.constant 0 : index
    %18 = vector.load %arg2[%c0_12, %c0_13] : memref<256x16xbf16, #tpu.memory_space<vmem>>, vector<256x16xbf16>
    %c0_14 = arith.constant 0 : index
    %c0_15 = arith.constant 0 : index
    %19 = vector.load %arg8[%c0_14, %c0_15] : memref<16x32xbf16, #tpu.memory_space<vmem>>, vector<16x32xbf16>
    %cst_16 = arith.constant dense<0.000000e+00> : vector<256x32xf32>
    %20 = tpu.matmul %18, %19, %cst_16 {dimension_numbers = #tpu.dot_dimension_numbers<[1], [0], [0], [1], [0, 0, 1, 1], [], []>} : vector<256x16xbf16>, vector<16x32xbf16>, vector<256x32xf32> -> vector<256x32xf32>
    %c0_17 = arith.constant 0 : index
    %c0_18 = arith.constant 0 : index
    %21 = vector.load %arg9[%c0_17, %c0_18] : memref<1x32xf32, #tpu.memory_space<vmem>>, vector<1x32xf32>
    %22 = vector.broadcast %21 : vector<1x32xf32> to vector<256x32xf32>
    %23 = arith.mulf %20, %22 : vector<256x32xf32>
    %c0_19 = arith.constant 0 : index
    %c0_20 = arith.constant 0 : index
    %24 = vector.load %arg10[%c0_19, %c0_20] : memref<1x32xf32, #tpu.memory_space<vmem>>, vector<1x32xf32>
    %25 = vector.broadcast %24 : vector<1x32xf32> to vector<256x32xf32>
    %26 = arith.addf %23, %25 : vector<256x32xf32>
    %27 = arith.addf %17, %26 : vector<256x32xf32>
    %cst_21 = arith.constant 0.000000e+00 : f32
    %28 = vector.broadcast %cst_21 : f32 to vector<256x32xf32>
    %29 = arith.maximumf %27, %28 : vector<256x32xf32>
    %c0_22 = arith.constant 0 : index
    %c0_23 = arith.constant 0 : index
    %30 = vector.load %arg11[%c0_22, %c0_23] : memref<256x32xf32, #tpu.memory_space<vmem>>, vector<256x32xf32>
    tpu.vector_store %arg11[%c0_22, %c0_23], %29 {strides = array<i32>} : memref<256x32xf32, #tpu.memory_space<vmem>>, vector<256x32xf32>,
    return
  }
  func.func @transform_0(%arg0: i32) -> (i32, i32) {
    %c0_i32 = arith.constant 0 : i32
    %c0_i32_0 = arith.constant 0 : i32
    return %arg0, %c0_i32 : i32, i32
  }
  func.func @transform_1(%arg0: i32) -> (i32, i32) {
    %c0_i32 = arith.constant 0 : i32
    %c0_i32_0 = arith.constant 0 : i32
    return %arg0, %c0_i32 : i32, i32
  }
  func.func @transform_2(%arg0: i32) -> (i32, i32) {
    %c0_i32 = arith.constant 0 : i32
    %c0_i32_0 = arith.constant 0 : i32
    %c0_i32_1 = arith.constant 0 : i32
    return %c0_i32, %c0_i32_0 : i32, i32
  }
  func.func @transform_3(%arg0: i32) -> (i32, i32) {
    %c0_i32 = arith.constant 0 : i32
    %c0_i32_0 = arith.constant 0 : i32
    %c0_i32_1 = arith.constant 0 : i32
    return %c0_i32, %c0_i32_0 : i32, i32
  }
  func.func @transform_4(%arg0: i32) -> (i32, i32) {
    %c0_i32 = arith.constant 0 : i32
    %c0_i32_0 = arith.constant 0 : i32
    %c0_i32_1 = arith.constant 0 : i32
    return %c0_i32, %c0_i32_0 : i32, i32
  }
  func.func @transform_5(%arg0: i32) -> (i32, i32) {
    %c0_i32 = arith.constant 0 : i32
    %c0_i32_0 = arith.constant 0 : i32
    %c0_i32_1 = arith.constant 0 : i32
    return %c0_i32, %c0_i32_0 : i32, i32
  }
  func.func @transform_6(%arg0: i32) -> (i32, i32) {
    %c0_i32 = arith.constant 0 : i32
    %c0_i32_0 = arith.constant 0 : i32
    %c0_i32_1 = arith.constant 0 : i32
    return %c0_i32, %c0_i32_0 : i32, i32
  }
  func.func @transform_7(%arg0: i32) -> (i32, i32) {
    %c0_i32 = arith.constant 0 : i32
    %c0_i32_0 = arith.constant 0 : i32
    %c0_i32_1 = arith.constant 0 : i32
    return %c0_i32, %c0_i32_0 : i32, i32
  }
  func.func @transform_8(%arg0: i32) -> (i32, i32) {
    %c0_i32 = arith.constant 0 : i32
    %c0_i32_0 = arith.constant 0 : i32
    %c0_i32_1 = arith.constant 0 : i32
    return %c0_i32, %c0_i32_0 : i32, i32
  }
  func.func @transform_9(%arg0: i32) -> (i32, i32) {
    %c0_i32 = arith.constant 0 : i32
    %c0_i32_0 = arith.constant 0 : i32
    %c0_i32_1 = arith.constant 0 : i32
    return %c0_i32, %c0_i32_0 : i32, i32
  }
  func.func @transform_10(%arg0: i32) -> (i32, i32) {
    %c0_i32 = arith.constant 0 : i32
    %c0_i32_0 = arith.constant 0 : i32
    return %arg0, %c0_i32 : i32, i32
  }
}

</mosaic_0001>

<llo_original>
// kernel: bottleneck_forward.6
$region0: #{bottleneck_forward.6}
  #allocation0 [shape = 'u32[]', space=smem, size = 0x4, offset = 0x4, fixed_abs, tag = 'smem constant byte address 0x4 - core index']
  #allocation1 [shape = 'u32[144,128]{1,0:T(1,128)}', space=vmem, size = 0x12000, scoped, tag = 'internal scratch']
  %s0 = inlined_call_operand.vmem [shape: f32[512,8], index: 0, kind: input, shape index: {}]
  %s1 = inlined_call_operand.vmem [shape: f32[1,8], index: 1, kind: input, shape index: {}]
  %s2 = inlined_call_operand.vmem [shape: f32[1,8], index: 2, kind: input, shape index: {}]
  %s3 = inlined_call_operand.vmem [shape: bf16[8,32], index: 3, kind: input, shape index: {}]
  %s4 = inlined_call_operand.vmem [shape: f32[1,32], index: 4, kind: output, shape index: {0}]
  %s5 = inlined_call_operand.vmem [shape: f32[1,32], index: 5, kind: output, shape index: {1}]
  %6 = xla_tuple %s4, %s5
  %s7 = sld [smem:[#allocation0]]
  $region61: #{bottleneck_forward.6} parent=0
    _
  %s9 = ssub.s32 1, %s7
  %s10 = scalar_select 0, %s9, %s7
  loop: start=0, step=1, limit=4
  $region2: #{bottleneck_forward.6} parent=0 // loop_pre_header
    _
  $region3: #{bottleneck_forward.6} parent=0 // loop_header
    %s12 = sphi 0, %s16
    %p13 = scmp.ge.s32.totalorder %s12, 4
    %s22 = sphi 0, %s24
    %s25 = sphi 0, %s22
    %s26 = sphi 0, %s25
    %s42 = sphi 0, %s26
    %s46 = sphi 0, %s46
    %s48 = sphi 0, %s46
    %s49 = sphi 0, %s48
    %s63 = sphi 0, %s49
    %s67 = sphi 0, %s67
    %s69 = sphi 0, %s67
    %s70 = sphi 0, %s69
    %s84 = sphi 0, %s70
    %s88 = sphi 0, %s88
    %s90 = sphi 0, %s88
    %s91 = sphi 0, %s90
    %s105 = sphi 0, %s91
    %s109 = sphi 0, %s109
    %s111 = sphi 0, %s109
    %s112 = sphi 0, %s111
    %s126 = sphi 0, %s112
    %s130 = sphi 0, %s130
    %s132 = sphi 0, %s130
    %s133 = sphi 0, %s132
    %s147 = sphi 0, %s133
  $region4: #{bottleneck_forward.6} parent=0 // loop_header_branch
    %15 = sbr.rel (%p13) target = $region8
  $region5: #{bottleneck_forward.6} parent=0 // loop_body
    %s17 = ssub.s32 %s12, 1
    %s18 = ssub.s32 %s12, 2
    %s19 = sadd.s32 %s12, 1
    %s20 = ssub.s32 %s12, %s19
    %p21 = scmp.eq.s32.totalorder %s20, 0
    %s23 = sadd.s32 %s22, 1
    %s24 = scalar_select %p21, %s22, %s23
    %p27 = pneg %p21
    %p28 = scmp.eq.s32.totalorder %s12, 1
    %p29 = por %p27, %p28
    %p30 = scmp.ne.s32.totalorder %s22, %s25
    %p31 = scmp.eq.s32.totalorder %s12, 0
    %p32 = por %p30, %p31
    %p33 = scmp.ne.s32.totalorder %s22, %s25
    %p34 = scmp.eq.s32.totalorder %s17, 1
    %p35 = por %p33, %p34
    %p36 = scmp.ne.s32.totalorder %s25, %s26
    %p37 = scmp.eq.s32.totalorder %s17, 0
    %p38 = por %p36, %p37
    %p39 = scmp.ne.s32.totalorder %s25, %s26
    %p40 = scmp.eq.s32.totalorder %s18, 1
    %p41 = por %p39, %p40
    %p43 = scmp.ne.s32.totalorder %s26, %s42
    %p44 = scmp.eq.s32.totalorder %s18, 0
    %p45 = por %p43, %p44
    %s47 = sadd.s32 %s46, 1
    %p50 = scmp.eq.s32.totalorder %s12, 1
    %p51 = scmp.ne.s32.totalorder %s46, %s48
    %p52 = scmp.eq.s32.totalorder %s12, 0
    %p53 = por %p51, %p52
    %p54 = scmp.ne.s32.totalorder %s46, %s48
    %p55 = scmp.eq.s32.totalorder %s17, 1
    %p56 = por %p54, %p55
    %p57 = scmp.ne.s32.totalorder %s48, %s49
    %p58 = scmp.eq.s32.totalorder %s17, 0
    %p59 = por %p57, %p58
    %p60 = scmp.ne.s32.totalorder %s48, %s49
    %p61 = scmp.eq.s32.totalorder %s18, 1
    %p62 = por %p60, %p61
    %p64 = scmp.ne.s32.totalorder %s49, %s63
    %p65 = scmp.eq.s32.totalorder %s18, 0
    %p66 = por %p64, %p65
    %s68 = sadd.s32 %s67, 1
    %p71 = scmp.eq.s32.totalorder %s12, 1
    %p72 = scmp.ne.s32.totalorder %s67, %s69
    %p73 = scmp.eq.s32.totalorder %s12, 0
    %p74 = por %p72, %p73
    %p75 = scmp.ne.s32.totalorder %s67, %s69
    %p76 = scmp.eq.s32.totalorder %s17, 1
    %p77 = por %p75, %p76
    %p78 = scmp.ne.s32.totalorder %s69, %s70
    %p79 = scmp.eq.s32.totalorder %s17, 0
    %p80 = por %p78, %p79
    %p81 = scmp.ne.s32.totalorder %s69, %s70
    %p82 = scmp.eq.s32.totalorder %s18, 1
    %p83 = por %p81, %p82
    %p85 = scmp.ne.s32.totalorder %s70, %s84
    %p86 = scmp.eq.s32.totalorder %s18, 0
    %p87 = por %p85, %p86
    %s89 = sadd.s32 %s88, 1
    %p92 = scmp.eq.s32.totalorder %s12, 1
    %p93 = scmp.ne.s32.totalorder %s88, %s90
    %p94 = scmp.eq.s32.totalorder %s12, 0
    %p95 = por %p93, %p94
    %p96 = scmp.ne.s32.totalorder %s88, %s90
    %p97 = scmp.eq.s32.totalorder %s17, 1
    %p98 = por %p96, %p97
    %p99 = scmp.ne.s32.totalorder %s90, %s91
    %p100 = scmp.eq.s32.totalorder %s17, 0
    %p101 = por %p99, %p100
    %p102 = scmp.ne.s32.totalorder %s90, %s91
    %p103 = scmp.eq.s32.totalorder %s18, 1
    %p104 = por %p102, %p103
    %p106 = scmp.ne.s32.totalorder %s91, %s105
    %p107 = scmp.eq.s32.totalorder %s18, 0
    %p108 = por %p106, %p107
    %s110 = sadd.s32 %s109, 1
    %p113 = scmp.eq.s32.totalorder %s12, 1
    %p114 = scmp.ne.s32.totalorder %s109, %s111
    %p115 = scmp.eq.s32.totalorder %s12, 0
    %p116 = por %p114, %p115
    %p117 = scmp.ne.s32.totalorder %s109, %s111
    %p118 = scmp.eq.s32.totalorder %s17, 1
    %p119 = por %p117, %p118
    %p120 = scmp.ne.s32.totalorder %s111, %s112
    %p121 = scmp.eq.s32.totalorder %s17, 0
    %p122 = por %p120, %p121
    %p123 = scmp.ne.s32.totalorder %s111, %s112
    %p124 = scmp.eq.s32.totalorder %s18, 1
    %p125 = por %p123, %p124
    %p127 = scmp.ne.s32.totalorder %s112, %s126
    %p128 = scmp.eq.s32.totalorder %s18, 0
    %p129 = por %p127, %p128
    %s131 = sadd.s32 %s130, 1
    %p134 = scmp.eq.s32.totalorder %s12, 1
    %p135 = scmp.ne.s32.totalorder %s130, %s132
    %p136 = scmp.eq.s32.totalorder %s12, 0
    %p137 = por %p135, %p136
    %p138 = scmp.ne.s32.totalorder %s130, %s132
    %p139 = scmp.eq.s32.totalorder %s17, 1
    %p140 = por %p138, %p139
    %p141 = scmp.ne.s32.totalorder %s132, %s133
    %p142 = scmp.eq.s32.totalorder %s17, 0
    %p143 = por %p141, %p142
    %p144 = scmp.ne.s32.totalorder %s132, %s133
    %p145 = scmp.eq.s32.totalorder %s18, 1
    %p146 = por %p144, %p145
    %p148 = scmp.ne.s32.totalorder %s133, %s147
    %p149 = scmp.eq.s32.totalorder %s18, 0
    %p150 = por %p148, %p149
    %p151 = scmp.le.s32.totalorder 1, %s12
    %p152 = scmp.lt.s32.totalorder %s12, 3
    %p153 = pnand %p151, %p152
    %p154 = pneg %p153
    // Predicated region
    $region9: #{bottleneck_forward.6} parent=5 // pred_check
      _
    $region10: #{bottleneck_forward.6} parent=5 // pred_check_branch
      %156 = sbr.rel (%p153) target = $region12
    $region11: #{bottleneck_forward.6} parent=5 // pred_region
      %s157 = ssub.s32 %s12, 1
      // Predicated region
      $region13: #{bottleneck_forward.6} parent=11 // pred_check
        %p158 = pneg %p59
      $region14: #{bottleneck_forward.6} parent=11 // pred_check_branch
        %160 = sbr.rel (%p158) target = $region16
      $region15: #{bottleneck_forward.6} parent=11 // pred_region
        _
      $region16: #{bottleneck_forward.6} parent=11 // pred_fallthru
        _
      // Predicated region
      $region17: #{bottleneck_forward.6} parent=11 // pred_check
        %p161 = pneg %p80
      $region18: #{bottleneck_forward.6} parent=11 // pred_check_branch
        %163 = sbr.rel (%p161) target = $region20
      $region19: #{bottleneck_forward.6} parent=11 // pred_region
        _
      $region20: #{bottleneck_forward.6} parent=11 // pred_fallthru
        _
      // Predicated region
      $region21: #{bottleneck_forward.6} parent=11 // pred_check
        %p164 = pneg %p101
      $region22: #{bottleneck_forward.6} parent=11 // pred_check_branch
        %166 = sbr.rel (%p164) target = $region24
      $region23: #{bottleneck_forward.6} parent=11 // pred_region
        _
      $region24: #{bottleneck_forward.6} parent=11 // pred_fallthru
        _
    $region12: #{bottleneck_forward.6} parent=5 // pred_fallthru
      _
    %p167 = scmp.lt.s32.totalorder %s12, 2
    // Predicated region
    $region25: #{bottleneck_forward.6} parent=5 // pred_check
      %p168 = pneg %p167
    $region26: #{bottleneck_forward.6} parent=5 // pred_check_branch
      %170 = sbr.rel (%p168) target = $region28
    $region27: #{bottleneck_forward.6} parent=5 // pred_region
      // Predicated region
      $region29: #{bottleneck_forward.6} parent=27 // pred_check
        %p171 = pneg %p32
      $region30: #{bottleneck_forward.6} parent=27 // pred_check_branch
        %173 = sbr.rel (%p171) target = $region32
      $region31: #{bottleneck_forward.6} parent=27 // pred_region
        %s174 = smul.u32 32, %s12
        %p175 = scmp.lt.s32.totalorder %s174, 63
        %s176 = scalar_select %p175, %s174, 63
        %s177 = smul.addr %s176, 8
        %s178 = scalar_lea.vmem %s0, %s177
        %s179 = smul.u32 32, %s12
      $region32: #{bottleneck_forward.6} parent=27 // pred_fallthru
        _
    $region28: #{bottleneck_forward.6} parent=5 // pred_fallthru
      _
    %p180 = scmp.le.s32.totalorder 1, %s12
    %p181 = scmp.lt.s32.totalorder %s12, 3
    %p182 = pnand %p180, %p181
    %p183 = pneg %p182
    // Predicated region
    $region33: #{bottleneck_forward.6} parent=5 // pred_check
      _
    $region34: #{bottleneck_forward.6} parent=5 // pred_check_branch
      %185 = sbr.rel (%p182) target = $region36
    $region35: #{bottleneck_forward.6} parent=5 // pred_region
      %s186 = ssub.s32 %s12, 1
      %s187 = smul.u32 32, %s17
      %p188 = scmp.lt.s32.totalorder %s187, 63
      %s189 = scalar_select %p188, %s187, 63
      %s190 = smul.addr %s189, 8
      %s191 = scalar_lea.vmem %s0, %s190
      %p192 = pneg %p38
      %p193 = pneg %p35
      %p194 = pneg %p59
      %p195 = pneg %p56
      %p196 = pneg %p80
      %p197 = pneg %p77
      %p198 = pneg %p101
      %p199 = pneg %p98
      %p200 = pneg %p122
      %p201 = pneg %p119
      %p202 = pneg %p143
      %p203 = pneg %p140
      %s204 = smul.u32 32, %s17
      %p205 = scmp.lt.s32.totalorder %s204, 63
      %s206 = scalar_select %p205, %s204, 63
      %s207 = smul.addr %s206, 8
      %s208 = scalar_lea.vmem %s0, %s207
      %s209 = smul.u32 32, %s17
      %p211 = scmp.eq.s32.totalorder %s17, 0
      // Predicated region
      $region37: #{bottleneck_forward.6} parent=35 // pred_check
        %p212 = pneg %p211
      $region38: #{bottleneck_forward.6} parent=35 // pred_check_branch
        %214 = sbr.rel (%p212) target = $region40
      $region39: #{bottleneck_forward.6} parent=35 // pred_region
        %vm215 = vcmask 253952
        %216 = vst.msk [vmem:[%s4] sm:$0x1] %vm215, 0.0
        %217 = vst.msk [vmem:[%s5] sm:$0x1] %vm215, 0.0
      $region40: #{bottleneck_forward.6} parent=35 // pred_fallthru
        _
      %v218 = vld [vmem:[%s208] sm:$0xff]
      %v219 = vld [vmem:[%s208 + $0x8] sm:$0xff]
      %v220 = vld [vmem:[%s208 + $0x10] sm:$0xff]
      %v221 = vld [vmem:[%s208 + $0x18] sm:$0xff]
      %v222 = vld [vmem:[%s208 + $0x20] sm:$0xff]
      %v223 = vld [vmem:[%s208 + $0x28] sm:$0xff]
      %v224 = vld [vmem:[%s208 + $0x30] sm:$0xff]
      %v225 = vld [vmem:[%s208 + $0x38] sm:$0xff]
      %v226 = vld [vmem:[%s208 + $0x40] sm:$0xff]
      %v227 = vld [vmem:[%s208 + $0x48] sm:$0xff]
      %v228 = vld [vmem:[%s208 + $0x50] sm:$0xff]
      %v229 = vld [vmem:[%s208 + $0x58] sm:$0xff]
      %v230 = vld [vmem:[%s208 + $0x60] sm:$0xff]
      %v231 = vld [vmem:[%s208 + $0x68] sm:$0xff]
      %v232 = vld [vmem:[%s208 + $0x70] sm:$0xff]
      %v233 = vld [vmem:[%s208 + $0x78] sm:$0xff]
      %v234 = vld [vmem:[%s208 + $0x80] sm:$0xff]
      %v235 = vld [vmem:[%s208 + $0x88] sm:$0xff]
      %v236 = vld [vmem:[%s208 + $0x90] sm:$0xff]
      %v237 = vld [vmem:[%s208 + $0x98] sm:$0xff]
      %v238 = vld [vmem:[%s208 + $0xa0] sm:$0xff]
      %v239 = vld [vmem:[%s208 + $0xa8] sm:$0xff]
      %v240 = vld [vmem:[%s208 + $0xb0] sm:$0xff]
      %v241 = vld [vmem:[%s208 + $0xb8] sm:$0xff]
      %v242 = vld [vmem:[%s208 + $0xc0] sm:$0xff]
      %v243 = vld [vmem:[%s208 + $0xc8] sm:$0xff]
      %v244 = vld [vmem:[%s208 + $0xd0] sm:$0xff]
      %v245 = vld [vmem:[%s208 + $0xd8] sm:$0xff]
      %v246 = vld [vmem:[%s208 + $0xe0] sm:$0xff]
      %v247 = vld [vmem:[%s208 + $0xe8] sm:$0xff]
      %v248 = vld [vmem:[%s208 + $0xf0] sm:$0xff]
      %v249 = vld [vmem:[%s208 + $0xf8] sm:$0xff]
      %v250 = vld [vmem:[%s1] sm:$0x1]
      %v252 = vlaneseq
      %v253 = vshrl.u32 %v252, 7
      %v254 = vsub.s32 0, %v253
      %v255 = vrot.slane %v250, %v254
      %v257 = vmul.f32 %v218, %v255
      %v258 = vmul.f32 %v219, %v255
      %v259 = vmul.f32 %v220, %v255
      %v260 = vmul.f32 %v221, %v255
      %v261 = vmul.f32 %v222, %v255
      %v262 = vmul.f32 %v223, %v255
      %v263 = vmul.f32 %v224, %v255
      %v264 = vmul.f32 %v225, %v255
      %v265 = vmul.f32 %v226, %v255
      %v266 = vmul.f32 %v227, %v255
      %v267 = vmul.f32 %v228, %v255
      %v268 = vmul.f32 %v229, %v255
      %v269 = vmul.f32 %v230, %v255
      %v270 = vmul.f32 %v231, %v255
      %v271 = vmul.f32 %v232, %v255
      %v272 = vmul.f32 %v233, %v255
      %v273 = vmul.f32 %v234, %v255
      %v274 = vmul.f32 %v235, %v255
      %v275 = vmul.f32 %v236, %v255
      %v276 = vmul.f32 %v237, %v255
      %v277 = vmul.f32 %v238, %v255
      %v278 = vmul.f32 %v239, %v255
      %v279 = vmul.f32 %v240, %v255
      %v280 = vmul.f32 %v241, %v255
      %v281 = vmul.f32 %v242, %v255
      %v282 = vmul.f32 %v243, %v255
      %v283 = vmul.f32 %v244, %v255
      %v284 = vmul.f32 %v245, %v255
      %v285 = vmul.f32 %v246, %v255
      %v286 = vmul.f32 %v247, %v255
      %v287 = vmul.f32 %v248, %v255
      %v288 = vmul.f32 %v249, %v255
      %v289 = vld [vmem:[%s2] sm:$0x1]
      %v291 = vlaneseq
      %v292 = vshrl.u32 %v291, 7
      %v293 = vsub.s32 0, %v292
      %v294 = vrot.slane %v289, %v293
      %v296 = vadd.f32 %v257, %v294
      %v297 = vadd.f32 %v258, %v294
      %v298 = vadd.f32 %v259, %v294
      %v299 = vadd.f32 %v260, %v294
      %v300 = vadd.f32 %v261, %v294
      %v301 = vadd.f32 %v262, %v294
      %v302 = vadd.f32 %v263, %v294
      %v303 = vadd.f32 %v264, %v294
      %v304 = vadd.f32 %v265, %v294
      %v305 = vadd.f32 %v266, %v294
      %v306 = vadd.f32 %v267, %v294
      %v307 = vadd.f32 %v268, %v294
      %v308 = vadd.f32 %v269, %v294
      %v309 = vadd.f32 %v270, %v294
      %v310 = vadd.f32 %v271, %v294
      %v311 = vadd.f32 %v272, %v294
      %v312 = vadd.f32 %v273, %v294
      %v313 = vadd.f32 %v274, %v294
      %v314 = vadd.f32 %v275, %v294
      %v315 = vadd.f32 %v276, %v294
      %v316 = vadd.f32 %v277, %v294
      %v317 = vadd.f32 %v278, %v294
      %v318 = vadd.f32 %v279, %v294
      %v319 = vadd.f32 %v280, %v294
      %v320 = vadd.f32 %v281, %v294
      %v321 = vadd.f32 %v282, %v294
      %v322 = vadd.f32 %v283, %v294
      %v323 = vadd.f32 %v284, %v294
      %v324 = vadd.f32 %v285, %v294
      %v325 = vadd.f32 %v286, %v294
      %v326 = vadd.f32 %v287, %v294
      %v327 = vadd.f32 %v288, %v294
      %v328 = vmax.f32 %v296, 0.0
      %v329 = vmax.f32 %v297, 0.0
      %v330 = vmax.f32 %v298, 0.0
      %v331 = vmax.f32 %v299, 0.0
      %v332 = vmax.f32 %v300, 0.0
      %v333 = vmax.f32 %v301, 0.0
      %v334 = vmax.f32 %v302, 0.0
      %v335 = vmax.f32 %v303, 0.0
      %v336 = vmax.f32 %v304, 0.0
      %v337 = vmax.f32 %v305, 0.0
      %v338 = vmax.f32 %v306, 0.0
      %v339 = vmax.f32 %v307, 0.0
      %v340 = vmax.f32 %v308, 0.0
      %v341 = vmax.f32 %v309, 0.0
      %v342 = vmax.f32 %v310, 0.0
      %v343 = vmax.f32 %v311, 0.0
      %v344 = vmax.f32 %v312, 0.0
      %v345 = vmax.f32 %v313, 0.0
      %v346 = vmax.f32 %v314, 0.0
      %v347 = vmax.f32 %v315, 0.0
      %v348 = vmax.f32 %v316, 0.0
      %v349 = vmax.f32 %v317, 0.0
      %v350 = vmax.f32 %v318, 0.0
      %v351 = vmax.f32 %v319, 0.0
      %v352 = vmax.f32 %v320, 0.0
      %v353 = vmax.f32 %v321, 0.0
      %v354 = vmax.f32 %v322, 0.0
      %v355 = vmax.f32 %v323, 0.0
      %v356 = vmax.f32 %v324, 0.0
      %v357 = vmax.f32 %v325, 0.0
      %v358 = vmax.f32 %v326, 0.0
      %v359 = vmax.f32 %v327, 0.0
      %v360 = vpack.c.bf16 %v329, %v328
      %v361 = vpack.c.bf16 %v331, %v330
      %v362 = vpack.c.bf16 %v333, %v332
      %v363 = vpack.c.bf16 %v335, %v334
      %v364 = vpack.c.bf16 %v337, %v336
      %v365 = vpack.c.bf16 %v339, %v338
      %v366 = vpack.c.bf16 %v341, %v340
      %v367 = vpack.c.bf16 %v343, %v342
      %v368 = vpack.c.bf16 %v345, %v344
      %v369 = vpack.c.bf16 %v347, %v346
      %v370 = vpack.c.bf16 %v349, %v348
      %v371 = vpack.c.bf16 %v351, %v350
      %v372 = vpack.c.bf16 %v353, %v352
      %v373 = vpack.c.bf16 %v355, %v354
      %v374 = vpack.c.bf16 %v357, %v356
      %v375 = vpack.c.bf16 %v359, %v358
      %v376 = vld [vmem:[%s3] sm:$0xf]
      %vm377 = vcmask 64512
      %v379 = vsel %vm377, %v360, 0
      %v382 = vsel %vm377, %v361, 0
      %v385 = vsel %vm377, %v362, 0
      %v388 = vsel %vm377, %v363, 0
      %v391 = vsel %vm377, %v364, 0
      %v394 = vsel %vm377, %v365, 0
      %v397 = vsel %vm377, %v366, 0
      %v400 = vsel %vm377, %v367, 0
      %v403 = vsel %vm377, %v368, 0
      %v406 = vsel %vm377, %v369, 0
      %v409 = vsel %vm377, %v370, 0
      %v412 = vsel %vm377, %v371, 0
      %v415 = vsel %vm377, %v372, 0
      %v418 = vsel %vm377, %v373, 0
      %v421 = vsel %vm377, %v374, 0
      %v424 = vsel %vm377, %v375, 0
      %vm426 = vcmask 1043456
      %v428 = vsel %vm426, %v376, 0
      %430 = vmatprep.subr.bf16.mxu0 0
      %431 = vmatpush1.bf16.msra.mxu0 0
      %432 = vmatprep.subr.bf16.mxu0 0
      %433 = vmatpush1.bf16.msra.mxu0 0
      %434 = vmatprep.subr.bf16.mxu0 0
      %435 = vmatpush1.bf16.msra.mxu0 0
      %436 = vmatprep.subr.bf16.mxu0 0
      %437 = vmatpush1.bf16.msra.mxu0 0
      %438 = vmatprep.subr.bf16.mxu0 0
      %439 = vmatpush1.bf16.msra.mxu0 0
      %440 = vmatprep.subr.bf16.mxu0 0
      %441 = vmatpush1.bf16.msra.mxu0 0
      %442 = vmatprep.subr.bf16.mxu0 0
      %443 = vmatpush1.bf16.msra.mxu0 0
      %444 = vmatprep.subr.bf16.mxu0 0
      %445 = vmatpush1.bf16.msra.mxu0 %v428
      %446 = vmatprep.subr.bf16.mxu0 0
      %447 = vmatpush2.bf16.msra.mxu0 0
      %448 = vmatprep.subr.bf16.mxu0 0
      %449 = vmatpush2.bf16.msra.mxu0 0
      %450 = vmatprep.subr.bf16.mxu0 0
      %451 = vmatpush2.bf16.msra.mxu0 0
      %452 = vmatprep.subr.bf16.mxu0 0
      %453 = vmatpush2.bf16.msra.mxu0 0
      %454 = vmatprep.subr.bf16.mxu0 0
      %455 = vmatpush2.bf16.msra.mxu0 0
      %456 = vmatprep.subr.bf16.mxu0 0
      %457 = vmatpush2.bf16.msra.mxu0 0
      %458 = vmatprep.subr.bf16.mxu0 0
      %459 = vmatpush2.bf16.msra.mxu0 0
      %460 = vmatprep.subr.bf16.mxu0 0
      %461 = vmatpush2.bf16.msra.mxu0 0
      %462 = vmatprep.mubr.bf16.mxu0 0
      %463 = vmatmul.mubr.bf16.gmra.mxu0 %v379
      %v464 = vpop.f32.mrf.mxu0
      %v465 = vadd.f32 0.0, %v464
      %v466 = vpop.f32.mrf.mxu0
      %v467 = vpop.f32.mrf.mxu0
      %v468 = vadd.f32 0.0, %v467
      %v469 = vpop.f32.mrf.mxu0
      %470 = vmatprep.mubr.bf16.mxu0 0
      %471 = vmatmul.mubr.bf16.gmra.mxu0 %v382
      %v472 = vpop.f32.mrf.mxu0
      %v473 = vadd.f32 0.0, %v472
      %v474 = vpop.f32.mrf.mxu0
      %v475 = vpop.f32.mrf.mxu0
      %v476 = vadd.f32 0.0, %v475
      %v477 = vpop.f32.mrf.mxu0
      %478 = vmatprep.mubr.bf16.mxu0 0
      %479 = vmatmul.mubr.bf16.gmra.mxu0 %v385
      %v480 = vpop.f32.mrf.mxu0
      %v481 = vadd.f32 0.0, %v480
      %v482 = vpop.f32.mrf.mxu0
      %v483 = vpop.f32.mrf.mxu0
      %v484 = vadd.f32 0.0, %v483
      %v485 = vpop.f32.mrf.mxu0
      %486 = vmatprep.mubr.bf16.mxu0 0
      %487 = vmatmul.mubr.bf16.gmra.mxu0 %v388
      %v488 = vpop.f32.mrf.mxu0
      %v489 = vadd.f32 0.0, %v488
      %v490 = vpop.f32.mrf.mxu0
      %v491 = vpop.f32.mrf.mxu0
      %v492 = vadd.f32 0.0, %v491
      %v493 = vpop.f32.mrf.mxu0
      %494 = vmatprep.mubr.bf16.mxu0 0
      %495 = vmatmul.mubr.bf16.gmra.mxu0 %v391
      %v496 = vpop.f32.mrf.mxu0
      %v497 = vadd.f32 0.0, %v496
      %v498 = vpop.f32.mrf.mxu0
      %v499 = vpop.f32.mrf.mxu0
      %v500 = vadd.f32 0.0, %v499
      %v501 = vpop.f32.mrf.mxu0
      %502 = vmatprep.mubr.bf16.mxu0 0
      %503 = vmatmul.mubr.bf16.gmra.mxu0 %v394
      %v504 = vpop.f32.mrf.mxu0
      %v505 = vadd.f32 0.0, %v504
      %v506 = vpop.f32.mrf.mxu0
      %v507 = vpop.f32.mrf.mxu0
      %v508 = vadd.f32 0.0, %v507
      %v509 = vpop.f32.mrf.mxu0
      %510 = vmatprep.mubr.bf16.mxu0 0
      %511 = vmatmul.mubr.bf16.gmra.mxu0 %v397
      %v512 = vpop.f32.mrf.mxu0
      %v513 = vadd.f32 0.0, %v512
      %v514 = vpop.f32.mrf.mxu0
      %v515 = vpop.f32.mrf.mxu0
      %v516 = vadd.f32 0.0, %v515
      %v517 = vpop.f32.mrf.mxu0
      %518 = vmatprep.mubr.bf16.mxu0 0
      %519 = vmatmul.mubr.bf16.gmra.mxu0 %v400
      %v520 = vpop.f32.mrf.mxu0
      %v521 = vadd.f32 0.0, %v520
      %v522 = vpop.f32.mrf.mxu0
      %v523 = vpop.f32.mrf.mxu0
      %v524 = vadd.f32 0.0, %v523
      %v525 = vpop.f32.mrf.mxu0
      %526 = vmatprep.mubr.bf16.mxu0 0
      %527 = vmatmul.mubr.bf16.gmra.mxu0 %v403
      %v528 = vpop.f32.mrf.mxu0
      %v529 = vadd.f32 0.0, %v528
      %v530 = vpop.f32.mrf.mxu0
      %v531 = vpop.f32.mrf.mxu0
      %v532 = vadd.f32 0.0, %v531
      %v533 = vpop.f32.mrf.mxu0
      %534 = vmatprep.mubr.bf16.mxu0 0
      %535 = vmatmul.mubr.bf16.gmra.mxu0 %v406
      %v536 = vpop.f32.mrf.mxu0
      %v537 = vadd.f32 0.0, %v536
      %v538 = vpop.f32.mrf.mxu0
      %v539 = vpop.f32.mrf.mxu0
      %v540 = vadd.f32 0.0, %v539
      %v541 = vpop.f32.mrf.mxu0
      %542 = vmatprep.mubr.bf16.mxu0 0
      %543 = vmatmul.mubr.bf16.gmra.mxu0 %v409
      %v544 = vpop.f32.mrf.mxu0
      %v545 = vadd.f32 0.0, %v544
      %v546 = vpop.f32.mrf.mxu0
      %v547 = vpop.f32.mrf.mxu0
      %v548 = vadd.f32 0.0, %v547
      %v549 = vpop.f32.mrf.mxu0
      %550 = vmatprep.mubr.bf16.mxu0 0
      %551 = vmatmul.mubr.bf16.gmra.mxu0 %v412
      %v552 = vpop.f32.mrf.mxu0
      %v553 = vadd.f32 0.0, %v552
      %v554 = vpop.f32.mrf.mxu0
      %v555 = vpop.f32.mrf.mxu0
      %v556 = vadd.f32 0.0, %v555
      %v557 = vpop.f32.mrf.mxu0
      %558 = vmatprep.mubr.bf16.mxu0 0
      %559 = vmatmul.mubr.bf16.gmra.mxu0 %v415
      %v560 = vpop.f32.mrf.mxu0
      %v561 = vadd.f32 0.0, %v560
      %v562 = vpop.f32.mrf.mxu0
      %v563 = vpop.f32.mrf.mxu0
      %v564 = vadd.f32 0.0, %v563
      %v565 = vpop.f32.mrf.mxu0
      %566 = vmatprep.mubr.bf16.mxu0 0
      %567 = vmatmul.mubr.bf16.gmra.mxu0 %v418
      %v568 = vpop.f32.mrf.mxu0
      %v569 = vadd.f32 0.0, %v568
      %v570 = vpop.f32.mrf.mxu0
      %v571 = vpop.f32.mrf.mxu0
      %v572 = vadd.f32 0.0, %v571
      %v573 = vpop.f32.mrf.mxu0
      %574 = vmatprep.mubr.bf16.mxu0 0
      %575 = vmatmul.mubr.bf16.gmra.mxu0 %v421
      %v576 = vpop.f32.mrf.mxu0
      %v577 = vadd.f32 0.0, %v576
      %v578 = vpop.f32.mrf.mxu0
      %v579 = vpop.f32.mrf.mxu0
      %v580 = vadd.f32 0.0, %v579
      %v581 = vpop.f32.mrf.mxu0
      %582 = vmatprep.mubr.bf16.mxu0 0
      %583 = vmatmul.mubr.bf16.gmra.mxu0 %v424
      %v584 = vpop.f32.mrf.mxu0
      %v585 = vadd.f32 0.0, %v584
      %v586 = vpop.f32.mrf.mxu0
      %v587 = vpop.f32.mrf.mxu0
      %v588 = vadd.f32 0.0, %v587
      %v589 = vpop.f32.mrf.mxu0
      %590 = vdwg.mxu0
      %v591 = vld [vmem:[%s4] sm:$0x1]
      %vm592 = vcmask 261120
      %v593 = vsel %vm592, %v465, 0.0
      %v594 = vsel %vm592, %v468, 0.0
      %v595 = vadd.f32 %v593, %v594
      %v596 = vsel %vm592, %v473, 0.0
      %v597 = vadd.f32 %v595, %v596
      %v598 = vsel %vm592, %v476, 0.0
      %v599 = vadd.f32 %v597, %v598
      %v600 = vsel %vm592, %v481, 0.0
      %v601 = vadd.f32 %v599, %v600
      %v602 = vsel %vm592, %v484, 0.0
      %v603 = vadd.f32 %v601, %v602
      %v604 = vsel %vm592, %v489, 0.0
      %v605 = vadd.f32 %v603, %v604
      %v606 = vsel %vm592, %v492, 0.0
      %v607 = vadd.f32 %v605, %v606
      %v608 = vsel %vm592, %v497, 0.0
      %v609 = vadd.f32 %v607, %v608
      %v610 = vsel %vm592, %v500, 0.0
      %v611 = vadd.f32 %v609, %v610
      %v612 = vsel %vm592, %v505, 0.0
      %v613 = vadd.f32 %v611, %v612
      %v614 = vsel %vm592, %v508, 0.0
      %v615 = vadd.f32 %v613, %v614
      %v616 = vsel %vm592, %v513, 0.0
      %v617 = vadd.f32 %v615, %v616
      %v618 = vsel %vm592, %v516, 0.0
      %v619 = vadd.f32 %v617, %v618
      %v620 = vsel %vm592, %v521, 0.0
      %v621 = vadd.f32 %v619, %v620
      %v622 = vsel %vm592, %v524, 0.0
      %v623 = vadd.f32 %v621, %v622
      %v624 = vsel %vm592, %v529, 0.0
      %v625 = vadd.f32 %v623, %v624
      %v626 = vsel %vm592, %v532, 0.0
      %v627 = vadd.f32 %v625, %v626
      %v628 = vsel %vm592, %v537, 0.0
      %v629 = vadd.f32 %v627, %v628
      %v630 = vsel %vm592, %v540, 0.0
      %v631 = vadd.f32 %v629, %v630
      %v632 = vsel %vm592, %v545, 0.0
      %v633 = vadd.f32 %v631, %v632
      %v634 = vsel %vm592, %v548, 0.0
      %v635 = vadd.f32 %v633, %v634
      %v636 = vsel %vm592, %v553, 0.0
      %v637 = vadd.f32 %v635, %v636
      %v638 = vsel %vm592, %v556, 0.0
      %v639 = vadd.f32 %v637, %v638
      %v640 = vsel %vm592, %v561, 0.0
      %v641 = vadd.f32 %v639, %v640
      %v642 = vsel %vm592, %v564, 0.0
      %v643 = vadd.f32 %v641, %v642
      %v644 = vsel %vm592, %v569, 0.0
      %v645 = vadd.f32 %v643, %v644
      %v646 = vsel %vm592, %v572, 0.0
      %v647 = vadd.f32 %v645, %v646
      %v648 = vsel %vm592, %v577, 0.0
      %v649 = vadd.f32 %v647, %v648
      %v650 = vsel %vm592, %v580, 0.0
      %v651 = vadd.f32 %v649, %v650
      %v652 = vsel %vm592, %v585, 0.0
      %v653 = vadd.f32 %v651, %v652
      %v654 = vsel %vm592, %v588, 0.0
      %v655 = vadd.f32 %v653, %v654
      %v656 = vrot.slane %v655, 4
      %v657 = vadd.f32 %v655, %v656
      %v658 = vrot.slane %v657, 2
      %v659 = vadd.f32 %v657, %v658
      %v660 = vrot.slane %v659, 1
      %v661 = vadd.f32 %v659, %v660
      %v662 = vadd.f32 %v591, %v661
      %vm663 = vcmask 253952
      %664 = vst.msk [vmem:[%s4] sm:$0x1] %vm663, %v662
      %v665 = vld [vmem:[%s5] sm:$0x1]
      %v666 = vmul.f32 %v465, %v465
      %v667 = vmul.f32 %v468, %v468
      %v668 = vmul.f32 %v473, %v473
      %v669 = vmul.f32 %v476, %v476
      %v670 = vmul.f32 %v481, %v481
      %v671 = vmul.f32 %v484, %v484
      %v672 = vmul.f32 %v489, %v489
      %v673 = vmul.f32 %v492, %v492
      %v674 = vmul.f32 %v497, %v497
      %v675 = vmul.f32 %v500, %v500
      %v676 = vmul.f32 %v505, %v505
      %v677 = vmul.f32 %v508, %v508
      %v678 = vmul.f32 %v513, %v513
      %v679 = vmul.f32 %v516, %v516
      %v680 = vmul.f32 %v521, %v521
      %v681 = vmul.f32 %v524, %v524
      %v682 = vmul.f32 %v529, %v529
      %v683 = vmul.f32 %v532, %v532
      %v684 = vmul.f32 %v537, %v537
      %v685 = vmul.f32 %v540, %v540
      %v686 = vmul.f32 %v545, %v545
      %v687 = vmul.f32 %v548, %v548
      %v688 = vmul.f32 %v553, %v553
      %v689 = vmul.f32 %v556, %v556
      %v690 = vmul.f32 %v561, %v561
      %v691 = vmul.f32 %v564, %v564
      %v692 = vmul.f32 %v569, %v569
      %v693 = vmul.f32 %v572, %v572
      %v694 = vmul.f32 %v577, %v577
      %v695 = vmul.f32 %v580, %v580
      %v696 = vmul.f32 %v585, %v585
      %v697 = vmul.f32 %v588, %v588
      %v698 = vsel %vm592, %v666, 0.0
      %v699 = vsel %vm592, %v667, 0.0
      %v700 = vadd.f32 %v698, %v699
      %v701 = vsel %vm592, %v668, 0.0
      %v702 = vadd.f32 %v700, %v701
      %v703 = vsel %vm592, %v669, 0.0
      %v704 = vadd.f32 %v702, %v703
      %v705 = vsel %vm592, %v670, 0.0
      %v706 = vadd.f32 %v704, %v705
      %v707 = vsel %vm592, %v671, 0.0
      %v708 = vadd.f32 %v706, %v707
      %v709 = vsel %vm592, %v672, 0.0
      %v710 = vadd.f32 %v708, %v709
      %v711 = vsel %vm592, %v673, 0.0
      %v712 = vadd.f32 %v710, %v711
      %v713 = vsel %vm592, %v674, 0.0
      %v714 = vadd.f32 %v712, %v713
      %v715 = vsel %vm592, %v675, 0.0
      %v716 = vadd.f32 %v714, %v715
      %v717 = vsel %vm592, %v676, 0.0
      %v718 = vadd.f32 %v716, %v717
      %v719 = vsel %vm592, %v677, 0.0
      %v720 = vadd.f32 %v718, %v719
      %v721 = vsel %vm592, %v678, 0.0
      %v722 = vadd.f32 %v720, %v721
      %v723 = vsel %vm592, %v679, 0.0
      %v724 = vadd.f32 %v722, %v723
      %v725 = vsel %vm592, %v680, 0.0
      %v726 = vadd.f32 %v724, %v725
      %v727 = vsel %vm592, %v681, 0.0
      %v728 = vadd.f32 %v726, %v727
      %v729 = vsel %vm592, %v682, 0.0
      %v730 = vadd.f32 %v728, %v729
      %v731 = vsel %vm592, %v683, 0.0
      %v732 = vadd.f32 %v730, %v731
      %v733 = vsel %vm592, %v684, 0.0
      %v734 = vadd.f32 %v732, %v733
      %v735 = vsel %vm592, %v685, 0.0
      %v736 = vadd.f32 %v734, %v735
      %v737 = vsel %vm592, %v686, 0.0
      %v738 = vadd.f32 %v736, %v737
      %v739 = vsel %vm592, %v687, 0.0
      %v740 = vadd.f32 %v738, %v739
      %v741 = vsel %vm592, %v688, 0.0
      %v742 = vadd.f32 %v740, %v741
      %v743 = vsel %vm592, %v689, 0.0
      %v744 = vadd.f32 %v742, %v743
      %v745 = vsel %vm592, %v690, 0.0
      %v746 = vadd.f32 %v744, %v745
      %v747 = vsel %vm592, %v691, 0.0
      %v748 = vadd.f32 %v746, %v747
      %v749 = vsel %vm592, %v692, 0.0
      %v750 = vadd.f32 %v748, %v749
      %v751 = vsel %vm592, %v693, 0.0
      %v752 = vadd.f32 %v750, %v751
      %v753 = vsel %vm592, %v694, 0.0
      %v754 = vadd.f32 %v752, %v753
      %v755 = vsel %vm592, %v695, 0.0
      %v756 = vadd.f32 %v754, %v755
      %v757 = vsel %vm592, %v696, 0.0
      %v758 = vadd.f32 %v756, %v757
      %v759 = vsel %vm592, %v697, 0.0
      %v760 = vadd.f32 %v758, %v759
      %v761 = vrot.slane %v760, 4
      %v762 = vadd.f32 %v760, %v761
      %v763 = vrot.slane %v762, 2
      %v764 = vadd.f32 %v762, %v763
      %v765 = vrot.slane %v764, 1
      %v766 = vadd.f32 %v764, %v765
      %v767 = vadd.f32 %v665, %v766
      %768 = vst.msk [vmem:[%s5] sm:$0x1] %vm663, %v767
      // Predicated region
      $region41: #{bottleneck_forward.6} parent=35 // pred_check
        %p769 = pneg %p119
      $region42: #{bottleneck_forward.6} parent=35 // pred_check_branch
        %771 = sbr.rel (%p769) target = $region44
      $region43: #{bottleneck_forward.6} parent=35 // pred_region
        _
      $region44: #{bottleneck_forward.6} parent=35 // pred_fallthru
        _
      // Predicated region
      $region45: #{bottleneck_forward.6} parent=35 // pred_check
        %p772 = pneg %p140
      $region46: #{bottleneck_forward.6} parent=35 // pred_check_branch
        %774 = sbr.rel (%p772) target = $region48
      $region47: #{bottleneck_forward.6} parent=35 // pred_region
        _
      $region48: #{bottleneck_forward.6} parent=35 // pred_fallthru
        _
      // Predicated region
      $region49: #{bottleneck_forward.6} parent=35 // pred_check
        %p775 = pneg %p119
      $region50: #{bottleneck_forward.6} parent=35 // pred_check_branch
        %777 = sbr.rel (%p775) target = $region52
      $region51: #{bottleneck_forward.6} parent=35 // pred_region
        _
      $region52: #{bottleneck_forward.6} parent=35 // pred_fallthru
        _
      // Predicated region
      $region53: #{bottleneck_forward.6} parent=35 // pred_check
        %p778 = pneg %p140
      $region54: #{bottleneck_forward.6} parent=35 // pred_check_branch
        %780 = sbr.rel (%p778) target = $region56
      $region55: #{bottleneck_forward.6} parent=35 // pred_region
        _
      $region56: #{bottleneck_forward.6} parent=35 // pred_fallthru
        _
    $region36: #{bottleneck_forward.6} parent=5 // pred_fallthru
      _
    %p781 = scmp.le.s32.totalorder 2, %s12
    // Predicated region
    $region57: #{bottleneck_forward.6} parent=5 // pred_check
      %p782 = pneg %p781
    $region58: #{bottleneck_forward.6} parent=5 // pred_check_branch
      %784 = sbr.rel (%p782) target = $region60
    $region59: #{bottleneck_forward.6} parent=5 // pred_region
      %s785 = ssub.s32 %s12, 2
    $region60: #{bottleneck_forward.6} parent=5 // pred_fallthru
      _
  $region6: #{bottleneck_forward.6} parent=0 // loop_footer
    %s16 = sadd.s32 1, %s12
  $region7: #{bottleneck_forward.6} parent=0 // loop_footer_branch
    %11 = sbr.rel target = $region3
  $region8: #{bottleneck_forward.6} parent=0 // loop_exit
    _

// kernel: bottleneck_forward.4
$region0: #{bottleneck_forward.4}
  #allocation0 [shape = 'u32[]', space=smem, size = 0x4, offset = 0x4, fixed_abs, tag = 'smem constant byte address 0x4 - core index']
  #allocation1 [shape = 'u32[144,128]{1,0:T(1,128)}', space=vmem, size = 0x12000, scoped, tag = 'internal scratch']
  %s0 = inlined_call_operand.vmem [shape: bf16[512,16], index: 0, kind: input, shape index: {}]
  %s1 = inlined_call_operand.vmem [shape: bf16[16,16], index: 1, kind: input, shape index: {}]
  %s2 = inlined_call_operand.vmem [shape: bf16[16,32], index: 2, kind: input, shape index: {}]
  %s3 = inlined_call_operand.vmem [shape: f32[1,16], index: 3, kind: output, shape index: {0}]
  %s4 = inlined_call_operand.vmem [shape: f32[1,16], index: 4, kind: output, shape index: {1}]
  %s5 = inlined_call_operand.vmem [shape: f32[1,32], index: 5, kind: output, shape index: {2}]
  %s6 = inlined_call_operand.vmem [shape: f32[1,32], index: 6, kind: output, shape index: {3}]
  %7 = xla_tuple %s3, %s4, %s5, %s6
  %s8 = sld [smem:[#allocation0]]
  $region73: #{bottleneck_forward.4} parent=0
    _
  %s10 = ssub.s32 1, %s8
  %s11 = scalar_select 0, %s10, %s8
  loop: start=0, step=1, limit=4
  $region2: #{bottleneck_forward.4} parent=0 // loop_pre_header
    _
  $region3: #{bottleneck_forward.4} parent=0 // loop_header
    %s13 = sphi 0, %s17
    %p14 = scmp.ge.s32.totalorder %s13, 4
    %s23 = sphi 0, %s25
    %s26 = sphi 0, %s23
    %s27 = sphi 0, %s26
    %s43 = sphi 0, %s27
    %s47 = sphi 0, %s47
    %s49 = sphi 0, %s47
    %s50 = sphi 0, %s49
    %s64 = sphi 0, %s50
    %s68 = sphi 0, %s68
    %s70 = sphi 0, %s68
    %s71 = sphi 0, %s70
    %s85 = sphi 0, %s71
    %s89 = sphi 0, %s89
    %s91 = sphi 0, %s89
    %s92 = sphi 0, %s91
    %s106 = sphi 0, %s92
    %s110 = sphi 0, %s110
    %s112 = sphi 0, %s110
    %s113 = sphi 0, %s112
    %s127 = sphi 0, %s113
    %s131 = sphi 0, %s131
    %s133 = sphi 0, %s131
    %s134 = sphi 0, %s133
    %s148 = sphi 0, %s134
    %s152 = sphi 0, %s152
    %s154 = sphi 0, %s152
    %s155 = sphi 0, %s154
    %s169 = sphi 0, %s155
  $region4: #{bottleneck_forward.4} parent=0 // loop_header_branch
    %16 = sbr.rel (%p14) target = $region8
  $region5: #{bottleneck_forward.4} parent=0 // loop_body
    %s18 = ssub.s32 %s13, 1
    %s19 = ssub.s32 %s13, 2
    %s20 = sadd.s32 %s13, 1
    %s21 = ssub.s32 %s13, %s20
    %p22 = scmp.eq.s32.totalorder %s21, 0
    %s24 = sadd.s32 %s23, 1
    %s25 = scalar_select %p22, %s23, %s24
    %p28 = pneg %p22
    %p29 = scmp.eq.s32.totalorder %s13, 1
    %p30 = por %p28, %p29
    %p31 = scmp.ne.s32.totalorder %s23, %s26
    %p32 = scmp.eq.s32.totalorder %s13, 0
    %p33 = por %p31, %p32
    %p34 = scmp.ne.s32.totalorder %s23, %s26
    %p35 = scmp.eq.s32.totalorder %s18, 1
    %p36 = por %p34, %p35
    %p37 = scmp.ne.s32.totalorder %s26, %s27
    %p38 = scmp.eq.s32.totalorder %s18, 0
    %p39 = por %p37, %p38
    %p40 = scmp.ne.s32.totalorder %s26, %s27
    %p41 = scmp.eq.s32.totalorder %s19, 1
    %p42 = por %p40, %p41
    %p44 = scmp.ne.s32.totalorder %s27, %s43
    %p45 = scmp.eq.s32.totalorder %s19, 0
    %p46 = por %p44, %p45
    %s48 = sadd.s32 %s47, 1
    %p51 = scmp.eq.s32.totalorder %s13, 1
    %p52 = scmp.ne.s32.totalorder %s47, %s49
    %p53 = scmp.eq.s32.totalorder %s13, 0
    %p54 = por %p52, %p53
    %p55 = scmp.ne.s32.totalorder %s47, %s49
    %p56 = scmp.eq.s32.totalorder %s18, 1
    %p57 = por %p55, %p56
    %p58 = scmp.ne.s32.totalorder %s49, %s50
    %p59 = scmp.eq.s32.totalorder %s18, 0
    %p60 = por %p58, %p59
    %p61 = scmp.ne.s32.totalorder %s49, %s50
    %p62 = scmp.eq.s32.totalorder %s19, 1
    %p63 = por %p61, %p62
    %p65 = scmp.ne.s32.totalorder %s50, %s64
    %p66 = scmp.eq.s32.totalorder %s19, 0
    %p67 = por %p65, %p66
    %s69 = sadd.s32 %s68, 1
    %p72 = scmp.eq.s32.totalorder %s13, 1
    %p73 = scmp.ne.s32.totalorder %s68, %s70
    %p74 = scmp.eq.s32.totalorder %s13, 0
    %p75 = por %p73, %p74
    %p76 = scmp.ne.s32.totalorder %s68, %s70
    %p77 = scmp.eq.s32.totalorder %s18, 1
    %p78 = por %p76, %p77
    %p79 = scmp.ne.s32.totalorder %s70, %s71
    %p80 = scmp.eq.s32.totalorder %s18, 0
    %p81 = por %p79, %p80
    %p82 = scmp.ne.s32.totalorder %s70, %s71
    %p83 = scmp.eq.s32.totalorder %s19, 1
    %p84 = por %p82, %p83
    %p86 = scmp.ne.s32.totalorder %s71, %s85
    %p87 = scmp.eq.s32.totalorder %s19, 0
    %p88 = por %p86, %p87
    %s90 = sadd.s32 %s89, 1
    %p93 = scmp.eq.s32.totalorder %s13, 1
    %p94 = scmp.ne.s32.totalorder %s89, %s91
    %p95 = scmp.eq.s32.totalorder %s13, 0
    %p96 = por %p94, %p95
    %p97 = scmp.ne.s32.totalorder %s89, %s91
    %p98 = scmp.eq.s32.totalorder %s18, 1
    %p99 = por %p97, %p98
    %p100 = scmp.ne.s32.totalorder %s91, %s92
    %p101 = scmp.eq.s32.totalorder %s18, 0
    %p102 = por %p100, %p101
    %p103 = scmp.ne.s32.totalorder %s91, %s92
    %p104 = scmp.eq.s32.totalorder %s19, 1
    %p105 = por %p103, %p104
    %p107 = scmp.ne.s32.totalorder %s92, %s106
    %p108 = scmp.eq.s32.totalorder %s19, 0
    %p109 = por %p107, %p108
    %s111 = sadd.s32 %s110, 1
    %p114 = scmp.eq.s32.totalorder %s13, 1
    %p115 = scmp.ne.s32.totalorder %s110, %s112
    %p116 = scmp.eq.s32.totalorder %s13, 0
    %p117 = por %p115, %p116
    %p118 = scmp.ne.s32.totalorder %s110, %s112
    %p119 = scmp.eq.s32.totalorder %s18, 1
    %p120 = por %p118, %p119
    %p121 = scmp.ne.s32.totalorder %s112, %s113
    %p122 = scmp.eq.s32.totalorder %s18, 0
    %p123 = por %p121, %p122
    %p124 = scmp.ne.s32.totalorder %s112, %s113
    %p125 = scmp.eq.s32.totalorder %s19, 1
    %p126 = por %p124, %p125
    %p128 = scmp.ne.s32.totalorder %s113, %s127
    %p129 = scmp.eq.s32.totalorder %s19, 0
    %p130 = por %p128, %p129
    %s132 = sadd.s32 %s131, 1
    %p135 = scmp.eq.s32.totalorder %s13, 1
    %p136 = scmp.ne.s32.totalorder %s131, %s133
    %p137 = scmp.eq.s32.totalorder %s13, 0
    %p138 = por %p136, %p137
    %p139 = scmp.ne.s32.totalorder %s131, %s133
    %p140 = scmp.eq.s32.totalorder %s18, 1
    %p141 = por %p139, %p140
    %p142 = scmp.ne.s32.totalorder %s133, %s134
    %p143 = scmp.eq.s32.totalorder %s18, 0
    %p144 = por %p142, %p143
    %p145 = scmp.ne.s32.totalorder %s133, %s134
    %p146 = scmp.eq.s32.totalorder %s19, 1
    %p147 = por %p145, %p146
    %p149 = scmp.ne.s32.totalorder %s134, %s148
    %p150 = scmp.eq.s32.totalorder %s19, 0
    %p151 = por %p149, %p150
    %s153 = sadd.s32 %s152, 1
    %p156 = scmp.eq.s32.totalorder %s13, 1
    %p157 = scmp.ne.s32.totalorder %s152, %s154
    %p158 = scmp.eq.s32.totalorder %s13, 0
    %p159 = por %p157, %p158
    %p160 = scmp.ne.s32.totalorder %s152, %s154
    %p161 = scmp.eq.s32.totalorder %s18, 1
    %p162 = por %p160, %p161
    %p163 = scmp.ne.s32.totalorder %s154, %s155
    %p164 = scmp.eq.s32.totalorder %s18, 0
    %p165 = por %p163, %p164
    %p166 = scmp.ne.s32.totalorder %s154, %s155
    %p167 = scmp.eq.s32.totalorder %s19, 1
    %p168 = por %p166, %p167
    %p170 = scmp.ne.s32.totalorder %s155, %s169
    %p171 = scmp.eq.s32.totalorder %s19, 0
    %p172 = por %p170, %p171
    %p173 = scmp.le.s32.totalorder 1, %s13
    %p174 = scmp.lt.s32.totalorder %s13, 3
    %p175 = pnand %p173, %p174
    %p176 = pneg %p175
    // Predicated region
    $region9: #{bottleneck_forward.4} parent=5 // pred_check
      _
    $region10: #{bottleneck_forward.4} parent=5 // pred_check_branch
      %178 = sbr.rel (%p175) target = $region12
    $region11: #{bottleneck_forward.4} parent=5 // pred_region
      %s179 = ssub.s32 %s13, 1
      // Predicated region
      $region13: #{bottleneck_forward.4} parent=11 // pred_check
        %p180 = pneg %p60
      $region14: #{bottleneck_forward.4} parent=11 // pred_check_branch
        %182 = sbr.rel (%p180) target = $region16
      $region15: #{bottleneck_forward.4} parent=11 // pred_region
        _
      $region16: #{bottleneck_forward.4} parent=11 // pred_fallthru
        _
      // Predicated region
      $region17: #{bottleneck_forward.4} parent=11 // pred_check
        %p183 = pneg %p81
      $region18: #{bottleneck_forward.4} parent=11 // pred_check_branch
        %185 = sbr.rel (%p183) target = $region20
      $region19: #{bottleneck_forward.4} parent=11 // pred_region
        _
      $region20: #{bottleneck_forward.4} parent=11 // pred_fallthru
        _
    $region12: #{bottleneck_forward.4} parent=5 // pred_fallthru
      _
    %p186 = scmp.lt.s32.totalorder %s13, 2
    // Predicated region
    $region21: #{bottleneck_forward.4} parent=5 // pred_check
      %p187 = pneg %p186
    $region22: #{bottleneck_forward.4} parent=5 // pred_check_branch
      %189 = sbr.rel (%p187) target = $region24
    $region23: #{bottleneck_forward.4} parent=5 // pred_region
      // Predicated region
      $region25: #{bottleneck_forward.4} parent=23 // pred_check
        %p190 = pneg %p33
      $region26: #{bottleneck_forward.4} parent=23 // pred_check_branch
        %192 = sbr.rel (%p190) target = $region28
      $region27: #{bottleneck_forward.4} parent=23 // pred_region
        %s193 = smul.u32 32, %s13
        %p194 = scmp.lt.s32.totalorder %s193, 63
        %s195 = scalar_select %p194, %s193, 63
        %s196 = smul.addr %s195, 4
        %s197 = scalar_lea.vmem %s0, %s196
        %s198 = smul.u32 32, %s13
      $region28: #{bottleneck_forward.4} parent=23 // pred_fallthru
        _
    $region24: #{bottleneck_forward.4} parent=5 // pred_fallthru
      _
    %p199 = scmp.le.s32.totalorder 1, %s13
    %p200 = scmp.lt.s32.totalorder %s13, 3
    %p201 = pnand %p199, %p200
    %p202 = pneg %p201
    // Predicated region
    $region29: #{bottleneck_forward.4} parent=5 // pred_check
      _
    $region30: #{bottleneck_forward.4} parent=5 // pred_check_branch
      %204 = sbr.rel (%p201) target = $region32
    $region31: #{bottleneck_forward.4} parent=5 // pred_region
      %s205 = ssub.s32 %s13, 1
      %s206 = smul.u32 32, %s18
      %p207 = scmp.lt.s32.totalorder %s206, 63
      %s208 = scalar_select %p207, %s206, 63
      %s209 = smul.addr %s208, 4
      %s210 = scalar_lea.vmem %s0, %s209
      %p211 = pneg %p39
      %p212 = pneg %p36
      %p213 = pneg %p60
      %p214 = pneg %p57
      %p215 = pneg %p81
      %p216 = pneg %p78
      %p217 = pneg %p102
      %p218 = pneg %p99
      %p219 = pneg %p123
      %p220 = pneg %p120
      %p221 = pneg %p144
      %p222 = pneg %p141
      %p223 = pneg %p165
      %p224 = pneg %p162
      %s225 = smul.u32 32, %s18
      %p226 = scmp.lt.s32.totalorder %s225, 63
      %s227 = scalar_select %p226, %s225, 63
      %s228 = smul.addr %s227, 4
      %s229 = scalar_lea.vmem %s0, %s228
      %s230 = smul.u32 32, %s18
      %p232 = scmp.eq.s32.totalorder %s18, 0
      // Predicated region
      $region33: #{bottleneck_forward.4} parent=31 // pred_check
        %p233 = pneg %p232
      $region34: #{bottleneck_forward.4} parent=31 // pred_check_branch
        %235 = sbr.rel (%p233) target = $region36
      $region35: #{bottleneck_forward.4} parent=31 // pred_region
        %vm236 = vcmask 122880
        %237 = vst.msk [vmem:[%s3] sm:$0x1] %vm236, 0.0
        %238 = vst.msk [vmem:[%s4] sm:$0x1] %vm236, 0.0
        %vm239 = vcmask 253952
        %240 = vst.msk [vmem:[%s5] sm:$0x1] %vm239, 0.0
        %241 = vst.msk [vmem:[%s6] sm:$0x1] %vm239, 0.0
      $region36: #{bottleneck_forward.4} parent=31 // pred_fallthru
        _
      %v242 = vld [vmem:[%s229] sm:$0xf]
      %v243 = vld [vmem:[%s229 + $0x4] sm:$0xf]
      %v244 = vld [vmem:[%s229 + $0x8] sm:$0xf]
      %v245 = vld [vmem:[%s229 + $0xc] sm:$0xf]
      %v246 = vld [vmem:[%s229 + $0x10] sm:$0xf]
      %v247 = vld [vmem:[%s229 + $0x14] sm:$0xf]
      %v248 = vld [vmem:[%s229 + $0x18] sm:$0xf]
      %v249 = vld [vmem:[%s229 + $0x1c] sm:$0xf]
      %v250 = vld [vmem:[%s229 + $0x20] sm:$0xf]
      %v251 = vld [vmem:[%s229 + $0x24] sm:$0xf]
      %v252 = vld [vmem:[%s229 + $0x28] sm:$0xf]
      %v253 = vld [vmem:[%s229 + $0x2c] sm:$0xf]
      %v254 = vld [vmem:[%s229 + $0x30] sm:$0xf]
      %v255 = vld [vmem:[%s229 + $0x34] sm:$0xf]
      %v256 = vld [vmem:[%s229 + $0x38] sm:$0xf]
      %v257 = vld [vmem:[%s229 + $0x3c] sm:$0xf]
      %v258 = vld [vmem:[%s229 + $0x40] sm:$0xf]
      %v259 = vld [vmem:[%s229 + $0x44] sm:$0xf]
      %v260 = vld [vmem:[%s229 + $0x48] sm:$0xf]
      %v261 = vld [vmem:[%s229 + $0x4c] sm:$0xf]
      %v262 = vld [vmem:[%s229 + $0x50] sm:$0xf]
      %v263 = vld [vmem:[%s229 + $0x54] sm:$0xf]
      %v264 = vld [vmem:[%s229 + $0x58] sm:$0xf]
      %v265 = vld [vmem:[%s229 + $0x5c] sm:$0xf]
      %v266 = vld [vmem:[%s229 + $0x60] sm:$0xf]
      %v267 = vld [vmem:[%s229 + $0x64] sm:$0xf]
      %v268 = vld [vmem:[%s229 + $0x68] sm:$0xf]
      %v269 = vld [vmem:[%s229 + $0x6c] sm:$0xf]
      %v270 = vld [vmem:[%s229 + $0x70] sm:$0xf]
      %v271 = vld [vmem:[%s229 + $0x74] sm:$0xf]
      %v272 = vld [vmem:[%s229 + $0x78] sm:$0xf]
      %v273 = vld [vmem:[%s229 + $0x7c] sm:$0xf]
      %v274 = vld [vmem:[%s1] sm:$0xf]
      %v275 = vld [vmem:[%s1 + $0x4] sm:$0xf]
      %v308 = vunpack.c.l.b16 %v242
      %v309 = vunpack.c.l.b16 %v243
      %v310 = vunpack.c.l.b16 %v244
      %v311 = vunpack.c.l.b16 %v245
      %v312 = vunpack.c.l.b16 %v246
      %v313 = vunpack.c.l.b16 %v247
      %v314 = vunpack.c.l.b16 %v248
      %v315 = vunpack.c.l.b16 %v249
      %v316 = vunpack.c.l.b16 %v250
      %v317 = vunpack.c.l.b16 %v251
      %v318 = vunpack.c.l.b16 %v252
      %v319 = vunpack.c.l.b16 %v253
      %v320 = vunpack.c.l.b16 %v254
      %v321 = vunpack.c.l.b16 %v255
      %v322 = vunpack.c.l.b16 %v256
      %v323 = vunpack.c.l.b16 %v257
      %v324 = vunpack.c.l.b16 %v258
      %v325 = vunpack.c.l.b16 %v259
      %v326 = vunpack.c.l.b16 %v260
      %v327 = vunpack.c.l.b16 %v261
      %v328 = vunpack.c.l.b16 %v262
      %v329 = vunpack.c.l.b16 %v263
      %v330 = vunpack.c.l.b16 %v264
      %v331 = vunpack.c.l.b16 %v265
      %v332 = vunpack.c.l.b16 %v266
      %v333 = vunpack.c.l.b16 %v267
      %v334 = vunpack.c.l.b16 %v268
      %v335 = vunpack.c.l.b16 %v269
      %v336 = vunpack.c.l.b16 %v270
      %v337 = vunpack.c.l.b16 %v271
      %v338 = vunpack.c.l.b16 %v272
      %v339 = vunpack.c.l.b16 %v273
      %v340 = vpack.c.b16 %v309, %v308
      %v341 = vpack.c.b16 %v311, %v310
      %v342 = vpack.c.b16 %v313, %v312
      %v343 = vpack.c.b16 %v315, %v314
      %v344 = vpack.c.b16 %v317, %v316
      %v345 = vpack.c.b16 %v319, %v318
      %v346 = vpack.c.b16 %v321, %v320
      %v347 = vpack.c.b16 %v323, %v322
      %v348 = vpack.c.b16 %v325, %v324
      %v349 = vpack.c.b16 %v327, %v326
      %v350 = vpack.c.b16 %v329, %v328
      %v351 = vpack.c.b16 %v331, %v330
      %v352 = vpack.c.b16 %v333, %v332
      %v353 = vpack.c.b16 %v335, %v334
      %v354 = vpack.c.b16 %v337, %v336
      %v355 = vpack.c.b16 %v339, %v338
      %v358 = vunpack.c.l.b16 %v274
      %v359 = vunpack.c.l.b16 %v275
      %v360 = vpack.c.b16 %v359, %v358
      %vm362 = vcmask 130048
      %v364 = vsel %vm362, %v340, 0
      %v367 = vsel %vm362, %v341, 0
      %v370 = vsel %vm362, %v342, 0
      %v373 = vsel %vm362, %v343, 0
      %v376 = vsel %vm362, %v344, 0
      %v379 = vsel %vm362, %v345, 0
      %v382 = vsel %vm362, %v346, 0
      %v385 = vsel %vm362, %v347, 0
      %v388 = vsel %vm362, %v348, 0
      %v391 = vsel %vm362, %v349, 0
      %v394 = vsel %vm362, %v350, 0
      %v397 = vsel %vm362, %v351, 0
      %v400 = vsel %vm362, %v352, 0
      %v403 = vsel %vm362, %v353, 0
      %v406 = vsel %vm362, %v354, 0
      %v409 = vsel %vm362, %v355, 0
      %411 = vmatprep.subr.bf16.mxu0 0
      %412 = vmatpush1.bf16.msra.mxu0 0
      %413 = vmatprep.subr.bf16.mxu0 0
      %414 = vmatpush1.bf16.msra.mxu0 0
      %415 = vmatprep.subr.bf16.mxu0 0
      %416 = vmatpush1.bf16.msra.mxu0 0
      %417 = vmatprep.subr.bf16.mxu0 0
      %418 = vmatpush1.bf16.msra.mxu0 0
      %419 = vmatprep.subr.bf16.mxu0 0
      %420 = vmatpush1.bf16.msra.mxu0 0
      %421 = vmatprep.subr.bf16.mxu0 0
      %422 = vmatpush1.bf16.msra.mxu0 0
      %423 = vmatprep.subr.bf16.mxu0 0
      %424 = vmatpush1.bf16.msra.mxu0 0
      %425 = vmatprep.subr.bf16.mxu0 0
      %426 = vmatpush1.bf16.msra.mxu0 %v360
      %427 = vmatprep.subr.bf16.mxu0 0
      %428 = vmatpush2.bf16.msra.mxu0 0
      %429 = vmatprep.subr.bf16.mxu0 0
      %430 = vmatpush2.bf16.msra.mxu0 0
      %431 = vmatprep.subr.bf16.mxu0 0
      %432 = vmatpush2.bf16.msra.mxu0 0
      %433 = vmatprep.subr.bf16.mxu0 0
      %434 = vmatpush2.bf16.msra.mxu0 0
      %435 = vmatprep.subr.bf16.mxu0 0
      %436 = vmatpush2.bf16.msra.mxu0 0
      %437 = vmatprep.subr.bf16.mxu0 0
      %438 = vmatpush2.bf16.msra.mxu0 0
      %439 = vmatprep.subr.bf16.mxu0 0
      %440 = vmatpush2.bf16.msra.mxu0 0
      %441 = vmatprep.subr.bf16.mxu0 0
      %442 = vmatpush2.bf16.msra.mxu0 0
      %443 = vmatprep.mubr.bf16.mxu0 0
      %444 = vmatmul.mubr.bf16.gmra.mxu0 %v364
      %v445 = vpop.f32.mrf.mxu0
      %v446 = vadd.f32 0.0, %v445
      %v447 = vpop.f32.mrf.mxu0
      %v448 = vpop.f32.mrf.mxu0
      %v449 = vadd.f32 0.0, %v448
      %v450 = vpop.f32.mrf.mxu0
      %451 = vmatprep.mubr.bf16.mxu0 0
      %452 = vmatmul.mubr.bf16.gmra.mxu0 %v367
      %v453 = vpop.f32.mrf.mxu0
      %v454 = vadd.f32 0.0, %v453
      %v455 = vpop.f32.mrf.mxu0
      %v456 = vpop.f32.mrf.mxu0
      %v457 = vadd.f32 0.0, %v456
      %v458 = vpop.f32.mrf.mxu0
      %459 = vmatprep.mubr.bf16.mxu0 0
      %460 = vmatmul.mubr.bf16.gmra.mxu0 %v370
      %v461 = vpop.f32.mrf.mxu0
      %v462 = vadd.f32 0.0, %v461
      %v463 = vpop.f32.mrf.mxu0
      %v464 = vpop.f32.mrf.mxu0
      %v465 = vadd.f32 0.0, %v464
      %v466 = vpop.f32.mrf.mxu0
      %467 = vmatprep.mubr.bf16.mxu0 0
      %468 = vmatmul.mubr.bf16.gmra.mxu0 %v373
      %v469 = vpop.f32.mrf.mxu0
      %v470 = vadd.f32 0.0, %v469
      %v471 = vpop.f32.mrf.mxu0
      %v472 = vpop.f32.mrf.mxu0
      %v473 = vadd.f32 0.0, %v472
      %v474 = vpop.f32.mrf.mxu0
      %475 = vmatprep.mubr.bf16.mxu0 0
      %476 = vmatmul.mubr.bf16.gmra.mxu0 %v376
      %v477 = vpop.f32.mrf.mxu0
      %v478 = vadd.f32 0.0, %v477
      %v479 = vpop.f32.mrf.mxu0
      %v480 = vpop.f32.mrf.mxu0
      %v481 = vadd.f32 0.0, %v480
      %v482 = vpop.f32.mrf.mxu0
      %483 = vmatprep.mubr.bf16.mxu0 0
      %484 = vmatmul.mubr.bf16.gmra.mxu0 %v379
      %v485 = vpop.f32.mrf.mxu0
      %v486 = vadd.f32 0.0, %v485
      %v487 = vpop.f32.mrf.mxu0
      %v488 = vpop.f32.mrf.mxu0
      %v489 = vadd.f32 0.0, %v488
      %v490 = vpop.f32.mrf.mxu0
      %491 = vmatprep.mubr.bf16.mxu0 0
      %492 = vmatmul.mubr.bf16.gmra.mxu0 %v382
      %v493 = vpop.f32.mrf.mxu0
      %v494 = vadd.f32 0.0, %v493
      %v495 = vpop.f32.mrf.mxu0
      %v496 = vpop.f32.mrf.mxu0
      %v497 = vadd.f32 0.0, %v496
      %v498 = vpop.f32.mrf.mxu0
      %499 = vmatprep.mubr.bf16.mxu0 0
      %500 = vmatmul.mubr.bf16.gmra.mxu0 %v385
      %v501 = vpop.f32.mrf.mxu0
      %v502 = vadd.f32 0.0, %v501
      %v503 = vpop.f32.mrf.mxu0
      %v504 = vpop.f32.mrf.mxu0
      %v505 = vadd.f32 0.0, %v504
      %v506 = vpop.f32.mrf.mxu0
      %507 = vmatprep.mubr.bf16.mxu0 0
      %508 = vmatmul.mubr.bf16.gmra.mxu0 %v388
      %v509 = vpop.f32.mrf.mxu0
      %v510 = vadd.f32 0.0, %v509
      %v511 = vpop.f32.mrf.mxu0
      %v512 = vpop.f32.mrf.mxu0
      %v513 = vadd.f32 0.0, %v512
      %v514 = vpop.f32.mrf.mxu0
      %515 = vmatprep.mubr.bf16.mxu0 0
      %516 = vmatmul.mubr.bf16.gmra.mxu0 %v391
      %v517 = vpop.f32.mrf.mxu0
      %v518 = vadd.f32 0.0, %v517
      %v519 = vpop.f32.mrf.mxu0
      %v520 = vpop.f32.mrf.mxu0
      %v521 = vadd.f32 0.0, %v520
      %v522 = vpop.f32.mrf.mxu0
      %523 = vmatprep.mubr.bf16.mxu0 0
      %524 = vmatmul.mubr.bf16.gmra.mxu0 %v394
      %v525 = vpop.f32.mrf.mxu0
      %v526 = vadd.f32 0.0, %v525
      %v527 = vpop.f32.mrf.mxu0
      %v528 = vpop.f32.mrf.mxu0
      %v529 = vadd.f32 0.0, %v528
      %v530 = vpop.f32.mrf.mxu0
      %531 = vmatprep.mubr.bf16.mxu0 0
      %532 = vmatmul.mubr.bf16.gmra.mxu0 %v397
      %v533 = vpop.f32.mrf.mxu0
      %v534 = vadd.f32 0.0, %v533
      %v535 = vpop.f32.mrf.mxu0
      %v536 = vpop.f32.mrf.mxu0
      %v537 = vadd.f32 0.0, %v536
      %v538 = vpop.f32.mrf.mxu0
      %539 = vmatprep.mubr.bf16.mxu0 0
      %540 = vmatmul.mubr.bf16.gmra.mxu0 %v400
      %v541 = vpop.f32.mrf.mxu0
      %v542 = vadd.f32 0.0, %v541
      %v543 = vpop.f32.mrf.mxu0
      %v544 = vpop.f32.mrf.mxu0
      %v545 = vadd.f32 0.0, %v544
      %v546 = vpop.f32.mrf.mxu0
      %547 = vmatprep.mubr.bf16.mxu0 0
      %548 = vmatmul.mubr.bf16.gmra.mxu0 %v403
      %v549 = vpop.f32.mrf.mxu0
      %v550 = vadd.f32 0.0, %v549
      %v551 = vpop.f32.mrf.mxu0
      %v552 = vpop.f32.mrf.mxu0
      %v553 = vadd.f32 0.0, %v552
      %v554 = vpop.f32.mrf.mxu0
      %555 = vmatprep.mubr.bf16.mxu0 0
      %556 = vmatmul.mubr.bf16.gmra.mxu0 %v406
      %v557 = vpop.f32.mrf.mxu0
      %v558 = vadd.f32 0.0, %v557
      %v559 = vpop.f32.mrf.mxu0
      %v560 = vpop.f32.mrf.mxu0
      %v561 = vadd.f32 0.0, %v560
      %v562 = vpop.f32.mrf.mxu0
      %563 = vmatprep.mubr.bf16.mxu0 0
      %564 = vmatmul.mubr.bf16.gmra.mxu0 %v409
      %v565 = vpop.f32.mrf.mxu0
      %v566 = vadd.f32 0.0, %v565
      %v567 = vpop.f32.mrf.mxu0
      %v568 = vpop.f32.mrf.mxu0
      %v569 = vadd.f32 0.0, %v568
      %v570 = vpop.f32.mrf.mxu0
      %571 = vdwg.mxu0
      %v572 = vld [vmem:[%s2] sm:$0xf]
      %v573 = vld [vmem:[%s2 + $0x4] sm:$0xf]
      %v576 = vunpack.c.l.b16 %v572
      %v577 = vunpack.c.l.b16 %v573
      %v578 = vpack.c.b16 %v577, %v576
      %580 = vmatprep.subr.bf16.mxu0 0
      %581 = vmatpush1.bf16.msra.mxu0 0
      %582 = vmatprep.subr.bf16.mxu0 0
      %583 = vmatpush1.bf16.msra.mxu0 0
      %584 = vmatprep.subr.bf16.mxu0 0
      %585 = vmatpush1.bf16.msra.mxu0 0
      %586 = vmatprep.subr.bf16.mxu0 0
      %587 = vmatpush1.bf16.msra.mxu0 0
      %588 = vmatprep.subr.bf16.mxu0 0
      %589 = vmatpush1.bf16.msra.mxu0 0
      %590 = vmatprep.subr.bf16.mxu0 0
      %591 = vmatpush1.bf16.msra.mxu0 0
      %592 = vmatprep.subr.bf16.mxu0 0
      %593 = vmatpush1.bf16.msra.mxu0 0
      %594 = vmatprep.subr.bf16.mxu0 0
      %595 = vmatpush1.bf16.msra.mxu0 %v578
      %596 = vmatprep.subr.bf16.mxu0 0
      %597 = vmatpush2.bf16.msra.mxu0 0
      %598 = vmatprep.subr.bf16.mxu0 0
      %599 = vmatpush2.bf16.msra.mxu0 0
      %600 = vmatprep.subr.bf16.mxu0 0
      %601 = vmatpush2.bf16.msra.mxu0 0
      %602 = vmatprep.subr.bf16.mxu0 0
      %603 = vmatpush2.bf16.msra.mxu0 0
      %604 = vmatprep.subr.bf16.mxu0 0
      %605 = vmatpush2.bf16.msra.mxu0 0
      %606 = vmatprep.subr.bf16.mxu0 0
      %607 = vmatpush2.bf16.msra.mxu0 0
      %608 = vmatprep.subr.bf16.mxu0 0
      %609 = vmatpush2.bf16.msra.mxu0 0
      %610 = vmatprep.subr.bf16.mxu0 0
      %611 = vmatpush2.bf16.msra.mxu0 0
      %612 = vmatprep.mubr.bf16.mxu0 0
      %613 = vmatmul.mubr.bf16.gmra.mxu0 %v364
      %v614 = vpop.f32.mrf.mxu0
      %v615 = vadd.f32 0.0, %v614
      %v616 = vpop.f32.mrf.mxu0
      %v617 = vpop.f32.mrf.mxu0
      %v618 = vadd.f32 0.0, %v617
      %v619 = vpop.f32.mrf.mxu0
      %620 = vmatprep.mubr.bf16.mxu0 0
      %621 = vmatmul.mubr.bf16.gmra.mxu0 %v367
      %v622 = vpop.f32.mrf.mxu0
      %v623 = vadd.f32 0.0, %v622
      %v624 = vpop.f32.mrf.mxu0
      %v625 = vpop.f32.mrf.mxu0
      %v626 = vadd.f32 0.0, %v625
      %v627 = vpop.f32.mrf.mxu0
      %628 = vmatprep.mubr.bf16.mxu0 0
      %629 = vmatmul.mubr.bf16.gmra.mxu0 %v370
      %v630 = vpop.f32.mrf.mxu0
      %v631 = vadd.f32 0.0, %v630
      %v632 = vpop.f32.mrf.mxu0
      %v633 = vpop.f32.mrf.mxu0
      %v634 = vadd.f32 0.0, %v633
      %v635 = vpop.f32.mrf.mxu0
      %636 = vmatprep.mubr.bf16.mxu0 0
      %637 = vmatmul.mubr.bf16.gmra.mxu0 %v373
      %v638 = vpop.f32.mrf.mxu0
      %v639 = vadd.f32 0.0, %v638
      %v640 = vpop.f32.mrf.mxu0
      %v641 = vpop.f32.mrf.mxu0
      %v642 = vadd.f32 0.0, %v641
      %v643 = vpop.f32.mrf.mxu0
      %644 = vmatprep.mubr.bf16.mxu0 0
      %645 = vmatmul.mubr.bf16.gmra.mxu0 %v376
      %v646 = vpop.f32.mrf.mxu0
      %v647 = vadd.f32 0.0, %v646
      %v648 = vpop.f32.mrf.mxu0
      %v649 = vpop.f32.mrf.mxu0
      %v650 = vadd.f32 0.0, %v649
      %v651 = vpop.f32.mrf.mxu0
      %652 = vmatprep.mubr.bf16.mxu0 0
      %653 = vmatmul.mubr.bf16.gmra.mxu0 %v379
      %v654 = vpop.f32.mrf.mxu0
      %v655 = vadd.f32 0.0, %v654
      %v656 = vpop.f32.mrf.mxu0
      %v657 = vpop.f32.mrf.mxu0
      %v658 = vadd.f32 0.0, %v657
      %v659 = vpop.f32.mrf.mxu0
      %660 = vmatprep.mubr.bf16.mxu0 0
      %661 = vmatmul.mubr.bf16.gmra.mxu0 %v382
      %v662 = vpop.f32.mrf.mxu0
      %v663 = vadd.f32 0.0, %v662
      %v664 = vpop.f32.mrf.mxu0
      %v665 = vpop.f32.mrf.mxu0
      %v666 = vadd.f32 0.0, %v665
      %v667 = vpop.f32.mrf.mxu0
      %668 = vmatprep.mubr.bf16.mxu0 0
      %669 = vmatmul.mubr.bf16.gmra.mxu0 %v385
      %v670 = vpop.f32.mrf.mxu0
      %v671 = vadd.f32 0.0, %v670
      %v672 = vpop.f32.mrf.mxu0
      %v673 = vpop.f32.mrf.mxu0
      %v674 = vadd.f32 0.0, %v673
      %v675 = vpop.f32.mrf.mxu0
      %676 = vmatprep.mubr.bf16.mxu0 0
      %677 = vmatmul.mubr.bf16.gmra.mxu0 %v388
      %v678 = vpop.f32.mrf.mxu0
      %v679 = vadd.f32 0.0, %v678
      %v680 = vpop.f32.mrf.mxu0
      %v681 = vpop.f32.mrf.mxu0
      %v682 = vadd.f32 0.0, %v681
      %v683 = vpop.f32.mrf.mxu0
      %684 = vmatprep.mubr.bf16.mxu0 0
      %685 = vmatmul.mubr.bf16.gmra.mxu0 %v391
      %v686 = vpop.f32.mrf.mxu0
      %v687 = vadd.f32 0.0, %v686
      %v688 = vpop.f32.mrf.mxu0
      %v689 = vpop.f32.mrf.mxu0
      %v690 = vadd.f32 0.0, %v689
      %v691 = vpop.f32.mrf.mxu0
      %692 = vmatprep.mubr.bf16.mxu0 0
      %693 = vmatmul.mubr.bf16.gmra.mxu0 %v394
      %v694 = vpop.f32.mrf.mxu0
      %v695 = vadd.f32 0.0, %v694
      %v696 = vpop.f32.mrf.mxu0
      %v697 = vpop.f32.mrf.mxu0
      %v698 = vadd.f32 0.0, %v697
      %v699 = vpop.f32.mrf.mxu0
      %700 = vmatprep.mubr.bf16.mxu0 0
      %701 = vmatmul.mubr.bf16.gmra.mxu0 %v397
      %v702 = vpop.f32.mrf.mxu0
      %v703 = vadd.f32 0.0, %v702
      %v704 = vpop.f32.mrf.mxu0
      %v705 = vpop.f32.mrf.mxu0
      %v706 = vadd.f32 0.0, %v705
      %v707 = vpop.f32.mrf.mxu0
      %708 = vmatprep.mubr.bf16.mxu0 0
      %709 = vmatmul.mubr.bf16.gmra.mxu0 %v400
      %v710 = vpop.f32.mrf.mxu0
      %v711 = vadd.f32 0.0, %v710
      %v712 = vpop.f32.mrf.mxu0
      %v713 = vpop.f32.mrf.mxu0
      %v714 = vadd.f32 0.0, %v713
      %v715 = vpop.f32.mrf.mxu0
      %716 = vmatprep.mubr.bf16.mxu0 0
      %717 = vmatmul.mubr.bf16.gmra.mxu0 %v403
      %v718 = vpop.f32.mrf.mxu0
      %v719 = vadd.f32 0.0, %v718
      %v720 = vpop.f32.mrf.mxu0
      %v721 = vpop.f32.mrf.mxu0
      %v722 = vadd.f32 0.0, %v721
      %v723 = vpop.f32.mrf.mxu0
      %724 = vmatprep.mubr.bf16.mxu0 0
      %725 = vmatmul.mubr.bf16.gmra.mxu0 %v406
      %v726 = vpop.f32.mrf.mxu0
      %v727 = vadd.f32 0.0, %v726
      %v728 = vpop.f32.mrf.mxu0
      %v729 = vpop.f32.mrf.mxu0
      %v730 = vadd.f32 0.0, %v729
      %v731 = vpop.f32.mrf.mxu0
      %732 = vmatprep.mubr.bf16.mxu0 0
      %733 = vmatmul.mubr.bf16.gmra.mxu0 %v409
      %v734 = vpop.f32.mrf.mxu0
      %v735 = vadd.f32 0.0, %v734
      %v736 = vpop.f32.mrf.mxu0
      %v737 = vpop.f32.mrf.mxu0
      %v738 = vadd.f32 0.0, %v737
      %v739 = vpop.f32.mrf.mxu0
      %740 = vdwg.mxu0
      %v741 = vld [vmem:[%s3] sm:$0x1]
      %v742 = vsel %vm362, %v446, 0.0
      %v743 = vsel %vm362, %v449, 0.0
      %v744 = vadd.f32 %v742, %v743
      %v745 = vsel %vm362, %v454, 0.0
      %v746 = vadd.f32 %v744, %v745
      %v747 = vsel %vm362, %v457, 0.0
      %v748 = vadd.f32 %v746, %v747
      %v749 = vsel %vm362, %v462, 0.0
      %v750 = vadd.f32 %v748, %v749
      %v751 = vsel %vm362, %v465, 0.0
      %v752 = vadd.f32 %v750, %v751
      %v753 = vsel %vm362, %v470, 0.0
      %v754 = vadd.f32 %v752, %v753
      %v755 = vsel %vm362, %v473, 0.0
      %v756 = vadd.f32 %v754, %v755
      %v757 = vsel %vm362, %v478, 0.0
      %v758 = vadd.f32 %v756, %v757
      %v759 = vsel %vm362, %v481, 0.0
      %v760 = vadd.f32 %v758, %v759
      %v761 = vsel %vm362, %v486, 0.0
      %v762 = vadd.f32 %v760, %v761
      %v763 = vsel %vm362, %v489, 0.0
      %v764 = vadd.f32 %v762, %v763
      %v765 = vsel %vm362, %v494, 0.0
      %v766 = vadd.f32 %v764, %v765
      %v767 = vsel %vm362, %v497, 0.0
      %v768 = vadd.f32 %v766, %v767
      %v769 = vsel %vm362, %v502, 0.0
      %v770 = vadd.f32 %v768, %v769
      %v771 = vsel %vm362, %v505, 0.0
      %v772 = vadd.f32 %v770, %v771
      %v773 = vsel %vm362, %v510, 0.0
      %v774 = vadd.f32 %v772, %v773
      %v775 = vsel %vm362, %v513, 0.0
      %v776 = vadd.f32 %v774, %v775
      %v777 = vsel %vm362, %v518, 0.0
      %v778 = vadd.f32 %v776, %v777
      %v779 = vsel %vm362, %v521, 0.0
      %v780 = vadd.f32 %v778, %v779
      %v781 = vsel %vm362, %v526, 0.0
      %v782 = vadd.f32 %v780, %v781
      %v783 = vsel %vm362, %v529, 0.0
      %v784 = vadd.f32 %v782, %v783
      %v785 = vsel %vm362, %v534, 0.0
      %v786 = vadd.f32 %v784, %v785
      %v787 = vsel %vm362, %v537, 0.0
      %v788 = vadd.f32 %v786, %v787
      %v789 = vsel %vm362, %v542, 0.0
      %v790 = vadd.f32 %v788, %v789
      %v791 = vsel %vm362, %v545, 0.0
      %v792 = vadd.f32 %v790, %v791
      %v793 = vsel %vm362, %v550, 0.0
      %v794 = vadd.f32 %v792, %v793
      %v795 = vsel %vm362, %v553, 0.0
      %v796 = vadd.f32 %v794, %v795
      %v797 = vsel %vm362, %v558, 0.0
      %v798 = vadd.f32 %v796, %v797
      %v799 = vsel %vm362, %v561, 0.0
      %v800 = vadd.f32 %v798, %v799
      %v801 = vsel %vm362, %v566, 0.0
      %v802 = vadd.f32 %v800, %v801
      %v803 = vsel %vm362, %v569, 0.0
      %v804 = vadd.f32 %v802, %v803
      %v805 = vrot.slane %v804, 4
      %v806 = vadd.f32 %v804, %v805
      %v807 = vrot.slane %v806, 2
      %v808 = vadd.f32 %v806, %v807
      %v809 = vrot.slane %v808, 1
      %v810 = vadd.f32 %v808, %v809
      %v811 = vadd.f32 %v741, %v810
      %vm812 = vcmask 122880
      %813 = vst.msk [vmem:[%s3] sm:$0x1] %vm812, %v811
      %v814 = vld [vmem:[%s4] sm:$0x1]
      %v815 = vmul.f32 %v446, %v446
      %v816 = vmul.f32 %v449, %v449
      %v817 = vmul.f32 %v454, %v454
      %v818 = vmul.f32 %v457, %v457
      %v819 = vmul.f32 %v462, %v462
      %v820 = vmul.f32 %v465, %v465
      %v821 = vmul.f32 %v470, %v470
      %v822 = vmul.f32 %v473, %v473
      %v823 = vmul.f32 %v478, %v478
      %v824 = vmul.f32 %v481, %v481
      %v825 = vmul.f32 %v486, %v486
      %v826 = vmul.f32 %v489, %v489
      %v827 = vmul.f32 %v494, %v494
      %v828 = vmul.f32 %v497, %v497
      %v829 = vmul.f32 %v502, %v502
      %v830 = vmul.f32 %v505, %v505
      %v831 = vmul.f32 %v510, %v510
      %v832 = vmul.f32 %v513, %v513
      %v833 = vmul.f32 %v518, %v518
      %v834 = vmul.f32 %v521, %v521
      %v835 = vmul.f32 %v526, %v526
      %v836 = vmul.f32 %v529, %v529
      %v837 = vmul.f32 %v534, %v534
      %v838 = vmul.f32 %v537, %v537
      %v839 = vmul.f32 %v542, %v542
      %v840 = vmul.f32 %v545, %v545
      %v841 = vmul.f32 %v550, %v550
      %v842 = vmul.f32 %v553, %v553
      %v843 = vmul.f32 %v558, %v558
      %v844 = vmul.f32 %v561, %v561
      %v845 = vmul.f32 %v566, %v566
      %v846 = vmul.f32 %v569, %v569
      %v847 = vsel %vm362, %v815, 0.0
      %v848 = vsel %vm362, %v816, 0.0
      %v849 = vadd.f32 %v847, %v848
      %v850 = vsel %vm362, %v817, 0.0
      %v851 = vadd.f32 %v849, %v850
      %v852 = vsel %vm362, %v818, 0.0
      %v853 = vadd.f32 %v851, %v852
      %v854 = vsel %vm362, %v819, 0.0
      %v855 = vadd.f32 %v853, %v854
      %v856 = vsel %vm362, %v820, 0.0
      %v857 = vadd.f32 %v855, %v856
      %v858 = vsel %vm362, %v821, 0.0
      %v859 = vadd.f32 %v857, %v858
      %v860 = vsel %vm362, %v822, 0.0
      %v861 = vadd.f32 %v859, %v860
      %v862 = vsel %vm362, %v823, 0.0
      %v863 = vadd.f32 %v861, %v862
      %v864 = vsel %vm362, %v824, 0.0
      %v865 = vadd.f32 %v863, %v864
      %v866 = vsel %vm362, %v825, 0.0
      %v867 = vadd.f32 %v865, %v866
      %v868 = vsel %vm362, %v826, 0.0
      %v869 = vadd.f32 %v867, %v868
      %v870 = vsel %vm362, %v827, 0.0
      %v871 = vadd.f32 %v869, %v870
      %v872 = vsel %vm362, %v828, 0.0
      %v873 = vadd.f32 %v871, %v872
      %v874 = vsel %vm362, %v829, 0.0
      %v875 = vadd.f32 %v873, %v874
      %v876 = vsel %vm362, %v830, 0.0
      %v877 = vadd.f32 %v875, %v876
      %v878 = vsel %vm362, %v831, 0.0
      %v879 = vadd.f32 %v877, %v878
      %v880 = vsel %vm362, %v832, 0.0
      %v881 = vadd.f32 %v879, %v880
      %v882 = vsel %vm362, %v833, 0.0
      %v883 = vadd.f32 %v881, %v882
      %v884 = vsel %vm362, %v834, 0.0
      %v885 = vadd.f32 %v883, %v884
      %v886 = vsel %vm362, %v835, 0.0
      %v887 = vadd.f32 %v885, %v886
      %v888 = vsel %vm362, %v836, 0.0
      %v889 = vadd.f32 %v887, %v888
      %v890 = vsel %vm362, %v837, 0.0
      %v891 = vadd.f32 %v889, %v890
      %v892 = vsel %vm362, %v838, 0.0
      %v893 = vadd.f32 %v891, %v892
      %v894 = vsel %vm362, %v839, 0.0
      %v895 = vadd.f32 %v893, %v894
      %v896 = vsel %vm362, %v840, 0.0
      %v897 = vadd.f32 %v895, %v896
      %v898 = vsel %vm362, %v841, 0.0
      %v899 = vadd.f32 %v897, %v898
      %v900 = vsel %vm362, %v842, 0.0
      %v901 = vadd.f32 %v899, %v900
      %v902 = vsel %vm362, %v843, 0.0
      %v903 = vadd.f32 %v901, %v902
      %v904 = vsel %vm362, %v844, 0.0
      %v905 = vadd.f32 %v903, %v904
      %v906 = vsel %vm362, %v845, 0.0
      %v907 = vadd.f32 %v905, %v906
      %v908 = vsel %vm362, %v846, 0.0
      %v909 = vadd.f32 %v907, %v908
      %v910 = vrot.slane %v909, 4
      %v911 = vadd.f32 %v909, %v910
      %v912 = vrot.slane %v911, 2
      %v913 = vadd.f32 %v911, %v912
      %v914 = vrot.slane %v913, 1
      %v915 = vadd.f32 %v913, %v914
      %v916 = vadd.f32 %v814, %v915
      %917 = vst.msk [vmem:[%s4] sm:$0x1] %vm812, %v916
      %v918 = vld [vmem:[%s5] sm:$0x1]
      %vm919 = vcmask 261120
      %v920 = vsel %vm919, %v615, 0.0
      %v921 = vsel %vm919, %v618, 0.0
      %v922 = vadd.f32 %v920, %v921
      %v923 = vsel %vm919, %v623, 0.0
      %v924 = vadd.f32 %v922, %v923
      %v925 = vsel %vm919, %v626, 0.0
      %v926 = vadd.f32 %v924, %v925
      %v927 = vsel %vm919, %v631, 0.0
      %v928 = vadd.f32 %v926, %v927
      %v929 = vsel %vm919, %v634, 0.0
      %v930 = vadd.f32 %v928, %v929
      %v931 = vsel %vm919, %v639, 0.0
      %v932 = vadd.f32 %v930, %v931
      %v933 = vsel %vm919, %v642, 0.0
      %v934 = vadd.f32 %v932, %v933
      %v935 = vsel %vm919, %v647, 0.0
      %v936 = vadd.f32 %v934, %v935
      %v937 = vsel %vm919, %v650, 0.0
      %v938 = vadd.f32 %v936, %v937
      %v939 = vsel %vm919, %v655, 0.0
      %v940 = vadd.f32 %v938, %v939
      %v941 = vsel %vm919, %v658, 0.0
      %v942 = vadd.f32 %v940, %v941
      %v943 = vsel %vm919, %v663, 0.0
      %v944 = vadd.f32 %v942, %v943
      %v945 = vsel %vm919, %v666, 0.0
      %v946 = vadd.f32 %v944, %v945
      %v947 = vsel %vm919, %v671, 0.0
      %v948 = vadd.f32 %v946, %v947
      %v949 = vsel %vm919, %v674, 0.0
      %v950 = vadd.f32 %v948, %v949
      %v951 = vsel %vm919, %v679, 0.0
      %v952 = vadd.f32 %v950, %v951
      %v953 = vsel %vm919, %v682, 0.0
      %v954 = vadd.f32 %v952, %v953
      %v955 = vsel %vm919, %v687, 0.0
      %v956 = vadd.f32 %v954, %v955
      %v957 = vsel %vm919, %v690, 0.0
      %v958 = vadd.f32 %v956, %v957
      %v959 = vsel %vm919, %v695, 0.0
      %v960 = vadd.f32 %v958, %v959
      %v961 = vsel %vm919, %v698, 0.0
      %v962 = vadd.f32 %v960, %v961
      %v963 = vsel %vm919, %v703, 0.0
      %v964 = vadd.f32 %v962, %v963
      %v965 = vsel %vm919, %v706, 0.0
      %v966 = vadd.f32 %v964, %v965
      %v967 = vsel %vm919, %v711, 0.0
      %v968 = vadd.f32 %v966, %v967
      %v969 = vsel %vm919, %v714, 0.0
      %v970 = vadd.f32 %v968, %v969
      %v971 = vsel %vm919, %v719, 0.0
      %v972 = vadd.f32 %v970, %v971
      %v973 = vsel %vm919, %v722, 0.0
      %v974 = vadd.f32 %v972, %v973
      %v975 = vsel %vm919, %v727, 0.0
      %v976 = vadd.f32 %v974, %v975
      %v977 = vsel %vm919, %v730, 0.0
      %v978 = vadd.f32 %v976, %v977
      %v979 = vsel %vm919, %v735, 0.0
      %v980 = vadd.f32 %v978, %v979
      %v981 = vsel %vm919, %v738, 0.0
      %v982 = vadd.f32 %v980, %v981
      %v983 = vrot.slane %v982, 4
      %v984 = vadd.f32 %v982, %v983
      %v985 = vrot.slane %v984, 2
      %v986 = vadd.f32 %v984, %v985
      %v987 = vrot.slane %v986, 1
      %v988 = vadd.f32 %v986, %v987
      %v989 = vadd.f32 %v918, %v988
      %vm990 = vcmask 253952
      %991 = vst.msk [vmem:[%s5] sm:$0x1] %vm990, %v989
      %v992 = vld [vmem:[%s6] sm:$0x1]
      %v993 = vmul.f32 %v615, %v615
      %v994 = vmul.f32 %v618, %v618
      %v995 = vmul.f32 %v623, %v623
      %v996 = vmul.f32 %v626, %v626
      %v997 = vmul.f32 %v631, %v631
      %v998 = vmul.f32 %v634, %v634
      %v999 = vmul.f32 %v639, %v639
      %v1000 = vmul.f32 %v642, %v642
      %v1001 = vmul.f32 %v647, %v647
      %v1002 = vmul.f32 %v650, %v650
      %v1003 = vmul.f32 %v655, %v655
      %v1004 = vmul.f32 %v658, %v658
      %v1005 = vmul.f32 %v663, %v663
      %v1006 = vmul.f32 %v666, %v666
      %v1007 = vmul.f32 %v671, %v671
      %v1008 = vmul.f32 %v674, %v674
      %v1009 = vmul.f32 %v679, %v679
      %v1010 = vmul.f32 %v682, %v682
      %v1011 = vmul.f32 %v687, %v687
      %v1012 = vmul.f32 %v690, %v690
      %v1013 = vmul.f32 %v695, %v695
      %v1014 = vmul.f32 %v698, %v698
      %v1015 = vmul.f32 %v703, %v703
      %v1016 = vmul.f32 %v706, %v706
      %v1017 = vmul.f32 %v711, %v711
      %v1018 = vmul.f32 %v714, %v714
      %v1019 = vmul.f32 %v719, %v719
      %v1020 = vmul.f32 %v722, %v722
      %v1021 = vmul.f32 %v727, %v727
      %v1022 = vmul.f32 %v730, %v730
      %v1023 = vmul.f32 %v735, %v735
      %v1024 = vmul.f32 %v738, %v738
      %v1025 = vsel %vm919, %v993, 0.0
      %v1026 = vsel %vm919, %v994, 0.0
      %v1027 = vadd.f32 %v1025, %v1026
      %v1028 = vsel %vm919, %v995, 0.0
      %v1029 = vadd.f32 %v1027, %v1028
      %v1030 = vsel %vm919, %v996, 0.0
      %v1031 = vadd.f32 %v1029, %v1030
      %v1032 = vsel %vm919, %v997, 0.0
      %v1033 = vadd.f32 %v1031, %v1032
      %v1034 = vsel %vm919, %v998, 0.0
      %v1035 = vadd.f32 %v1033, %v1034
      %v1036 = vsel %vm919, %v999, 0.0
      %v1037 = vadd.f32 %v1035, %v1036
      %v1038 = vsel %vm919, %v1000, 0.0
      %v1039 = vadd.f32 %v1037, %v1038
      %v1040 = vsel %vm919, %v1001, 0.0
      %v1041 = vadd.f32 %v1039, %v1040
      %v1042 = vsel %vm919, %v1002, 0.0
      %v1043 = vadd.f32 %v1041, %v1042
      %v1044 = vsel %vm919, %v1003, 0.0
      %v1045 = vadd.f32 %v1043, %v1044
      %v1046 = vsel %vm919, %v1004, 0.0
      %v1047 = vadd.f32 %v1045, %v1046
      %v1048 = vsel %vm919, %v1005, 0.0
      %v1049 = vadd.f32 %v1047, %v1048
      %v1050 = vsel %vm919, %v1006, 0.0
      %v1051 = vadd.f32 %v1049, %v1050
      %v1052 = vsel %vm919, %v1007, 0.0
      %v1053 = vadd.f32 %v1051, %v1052
      %v1054 = vsel %vm919, %v1008, 0.0
      %v1055 = vadd.f32 %v1053, %v1054
      %v1056 = vsel %vm919, %v1009, 0.0
      %v1057 = vadd.f32 %v1055, %v1056
      %v1058 = vsel %vm919, %v1010, 0.0
      %v1059 = vadd.f32 %v1057, %v1058
      %v1060 = vsel %vm919, %v1011, 0.0
      %v1061 = vadd.f32 %v1059, %v1060
      %v1062 = vsel %vm919, %v1012, 0.0
      %v1063 = vadd.f32 %v1061, %v1062
      %v1064 = vsel %vm919, %v1013, 0.0
      %v1065 = vadd.f32 %v1063, %v1064
      %v1066 = vsel %vm919, %v1014, 0.0
      %v1067 = vadd.f32 %v1065, %v1066
      %v1068 = vsel %vm919, %v1015, 0.0
      %v1069 = vadd.f32 %v1067, %v1068
      %v1070 = vsel %vm919, %v1016, 0.0
      %v1071 = vadd.f32 %v1069, %v1070
      %v1072 = vsel %vm919, %v1017, 0.0
      %v1073 = vadd.f32 %v1071, %v1072
      %v1074 = vsel %vm919, %v1018, 0.0
      %v1075 = vadd.f32 %v1073, %v1074
      %v1076 = vsel %vm919, %v1019, 0.0
      %v1077 = vadd.f32 %v1075, %v1076
      %v1078 = vsel %vm919, %v1020, 0.0
      %v1079 = vadd.f32 %v1077, %v1078
      %v1080 = vsel %vm919, %v1021, 0.0
      %v1081 = vadd.f32 %v1079, %v1080
      %v1082 = vsel %vm919, %v1022, 0.0
      %v1083 = vadd.f32 %v1081, %v1082
      %v1084 = vsel %vm919, %v1023, 0.0
      %v1085 = vadd.f32 %v1083, %v1084
      %v1086 = vsel %vm919, %v1024, 0.0
      %v1087 = vadd.f32 %v1085, %v1086
      %v1088 = vrot.slane %v1087, 4
      %v1089 = vadd.f32 %v1087, %v1088
      %v1090 = vrot.slane %v1089, 2
      %v1091 = vadd.f32 %v1089, %v1090
      %v1092 = vrot.slane %v1091, 1
      %v1093 = vadd.f32 %v1091, %v1092
      %v1094 = vadd.f32 %v992, %v1093
      %1095 = vst.msk [vmem:[%s6] sm:$0x1] %vm990, %v1094
      // Predicated region
      $region37: #{bottleneck_forward.4} parent=31 // pred_check
        %p1096 = pneg %p99
      $region38: #{bottleneck_forward.4} parent=31 // pred_check_branch
        %1098 = sbr.rel (%p1096) target = $region40
      $region39: #{bottleneck_forward.4} parent=31 // pred_region
        _
      $region40: #{bottleneck_forward.4} parent=31 // pred_fallthru
        _
      // Predicated region
      $region41: #{bottleneck_forward.4} parent=31 // pred_check
        %p1099 = pneg %p120
      $region42: #{bottleneck_forward.4} parent=31 // pred_check_branch
        %1101 = sbr.rel (%p1099) target = $region44
      $region43: #{bottleneck_forward.4} parent=31 // pred_region
        _
      $region44: #{bottleneck_forward.4} parent=31 // pred_fallthru
        _
      // Predicated region
      $region45: #{bottleneck_forward.4} parent=31 // pred_check
        %p1102 = pneg %p141
      $region46: #{bottleneck_forward.4} parent=31 // pred_check_branch
        %1104 = sbr.rel (%p1102) target = $region48
      $region47: #{bottleneck_forward.4} parent=31 // pred_region
        _
      $region48: #{bottleneck_forward.4} parent=31 // pred_fallthru
        _
      // Predicated region
      $region49: #{bottleneck_forward.4} parent=31 // pred_check
        %p1105 = pneg %p162
      $region50: #{bottleneck_forward.4} parent=31 // pred_check_branch
        %1107 = sbr.rel (%p1105) target = $region52
      $region51: #{bottleneck_forward.4} parent=31 // pred_region
        _
      $region52: #{bottleneck_forward.4} parent=31 // pred_fallthru
        _
      // Predicated region
      $region53: #{bottleneck_forward.4} parent=31 // pred_check
        %p1108 = pneg %p99
      $region54: #{bottleneck_forward.4} parent=31 // pred_check_branch
        %1110 = sbr.rel (%p1108) target = $region56
      $region55: #{bottleneck_forward.4} parent=31 // pred_region
        _
      $region56: #{bottleneck_forward.4} parent=31 // pred_fallthru
        _
      // Predicated region
      $region57: #{bottleneck_forward.4} parent=31 // pred_check
        %p1111 = pneg %p120
      $region58: #{bottleneck_forward.4} parent=31 // pred_check_branch
        %1113 = sbr.rel (%p1111) target = $region60
      $region59: #{bottleneck_forward.4} parent=31 // pred_region
        _
      $region60: #{bottleneck_forward.4} parent=31 // pred_fallthru
        _
      // Predicated region
      $region61: #{bottleneck_forward.4} parent=31 // pred_check
        %p1114 = pneg %p141
      $region62: #{bottleneck_forward.4} parent=31 // pred_check_branch
        %1116 = sbr.rel (%p1114) target = $region64
      $region63: #{bottleneck_forward.4} parent=31 // pred_region
        _
      $region64: #{bottleneck_forward.4} parent=31 // pred_fallthru
        _
      // Predicated region
      $region65: #{bottleneck_forward.4} parent=31 // pred_check
        %p1117 = pneg %p162
      $region66: #{bottleneck_forward.4} parent=31 // pred_check_branch
        %1119 = sbr.rel (%p1117) target = $region68
      $region67: #{bottleneck_forward.4} parent=31 // pred_region
        _
      $region68: #{bottleneck_forward.4} parent=31 // pred_fallthru
        _
    $region32: #{bottleneck_forward.4} parent=5 // pred_fallthru
      _
    %p1120 = scmp.le.s32.totalorder 2, %s13
    // Predicated region
    $region69: #{bottleneck_forward.4} parent=5 // pred_check
      %p1121 = pneg %p1120
    $region70: #{bottleneck_forward.4} parent=5 // pred_check_branch
      %1123 = sbr.rel (%p1121) target = $region72
    $region71: #{bottleneck_forward.4} parent=5 // pred_region
      %s1124 = ssub.s32 %s13, 2
    $region72: #{bottleneck_forward.4} parent=5 // pred_fallthru
      _
  $region6: #{bottleneck_forward.4} parent=0 // loop_footer
    %s17 = sadd.s32 1, %s13
  $region7: #{bottleneck_forward.4} parent=0 // loop_footer_branch
    %12 = sbr.rel target = $region3
  $region8: #{bottleneck_forward.4} parent=0 // loop_exit
    _

// kernel: bottleneck_forward.5
$region0: #{bottleneck_forward.5}
  #allocation0 [shape = 'u32[]', space=smem, size = 0x4, offset = 0x4, fixed_abs, tag = 'smem constant byte address 0x4 - core index']
  #allocation1 [shape = 'u32[144,128]{1,0:T(1,128)}', space=vmem, size = 0x12000, scoped, tag = 'internal scratch']
  %s0 = inlined_call_operand.vmem [shape: bf16[512,16], index: 0, kind: input, shape index: {}]
  %s1 = inlined_call_operand.vmem [shape: bf16[16,16], index: 1, kind: input, shape index: {}]
  %s2 = inlined_call_operand.vmem [shape: f32[1,16], index: 2, kind: input, shape index: {}]
  %s3 = inlined_call_operand.vmem [shape: f32[1,16], index: 3, kind: input, shape index: {}]
  %s4 = inlined_call_operand.vmem [shape: bf16[144,8], index: 4, kind: input, shape index: {}]
  %s5 = inlined_call_operand.vmem [shape: f32[512,8], index: 5, kind: output, shape index: {0}]
  %s6 = inlined_call_operand.vmem [shape: f32[1,8], index: 6, kind: output, shape index: {1}]
  %s7 = inlined_call_operand.vmem [shape: f32[1,8], index: 7, kind: output, shape index: {2}]
  %8 = xla_tuple %s5, %s6, %s7
  %s9 = sld [smem:[#allocation0]]
  $region73: #{bottleneck_forward.5} parent=0
    _
  %s11 = ssub.s32 1, %s9
  %s12 = scalar_select 0, %s11, %s9
  loop: start=0, step=1, limit=4
  $region2: #{bottleneck_forward.5} parent=0 // loop_pre_header
    _
  $region3: #{bottleneck_forward.5} parent=0 // loop_header
    %s14 = sphi 0, %s18
    %p15 = scmp.ge.s32.totalorder %s14, 4
    %s24 = sphi 0, %s26
    %s27 = sphi 0, %s24
    %s28 = sphi 0, %s27
    %s44 = sphi 0, %s28
    %s48 = sphi 0, %s48
    %s50 = sphi 0, %s48
    %s51 = sphi 0, %s50
    %s65 = sphi 0, %s51
    %s69 = sphi 0, %s69
    %s71 = sphi 0, %s69
    %s72 = sphi 0, %s71
    %s86 = sphi 0, %s72
    %s90 = sphi 0, %s90
    %s92 = sphi 0, %s90
    %s93 = sphi 0, %s92
    %s107 = sphi 0, %s93
    %s111 = sphi 0, %s111
    %s113 = sphi 0, %s111
    %s114 = sphi 0, %s113
    %s128 = sphi 0, %s114
    %s134 = sphi 0, %s136
    %s137 = sphi 0, %s134
    %s138 = sphi 0, %s137
    %s154 = sphi 0, %s138
    %s158 = sphi 0, %s158
    %s160 = sphi 0, %s158
    %s161 = sphi 0, %s160
    %s175 = sphi 0, %s161
    %s179 = sphi 0, %s179
    %s181 = sphi 0, %s179
    %s182 = sphi 0, %s181
    %s196 = sphi 0, %s182
  $region4: #{bottleneck_forward.5} parent=0 // loop_header_branch
    %17 = sbr.rel (%p15) target = $region8
  $region5: #{bottleneck_forward.5} parent=0 // loop_body
    %s19 = ssub.s32 %s14, 1
    %s20 = ssub.s32 %s14, 2
    %s21 = sadd.s32 %s14, 1
    %s22 = ssub.s32 %s14, %s21
    %p23 = scmp.eq.s32.totalorder %s22, 0
    %s25 = sadd.s32 %s24, 1
    %s26 = scalar_select %p23, %s24, %s25
    %p29 = pneg %p23
    %p30 = scmp.eq.s32.totalorder %s14, 1
    %p31 = por %p29, %p30
    %p32 = scmp.ne.s32.totalorder %s24, %s27
    %p33 = scmp.eq.s32.totalorder %s14, 0
    %p34 = por %p32, %p33
    %p35 = scmp.ne.s32.totalorder %s24, %s27
    %p36 = scmp.eq.s32.totalorder %s19, 1
    %p37 = por %p35, %p36
    %p38 = scmp.ne.s32.totalorder %s27, %s28
    %p39 = scmp.eq.s32.totalorder %s19, 0
    %p40 = por %p38, %p39
    %p41 = scmp.ne.s32.totalorder %s27, %s28
    %p42 = scmp.eq.s32.totalorder %s20, 1
    %p43 = por %p41, %p42
    %p45 = scmp.ne.s32.totalorder %s28, %s44
    %p46 = scmp.eq.s32.totalorder %s20, 0
    %p47 = por %p45, %p46
    %s49 = sadd.s32 %s48, 1
    %p52 = scmp.eq.s32.totalorder %s14, 1
    %p53 = scmp.ne.s32.totalorder %s48, %s50
    %p54 = scmp.eq.s32.totalorder %s14, 0
    %p55 = por %p53, %p54
    %p56 = scmp.ne.s32.totalorder %s48, %s50
    %p57 = scmp.eq.s32.totalorder %s19, 1
    %p58 = por %p56, %p57
    %p59 = scmp.ne.s32.totalorder %s50, %s51
    %p60 = scmp.eq.s32.totalorder %s19, 0
    %p61 = por %p59, %p60
    %p62 = scmp.ne.s32.totalorder %s50, %s51
    %p63 = scmp.eq.s32.totalorder %s20, 1
    %p64 = por %p62, %p63
    %p66 = scmp.ne.s32.totalorder %s51, %s65
    %p67 = scmp.eq.s32.totalorder %s20, 0
    %p68 = por %p66, %p67
    %s70 = sadd.s32 %s69, 1
    %p73 = scmp.eq.s32.totalorder %s14, 1
    %p74 = scmp.ne.s32.totalorder %s69, %s71
    %p75 = scmp.eq.s32.totalorder %s14, 0
    %p76 = por %p74, %p75
    %p77 = scmp.ne.s32.totalorder %s69, %s71
    %p78 = scmp.eq.s32.totalorder %s19, 1
    %p79 = por %p77, %p78
    %p80 = scmp.ne.s32.totalorder %s71, %s72
    %p81 = scmp.eq.s32.totalorder %s19, 0
    %p82 = por %p80, %p81
    %p83 = scmp.ne.s32.totalorder %s71, %s72
    %p84 = scmp.eq.s32.totalorder %s20, 1
    %p85 = por %p83, %p84
    %p87 = scmp.ne.s32.totalorder %s72, %s86
    %p88 = scmp.eq.s32.totalorder %s20, 0
    %p89 = por %p87, %p88
    %s91 = sadd.s32 %s90, 1
    %p94 = scmp.eq.s32.totalorder %s14, 1
    %p95 = scmp.ne.s32.totalorder %s90, %s92
    %p96 = scmp.eq.s32.totalorder %s14, 0
    %p97 = por %p95, %p96
    %p98 = scmp.ne.s32.totalorder %s90, %s92
    %p99 = scmp.eq.s32.totalorder %s19, 1
    %p100 = por %p98, %p99
    %p101 = scmp.ne.s32.totalorder %s92, %s93
    %p102 = scmp.eq.s32.totalorder %s19, 0
    %p103 = por %p101, %p102
    %p104 = scmp.ne.s32.totalorder %s92, %s93
    %p105 = scmp.eq.s32.totalorder %s20, 1
    %p106 = por %p104, %p105
    %p108 = scmp.ne.s32.totalorder %s93, %s107
    %p109 = scmp.eq.s32.totalorder %s20, 0
    %p110 = por %p108, %p109
    %s112 = sadd.s32 %s111, 1
    %p115 = scmp.eq.s32.totalorder %s14, 1
    %p116 = scmp.ne.s32.totalorder %s111, %s113
    %p117 = scmp.eq.s32.totalorder %s14, 0
    %p118 = por %p116, %p117
    %p119 = scmp.ne.s32.totalorder %s111, %s113
    %p120 = scmp.eq.s32.totalorder %s19, 1
    %p121 = por %p119, %p120
    %p122 = scmp.ne.s32.totalorder %s113, %s114
    %p123 = scmp.eq.s32.totalorder %s19, 0
    %p124 = por %p122, %p123
    %p125 = scmp.ne.s32.totalorder %s113, %s114
    %p126 = scmp.eq.s32.totalorder %s20, 1
    %p127 = por %p125, %p126
    %p129 = scmp.ne.s32.totalorder %s114, %s128
    %p130 = scmp.eq.s32.totalorder %s20, 0
    %p131 = por %p129, %p130
    %s132 = ssub.s32 %s14, %s21
    %p133 = scmp.eq.s32.totalorder %s132, 0
    %s135 = sadd.s32 %s134, 1
    %s136 = scalar_select %p133, %s134, %s135
    %p139 = pneg %p133
    %p140 = scmp.eq.s32.totalorder %s14, 1
    %p141 = por %p139, %p140
    %p142 = scmp.ne.s32.totalorder %s134, %s137
    %p143 = scmp.eq.s32.totalorder %s14, 0
    %p144 = por %p142, %p143
    %p145 = scmp.ne.s32.totalorder %s134, %s137
    %p146 = scmp.eq.s32.totalorder %s19, 1
    %p147 = por %p145, %p146
    %p148 = scmp.ne.s32.totalorder %s137, %s138
    %p149 = scmp.eq.s32.totalorder %s19, 0
    %p150 = por %p148, %p149
    %p151 = scmp.ne.s32.totalorder %s137, %s138
    %p152 = scmp.eq.s32.totalorder %s20, 1
    %p153 = por %p151, %p152
    %p155 = scmp.ne.s32.totalorder %s138, %s154
    %p156 = scmp.eq.s32.totalorder %s20, 0
    %p157 = por %p155, %p156
    %s159 = sadd.s32 %s158, 1
    %p162 = scmp.eq.s32.totalorder %s14, 1
    %p163 = scmp.ne.s32.totalorder %s158, %s160
    %p164 = scmp.eq.s32.totalorder %s14, 0
    %p165 = por %p163, %p164
    %p166 = scmp.ne.s32.totalorder %s158, %s160
    %p167 = scmp.eq.s32.totalorder %s19, 1
    %p168 = por %p166, %p167
    %p169 = scmp.ne.s32.totalorder %s160, %s161
    %p170 = scmp.eq.s32.totalorder %s19, 0
    %p171 = por %p169, %p170
    %p172 = scmp.ne.s32.totalorder %s160, %s161
    %p173 = scmp.eq.s32.totalorder %s20, 1
    %p174 = por %p172, %p173
    %p176 = scmp.ne.s32.totalorder %s161, %s175
    %p177 = scmp.eq.s32.totalorder %s20, 0
    %p178 = por %p176, %p177
    %s180 = sadd.s32 %s179, 1
    %p183 = scmp.eq.s32.totalorder %s14, 1
    %p184 = scmp.ne.s32.totalorder %s179, %s181
    %p185 = scmp.eq.s32.totalorder %s14, 0
    %p186 = por %p184, %p185
    %p187 = scmp.ne.s32.totalorder %s179, %s181
    %p188 = scmp.eq.s32.totalorder %s19, 1
    %p189 = por %p187, %p188
    %p190 = scmp.ne.s32.totalorder %s181, %s182
    %p191 = scmp.eq.s32.totalorder %s19, 0
    %p192 = por %p190, %p191
    %p193 = scmp.ne.s32.totalorder %s181, %s182
    %p194 = scmp.eq.s32.totalorder %s20, 1
    %p195 = por %p193, %p194
    %p197 = scmp.ne.s32.totalorder %s182, %s196
    %p198 = scmp.eq.s32.totalorder %s20, 0
    %p199 = por %p197, %p198
    %p200 = scmp.le.s32.totalorder 1, %s14
    %p201 = scmp.lt.s32.totalorder %s14, 3
    %p202 = pnand %p200, %p201
    %p203 = pneg %p202
    // Predicated region
    $region9: #{bottleneck_forward.5} parent=5 // pred_check
      _
    $region10: #{bottleneck_forward.5} parent=5 // pred_check_branch
      %205 = sbr.rel (%p202) target = $region12
    $region11: #{bottleneck_forward.5} parent=5 // pred_region
      %s206 = ssub.s32 %s14, 1
      // Predicated region
      $region13: #{bottleneck_forward.5} parent=11 // pred_check
        %p207 = pneg %p61
      $region14: #{bottleneck_forward.5} parent=11 // pred_check_branch
        %209 = sbr.rel (%p207) target = $region16
      $region15: #{bottleneck_forward.5} parent=11 // pred_region
        _
      $region16: #{bottleneck_forward.5} parent=11 // pred_fallthru
        _
      // Predicated region
      $region17: #{bottleneck_forward.5} parent=11 // pred_check
        %p210 = pneg %p82
      $region18: #{bottleneck_forward.5} parent=11 // pred_check_branch
        %212 = sbr.rel (%p210) target = $region20
      $region19: #{bottleneck_forward.5} parent=11 // pred_region
        _
      $region20: #{bottleneck_forward.5} parent=11 // pred_fallthru
        _
      // Predicated region
      $region21: #{bottleneck_forward.5} parent=11 // pred_check
        %p213 = pneg %p103
      $region22: #{bottleneck_forward.5} parent=11 // pred_check_branch
        %215 = sbr.rel (%p213) target = $region24
      $region23: #{bottleneck_forward.5} parent=11 // pred_region
        _
      $region24: #{bottleneck_forward.5} parent=11 // pred_fallthru
        _
      // Predicated region
      $region25: #{bottleneck_forward.5} parent=11 // pred_check
        %p216 = pneg %p124
      $region26: #{bottleneck_forward.5} parent=11 // pred_check_branch
        %218 = sbr.rel (%p216) target = $region28
      $region27: #{bottleneck_forward.5} parent=11 // pred_region
        _
      $region28: #{bottleneck_forward.5} parent=11 // pred_fallthru
        _
    $region12: #{bottleneck_forward.5} parent=5 // pred_fallthru
      _
    %p219 = scmp.lt.s32.totalorder %s14, 2
    // Predicated region
    $region29: #{bottleneck_forward.5} parent=5 // pred_check
      %p220 = pneg %p219
    $region30: #{bottleneck_forward.5} parent=5 // pred_check_branch
      %222 = sbr.rel (%p220) target = $region32
    $region31: #{bottleneck_forward.5} parent=5 // pred_region
      // Predicated region
      $region33: #{bottleneck_forward.5} parent=31 // pred_check
        %p223 = pneg %p34
      $region34: #{bottleneck_forward.5} parent=31 // pred_check_branch
        %225 = sbr.rel (%p223) target = $region36
      $region35: #{bottleneck_forward.5} parent=31 // pred_region
        %s226 = smul.u32 32, %s14
        %p227 = scmp.lt.s32.totalorder %s226, 63
        %s228 = scalar_select %p227, %s226, 63
        %s229 = smul.addr %s228, 4
        %s230 = scalar_lea.vmem %s0, %s229
        %s231 = smul.u32 32, %s14
      $region36: #{bottleneck_forward.5} parent=31 // pred_fallthru
        _
    $region32: #{bottleneck_forward.5} parent=5 // pred_fallthru
      _
    %p232 = scmp.le.s32.totalorder 1, %s14
    %p233 = scmp.lt.s32.totalorder %s14, 3
    %p234 = pnand %p232, %p233
    %p235 = pneg %p234
    // Predicated region
    $region37: #{bottleneck_forward.5} parent=5 // pred_check
      _
    $region38: #{bottleneck_forward.5} parent=5 // pred_check_branch
      %237 = sbr.rel (%p234) target = $region40
    $region39: #{bottleneck_forward.5} parent=5 // pred_region
      %s238 = ssub.s32 %s14, 1
      %s239 = smul.u32 32, %s19
      %p240 = scmp.lt.s32.totalorder %s239, 63
      %s241 = scalar_select %p240, %s239, 63
      %s242 = smul.addr %s241, 4
      %s243 = scalar_lea.vmem %s0, %s242
      %p244 = pneg %p40
      %p245 = pneg %p37
      %p246 = pneg %p61
      %p247 = pneg %p58
      %p248 = pneg %p82
      %p249 = pneg %p79
      %p250 = pneg %p103
      %p251 = pneg %p100
      %p252 = pneg %p124
      %p253 = pneg %p121
      %p254 = pneg %p150
      %p255 = pneg %p147
      %s256 = smul.u32 32, %s19
      %p257 = scmp.lt.s32.totalorder %s256, 63
      %s258 = scalar_select %p257, %s256, 63
      %s259 = smul.addr %s258, 8
      %s260 = scalar_lea.vmem %s5, %s259
      %p261 = pneg %p171
      %p262 = pneg %p168
      %p263 = pneg %p192
      %p264 = pneg %p189
      %s265 = smul.u32 32, %s19
      %p266 = scmp.lt.s32.totalorder %s265, 63
      %s267 = scalar_select %p266, %s265, 63
      %s268 = smul.addr %s267, 4
      %s269 = scalar_lea.vmem %s0, %s268
      %s270 = smul.u32 32, %s19
      %s271 = smul.u32 32, %s19
      %p272 = scmp.lt.s32.totalorder %s271, 63
      %s273 = scalar_select %p272, %s271, 63
      %s274 = smul.addr %s273, 8
      %s275 = scalar_lea.vmem %s5, %s274
      %s276 = smul.u32 32, %s19
      %p278 = scmp.eq.s32.totalorder %s19, 0
      // Predicated region
      $region41: #{bottleneck_forward.5} parent=39 // pred_check
        %p279 = pneg %p278
      $region42: #{bottleneck_forward.5} parent=39 // pred_check_branch
        %281 = sbr.rel (%p279) target = $region44
      $region43: #{bottleneck_forward.5} parent=39 // pred_region
        %vm282 = vcmask 57344
        %283 = vst.msk [vmem:[%s6] sm:$0x1] %vm282, 0.0
        %284 = vst.msk [vmem:[%s7] sm:$0x1] %vm282, 0.0
      $region44: #{bottleneck_forward.5} parent=39 // pred_fallthru
        _
      %v285 = vld [vmem:[%s269] sm:$0xf]
      %v286 = vld [vmem:[%s269 + $0x4] sm:$0xf]
      %v287 = vld [vmem:[%s269 + $0x8] sm:$0xf]
      %v288 = vld [vmem:[%s269 + $0xc] sm:$0xf]
      %v289 = vld [vmem:[%s269 + $0x10] sm:$0xf]
      %v290 = vld [vmem:[%s269 + $0x14] sm:$0xf]
      %v291 = vld [vmem:[%s269 + $0x18] sm:$0xf]
      %v292 = vld [vmem:[%s269 + $0x1c] sm:$0xf]
      %v293 = vld [vmem:[%s269 + $0x20] sm:$0xf]
      %v294 = vld [vmem:[%s269 + $0x24] sm:$0xf]
      %v295 = vld [vmem:[%s269 + $0x28] sm:$0xf]
      %v296 = vld [vmem:[%s269 + $0x2c] sm:$0xf]
      %v297 = vld [vmem:[%s269 + $0x30] sm:$0xf]
      %v298 = vld [vmem:[%s269 + $0x34] sm:$0xf]
      %v299 = vld [vmem:[%s269 + $0x38] sm:$0xf]
      %v300 = vld [vmem:[%s269 + $0x3c] sm:$0xf]
      %v301 = vld [vmem:[%s269 + $0x40] sm:$0xf]
      %v302 = vld [vmem:[%s269 + $0x44] sm:$0xf]
      %v303 = vld [vmem:[%s269 + $0x48] sm:$0xf]
      %v304 = vld [vmem:[%s269 + $0x4c] sm:$0xf]
      %v305 = vld [vmem:[%s269 + $0x50] sm:$0xf]
      %v306 = vld [vmem:[%s269 + $0x54] sm:$0xf]
      %v307 = vld [vmem:[%s269 + $0x58] sm:$0xf]
      %v308 = vld [vmem:[%s269 + $0x5c] sm:$0xf]
      %v309 = vld [vmem:[%s269 + $0x60] sm:$0xf]
      %v310 = vld [vmem:[%s269 + $0x64] sm:$0xf]
      %v311 = vld [vmem:[%s269 + $0x68] sm:$0xf]
      %v312 = vld [vmem:[%s269 + $0x6c] sm:$0xf]
      %v313 = vld [vmem:[%s269 + $0x70] sm:$0xf]
      %v314 = vld [vmem:[%s269 + $0x74] sm:$0xf]
      %v315 = vld [vmem:[%s269 + $0x78] sm:$0xf]
      %v316 = vld [vmem:[%s269 + $0x7c] sm:$0xf]
      %v317 = vld [vmem:[%s1] sm:$0xf]
      %v318 = vld [vmem:[%s1 + $0x4] sm:$0xf]
      %v351 = vunpack.c.l.b16 %v285
      %v352 = vunpack.c.l.b16 %v286
      %v353 = vunpack.c.l.b16 %v287
      %v354 = vunpack.c.l.b16 %v288
      %v355 = vunpack.c.l.b16 %v289
      %v356 = vunpack.c.l.b16 %v290
      %v357 = vunpack.c.l.b16 %v291
      %v358 = vunpack.c.l.b16 %v292
      %v359 = vunpack.c.l.b16 %v293
      %v360 = vunpack.c.l.b16 %v294
      %v361 = vunpack.c.l.b16 %v295
      %v362 = vunpack.c.l.b16 %v296
      %v363 = vunpack.c.l.b16 %v297
      %v364 = vunpack.c.l.b16 %v298
      %v365 = vunpack.c.l.b16 %v299
      %v366 = vunpack.c.l.b16 %v300
      %v367 = vunpack.c.l.b16 %v301
      %v368 = vunpack.c.l.b16 %v302
      %v369 = vunpack.c.l.b16 %v303
      %v370 = vunpack.c.l.b16 %v304
      %v371 = vunpack.c.l.b16 %v305
      %v372 = vunpack.c.l.b16 %v306
      %v373 = vunpack.c.l.b16 %v307
      %v374 = vunpack.c.l.b16 %v308
      %v375 = vunpack.c.l.b16 %v309
      %v376 = vunpack.c.l.b16 %v310
      %v377 = vunpack.c.l.b16 %v311
      %v378 = vunpack.c.l.b16 %v312
      %v379 = vunpack.c.l.b16 %v313
      %v380 = vunpack.c.l.b16 %v314
      %v381 = vunpack.c.l.b16 %v315
      %v382 = vunpack.c.l.b16 %v316
      %v383 = vpack.c.b16 %v352, %v351
      %v384 = vpack.c.b16 %v354, %v353
      %v385 = vpack.c.b16 %v356, %v355
      %v386 = vpack.c.b16 %v358, %v357
      %v387 = vpack.c.b16 %v360, %v359
      %v388 = vpack.c.b16 %v362, %v361
      %v389 = vpack.c.b16 %v364, %v363
      %v390 = vpack.c.b16 %v366, %v365
      %v391 = vpack.c.b16 %v368, %v367
      %v392 = vpack.c.b16 %v370, %v369
      %v393 = vpack.c.b16 %v372, %v371
      %v394 = vpack.c.b16 %v374, %v373
      %v395 = vpack.c.b16 %v376, %v375
      %v396 = vpack.c.b16 %v378, %v377
      %v397 = vpack.c.b16 %v380, %v379
      %v398 = vpack.c.b16 %v382, %v381
      %v401 = vunpack.c.l.b16 %v317
      %v402 = vunpack.c.l.b16 %v318
      %v403 = vpack.c.b16 %v402, %v401
      %vm405 = vcmask 130048
      %v407 = vsel %vm405, %v383, 0
      %v410 = vsel %vm405, %v384, 0
      %v413 = vsel %vm405, %v385, 0
      %v416 = vsel %vm405, %v386, 0
      %v419 = vsel %vm405, %v387, 0
      %v422 = vsel %vm405, %v388, 0
      %v425 = vsel %vm405, %v389, 0
      %v428 = vsel %vm405, %v390, 0
      %v431 = vsel %vm405, %v391, 0
      %v434 = vsel %vm405, %v392, 0
      %v437 = vsel %vm405, %v393, 0
      %v440 = vsel %vm405, %v394, 0
      %v443 = vsel %vm405, %v395, 0
      %v446 = vsel %vm405, %v396, 0
      %v449 = vsel %vm405, %v397, 0
      %v452 = vsel %vm405, %v398, 0
      %454 = vmatprep.subr.bf16.mxu0 0
      %455 = vmatpush1.bf16.msra.mxu0 0
      %456 = vmatprep.subr.bf16.mxu0 0
      %457 = vmatpush1.bf16.msra.mxu0 0
      %458 = vmatprep.subr.bf16.mxu0 0
      %459 = vmatpush1.bf16.msra.mxu0 0
      %460 = vmatprep.subr.bf16.mxu0 0
      %461 = vmatpush1.bf16.msra.mxu0 0
      %462 = vmatprep.subr.bf16.mxu0 0
      %463 = vmatpush1.bf16.msra.mxu0 0
      %464 = vmatprep.subr.bf16.mxu0 0
      %465 = vmatpush1.bf16.msra.mxu0 0
      %466 = vmatprep.subr.bf16.mxu0 0
      %467 = vmatpush1.bf16.msra.mxu0 0
      %468 = vmatprep.subr.bf16.mxu0 0
      %469 = vmatpush1.bf16.msra.mxu0 %v403
      %470 = vmatprep.subr.bf16.mxu0 0
      %471 = vmatpush2.bf16.msra.mxu0 0
      %472 = vmatprep.subr.bf16.mxu0 0
      %473 = vmatpush2.bf16.msra.mxu0 0
      %474 = vmatprep.subr.bf16.mxu0 0
      %475 = vmatpush2.bf16.msra.mxu0 0
      %476 = vmatprep.subr.bf16.mxu0 0
      %477 = vmatpush2.bf16.msra.mxu0 0
      %478 = vmatprep.subr.bf16.mxu0 0
      %479 = vmatpush2.bf16.msra.mxu0 0
      %480 = vmatprep.subr.bf16.mxu0 0
      %481 = vmatpush2.bf16.msra.mxu0 0
      %482 = vmatprep.subr.bf16.mxu0 0
      %483 = vmatpush2.bf16.msra.mxu0 0
      %484 = vmatprep.subr.bf16.mxu0 0
      %485 = vmatpush2.bf16.msra.mxu0 0
      %486 = vmatprep.mubr.bf16.mxu0 0
      %487 = vmatmul.mubr.bf16.gmra.mxu0 %v407
      %v488 = vpop.f32.mrf.mxu0
      %v489 = vadd.f32 0.0, %v488
      %v490 = vpop.f32.mrf.mxu0
      %v491 = vpop.f32.mrf.mxu0
      %v492 = vadd.f32 0.0, %v491
      %v493 = vpop.f32.mrf.mxu0
      %494 = vmatprep.mubr.bf16.mxu0 0
      %495 = vmatmul.mubr.bf16.gmra.mxu0 %v410
      %v496 = vpop.f32.mrf.mxu0
      %v497 = vadd.f32 0.0, %v496
      %v498 = vpop.f32.mrf.mxu0
      %v499 = vpop.f32.mrf.mxu0
      %v500 = vadd.f32 0.0, %v499
      %v501 = vpop.f32.mrf.mxu0
      %502 = vmatprep.mubr.bf16.mxu0 0
      %503 = vmatmul.mubr.bf16.gmra.mxu0 %v413
      %v504 = vpop.f32.mrf.mxu0
      %v505 = vadd.f32 0.0, %v504
      %v506 = vpop.f32.mrf.mxu0
      %v507 = vpop.f32.mrf.mxu0
      %v508 = vadd.f32 0.0, %v507
      %v509 = vpop.f32.mrf.mxu0
      %510 = vmatprep.mubr.bf16.mxu0 0
      %511 = vmatmul.mubr.bf16.gmra.mxu0 %v416
      %v512 = vpop.f32.mrf.mxu0
      %v513 = vadd.f32 0.0, %v512
      %v514 = vpop.f32.mrf.mxu0
      %v515 = vpop.f32.mrf.mxu0
      %v516 = vadd.f32 0.0, %v515
      %v517 = vpop.f32.mrf.mxu0
      %518 = vmatprep.mubr.bf16.mxu0 0
      %519 = vmatmul.mubr.bf16.gmra.mxu0 %v419
      %v520 = vpop.f32.mrf.mxu0
      %v521 = vadd.f32 0.0, %v520
      %v522 = vpop.f32.mrf.mxu0
      %v523 = vpop.f32.mrf.mxu0
      %v524 = vadd.f32 0.0, %v523
      %v525 = vpop.f32.mrf.mxu0
      %526 = vmatprep.mubr.bf16.mxu0 0
      %527 = vmatmul.mubr.bf16.gmra.mxu0 %v422
      %v528 = vpop.f32.mrf.mxu0
      %v529 = vadd.f32 0.0, %v528
      %v530 = vpop.f32.mrf.mxu0
      %v531 = vpop.f32.mrf.mxu0
      %v532 = vadd.f32 0.0, %v531
      %v533 = vpop.f32.mrf.mxu0
      %534 = vmatprep.mubr.bf16.mxu0 0
      %535 = vmatmul.mubr.bf16.gmra.mxu0 %v425
      %v536 = vpop.f32.mrf.mxu0
      %v537 = vadd.f32 0.0, %v536
      %v538 = vpop.f32.mrf.mxu0
      %v539 = vpop.f32.mrf.mxu0
      %v540 = vadd.f32 0.0, %v539
      %v541 = vpop.f32.mrf.mxu0
      %542 = vmatprep.mubr.bf16.mxu0 0
      %543 = vmatmul.mubr.bf16.gmra.mxu0 %v428
      %v544 = vpop.f32.mrf.mxu0
      %v545 = vadd.f32 0.0, %v544
      %v546 = vpop.f32.mrf.mxu0
      %v547 = vpop.f32.mrf.mxu0
      %v548 = vadd.f32 0.0, %v547
      %v549 = vpop.f32.mrf.mxu0
      %550 = vmatprep.mubr.bf16.mxu0 0
      %551 = vmatmul.mubr.bf16.gmra.mxu0 %v431
      %v552 = vpop.f32.mrf.mxu0
      %v553 = vadd.f32 0.0, %v552
      %v554 = vpop.f32.mrf.mxu0
      %v555 = vpop.f32.mrf.mxu0
      %v556 = vadd.f32 0.0, %v555
      %v557 = vpop.f32.mrf.mxu0
      %558 = vmatprep.mubr.bf16.mxu0 0
      %559 = vmatmul.mubr.bf16.gmra.mxu0 %v434
      %v560 = vpop.f32.mrf.mxu0
      %v561 = vadd.f32 0.0, %v560
      %v562 = vpop.f32.mrf.mxu0
      %v563 = vpop.f32.mrf.mxu0
      %v564 = vadd.f32 0.0, %v563
      %v565 = vpop.f32.mrf.mxu0
      %566 = vmatprep.mubr.bf16.mxu0 0
      %567 = vmatmul.mubr.bf16.gmra.mxu0 %v437
      %v568 = vpop.f32.mrf.mxu0
      %v569 = vadd.f32 0.0, %v568
      %v570 = vpop.f32.mrf.mxu0
      %v571 = vpop.f32.mrf.mxu0
      %v572 = vadd.f32 0.0, %v571
      %v573 = vpop.f32.mrf.mxu0
      %574 = vmatprep.mubr.bf16.mxu0 0
      %575 = vmatmul.mubr.bf16.gmra.mxu0 %v440
      %v576 = vpop.f32.mrf.mxu0
      %v577 = vadd.f32 0.0, %v576
      %v578 = vpop.f32.mrf.mxu0
      %v579 = vpop.f32.mrf.mxu0
      %v580 = vadd.f32 0.0, %v579
      %v581 = vpop.f32.mrf.mxu0
      %582 = vmatprep.mubr.bf16.mxu0 0
      %583 = vmatmul.mubr.bf16.gmra.mxu0 %v443
      %v584 = vpop.f32.mrf.mxu0
      %v585 = vadd.f32 0.0, %v584
      %v586 = vpop.f32.mrf.mxu0
      %v587 = vpop.f32.mrf.mxu0
      %v588 = vadd.f32 0.0, %v587
      %v589 = vpop.f32.mrf.mxu0
      %590 = vmatprep.mubr.bf16.mxu0 0
      %591 = vmatmul.mubr.bf16.gmra.mxu0 %v446
      %v592 = vpop.f32.mrf.mxu0
      %v593 = vadd.f32 0.0, %v592
      %v594 = vpop.f32.mrf.mxu0
      %v595 = vpop.f32.mrf.mxu0
      %v596 = vadd.f32 0.0, %v595
      %v597 = vpop.f32.mrf.mxu0
      %598 = vmatprep.mubr.bf16.mxu0 0
      %599 = vmatmul.mubr.bf16.gmra.mxu0 %v449
      %v600 = vpop.f32.mrf.mxu0
      %v601 = vadd.f32 0.0, %v600
      %v602 = vpop.f32.mrf.mxu0
      %v603 = vpop.f32.mrf.mxu0
      %v604 = vadd.f32 0.0, %v603
      %v605 = vpop.f32.mrf.mxu0
      %606 = vmatprep.mubr.bf16.mxu0 0
      %607 = vmatmul.mubr.bf16.gmra.mxu0 %v452
      %v608 = vpop.f32.mrf.mxu0
      %v609 = vadd.f32 0.0, %v608
      %v610 = vpop.f32.mrf.mxu0
      %v611 = vpop.f32.mrf.mxu0
      %v612 = vadd.f32 0.0, %v611
      %v613 = vpop.f32.mrf.mxu0
      %614 = vdwg.mxu0
      %v615 = vld [vmem:[%s2] sm:$0x1]
      %v617 = vlaneseq
      %v618 = vshrl.u32 %v617, 7
      %v619 = vsub.s32 0, %v618
      %v620 = vrot.slane %v615, %v619
      %v622 = vmul.f32 %v489, %v620
      %v623 = vmul.f32 %v492, %v620
      %v624 = vmul.f32 %v497, %v620
      %v625 = vmul.f32 %v500, %v620
      %v626 = vmul.f32 %v505, %v620
      %v627 = vmul.f32 %v508, %v620
      %v628 = vmul.f32 %v513, %v620
      %v629 = vmul.f32 %v516, %v620
      %v630 = vmul.f32 %v521, %v620
      %v631 = vmul.f32 %v524, %v620
      %v632 = vmul.f32 %v529, %v620
      %v633 = vmul.f32 %v532, %v620
      %v634 = vmul.f32 %v537, %v620
      %v635 = vmul.f32 %v540, %v620
      %v636 = vmul.f32 %v545, %v620
      %v637 = vmul.f32 %v548, %v620
      %v638 = vmul.f32 %v553, %v620
      %v639 = vmul.f32 %v556, %v620
      %v640 = vmul.f32 %v561, %v620
      %v641 = vmul.f32 %v564, %v620
      %v642 = vmul.f32 %v569, %v620
      %v643 = vmul.f32 %v572, %v620
      %v644 = vmul.f32 %v577, %v620
      %v645 = vmul.f32 %v580, %v620
      %v646 = vmul.f32 %v585, %v620
      %v647 = vmul.f32 %v588, %v620
      %v648 = vmul.f32 %v593, %v620
      %v649 = vmul.f32 %v596, %v620
      %v650 = vmul.f32 %v601, %v620
      %v651 = vmul.f32 %v604, %v620
      %v652 = vmul.f32 %v609, %v620
      %v653 = vmul.f32 %v612, %v620
      %v654 = vld [vmem:[%s3] sm:$0x1]
      %v656 = vlaneseq
      %v657 = vshrl.u32 %v656, 7
      %v658 = vsub.s32 0, %v657
      %v659 = vrot.slane %v654, %v658
      %v661 = vadd.f32 %v622, %v659
      %v662 = vadd.f32 %v623, %v659
      %v663 = vadd.f32 %v624, %v659
      %v664 = vadd.f32 %v625, %v659
      %v665 = vadd.f32 %v626, %v659
      %v666 = vadd.f32 %v627, %v659
      %v667 = vadd.f32 %v628, %v659
      %v668 = vadd.f32 %v629, %v659
      %v669 = vadd.f32 %v630, %v659
      %v670 = vadd.f32 %v631, %v659
      %v671 = vadd.f32 %v632, %v659
      %v672 = vadd.f32 %v633, %v659
      %v673 = vadd.f32 %v634, %v659
      %v674 = vadd.f32 %v635, %v659
      %v675 = vadd.f32 %v636, %v659
      %v676 = vadd.f32 %v637, %v659
      %v677 = vadd.f32 %v638, %v659
      %v678 = vadd.f32 %v639, %v659
      %v679 = vadd.f32 %v640, %v659
      %v680 = vadd.f32 %v641, %v659
      %v681 = vadd.f32 %v642, %v659
      %v682 = vadd.f32 %v643, %v659
      %v683 = vadd.f32 %v644, %v659
      %v684 = vadd.f32 %v645, %v659
      %v685 = vadd.f32 %v646, %v659
      %v686 = vadd.f32 %v647, %v659
      %v687 = vadd.f32 %v648, %v659
      %v688 = vadd.f32 %v649, %v659
      %v689 = vadd.f32 %v650, %v659
      %v690 = vadd.f32 %v651, %v659
      %v691 = vadd.f32 %v652, %v659
      %v692 = vadd.f32 %v653, %v659
      %v693 = vmax.f32 %v661, 0.0
      %v694 = vmax.f32 %v662, 0.0
      %v695 = vmax.f32 %v663, 0.0
      %v696 = vmax.f32 %v664, 0.0
      %v697 = vmax.f32 %v665, 0.0
      %v698 = vmax.f32 %v666, 0.0
      %v699 = vmax.f32 %v667, 0.0
      %v700 = vmax.f32 %v668, 0.0
      %v701 = vmax.f32 %v669, 0.0
      %v702 = vmax.f32 %v670, 0.0
      %v703 = vmax.f32 %v671, 0.0
      %v704 = vmax.f32 %v672, 0.0
      %v705 = vmax.f32 %v673, 0.0
      %v706 = vmax.f32 %v674, 0.0
      %v707 = vmax.f32 %v675, 0.0
      %v708 = vmax.f32 %v676, 0.0
      %v709 = vmax.f32 %v677, 0.0
      %v710 = vmax.f32 %v678, 0.0
      %v711 = vmax.f32 %v679, 0.0
      %v712 = vmax.f32 %v680, 0.0
      %v713 = vmax.f32 %v681, 0.0
      %v714 = vmax.f32 %v682, 0.0
      %v715 = vmax.f32 %v683, 0.0
      %v716 = vmax.f32 %v684, 0.0
      %v717 = vmax.f32 %v685, 0.0
      %v718 = vmax.f32 %v686, 0.0
      %v719 = vmax.f32 %v687, 0.0
      %v720 = vmax.f32 %v688, 0.0
      %v721 = vmax.f32 %v689, 0.0
      %v722 = vmax.f32 %v690, 0.0
      %v723 = vmax.f32 %v691, 0.0
      %v724 = vmax.f32 %v692, 0.0
      %v725 = vlaneseq
      %v726 = vshrl.u32 %v725, 7
      %v727 = vadd.s32 %v726, 8
      %v728 = vadd.s32 %v726, 16
      %v729 = vadd.s32 %v726, 24
      %v730 = vadd.s32 %v726, 32
      %v731 = vadd.s32 %v726, 40
      %v732 = vadd.s32 %v726, 48
      %v733 = vadd.s32 %v726, 56
      %v734 = vadd.s32 %v726, 64
      %v735 = vadd.s32 %v726, 72
      %v736 = vadd.s32 %v726, 80
      %v737 = vadd.s32 %v726, 88
      %v738 = vadd.s32 %v726, 96
      %v739 = vadd.s32 %v726, 104
      %v740 = vadd.s32 %v726, 112
      %v741 = vadd.s32 %v726, 120
      %v742 = vadd.s32 %v726, 128
      %v743 = vadd.s32 %v726, 136
      %v744 = vadd.s32 %v726, 144
      %v745 = vadd.s32 %v726, 152
      %v746 = vadd.s32 %v726, 160
      %v747 = vadd.s32 %v726, 168
      %v748 = vadd.s32 %v726, 176
      %v749 = vadd.s32 %v726, 184
      %v750 = vadd.s32 %v726, 192
      %v751 = vadd.s32 %v726, 200
      %v752 = vadd.s32 %v726, 208
      %v753 = vadd.s32 %v726, 216
      %v754 = vadd.s32 %v726, 224
      %v755 = vadd.s32 %v726, 232
      %v756 = vadd.s32 %v726, 240
      %v757 = vadd.s32 %v726, 248
      %vm758 = vcmp.lt.s32.totalorder %v726, 0
      %v759 = vsub.s32 0, %v726
      %v760 = vsel %vm758, %v759, %v726
      %v761 = vshrl.u32 %v760, 4
      %v762 = vand.u32 %v760, 15
      %v763 = vsub.s32 0, %v762
      %v764 = vsel %vm758, %v763, %v762
      %vm765 = vcmp.lt.s32.totalorder %v727, 0
      %v766 = vsub.s32 0, %v727
      %v767 = vsel %vm765, %v766, %v727
      %v768 = vshrl.u32 %v767, 4
      %v769 = vand.u32 %v767, 15
      %v770 = vsub.s32 0, %v769
      %v771 = vsel %vm765, %v770, %v769
      %vm772 = vcmp.lt.s32.totalorder %v728, 0
      %v773 = vsub.s32 0, %v728
      %v774 = vsel %vm772, %v773, %v728
      %v775 = vshrl.u32 %v774, 4
      %v776 = vand.u32 %v774, 15
      %v777 = vsub.s32 0, %v776
      %v778 = vsel %vm772, %v777, %v776
      %vm779 = vcmp.lt.s32.totalorder %v729, 0
      %v780 = vsub.s32 0, %v729
      %v781 = vsel %vm779, %v780, %v729
      %v782 = vshrl.u32 %v781, 4
      %v783 = vand.u32 %v781, 15
      %v784 = vsub.s32 0, %v783
      %v785 = vsel %vm779, %v784, %v783
      %vm786 = vcmp.lt.s32.totalorder %v730, 0
      %v787 = vsub.s32 0, %v730
      %v788 = vsel %vm786, %v787, %v730
      %v789 = vshrl.u32 %v788, 4
      %v790 = vand.u32 %v788, 15
      %v791 = vsub.s32 0, %v790
      %v792 = vsel %vm786, %v791, %v790
      %vm793 = vcmp.lt.s32.totalorder %v731, 0
      %v794 = vsub.s32 0, %v731
      %v795 = vsel %vm793, %v794, %v731
      %v796 = vshrl.u32 %v795, 4
      %v797 = vand.u32 %v795, 15
      %v798 = vsub.s32 0, %v797
      %v799 = vsel %vm793, %v798, %v797
      %vm800 = vcmp.lt.s32.totalorder %v732, 0
      %v801 = vsub.s32 0, %v732
      %v802 = vsel %vm800, %v801, %v732
      %v803 = vshrl.u32 %v802, 4
      %v804 = vand.u32 %v802, 15
      %v805 = vsub.s32 0, %v804
      %v806 = vsel %vm800, %v805, %v804
      %vm807 = vcmp.lt.s32.totalorder %v733, 0
      %v808 = vsub.s32 0, %v733
      %v809 = vsel %vm807, %v808, %v733
      %v810 = vshrl.u32 %v809, 4
      %v811 = vand.u32 %v809, 15
      %v812 = vsub.s32 0, %v811
      %v813 = vsel %vm807, %v812, %v811
      %vm814 = vcmp.lt.s32.totalorder %v734, 0
      %v815 = vsub.s32 0, %v734
      %v816 = vsel %vm814, %v815, %v734
      %v817 = vshrl.u32 %v816, 4
      %v818 = vand.u32 %v816, 15
      %v819 = vsub.s32 0, %v818
      %v820 = vsel %vm814, %v819, %v818
      %vm821 = vcmp.lt.s32.totalorder %v735, 0
      %v822 = vsub.s32 0, %v735
      %v823 = vsel %vm821, %v822, %v735
      %v824 = vshrl.u32 %v823, 4
      %v825 = vand.u32 %v823, 15
      %v826 = vsub.s32 0, %v825
      %v827 = vsel %vm821, %v826, %v825
      %vm828 = vcmp.lt.s32.totalorder %v736, 0
      %v829 = vsub.s32 0, %v736
      %v830 = vsel %vm828, %v829, %v736
      %v831 = vshrl.u32 %v830, 4
      %v832 = vand.u32 %v830, 15
      %v833 = vsub.s32 0, %v832
      %v834 = vsel %vm828, %v833, %v832
      %vm835 = vcmp.lt.s32.totalorder %v737, 0
      %v836 = vsub.s32 0, %v737
      %v837 = vsel %vm835, %v836, %v737
      %v838 = vshrl.u32 %v837, 4
      %v839 = vand.u32 %v837, 15
      %v840 = vsub.s32 0, %v839
      %v841 = vsel %vm835, %v840, %v839
      %vm842 = vcmp.lt.s32.totalorder %v738, 0
      %v843 = vsub.s32 0, %v738
      %v844 = vsel %vm842, %v843, %v738
      %v845 = vshrl.u32 %v844, 4
      %v846 = vand.u32 %v844, 15
      %v847 = vsub.s32 0, %v846
      %v848 = vsel %vm842, %v847, %v846
      %vm849 = vcmp.lt.s32.totalorder %v739, 0
      %v850 = vsub.s32 0, %v739
      %v851 = vsel %vm849, %v850, %v739
      %v852 = vshrl.u32 %v851, 4
      %v853 = vand.u32 %v851, 15
      %v854 = vsub.s32 0, %v853
      %v855 = vsel %vm849, %v854, %v853
      %vm856 = vcmp.lt.s32.totalorder %v740, 0
      %v857 = vsub.s32 0, %v740
      %v858 = vsel %vm856, %v857, %v740
      %v859 = vshrl.u32 %v858, 4
      %v860 = vand.u32 %v858, 15
      %v861 = vsub.s32 0, %v860
      %v862 = vsel %vm856, %v861, %v860
      %vm863 = vcmp.lt.s32.totalorder %v741, 0
      %v864 = vsub.s32 0, %v741
      %v865 = vsel %vm863, %v864, %v741
      %v866 = vshrl.u32 %v865, 4
      %v867 = vand.u32 %v865, 15
      %v868 = vsub.s32 0, %v867
      %v869 = vsel %vm863, %v868, %v867
      %vm870 = vcmp.lt.s32.totalorder %v742, 0
      %v871 = vsub.s32 0, %v742
      %v872 = vsel %vm870, %v871, %v742
      %v873 = vshrl.u32 %v872, 4
      %v874 = vand.u32 %v872, 15
      %v875 = vsub.s32 0, %v874
      %v876 = vsel %vm870, %v875, %v874
      %vm877 = vcmp.lt.s32.totalorder %v743, 0
      %v878 = vsub.s32 0, %v743
      %v879 = vsel %vm877, %v878, %v743
      %v880 = vshrl.u32 %v879, 4
      %v881 = vand.u32 %v879, 15
      %v882 = vsub.s32 0, %v881
      %v883 = vsel %vm877, %v882, %v881
      %vm884 = vcmp.lt.s32.totalorder %v744, 0
      %v885 = vsub.s32 0, %v744
      %v886 = vsel %vm884, %v885, %v744
      %v887 = vshrl.u32 %v886, 4
      %v888 = vand.u32 %v886, 15
      %v889 = vsub.s32 0, %v888
      %v890 = vsel %vm884, %v889, %v888
      %vm891 = vcmp.lt.s32.totalorder %v745, 0
      %v892 = vsub.s32 0, %v745
      %v893 = vsel %vm891, %v892, %v745
      %v894 = vshrl.u32 %v893, 4
      %v895 = vand.u32 %v893, 15
      %v896 = vsub.s32 0, %v895
      %v897 = vsel %vm891, %v896, %v895
      %vm898 = vcmp.lt.s32.totalorder %v746, 0
      %v899 = vsub.s32 0, %v746
      %v900 = vsel %vm898, %v899, %v746
      %v901 = vshrl.u32 %v900, 4
      %v902 = vand.u32 %v900, 15
      %v903 = vsub.s32 0, %v902
      %v904 = vsel %vm898, %v903, %v902
      %vm905 = vcmp.lt.s32.totalorder %v747, 0
      %v906 = vsub.s32 0, %v747
      %v907 = vsel %vm905, %v906, %v747
      %v908 = vshrl.u32 %v907, 4
      %v909 = vand.u32 %v907, 15
      %v910 = vsub.s32 0, %v909
      %v911 = vsel %vm905, %v910, %v909
      %vm912 = vcmp.lt.s32.totalorder %v748, 0
      %v913 = vsub.s32 0, %v748
      %v914 = vsel %vm912, %v913, %v748
      %v915 = vshrl.u32 %v914, 4
      %v916 = vand.u32 %v914, 15
      %v917 = vsub.s32 0, %v916
      %v918 = vsel %vm912, %v917, %v916
      %vm919 = vcmp.lt.s32.totalorder %v749, 0
      %v920 = vsub.s32 0, %v749
      %v921 = vsel %vm919, %v920, %v749
      %v922 = vshrl.u32 %v921, 4
      %v923 = vand.u32 %v921, 15
      %v924 = vsub.s32 0, %v923
      %v925 = vsel %vm919, %v924, %v923
      %vm926 = vcmp.lt.s32.totalorder %v750, 0
      %v927 = vsub.s32 0, %v750
      %v928 = vsel %vm926, %v927, %v750
      %v929 = vshrl.u32 %v928, 4
      %v930 = vand.u32 %v928, 15
      %v931 = vsub.s32 0, %v930
      %v932 = vsel %vm926, %v931, %v930
      %vm933 = vcmp.lt.s32.totalorder %v751, 0
      %v934 = vsub.s32 0, %v751
      %v935 = vsel %vm933, %v934, %v751
      %v936 = vshrl.u32 %v935, 4
      %v937 = vand.u32 %v935, 15
      %v938 = vsub.s32 0, %v937
      %v939 = vsel %vm933, %v938, %v937
      %vm940 = vcmp.lt.s32.totalorder %v752, 0
      %v941 = vsub.s32 0, %v752
      %v942 = vsel %vm940, %v941, %v752
      %v943 = vshrl.u32 %v942, 4
      %v944 = vand.u32 %v942, 15
      %v945 = vsub.s32 0, %v944
      %v946 = vsel %vm940, %v945, %v944
      %vm947 = vcmp.lt.s32.totalorder %v753, 0
      %v948 = vsub.s32 0, %v753
      %v949 = vsel %vm947, %v948, %v753
      %v950 = vshrl.u32 %v949, 4
      %v951 = vand.u32 %v949, 15
      %v952 = vsub.s32 0, %v951
      %v953 = vsel %vm947, %v952, %v951
      %vm954 = vcmp.lt.s32.totalorder %v754, 0
      %v955 = vsub.s32 0, %v754
      %v956 = vsel %vm954, %v955, %v754
      %v957 = vshrl.u32 %v956, 4
      %v958 = vand.u32 %v956, 15
      %v959 = vsub.s32 0, %v958
      %v960 = vsel %vm954, %v959, %v958
      %vm961 = vcmp.lt.s32.totalorder %v755, 0
      %v962 = vsub.s32 0, %v755
      %v963 = vsel %vm961, %v962, %v755
      %v964 = vshrl.u32 %v963, 4
      %v965 = vand.u32 %v963, 15
      %v966 = vsub.s32 0, %v965
      %v967 = vsel %vm961, %v966, %v965
      %vm968 = vcmp.lt.s32.totalorder %v756, 0
      %v969 = vsub.s32 0, %v756
      %v970 = vsel %vm968, %v969, %v756
      %v971 = vshrl.u32 %v970, 4
      %v972 = vand.u32 %v970, 15
      %v973 = vsub.s32 0, %v972
      %v974 = vsel %vm968, %v973, %v972
      %vm975 = vcmp.lt.s32.totalorder %v757, 0
      %v976 = vsub.s32 0, %v757
      %v977 = vsel %vm975, %v976, %v757
      %v978 = vshrl.u32 %v977, 4
      %v979 = vand.u32 %v977, 15
      %v980 = vsub.s32 0, %v979
      %v981 = vsel %vm975, %v980, %v979
      %vm982 = vcmp.ne.s32.totalorder %v764, 0
      %vm983 = vcmp.ne.s32.totalorder %v771, 0
      %vm984 = vcmp.ne.s32.totalorder %v778, 0
      %vm985 = vcmp.ne.s32.totalorder %v785, 0
      %vm986 = vcmp.ne.s32.totalorder %v792, 0
      %vm987 = vcmp.ne.s32.totalorder %v799, 0
      %vm988 = vcmp.ne.s32.totalorder %v806, 0
      %vm989 = vcmp.ne.s32.totalorder %v813, 0
      %vm990 = vcmp.ne.s32.totalorder %v820, 0
      %vm991 = vcmp.ne.s32.totalorder %v827, 0
      %vm992 = vcmp.ne.s32.totalorder %v834, 0
      %vm993 = vcmp.ne.s32.totalorder %v841, 0
      %vm994 = vcmp.ne.s32.totalorder %v848, 0
      %vm995 = vcmp.ne.s32.totalorder %v855, 0
      %vm996 = vcmp.ne.s32.totalorder %v862, 0
      %vm997 = vcmp.ne.s32.totalorder %v869, 0
      %vm998 = vcmp.ne.s32.totalorder %v876, 0
      %vm999 = vcmp.ne.s32.totalorder %v883, 0
      %vm1000 = vcmp.ne.s32.totalorder %v890, 0
      %vm1001 = vcmp.ne.s32.totalorder %v897, 0
      %vm1002 = vcmp.ne.s32.totalorder %v904, 0
      %vm1003 = vcmp.ne.s32.totalorder %v911, 0
      %vm1004 = vcmp.ne.s32.totalorder %v918, 0
      %vm1005 = vcmp.ne.s32.totalorder %v925, 0
      %vm1006 = vcmp.ne.s32.totalorder %v932, 0
      %vm1007 = vcmp.ne.s32.totalorder %v939, 0
      %vm1008 = vcmp.ne.s32.totalorder %v946, 0
      %vm1009 = vcmp.ne.s32.totalorder %v953, 0
      %vm1010 = vcmp.ne.s32.totalorder %v960, 0
      %vm1011 = vcmp.ne.s32.totalorder %v967, 0
      %vm1012 = vcmp.ne.s32.totalorder %v974, 0
      %vm1013 = vcmp.ne.s32.totalorder %v981, 0
      %vm1014 = vcmp.lt.s32.totalorder %v764, 0
      %vm1015 = vcmp.lt.s32.totalorder %v771, 0
      %vm1016 = vcmp.lt.s32.totalorder %v778, 0
      %vm1017 = vcmp.lt.s32.totalorder %v785, 0
      %vm1018 = vcmp.lt.s32.totalorder %v792, 0
      %vm1019 = vcmp.lt.s32.totalorder %v799, 0
      %vm1020 = vcmp.lt.s32.totalorder %v806, 0
      %vm1021 = vcmp.lt.s32.totalorder %v813, 0
      %vm1022 = vcmp.lt.s32.totalorder %v820, 0
      %vm1023 = vcmp.lt.s32.totalorder %v827, 0
      %vm1024 = vcmp.lt.s32.totalorder %v834, 0
      %vm1025 = vcmp.lt.s32.totalorder %v841, 0
      %vm1026 = vcmp.lt.s32.totalorder %v848, 0
      %vm1027 = vcmp.lt.s32.totalorder %v855, 0
      %vm1028 = vcmp.lt.s32.totalorder %v862, 0
      %vm1029 = vcmp.lt.s32.totalorder %v869, 0
      %vm1030 = vcmp.lt.s32.totalorder %v876, 0
      %vm1031 = vcmp.lt.s32.totalorder %v883, 0
      %vm1032 = vcmp.lt.s32.totalorder %v890, 0
      %vm1033 = vcmp.lt.s32.totalorder %v897, 0
      %vm1034 = vcmp.lt.s32.totalorder %v904, 0
      %vm1035 = vcmp.lt.s32.totalorder %v911, 0
      %vm1036 = vcmp.lt.s32.totalorder %v918, 0
      %vm1037 = vcmp.lt.s32.totalorder %v925, 0
      %vm1038 = vcmp.lt.s32.totalorder %v932, 0
      %vm1039 = vcmp.lt.s32.totalorder %v939, 0
      %vm1040 = vcmp.lt.s32.totalorder %v946, 0
      %vm1041 = vcmp.lt.s32.totalorder %v953, 0
      %vm1042 = vcmp.lt.s32.totalorder %v960, 0
      %vm1043 = vcmp.lt.s32.totalorder %v967, 0
      %vm1044 = vcmp.lt.s32.totalorder %v974, 0
      %vm1045 = vcmp.lt.s32.totalorder %v981, 0
      %vm1046 = vmand %vm1014, %vm982
      %vm1047 = vmand %vm1015, %vm983
      %vm1048 = vmand %vm1016, %vm984
      %vm1049 = vmand %vm1017, %vm985
      %vm1050 = vmand %vm1018, %vm986
      %vm1051 = vmand %vm1019, %vm987
      %vm1052 = vmand %vm1020, %vm988
      %vm1053 = vmand %vm1021, %vm989
      %vm1054 = vmand %vm1022, %vm990
      %vm1055 = vmand %vm1023, %vm991
      %vm1056 = vmand %vm1024, %vm992
      %vm1057 = vmand %vm1025, %vm993
      %vm1058 = vmand %vm1026, %vm994
      %vm1059 = vmand %vm1027, %vm995
      %vm1060 = vmand %vm1028, %vm996
      %vm1061 = vmand %vm1029, %vm997
      %vm1062 = vmand %vm1030, %vm998
      %vm1063 = vmand %vm1031, %vm999
      %vm1064 = vmand %vm1032, %vm1000
      %vm1065 = vmand %vm1033, %vm1001
      %vm1066 = vmand %vm1034, %vm1002
      %vm1067 = vmand %vm1035, %vm1003
      %vm1068 = vmand %vm1036, %vm1004
      %vm1069 = vmand %vm1037, %vm1005
      %vm1070 = vmand %vm1038, %vm1006
      %vm1071 = vmand %vm1039, %vm1007
      %vm1072 = vmand %vm1040, %vm1008
      %vm1073 = vmand %vm1041, %vm1009
      %vm1074 = vmand %vm1042, %vm1010
      %vm1075 = vmand %vm1043, %vm1011
      %vm1076 = vmand %vm1044, %vm1012
      %vm1077 = vmand %vm1045, %vm1013
      %v1078 = vadd.s32 %v764, 16
      %v1079 = vadd.s32 %v771, 16
      %v1080 = vadd.s32 %v778, 16
      %v1081 = vadd.s32 %v785, 16
      %v1082 = vadd.s32 %v792, 16
      %v1083 = vadd.s32 %v799, 16
      %v1084 = vadd.s32 %v806, 16
      %v1085 = vadd.s32 %v813, 16
      %v1086 = vadd.s32 %v820, 16
      %v1087 = vadd.s32 %v827, 16
      %v1088 = vadd.s32 %v834, 16
      %v1089 = vadd.s32 %v841, 16
      %v1090 = vadd.s32 %v848, 16
      %v1091 = vadd.s32 %v855, 16
      %v1092 = vadd.s32 %v862, 16
      %v1093 = vadd.s32 %v869, 16
      %v1094 = vadd.s32 %v876, 16
      %v1095 = vadd.s32 %v883, 16
      %v1096 = vadd.s32 %v890, 16
      %v1097 = vadd.s32 %v897, 16
      %v1098 = vadd.s32 %v904, 16
      %v1099 = vadd.s32 %v911, 16
      %v1100 = vadd.s32 %v918, 16
      %v1101 = vadd.s32 %v925, 16
      %v1102 = vadd.s32 %v932, 16
      %v1103 = vadd.s32 %v939, 16
      %v1104 = vadd.s32 %v946, 16
      %v1105 = vadd.s32 %v953, 16
      %v1106 = vadd.s32 %v960, 16
      %v1107 = vadd.s32 %v967, 16
      %v1108 = vadd.s32 %v974, 16
      %v1109 = vadd.s32 %v981, 16
      %v1110 = vsel %vm1046, %v1078, %v764
      %v1111 = vsel %vm1047, %v1079, %v771
      %v1112 = vsel %vm1048, %v1080, %v778
      %v1113 = vsel %vm1049, %v1081, %v785
      %v1114 = vsel %vm1050, %v1082, %v792
      %v1115 = vsel %vm1051, %v1083, %v799
      %v1116 = vsel %vm1052, %v1084, %v806
      %v1117 = vsel %vm1053, %v1085, %v813
      %v1118 = vsel %vm1054, %v1086, %v820
      %v1119 = vsel %vm1055, %v1087, %v827
      %v1120 = vsel %vm1056, %v1088, %v834
      %v1121 = vsel %vm1057, %v1089, %v841
      %v1122 = vsel %vm1058, %v1090, %v848
      %v1123 = vsel %vm1059, %v1091, %v855
      %v1124 = vsel %vm1060, %v1092, %v862
      %v1125 = vsel %vm1061, %v1093, %v869
      %v1126 = vsel %vm1062, %v1094, %v876
      %v1127 = vsel %vm1063, %v1095, %v883
      %v1128 = vsel %vm1064, %v1096, %v890
      %v1129 = vsel %vm1065, %v1097, %v897
      %v1130 = vsel %vm1066, %v1098, %v904
      %v1131 = vsel %vm1067, %v1099, %v911
      %v1132 = vsel %vm1068, %v1100, %v918
      %v1133 = vsel %vm1069, %v1101, %v925
      %v1134 = vsel %vm1070, %v1102, %v932
      %v1135 = vsel %vm1071, %v1103, %v939
      %v1136 = vsel %vm1072, %v1104, %v946
      %v1137 = vsel %vm1073, %v1105, %v953
      %v1138 = vsel %vm1074, %v1106, %v960
      %v1139 = vsel %vm1075, %v1107, %v967
      %v1140 = vsel %vm1076, %v1108, %v974
      %v1141 = vsel %vm1077, %v1109, %v981
      %vm1142 = vcmp.eq.s32.totalorder %v1110, 15
      %vm1143 = vcmp.eq.s32.totalorder %v1111, 15
      %vm1144 = vcmp.eq.s32.totalorder %v1112, 15
      %vm1145 = vcmp.eq.s32.totalorder %v1113, 15
      %vm1146 = vcmp.eq.s32.totalorder %v1114, 15
      %vm1147 = vcmp.eq.s32.totalorder %v1115, 15
      %vm1148 = vcmp.eq.s32.totalorder %v1116, 15
      %vm1149 = vcmp.eq.s32.totalorder %v1117, 15
      %vm1150 = vcmp.eq.s32.totalorder %v1118, 15
      %vm1151 = vcmp.eq.s32.totalorder %v1119, 15
      %vm1152 = vcmp.eq.s32.totalorder %v1120, 15
      %vm1153 = vcmp.eq.s32.totalorder %v1121, 15
      %vm1154 = vcmp.eq.s32.totalorder %v1122, 15
      %vm1155 = vcmp.eq.s32.totalorder %v1123, 15
      %vm1156 = vcmp.eq.s32.totalorder %v1124, 15
      %vm1157 = vcmp.eq.s32.totalorder %v1125, 15
      %vm1158 = vcmp.eq.s32.totalorder %v1126, 15
      %vm1159 = vcmp.eq.s32.totalorder %v1127, 15
      %vm1160 = vcmp.eq.s32.totalorder %v1128, 15
      %vm1161 = vcmp.eq.s32.totalorder %v1129, 15
      %vm1162 = vcmp.eq.s32.totalorder %v1130, 15
      %vm1163 = vcmp.eq.s32.totalorder %v1131, 15
      %vm1164 = vcmp.eq.s32.totalorder %v1132, 15
      %vm1165 = vcmp.eq.s32.totalorder %v1133, 15
      %vm1166 = vcmp.eq.s32.totalorder %v1134, 15
      %vm1167 = vcmp.eq.s32.totalorder %v1135, 15
      %vm1168 = vcmp.eq.s32.totalorder %v1136, 15
      %vm1169 = vcmp.eq.s32.totalorder %v1137, 15
      %vm1170 = vcmp.eq.s32.totalorder %v1138, 15
      %vm1171 = vcmp.eq.s32.totalorder %v1139, 15
      %vm1172 = vcmp.eq.s32.totalorder %v1140, 15
      %vm1173 = vcmp.eq.s32.totalorder %v1141, 15
      %v1174 = vsel %vm1142, 1, 0
      %v1175 = vsel %vm1143, 1, 0
      %v1176 = vsel %vm1144, 1, 0
      %v1177 = vsel %vm1145, 1, 0
      %v1178 = vsel %vm1146, 1, 0
      %v1179 = vsel %vm1147, 1, 0
      %v1180 = vsel %vm1148, 1, 0
      %v1181 = vsel %vm1149, 1, 0
      %v1182 = vsel %vm1150, 1, 0
      %v1183 = vsel %vm1151, 1, 0
      %v1184 = vsel %vm1152, 1, 0
      %v1185 = vsel %vm1153, 1, 0
      %v1186 = vsel %vm1154, 1, 0
      %v1187 = vsel %vm1155, 1, 0
      %v1188 = vsel %vm1156, 1, 0
      %v1189 = vsel %vm1157, 1, 0
      %v1190 = vsel %vm1158, 1, 0
      %v1191 = vsel %vm1159, 1, 0
      %v1192 = vsel %vm1160, 1, 0
      %v1193 = vsel %vm1161, 1, 0
      %v1194 = vsel %vm1162, 1, 0
      %v1195 = vsel %vm1163, 1, 0
      %v1196 = vsel %vm1164, 1, 0
      %v1197 = vsel %vm1165, 1, 0
      %v1198 = vsel %vm1166, 1, 0
      %v1199 = vsel %vm1167, 1, 0
      %v1200 = vsel %vm1168, 1, 0
      %v1201 = vsel %vm1169, 1, 0
      %v1202 = vsel %vm1170, 1, 0
      %v1203 = vsel %vm1171, 1, 0
      %v1204 = vsel %vm1172, 1, 0
      %v1205 = vsel %vm1173, 1, 0
      %vm1206 = vcmp.eq.s32.totalorder %v1174, 1
      %vm1207 = vcmp.eq.s32.totalorder %v1175, 1
      %vm1208 = vcmp.eq.s32.totalorder %v1176, 1
      %vm1209 = vcmp.eq.s32.totalorder %v1177, 1
      %vm1210 = vcmp.eq.s32.totalorder %v1178, 1
      %vm1211 = vcmp.eq.s32.totalorder %v1179, 1
      %vm1212 = vcmp.eq.s32.totalorder %v1180, 1
      %vm1213 = vcmp.eq.s32.totalorder %v1181, 1
      %vm1214 = vcmp.eq.s32.totalorder %v1182, 1
      %vm1215 = vcmp.eq.s32.totalorder %v1183, 1
      %vm1216 = vcmp.eq.s32.totalorder %v1184, 1
      %vm1217 = vcmp.eq.s32.totalorder %v1185, 1
      %vm1218 = vcmp.eq.s32.totalorder %v1186, 1
      %vm1219 = vcmp.eq.s32.totalorder %v1187, 1
      %vm1220 = vcmp.eq.s32.totalorder %v1188, 1
      %vm1221 = vcmp.eq.s32.totalorder %v1189, 1
      %vm1222 = vcmp.eq.s32.totalorder %v1190, 1
      %vm1223 = vcmp.eq.s32.totalorder %v1191, 1
      %vm1224 = vcmp.eq.s32.totalorder %v1192, 1
      %vm1225 = vcmp.eq.s32.totalorder %v1193, 1
      %vm1226 = vcmp.eq.s32.totalorder %v1194, 1
      %vm1227 = vcmp.eq.s32.totalorder %v1195, 1
      %vm1228 = vcmp.eq.s32.totalorder %v1196, 1
      %vm1229 = vcmp.eq.s32.totalorder %v1197, 1
      %vm1230 = vcmp.eq.s32.totalorder %v1198, 1
      %vm1231 = vcmp.eq.s32.totalorder %v1199, 1
      %vm1232 = vcmp.eq.s32.totalorder %v1200, 1
      %vm1233 = vcmp.eq.s32.totalorder %v1201, 1
      %vm1234 = vcmp.eq.s32.totalorder %v1202, 1
      %vm1235 = vcmp.eq.s32.totalorder %v1203, 1
      %vm1236 = vcmp.eq.s32.totalorder %v1204, 1
      %vm1237 = vcmp.eq.s32.totalorder %v1205, 1
      %v1238 = vsel %vm1206, 0.0, %v693
      %v1239 = vsel %vm1207, 0.0, %v694
      %v1240 = vsel %vm1208, 0.0, %v695
      %v1241 = vsel %vm1209, 0.0, %v696
      %v1242 = vsel %vm1210, 0.0, %v697
      %v1243 = vsel %vm1211, 0.0, %v698
      %v1244 = vsel %vm1212, 0.0, %v699
      %v1245 = vsel %vm1213, 0.0, %v700
      %v1246 = vsel %vm1214, 0.0, %v701
      %v1247 = vsel %vm1215, 0.0, %v702
      %v1248 = vsel %vm1216, 0.0, %v703
      %v1249 = vsel %vm1217, 0.0, %v704
      %v1250 = vsel %vm1218, 0.0, %v705
      %v1251 = vsel %vm1219, 0.0, %v706
      %v1252 = vsel %vm1220, 0.0, %v707
      %v1253 = vsel %vm1221, 0.0, %v708
      %v1254 = vsel %vm1222, 0.0, %v709
      %v1255 = vsel %vm1223, 0.0, %v710
      %v1256 = vsel %vm1224, 0.0, %v711
      %v1257 = vsel %vm1225, 0.0, %v712
      %v1258 = vsel %vm1226, 0.0, %v713
      %v1259 = vsel %vm1227, 0.0, %v714
      %v1260 = vsel %vm1228, 0.0, %v715
      %v1261 = vsel %vm1229, 0.0, %v716
      %v1262 = vsel %vm1230, 0.0, %v717
      %v1263 = vsel %vm1231, 0.0, %v718
      %v1264 = vsel %vm1232, 0.0, %v719
      %v1265 = vsel %vm1233, 0.0, %v720
      %v1266 = vsel %vm1234, 0.0, %v721
      %v1267 = vsel %vm1235, 0.0, %v722
      %v1268 = vsel %vm1236, 0.0, %v723
      %v1269 = vsel %vm1237, 0.0, %v724
      %vm1270 = vcmp.eq.s32.totalorder %v1110, 0
      %vm1271 = vcmp.eq.s32.totalorder %v1111, 0
      %vm1272 = vcmp.eq.s32.totalorder %v1112, 0
      %vm1273 = vcmp.eq.s32.totalorder %v1113, 0
      %vm1274 = vcmp.eq.s32.totalorder %v1114, 0
      %vm1275 = vcmp.eq.s32.totalorder %v1115, 0
      %vm1276 = vcmp.eq.s32.totalorder %v1116, 0
      %vm1277 = vcmp.eq.s32.totalorder %v1117, 0
      %vm1278 = vcmp.eq.s32.totalorder %v1118, 0
      %vm1279 = vcmp.eq.s32.totalorder %v1119, 0
      %vm1280 = vcmp.eq.s32.totalorder %v1120, 0
      %vm1281 = vcmp.eq.s32.totalorder %v1121, 0
      %vm1282 = vcmp.eq.s32.totalorder %v1122, 0
      %vm1283 = vcmp.eq.s32.totalorder %v1123, 0
      %vm1284 = vcmp.eq.s32.totalorder %v1124, 0
      %vm1285 = vcmp.eq.s32.totalorder %v1125, 0
      %vm1286 = vcmp.eq.s32.totalorder %v1126, 0
      %vm1287 = vcmp.eq.s32.totalorder %v1127, 0
      %vm1288 = vcmp.eq.s32.totalorder %v1128, 0
      %vm1289 = vcmp.eq.s32.totalorder %v1129, 0
      %vm1290 = vcmp.eq.s32.totalorder %v1130, 0
      %vm1291 = vcmp.eq.s32.totalorder %v1131, 0
      %vm1292 = vcmp.eq.s32.totalorder %v1132, 0
      %vm1293 = vcmp.eq.s32.totalorder %v1133, 0
      %vm1294 = vcmp.eq.s32.totalorder %v1134, 0
      %vm1295 = vcmp.eq.s32.totalorder %v1135, 0
      %vm1296 = vcmp.eq.s32.totalorder %v1136, 0
      %vm1297 = vcmp.eq.s32.totalorder %v1137, 0
      %vm1298 = vcmp.eq.s32.totalorder %v1138, 0
      %vm1299 = vcmp.eq.s32.totalorder %v1139, 0
      %vm1300 = vcmp.eq.s32.totalorder %v1140, 0
      %vm1301 = vcmp.eq.s32.totalorder %v1141, 0
      %v1302 = vsel %vm1270, 1, 0
      %v1303 = vsel %vm1271, 1, 0
      %v1304 = vsel %vm1272, 1, 0
      %v1305 = vsel %vm1273, 1, 0
      %v1306 = vsel %vm1274, 1, 0
      %v1307 = vsel %vm1275, 1, 0
      %v1308 = vsel %vm1276, 1, 0
      %v1309 = vsel %vm1277, 1, 0
      %v1310 = vsel %vm1278, 1, 0
      %v1311 = vsel %vm1279, 1, 0
      %v1312 = vsel %vm1280, 1, 0
      %v1313 = vsel %vm1281, 1, 0
      %v1314 = vsel %vm1282, 1, 0
      %v1315 = vsel %vm1283, 1, 0
      %v1316 = vsel %vm1284, 1, 0
      %v1317 = vsel %vm1285, 1, 0
      %v1318 = vsel %vm1286, 1, 0
      %v1319 = vsel %vm1287, 1, 0
      %v1320 = vsel %vm1288, 1, 0
      %v1321 = vsel %vm1289, 1, 0
      %v1322 = vsel %vm1290, 1, 0
      %v1323 = vsel %vm1291, 1, 0
      %v1324 = vsel %vm1292, 1, 0
      %v1325 = vsel %vm1293, 1, 0
      %v1326 = vsel %vm1294, 1, 0
      %v1327 = vsel %vm1295, 1, 0
      %v1328 = vsel %vm1296, 1, 0
      %v1329 = vsel %vm1297, 1, 0
      %v1330 = vsel %vm1298, 1, 0
      %v1331 = vsel %vm1299, 1, 0
      %v1332 = vsel %vm1300, 1, 0
      %v1333 = vsel %vm1301, 1, 0
      %vm1334 = vcmp.eq.s32.totalorder %v1302, 1
      %vm1335 = vcmp.eq.s32.totalorder %v1303, 1
      %vm1336 = vcmp.eq.s32.totalorder %v1304, 1
      %vm1337 = vcmp.eq.s32.totalorder %v1305, 1
      %vm1338 = vcmp.eq.s32.totalorder %v1306, 1
      %vm1339 = vcmp.eq.s32.totalorder %v1307, 1
      %vm1340 = vcmp.eq.s32.totalorder %v1308, 1
      %vm1341 = vcmp.eq.s32.totalorder %v1309, 1
      %vm1342 = vcmp.eq.s32.totalorder %v1310, 1
      %vm1343 = vcmp.eq.s32.totalorder %v1311, 1
      %vm1344 = vcmp.eq.s32.totalorder %v1312, 1
      %vm1345 = vcmp.eq.s32.totalorder %v1313, 1
      %vm1346 = vcmp.eq.s32.totalorder %v1314, 1
      %vm1347 = vcmp.eq.s32.totalorder %v1315, 1
      %vm1348 = vcmp.eq.s32.totalorder %v1316, 1
      %vm1349 = vcmp.eq.s32.totalorder %v1317, 1
      %vm1350 = vcmp.eq.s32.totalorder %v1318, 1
      %vm1351 = vcmp.eq.s32.totalorder %v1319, 1
      %vm1352 = vcmp.eq.s32.totalorder %v1320, 1
      %vm1353 = vcmp.eq.s32.totalorder %v1321, 1
      %vm1354 = vcmp.eq.s32.totalorder %v1322, 1
      %vm1355 = vcmp.eq.s32.totalorder %v1323, 1
      %vm1356 = vcmp.eq.s32.totalorder %v1324, 1
      %vm1357 = vcmp.eq.s32.totalorder %v1325, 1
      %vm1358 = vcmp.eq.s32.totalorder %v1326, 1
      %vm1359 = vcmp.eq.s32.totalorder %v1327, 1
      %vm1360 = vcmp.eq.s32.totalorder %v1328, 1
      %vm1361 = vcmp.eq.s32.totalorder %v1329, 1
      %vm1362 = vcmp.eq.s32.totalorder %v1330, 1
      %vm1363 = vcmp.eq.s32.totalorder %v1331, 1
      %vm1364 = vcmp.eq.s32.totalorder %v1332, 1
      %vm1365 = vcmp.eq.s32.totalorder %v1333, 1
      %v1366 = vsel %vm1334, 0.0, %v693
      %v1367 = vsel %vm1335, 0.0, %v694
      %v1368 = vsel %vm1336, 0.0, %v695
      %v1369 = vsel %vm1337, 0.0, %v696
      %v1370 = vsel %vm1338, 0.0, %v697
      %v1371 = vsel %vm1339, 0.0, %v698
      %v1372 = vsel %vm1340, 0.0, %v699
      %v1373 = vsel %vm1341, 0.0, %v700
      %v1374 = vsel %vm1342, 0.0, %v701
      %v1375 = vsel %vm1343, 0.0, %v702
      %v1376 = vsel %vm1344, 0.0, %v703
      %v1377 = vsel %vm1345, 0.0, %v704
      %v1378 = vsel %vm1346, 0.0, %v705
      %v1379 = vsel %vm1347, 0.0, %v706
      %v1380 = vsel %vm1348, 0.0, %v707
      %v1381 = vsel %vm1349, 0.0, %v708
      %v1382 = vsel %vm1350, 0.0, %v709
      %v1383 = vsel %vm1351, 0.0, %v710
      %v1384 = vsel %vm1352, 0.0, %v711
      %v1385 = vsel %vm1353, 0.0, %v712
      %v1386 = vsel %vm1354, 0.0, %v713
      %v1387 = vsel %vm1355, 0.0, %v714
      %v1388 = vsel %vm1356, 0.0, %v715
      %v1389 = vsel %vm1357, 0.0, %v716
      %v1390 = vsel %vm1358, 0.0, %v717
      %v1391 = vsel %vm1359, 0.0, %v718
      %v1392 = vsel %vm1360, 0.0, %v719
      %v1393 = vsel %vm1361, 0.0, %v720
      %v1394 = vsel %vm1362, 0.0, %v721
      %v1395 = vsel %vm1363, 0.0, %v722
      %v1396 = vsel %vm1364, 0.0, %v723
      %v1397 = vsel %vm1365, 0.0, %v724
      %vm1430 = vcmask 1040384
      %v1431 = vrot.slane %v1238, 7
      %v1432 = vrot.slane %v1239, 7
      %v1433 = vsel %vm1430, %v1431, %v1432
      %v1434 = vrot.slane %v1240, 7
      %v1435 = vsel %vm1430, %v1432, %v1434
      %v1436 = vrot.slane %v1241, 7
      %v1437 = vsel %vm1430, %v1434, %v1436
      %v1438 = vrot.slane %v1242, 7
      %v1439 = vsel %vm1430, %v1436, %v1438
      %v1440 = vrot.slane %v1243, 7
      %v1441 = vsel %vm1430, %v1438, %v1440
      %v1442 = vrot.slane %v1244, 7
      %v1443 = vsel %vm1430, %v1440, %v1442
      %v1444 = vrot.slane %v1245, 7
      %v1445 = vsel %vm1430, %v1442, %v1444
      %v1446 = vrot.slane %v1246, 7
      %v1447 = vsel %vm1430, %v1444, %v1446
      %v1448 = vrot.slane %v1247, 7
      %v1449 = vsel %vm1430, %v1446, %v1448
      %v1450 = vrot.slane %v1248, 7
      %v1451 = vsel %vm1430, %v1448, %v1450
      %v1452 = vrot.slane %v1249, 7
      %v1453 = vsel %vm1430, %v1450, %v1452
      %v1454 = vrot.slane %v1250, 7
      %v1455 = vsel %vm1430, %v1452, %v1454
      %v1456 = vrot.slane %v1251, 7
      %v1457 = vsel %vm1430, %v1454, %v1456
      %v1458 = vrot.slane %v1252, 7
      %v1459 = vsel %vm1430, %v1456, %v1458
      %v1460 = vrot.slane %v1253, 7
      %v1461 = vsel %vm1430, %v1458, %v1460
      %v1462 = vrot.slane %v1254, 7
      %v1463 = vsel %vm1430, %v1460, %v1462
      %v1464 = vrot.slane %v1255, 7
      %v1465 = vsel %vm1430, %v1462, %v1464
      %v1466 = vrot.slane %v1256, 7
      %v1467 = vsel %vm1430, %v1464, %v1466
      %v1468 = vrot.slane %v1257, 7
      %v1469 = vsel %vm1430, %v1466, %v1468
      %v1470 = vrot.slane %v1258, 7
      %v1471 = vsel %vm1430, %v1468, %v1470
      %v1472 = vrot.slane %v1259, 7
      %v1473 = vsel %vm1430, %v1470, %v1472
      %v1474 = vrot.slane %v1260, 7
      %v1475 = vsel %vm1430, %v1472, %v1474
      %v1476 = vrot.slane %v1261, 7
      %v1477 = vsel %vm1430, %v1474, %v1476
      %v1478 = vrot.slane %v1262, 7
      %v1479 = vsel %vm1430, %v1476, %v1478
      %v1480 = vrot.slane %v1263, 7
      %v1481 = vsel %vm1430, %v1478, %v1480
      %v1482 = vrot.slane %v1264, 7
      %v1483 = vsel %vm1430, %v1480, %v1482
      %v1484 = vrot.slane %v1265, 7
      %v1485 = vsel %vm1430, %v1482, %v1484
      %v1486 = vrot.slane %v1266, 7
      %v1487 = vsel %vm1430, %v1484, %v1486
      %v1488 = vrot.slane %v1267, 7
      %v1489 = vsel %vm1430, %v1486, %v1488
      %v1490 = vrot.slane %v1268, 7
      %v1491 = vsel %vm1430, %v1488, %v1490
      %v1492 = vrot.slane %v1269, 7
      %v1493 = vsel %vm1430, %v1490, %v1492
      %v1527 = vsel %vm1430, 0.0, %v1431
      %v1528 = vsel %vm1430, %v1492, 0.0
      %v1561 = vrot.slane %v693, 7
      %v1562 = vrot.slane %v694, 7
      %v1563 = vsel %vm1430, %v1561, %v1562
      %v1564 = vrot.slane %v695, 7
      %v1565 = vsel %vm1430, %v1562, %v1564
      %v1566 = vrot.slane %v696, 7
      %v1567 = vsel %vm1430, %v1564, %v1566
      %v1568 = vrot.slane %v697, 7
      %v1569 = vsel %vm1430, %v1566, %v1568
      %v1570 = vrot.slane %v698, 7
      %v1571 = vsel %vm1430, %v1568, %v1570
      %v1572 = vrot.slane %v699, 7
      %v1573 = vsel %vm1430, %v1570, %v1572
      %v1574 = vrot.slane %v700, 7
      %v1575 = vsel %vm1430, %v1572, %v1574
      %v1576 = vrot.slane %v701, 7
      %v1577 = vsel %vm1430, %v1574, %v1576
      %v1578 = vrot.slane %v702, 7
      %v1579 = vsel %vm1430, %v1576, %v1578
      %v1580 = vrot.slane %v703, 7
      %v1581 = vsel %vm1430, %v1578, %v1580
      %v1582 = vrot.slane %v704, 7
      %v1583 = vsel %vm1430, %v1580, %v1582
      %v1584 = vrot.slane %v705, 7
      %v1585 = vsel %vm1430, %v1582, %v1584
      %v1586 = vrot.slane %v706, 7
      %v1587 = vsel %vm1430, %v1584, %v1586
      %v1588 = vrot.slane %v707, 7
      %v1589 = vsel %vm1430, %v1586, %v1588
      %v1590 = vrot.slane %v708, 7
      %v1591 = vsel %vm1430, %v1588, %v1590
      %v1592 = vrot.slane %v709, 7
      %v1593 = vsel %vm1430, %v1590, %v1592
      %v1594 = vrot.slane %v710, 7
      %v1595 = vsel %vm1430, %v1592, %v1594
      %v1596 = vrot.slane %v711, 7
      %v1597 = vsel %vm1430, %v1594, %v1596
      %v1598 = vrot.slane %v712, 7
      %v1599 = vsel %vm1430, %v1596, %v1598
      %v1600 = vrot.slane %v713, 7
      %v1601 = vsel %vm1430, %v1598, %v1600
      %v1602 = vrot.slane %v714, 7
      %v1603 = vsel %vm1430, %v1600, %v1602
      %v1604 = vrot.slane %v715, 7
      %v1605 = vsel %vm1430, %v1602, %v1604
      %v1606 = vrot.slane %v716, 7
      %v1607 = vsel %vm1430, %v1604, %v1606
      %v1608 = vrot.slane %v717, 7
      %v1609 = vsel %vm1430, %v1606, %v1608
      %v1610 = vrot.slane %v718, 7
      %v1611 = vsel %vm1430, %v1608, %v1610
      %v1612 = vrot.slane %v719, 7
      %v1613 = vsel %vm1430, %v1610, %v1612
      %v1614 = vrot.slane %v720, 7
      %v1615 = vsel %vm1430, %v1612, %v1614
      %v1616 = vrot.slane %v721, 7
      %v1617 = vsel %vm1430, %v1614, %v1616
      %v1618 = vrot.slane %v722, 7
      %v1619 = vsel %vm1430, %v1616, %v1618
      %v1620 = vrot.slane %v723, 7
      %v1621 = vsel %vm1430, %v1618, %v1620
      %v1622 = vrot.slane %v724, 7
      %v1623 = vsel %vm1430, %v1620, %v1622
      %v1657 = vsel %vm1430, 0.0, %v1561
      %v1658 = vsel %vm1430, %v1622, 0.0
      %v1691 = vrot.slane %v1366, 7
      %v1692 = vrot.slane %v1367, 7
      %v1693 = vsel %vm1430, %v1691, %v1692
      %v1694 = vrot.slane %v1368, 7
      %v1695 = vsel %vm1430, %v1692, %v1694
      %v1696 = vrot.slane %v1369, 7
      %v1697 = vsel %vm1430, %v1694, %v1696
      %v1698 = vrot.slane %v1370, 7
      %v1699 = vsel %vm1430, %v1696, %v1698
      %v1700 = vrot.slane %v1371, 7
      %v1701 = vsel %vm1430, %v1698, %v1700
      %v1702 = vrot.slane %v1372, 7
      %v1703 = vsel %vm1430, %v1700, %v1702
      %v1704 = vrot.slane %v1373, 7
      %v1705 = vsel %vm1430, %v1702, %v1704
      %v1706 = vrot.slane %v1374, 7
      %v1707 = vsel %vm1430, %v1704, %v1706
      %v1708 = vrot.slane %v1375, 7
      %v1709 = vsel %vm1430, %v1706, %v1708
      %v1710 = vrot.slane %v1376, 7
      %v1711 = vsel %vm1430, %v1708, %v1710
      %v1712 = vrot.slane %v1377, 7
      %v1713 = vsel %vm1430, %v1710, %v1712
      %v1714 = vrot.slane %v1378, 7
      %v1715 = vsel %vm1430, %v1712, %v1714
      %v1716 = vrot.slane %v1379, 7
      %v1717 = vsel %vm1430, %v1714, %v1716
      %v1718 = vrot.slane %v1380, 7
      %v1719 = vsel %vm1430, %v1716, %v1718
      %v1720 = vrot.slane %v1381, 7
      %v1721 = vsel %vm1430, %v1718, %v1720
      %v1722 = vrot.slane %v1382, 7
      %v1723 = vsel %vm1430, %v1720, %v1722
      %v1724 = vrot.slane %v1383, 7
      %v1725 = vsel %vm1430, %v1722, %v1724
      %v1726 = vrot.slane %v1384, 7
      %v1727 = vsel %vm1430, %v1724, %v1726
      %v1728 = vrot.slane %v1385, 7
      %v1729 = vsel %vm1430, %v1726, %v1728
      %v1730 = vrot.slane %v1386, 7
      %v1731 = vsel %vm1430, %v1728, %v1730
      %v1732 = vrot.slane %v1387, 7
      %v1733 = vsel %vm1430, %v1730, %v1732
      %v1734 = vrot.slane %v1388, 7
      %v1735 = vsel %vm1430, %v1732, %v1734
      %v1736 = vrot.slane %v1389, 7
      %v1737 = vsel %vm1430, %v1734, %v1736
      %v1738 = vrot.slane %v1390, 7
      %v1739 = vsel %vm1430, %v1736, %v1738
      %v1740 = vrot.slane %v1391, 7
      %v1741 = vsel %vm1430, %v1738, %v1740
      %v1742 = vrot.slane %v1392, 7
      %v1743 = vsel %vm1430, %v1740, %v1742
      %v1744 = vrot.slane %v1393, 7
      %v1745 = vsel %vm1430, %v1742, %v1744
      %v1746 = vrot.slane %v1394, 7
      %v1747 = vsel %vm1430, %v1744, %v1746
      %v1748 = vrot.slane %v1395, 7
      %v1749 = vsel %vm1430, %v1746, %v1748
      %v1750 = vrot.slane %v1396, 7
      %v1751 = vsel %vm1430, %v1748, %v1750
      %v1752 = vrot.slane %v1397, 7
      %v1753 = vsel %vm1430, %v1750, %v1752
      %v1787 = vsel %vm1430, 0.0, %v1691
      %v1788 = vsel %vm1430, %v1752, 0.0
      %v1789 = vld [vmem:[%s4] sm:$0xf]
      %v1790 = vld [vmem:[%s4 + $0x4] sm:$0xf]
      %v1791 = vld [vmem:[%s4 + $0x8] sm:$0xf]
      %v1792 = vld [vmem:[%s4 + $0xc] sm:$0xf]
      %v1793 = vld [vmem:[%s4 + $0x10] sm:$0xf]
      %v1794 = vld [vmem:[%s4 + $0x14] sm:$0xf]
      %v1795 = vld [vmem:[%s4 + $0x18] sm:$0xf]
      %v1796 = vld [vmem:[%s4 + $0x1c] sm:$0xf]
      %v1797 = vld [vmem:[%s4 + $0x20] sm:$0xf]
      %v1798 = vld [vmem:[%s4 + $0x24] sm:$0xf]
      %v1799 = vld [vmem:[%s4 + $0x28] sm:$0xf]
      %v1800 = vld [vmem:[%s4 + $0x2c] sm:$0xf]
      %v1801 = vld [vmem:[%s4 + $0x30] sm:$0xf]
      %v1802 = vld [vmem:[%s4 + $0x34] sm:$0xf]
      %v1803 = vld [vmem:[%s4 + $0x38] sm:$0xf]
      %v1804 = vld [vmem:[%s4 + $0x3c] sm:$0xf]
      %v1805 = vld [vmem:[%s4 + $0x40] sm:$0xf]
      %v1806 = vld [vmem:[%s4 + $0x44] sm:$0xf]
      %v1807 = vpack.c.bf16 0.0, 0.0
      %v1808 = vpack.c.bf16 %v1433, %v1527
      %v1809 = vpack.c.bf16 %v1437, %v1435
      %v1810 = vpack.c.bf16 %v1441, %v1439
      %v1811 = vpack.c.bf16 %v1445, %v1443
      %v1812 = vpack.c.bf16 %v1449, %v1447
      %v1813 = vpack.c.bf16 %v1453, %v1451
      %v1814 = vpack.c.bf16 %v1457, %v1455
      %v1815 = vpack.c.bf16 %v1461, %v1459
      %v1816 = vpack.c.bf16 %v1465, %v1463
      %v1817 = vpack.c.bf16 %v1469, %v1467
      %v1818 = vpack.c.bf16 %v1473, %v1471
      %v1819 = vpack.c.bf16 %v1477, %v1475
      %v1820 = vpack.c.bf16 %v1481, %v1479
      %v1821 = vpack.c.bf16 %v1485, %v1483
      %v1822 = vpack.c.bf16 %v1489, %v1487
      %v1823 = vpack.c.bf16 %v1563, %v1657
      %v1824 = vpack.c.bf16 %v1567, %v1565
      %v1825 = vpack.c.bf16 %v1571, %v1569
      %v1826 = vpack.c.bf16 %v1575, %v1573
      %v1827 = vpack.c.bf16 %v1579, %v1577
      %v1828 = vpack.c.bf16 %v1583, %v1581
      %v1829 = vpack.c.bf16 %v1587, %v1585
      %v1830 = vpack.c.bf16 %v1591, %v1589
      %v1831 = vpack.c.bf16 %v1595, %v1593
      %v1832 = vpack.c.bf16 %v1599, %v1597
      %v1833 = vpack.c.bf16 %v1603, %v1601
      %v1834 = vpack.c.bf16 %v1607, %v1605
      %v1835 = vpack.c.bf16 %v1611, %v1609
      %v1836 = vpack.c.bf16 %v1615, %v1613
      %v1837 = vpack.c.bf16 %v1619, %v1617
      %v1838 = vpack.c.bf16 %v1621, %v1621
      %vm1839 = vsmask.f32 7424
      %v1841 = vshrl.u32 %v1807, 16
      %v1843 = vshll.u32 %v1807, 16
      %v1845 = vrot.slane %v1843, 1
      %v1846 = vor.u32 %v1841, %v1845
      %v1848 = vshll.u32 %v1823, 16
      %v1850 = vrot.slane %v1848, 1
      %v1851 = vsel %vm1839, %v1846, %v1850
      %v1852 = vshrl.u32 %v1823, 16
      %v1854 = vor.u32 %v1852, %v1850
      %v1856 = vshll.u32 %v1824, 16
      %v1858 = vrot.slane %v1856, 1
      %v1859 = vsel %vm1839, %v1854, %v1858
      %v1860 = vshrl.u32 %v1824, 16
      %v1862 = vor.u32 %v1860, %v1858
      %v1864 = vshll.u32 %v1825, 16
      %v1866 = vrot.slane %v1864, 1
      %v1867 = vsel %vm1839, %v1862, %v1866
      %v1868 = vshrl.u32 %v1825, 16
      %v1870 = vor.u32 %v1868, %v1866
      %v1872 = vshll.u32 %v1826, 16
      %v1874 = vrot.slane %v1872, 1
      %v1875 = vsel %vm1839, %v1870, %v1874
      %v1876 = vshrl.u32 %v1826, 16
      %v1878 = vor.u32 %v1876, %v1874
      %v1880 = vshll.u32 %v1827, 16
      %v1882 = vrot.slane %v1880, 1
      %v1883 = vsel %vm1839, %v1878, %v1882
      %v1884 = vshrl.u32 %v1827, 16
      %v1886 = vor.u32 %v1884, %v1882
      %v1888 = vshll.u32 %v1828, 16
      %v1890 = vrot.slane %v1888, 1
      %v1891 = vsel %vm1839, %v1886, %v1890
      %v1892 = vshrl.u32 %v1828, 16
      %v1894 = vor.u32 %v1892, %v1890
      %v1896 = vshll.u32 %v1829, 16
      %v1898 = vrot.slane %v1896, 1
      %v1899 = vsel %vm1839, %v1894, %v1898
      %v1900 = vshrl.u32 %v1829, 16
      %v1902 = vor.u32 %v1900, %v1898
      %v1904 = vshll.u32 %v1830, 16
      %v1906 = vrot.slane %v1904, 1
      %v1907 = vsel %vm1839, %v1902, %v1906
      %v1908 = vshrl.u32 %v1830, 16
      %v1910 = vor.u32 %v1908, %v1906
      %v1912 = vshll.u32 %v1831, 16
      %v1914 = vrot.slane %v1912, 1
      %v1915 = vsel %vm1839, %v1910, %v1914
      %v1916 = vshrl.u32 %v1831, 16
      %v1918 = vor.u32 %v1916, %v1914
      %v1920 = vshll.u32 %v1832, 16
      %v1922 = vrot.slane %v1920, 1
      %v1923 = vsel %vm1839, %v1918, %v1922
      %v1924 = vshrl.u32 %v1832, 16
      %v1926 = vor.u32 %v1924, %v1922
      %v1928 = vshll.u32 %v1833, 16
      %v1930 = vrot.slane %v1928, 1
      %v1931 = vsel %vm1839, %v1926, %v1930
      %v1932 = vshrl.u32 %v1833, 16
      %v1934 = vor.u32 %v1932, %v1930
      %v1936 = vshll.u32 %v1834, 16
      %v1938 = vrot.slane %v1936, 1
      %v1939 = vsel %vm1839, %v1934, %v1938
      %v1940 = vshrl.u32 %v1834, 16
      %v1942 = vor.u32 %v1940, %v1938
      %v1944 = vshll.u32 %v1835, 16
      %v1946 = vrot.slane %v1944, 1
      %v1947 = vsel %vm1839, %v1942, %v1946
      %v1948 = vshrl.u32 %v1835, 16
      %v1950 = vor.u32 %v1948, %v1946
      %v1952 = vshll.u32 %v1836, 16
      %v1954 = vrot.slane %v1952, 1
      %v1955 = vsel %vm1839, %v1950, %v1954
      %v1956 = vshrl.u32 %v1836, 16
      %v1958 = vor.u32 %v1956, %v1954
      %v1960 = vshll.u32 %v1837, 16
      %v1962 = vrot.slane %v1960, 1
      %v1963 = vsel %vm1839, %v1958, %v1962
      %v1964 = vshrl.u32 %v1837, 16
      %v1966 = vor.u32 %v1964, %v1962
      %v1968 = vshll.u32 %v1838, 16
      %v1970 = vrot.slane %v1968, 1
      %v1971 = vsel %vm1839, %v1966, %v1970
      %v1974 = vunpack.c.l.b16 %v1791
      %v1975 = vunpack.c.l.b16 %v1792
      %v1976 = vpack.c.b16 %v1975, %v1974
      %v1979 = vsel %vm405, %v1851, 0
      %v1982 = vsel %vm405, %v1859, 0
      %v1985 = vsel %vm405, %v1867, 0
      %v1988 = vsel %vm405, %v1875, 0
      %v1991 = vsel %vm405, %v1883, 0
      %v1994 = vsel %vm405, %v1891, 0
      %v1997 = vsel %vm405, %v1899, 0
      %v2000 = vsel %vm405, %v1907, 0
      %v2003 = vsel %vm405, %v1915, 0
      %v2006 = vsel %vm405, %v1923, 0
      %v2009 = vsel %vm405, %v1931, 0
      %v2012 = vsel %vm405, %v1939, 0
      %v2015 = vsel %vm405, %v1947, 0
      %v2018 = vsel %vm405, %v1955, 0
      %v2021 = vsel %vm405, %v1963, 0
      %v2024 = vsel %vm405, %v1971, 0
      %2026 = vmatprep.subr.bf16.mxu0 0
      %2027 = vmatpush1.bf16.msra.mxu0 0
      %2028 = vmatprep.subr.bf16.mxu0 0
      %2029 = vmatpush1.bf16.msra.mxu0 0
      %2030 = vmatprep.subr.bf16.mxu0 0
      %2031 = vmatpush1.bf16.msra.mxu0 0
      %2032 = vmatprep.subr.bf16.mxu0 0
      %2033 = vmatpush1.bf16.msra.mxu0 0
      %2034 = vmatprep.subr.bf16.mxu0 0
      %2035 = vmatpush1.bf16.msra.mxu0 0
      %2036 = vmatprep.subr.bf16.mxu0 0
      %2037 = vmatpush1.bf16.msra.mxu0 0
      %2038 = vmatprep.subr.bf16.mxu0 0
      %2039 = vmatpush1.bf16.msra.mxu0 0
      %2040 = vmatprep.subr.bf16.mxu0 0
      %2041 = vmatpush1.bf16.msra.mxu0 %v1976
      %2042 = vmatprep.subr.bf16.mxu0 0
      %2043 = vmatpush2.bf16.msra.mxu0 0
      %2044 = vmatprep.subr.bf16.mxu0 0
      %2045 = vmatpush2.bf16.msra.mxu0 0
      %2046 = vmatprep.subr.bf16.mxu0 0
      %2047 = vmatpush2.bf16.msra.mxu0 0
      %2048 = vmatprep.subr.bf16.mxu0 0
      %2049 = vmatpush2.bf16.msra.mxu0 0
      %2050 = vmatprep.subr.bf16.mxu0 0
      %2051 = vmatpush2.bf16.msra.mxu0 0
      %2052 = vmatprep.subr.bf16.mxu0 0
      %2053 = vmatpush2.bf16.msra.mxu0 0
      %2054 = vmatprep.subr.bf16.mxu0 0
      %2055 = vmatpush2.bf16.msra.mxu0 0
      %2056 = vmatprep.subr.bf16.mxu0 0
      %2057 = vmatpush2.bf16.msra.mxu0 0
      %2058 = vmatprep.mubr.bf16.mxu0 0
      %2059 = vmatmul.mubr.bf16.gmra.mxu0 %v1979
      %v2060 = vpop.f32.mrf.mxu0
      %v2061 = vadd.f32 0.0, %v2060
      %v2062 = vpop.f32.mrf.mxu0
      %v2063 = vpop.f32.mrf.mxu0
      %v2064 = vadd.f32 0.0, %v2063
      %v2065 = vpop.f32.mrf.mxu0
      %2066 = vmatprep.mubr.bf16.mxu0 0
      %2067 = vmatmul.mubr.bf16.gmra.mxu0 %v1982
      %v2068 = vpop.f32.mrf.mxu0
      %v2069 = vadd.f32 0.0, %v2068
      %v2070 = vpop.f32.mrf.mxu0
      %v2071 = vpop.f32.mrf.mxu0
      %v2072 = vadd.f32 0.0, %v2071
      %v2073 = vpop.f32.mrf.mxu0
      %2074 = vmatprep.mubr.bf16.mxu0 0
      %2075 = vmatmul.mubr.bf16.gmra.mxu0 %v1985
      %v2076 = vpop.f32.mrf.mxu0
      %v2077 = vadd.f32 0.0, %v2076
      %v2078 = vpop.f32.mrf.mxu0
      %v2079 = vpop.f32.mrf.mxu0
      %v2080 = vadd.f32 0.0, %v2079
      %v2081 = vpop.f32.mrf.mxu0
      %2082 = vmatprep.mubr.bf16.mxu0 0
      %2083 = vmatmul.mubr.bf16.gmra.mxu0 %v1988
      %v2084 = vpop.f32.mrf.mxu0
      %v2085 = vadd.f32 0.0, %v2084
      %v2086 = vpop.f32.mrf.mxu0
      %v2087 = vpop.f32.mrf.mxu0
      %v2088 = vadd.f32 0.0, %v2087
      %v2089 = vpop.f32.mrf.mxu0
      %2090 = vmatprep.mubr.bf16.mxu0 0
      %2091 = vmatmul.mubr.bf16.gmra.mxu0 %v1991
      %v2092 = vpop.f32.mrf.mxu0
      %v2093 = vadd.f32 0.0, %v2092
      %v2094 = vpop.f32.mrf.mxu0
      %v2095 = vpop.f32.mrf.mxu0
      %v2096 = vadd.f32 0.0, %v2095
      %v2097 = vpop.f32.mrf.mxu0
      %2098 = vmatprep.mubr.bf16.mxu0 0
      %2099 = vmatmul.mubr.bf16.gmra.mxu0 %v1994
      %v2100 = vpop.f32.mrf.mxu0
      %v2101 = vadd.f32 0.0, %v2100
      %v2102 = vpop.f32.mrf.mxu0
      %v2103 = vpop.f32.mrf.mxu0
      %v2104 = vadd.f32 0.0, %v2103
      %v2105 = vpop.f32.mrf.mxu0
      %2106 = vmatprep.mubr.bf16.mxu0 0
      %2107 = vmatmul.mubr.bf16.gmra.mxu0 %v1997
      %v2108 = vpop.f32.mrf.mxu0
      %v2109 = vadd.f32 0.0, %v2108
      %v2110 = vpop.f32.mrf.mxu0
      %v2111 = vpop.f32.mrf.mxu0
      %v2112 = vadd.f32 0.0, %v2111
      %v2113 = vpop.f32.mrf.mxu0
      %2114 = vmatprep.mubr.bf16.mxu0 0
      %2115 = vmatmul.mubr.bf16.gmra.mxu0 %v2000
      %v2116 = vpop.f32.mrf.mxu0
      %v2117 = vadd.f32 0.0, %v2116
      %v2118 = vpop.f32.mrf.mxu0
      %v2119 = vpop.f32.mrf.mxu0
      %v2120 = vadd.f32 0.0, %v2119
      %v2121 = vpop.f32.mrf.mxu0
      %2122 = vmatprep.mubr.bf16.mxu0 0
      %2123 = vmatmul.mubr.bf16.gmra.mxu0 %v2003
      %v2124 = vpop.f32.mrf.mxu0
      %v2125 = vadd.f32 0.0, %v2124
      %v2126 = vpop.f32.mrf.mxu0
      %v2127 = vpop.f32.mrf.mxu0
      %v2128 = vadd.f32 0.0, %v2127
      %v2129 = vpop.f32.mrf.mxu0
      %2130 = vmatprep.mubr.bf16.mxu0 0
      %2131 = vmatmul.mubr.bf16.gmra.mxu0 %v2006
      %v2132 = vpop.f32.mrf.mxu0
      %v2133 = vadd.f32 0.0, %v2132
      %v2134 = vpop.f32.mrf.mxu0
      %v2135 = vpop.f32.mrf.mxu0
      %v2136 = vadd.f32 0.0, %v2135
      %v2137 = vpop.f32.mrf.mxu0
      %2138 = vmatprep.mubr.bf16.mxu0 0
      %2139 = vmatmul.mubr.bf16.gmra.mxu0 %v2009
      %v2140 = vpop.f32.mrf.mxu0
      %v2141 = vadd.f32 0.0, %v2140
      %v2142 = vpop.f32.mrf.mxu0
      %v2143 = vpop.f32.mrf.mxu0
      %v2144 = vadd.f32 0.0, %v2143
      %v2145 = vpop.f32.mrf.mxu0
      %2146 = vmatprep.mubr.bf16.mxu0 0
      %2147 = vmatmul.mubr.bf16.gmra.mxu0 %v2012
      %v2148 = vpop.f32.mrf.mxu0
      %v2149 = vadd.f32 0.0, %v2148
      %v2150 = vpop.f32.mrf.mxu0
      %v2151 = vpop.f32.mrf.mxu0
      %v2152 = vadd.f32 0.0, %v2151
      %v2153 = vpop.f32.mrf.mxu0
      %2154 = vmatprep.mubr.bf16.mxu0 0
      %2155 = vmatmul.mubr.bf16.gmra.mxu0 %v2015
      %v2156 = vpop.f32.mrf.mxu0
      %v2157 = vadd.f32 0.0, %v2156
      %v2158 = vpop.f32.mrf.mxu0
      %v2159 = vpop.f32.mrf.mxu0
      %v2160 = vadd.f32 0.0, %v2159
      %v2161 = vpop.f32.mrf.mxu0
      %2162 = vmatprep.mubr.bf16.mxu0 0
      %2163 = vmatmul.mubr.bf16.gmra.mxu0 %v2018
      %v2164 = vpop.f32.mrf.mxu0
      %v2165 = vadd.f32 0.0, %v2164
      %v2166 = vpop.f32.mrf.mxu0
      %v2167 = vpop.f32.mrf.mxu0
      %v2168 = vadd.f32 0.0, %v2167
      %v2169 = vpop.f32.mrf.mxu0
      %2170 = vmatprep.mubr.bf16.mxu0 0
      %2171 = vmatmul.mubr.bf16.gmra.mxu0 %v2021
      %v2172 = vpop.f32.mrf.mxu0
      %v2173 = vadd.f32 0.0, %v2172
      %v2174 = vpop.f32.mrf.mxu0
      %v2175 = vpop.f32.mrf.mxu0
      %v2176 = vadd.f32 0.0, %v2175
      %v2177 = vpop.f32.mrf.mxu0
      %2178 = vmatprep.mubr.bf16.mxu0 0
      %2179 = vmatmul.mubr.bf16.gmra.mxu0 %v2024
      %v2180 = vpop.f32.mrf.mxu0
      %v2181 = vadd.f32 0.0, %v2180
      %v2182 = vpop.f32.mrf.mxu0
      %v2183 = vpop.f32.mrf.mxu0
      %v2184 = vadd.f32 0.0, %v2183
      %v2185 = vpop.f32.mrf.mxu0
      %2186 = vdwg.mxu0
      %v2189 = vunpack.c.l.b16 %v1789
      %v2190 = vunpack.c.l.b16 %v1790
      %v2191 = vpack.c.b16 %v2190, %v2189
      %v2193 = vsel %vm405, %v1807, 0
      %v2196 = vsel %vm405, %v1808, 0
      %v2199 = vsel %vm405, %v1809, 0
      %v2202 = vsel %vm405, %v1810, 0
      %v2205 = vsel %vm405, %v1811, 0
      %v2208 = vsel %vm405, %v1812, 0
      %v2211 = vsel %vm405, %v1813, 0
      %v2214 = vsel %vm405, %v1814, 0
      %v2217 = vsel %vm405, %v1815, 0
      %v2220 = vsel %vm405, %v1816, 0
      %v2223 = vsel %vm405, %v1817, 0
      %v2226 = vsel %vm405, %v1818, 0
      %v2229 = vsel %vm405, %v1819, 0
      %v2232 = vsel %vm405, %v1820, 0
      %v2235 = vsel %vm405, %v1821, 0
      %v2238 = vsel %vm405, %v1822, 0
      %2240 = vmatprep.subr.bf16.mxu0 0
      %2241 = vmatpush1.bf16.msra.mxu0 0
      %2242 = vmatprep.subr.bf16.mxu0 0
      %2243 = vmatpush1.bf16.msra.mxu0 0
      %2244 = vmatprep.subr.bf16.mxu0 0
      %2245 = vmatpush1.bf16.msra.mxu0 0
      %2246 = vmatprep.subr.bf16.mxu0 0
      %2247 = vmatpush1.bf16.msra.mxu0 0
      %2248 = vmatprep.subr.bf16.mxu0 0
      %2249 = vmatpush1.bf16.msra.mxu0 0
      %2250 = vmatprep.subr.bf16.mxu0 0
      %2251 = vmatpush1.bf16.msra.mxu0 0
      %2252 = vmatprep.subr.bf16.mxu0 0
      %2253 = vmatpush1.bf16.msra.mxu0 0
      %2254 = vmatprep.subr.bf16.mxu0 0
      %2255 = vmatpush1.bf16.msra.mxu0 %v2191
      %2256 = vmatprep.subr.bf16.mxu0 0
      %2257 = vmatpush2.bf16.msra.mxu0 0
      %2258 = vmatprep.subr.bf16.mxu0 0
      %2259 = vmatpush2.bf16.msra.mxu0 0
      %2260 = vmatprep.subr.bf16.mxu0 0
      %2261 = vmatpush2.bf16.msra.mxu0 0
      %2262 = vmatprep.subr.bf16.mxu0 0
      %2263 = vmatpush2.bf16.msra.mxu0 0
      %2264 = vmatprep.subr.bf16.mxu0 0
      %2265 = vmatpush2.bf16.msra.mxu0 0
      %2266 = vmatprep.subr.bf16.mxu0 0
      %2267 = vmatpush2.bf16.msra.mxu0 0
      %2268 = vmatprep.subr.bf16.mxu0 0
      %2269 = vmatpush2.bf16.msra.mxu0 0
      %2270 = vmatprep.subr.bf16.mxu0 0
      %2271 = vmatpush2.bf16.msra.mxu0 0
      %2272 = vmatprep.mubr.bf16.mxu0 0
      %2273 = vmatmul.mubr.bf16.gmra.mxu0 %v2193
      %v2274 = vpop.f32.mrf.mxu0
      %v2275 = vadd.f32 %v2061, %v2274
      %v2276 = vpop.f32.mrf.mxu0
      %v2277 = vpop.f32.mrf.mxu0
      %v2278 = vadd.f32 %v2064, %v2277
      %v2279 = vpop.f32.mrf.mxu0
      %2280 = vmatprep.mubr.bf16.mxu0 0
      %2281 = vmatmul.mubr.bf16.gmra.mxu0 %v2196
      %v2282 = vpop.f32.mrf.mxu0
      %v2283 = vadd.f32 %v2069, %v2282
      %v2284 = vpop.f32.mrf.mxu0
      %v2285 = vpop.f32.mrf.mxu0
      %v2286 = vadd.f32 %v2072, %v2285
      %v2287 = vpop.f32.mrf.mxu0
      %2288 = vmatprep.mubr.bf16.mxu0 0
      %2289 = vmatmul.mubr.bf16.gmra.mxu0 %v2199
      %v2290 = vpop.f32.mrf.mxu0
      %v2291 = vadd.f32 %v2077, %v2290
      %v2292 = vpop.f32.mrf.mxu0
      %v2293 = vpop.f32.mrf.mxu0
      %v2294 = vadd.f32 %v2080, %v2293
      %v2295 = vpop.f32.mrf.mxu0
      %2296 = vmatprep.mubr.bf16.mxu0 0
      %2297 = vmatmul.mubr.bf16.gmra.mxu0 %v2202
      %v2298 = vpop.f32.mrf.mxu0
      %v2299 = vadd.f32 %v2085, %v2298
      %v2300 = vpop.f32.mrf.mxu0
      %v2301 = vpop.f32.mrf.mxu0
      %v2302 = vadd.f32 %v2088, %v2301
      %v2303 = vpop.f32.mrf.mxu0
      %2304 = vmatprep.mubr.bf16.mxu0 0
      %2305 = vmatmul.mubr.bf16.gmra.mxu0 %v2205
      %v2306 = vpop.f32.mrf.mxu0
      %v2307 = vadd.f32 %v2093, %v2306
      %v2308 = vpop.f32.mrf.mxu0
      %v2309 = vpop.f32.mrf.mxu0
      %v2310 = vadd.f32 %v2096, %v2309
      %v2311 = vpop.f32.mrf.mxu0
      %2312 = vmatprep.mubr.bf16.mxu0 0
      %2313 = vmatmul.mubr.bf16.gmra.mxu0 %v2208
      %v2314 = vpop.f32.mrf.mxu0
      %v2315 = vadd.f32 %v2101, %v2314
      %v2316 = vpop.f32.mrf.mxu0
      %v2317 = vpop.f32.mrf.mxu0
      %v2318 = vadd.f32 %v2104, %v2317
      %v2319 = vpop.f32.mrf.mxu0
      %2320 = vmatprep.mubr.bf16.mxu0 0
      %2321 = vmatmul.mubr.bf16.gmra.mxu0 %v2211
      %v2322 = vpop.f32.mrf.mxu0
      %v2323 = vadd.f32 %v2109, %v2322
      %v2324 = vpop.f32.mrf.mxu0
      %v2325 = vpop.f32.mrf.mxu0
      %v2326 = vadd.f32 %v2112, %v2325
      %v2327 = vpop.f32.mrf.mxu0
      %2328 = vmatprep.mubr.bf16.mxu0 0
      %2329 = vmatmul.mubr.bf16.gmra.mxu0 %v2214
      %v2330 = vpop.f32.mrf.mxu0
      %v2331 = vadd.f32 %v2117, %v2330
      %v2332 = vpop.f32.mrf.mxu0
      %v2333 = vpop.f32.mrf.mxu0
      %v2334 = vadd.f32 %v2120, %v2333
      %v2335 = vpop.f32.mrf.mxu0
      %2336 = vmatprep.mubr.bf16.mxu0 0
      %2337 = vmatmul.mubr.bf16.gmra.mxu0 %v2217
      %v2338 = vpop.f32.mrf.mxu0
      %v2339 = vadd.f32 %v2125, %v2338
      %v2340 = vpop.f32.mrf.mxu0
      %v2341 = vpop.f32.mrf.mxu0
      %v2342 = vadd.f32 %v2128, %v2341
      %v2343 = vpop.f32.mrf.mxu0
      %2344 = vmatprep.mubr.bf16.mxu0 0
      %2345 = vmatmul.mubr.bf16.gmra.mxu0 %v2220
      %v2346 = vpop.f32.mrf.mxu0
      %v2347 = vadd.f32 %v2133, %v2346
      %v2348 = vpop.f32.mrf.mxu0
      %v2349 = vpop.f32.mrf.mxu0
      %v2350 = vadd.f32 %v2136, %v2349
      %v2351 = vpop.f32.mrf.mxu0
      %2352 = vmatprep.mubr.bf16.mxu0 0
      %2353 = vmatmul.mubr.bf16.gmra.mxu0 %v2223
      %v2354 = vpop.f32.mrf.mxu0
      %v2355 = vadd.f32 %v2141, %v2354
      %v2356 = vpop.f32.mrf.mxu0
      %v2357 = vpop.f32.mrf.mxu0
      %v2358 = vadd.f32 %v2144, %v2357
      %v2359 = vpop.f32.mrf.mxu0
      %2360 = vmatprep.mubr.bf16.mxu0 0
      %2361 = vmatmul.mubr.bf16.gmra.mxu0 %v2226
      %v2362 = vpop.f32.mrf.mxu0
      %v2363 = vadd.f32 %v2149, %v2362
      %v2364 = vpop.f32.mrf.mxu0
      %v2365 = vpop.f32.mrf.mxu0
      %v2366 = vadd.f32 %v2152, %v2365
      %v2367 = vpop.f32.mrf.mxu0
      %2368 = vmatprep.mubr.bf16.mxu0 0
      %2369 = vmatmul.mubr.bf16.gmra.mxu0 %v2229
      %v2370 = vpop.f32.mrf.mxu0
      %v2371 = vadd.f32 %v2157, %v2370
      %v2372 = vpop.f32.mrf.mxu0
      %v2373 = vpop.f32.mrf.mxu0
      %v2374 = vadd.f32 %v2160, %v2373
      %v2375 = vpop.f32.mrf.mxu0
      %2376 = vmatprep.mubr.bf16.mxu0 0
      %2377 = vmatmul.mubr.bf16.gmra.mxu0 %v2232
      %v2378 = vpop.f32.mrf.mxu0
      %v2379 = vadd.f32 %v2165, %v2378
      %v2380 = vpop.f32.mrf.mxu0
      %v2381 = vpop.f32.mrf.mxu0
      %v2382 = vadd.f32 %v2168, %v2381
      %v2383 = vpop.f32.mrf.mxu0
      %2384 = vmatprep.mubr.bf16.mxu0 0
      %2385 = vmatmul.mubr.bf16.gmra.mxu0 %v2235
      %v2386 = vpop.f32.mrf.mxu0
      %v2387 = vadd.f32 %v2173, %v2386
      %v2388 = vpop.f32.mrf.mxu0
      %v2389 = vpop.f32.mrf.mxu0
      %v2390 = vadd.f32 %v2176, %v2389
      %v2391 = vpop.f32.mrf.mxu0
      %2392 = vmatprep.mubr.bf16.mxu0 0
      %2393 = vmatmul.mubr.bf16.gmra.mxu0 %v2238
      %v2394 = vpop.f32.mrf.mxu0
      %v2395 = vadd.f32 %v2181, %v2394
      %v2396 = vpop.f32.mrf.mxu0
      %v2397 = vpop.f32.mrf.mxu0
      %v2398 = vadd.f32 %v2184, %v2397
      %v2399 = vpop.f32.mrf.mxu0
      %2400 = vdwg.mxu0
      %v2401 = vpack.c.bf16 %v1693, %v1787
      %v2402 = vpack.c.bf16 %v1697, %v1695
      %v2403 = vpack.c.bf16 %v1701, %v1699
      %v2404 = vpack.c.bf16 %v1705, %v1703
      %v2405 = vpack.c.bf16 %v1709, %v1707
      %v2406 = vpack.c.bf16 %v1713, %v1711
      %v2407 = vpack.c.bf16 %v1717, %v1715
      %v2408 = vpack.c.bf16 %v1721, %v1719
      %v2409 = vpack.c.bf16 %v1725, %v1723
      %v2410 = vpack.c.bf16 %v1729, %v1727
      %v2411 = vpack.c.bf16 %v1733, %v1731
      %v2412 = vpack.c.bf16 %v1737, %v1735
      %v2413 = vpack.c.bf16 %v1741, %v1739
      %v2414 = vpack.c.bf16 %v1745, %v1743
      %v2415 = vpack.c.bf16 %v1749, %v1747
      %v2416 = vpack.c.bf16 %v1751, %v1751
      %vm2434 = vcmask 1046528
      %v2435 = vrot.slane %v1807, 1
      %v2436 = vrot.slane %v2401, 1
      %v2437 = vsel %vm2434, %v2435, %v2436
      %v2438 = vrot.slane %v2402, 1
      %v2439 = vsel %vm2434, %v2436, %v2438
      %v2440 = vrot.slane %v2403, 1
      %v2441 = vsel %vm2434, %v2438, %v2440
      %v2442 = vrot.slane %v2404, 1
      %v2443 = vsel %vm2434, %v2440, %v2442
      %v2444 = vrot.slane %v2405, 1
      %v2445 = vsel %vm2434, %v2442, %v2444
      %v2446 = vrot.slane %v2406, 1
      %v2447 = vsel %vm2434, %v2444, %v2446
      %v2448 = vrot.slane %v2407, 1
      %v2449 = vsel %vm2434, %v2446, %v2448
      %v2450 = vrot.slane %v2408, 1
      %v2451 = vsel %vm2434, %v2448, %v2450
      %v2452 = vrot.slane %v2409, 1
      %v2453 = vsel %vm2434, %v2450, %v2452
      %v2454 = vrot.slane %v2410, 1
      %v2455 = vsel %vm2434, %v2452, %v2454
      %v2456 = vrot.slane %v2411, 1
      %v2457 = vsel %vm2434, %v2454, %v2456
      %v2458 = vrot.slane %v2412, 1
      %v2459 = vsel %vm2434, %v2456, %v2458
      %v2460 = vrot.slane %v2413, 1
      %v2461 = vsel %vm2434, %v2458, %v2460
      %v2462 = vrot.slane %v2414, 1
      %v2463 = vsel %vm2434, %v2460, %v2462
      %v2464 = vrot.slane %v2415, 1
      %v2465 = vsel %vm2434, %v2462, %v2464
      %v2466 = vrot.slane %v2416, 1
      %v2467 = vsel %vm2434, %v2464, %v2466
      %v2470 = vunpack.c.l.b16 %v1793
      %v2471 = vunpack.c.l.b16 %v1794
      %v2472 = vpack.c.b16 %v2471, %v2470
      %v2475 = vsel %vm405, %v2437, 0
      %v2478 = vsel %vm405, %v2439, 0
      %v2481 = vsel %vm405, %v2441, 0
      %v2484 = vsel %vm405, %v2443, 0
      %v2487 = vsel %vm405, %v2445, 0
      %v2490 = vsel %vm405, %v2447, 0
      %v2493 = vsel %vm405, %v2449, 0
      %v2496 = vsel %vm405, %v2451, 0
      %v2499 = vsel %vm405, %v2453, 0
      %v2502 = vsel %vm405, %v2455, 0
      %v2505 = vsel %vm405, %v2457, 0
      %v2508 = vsel %vm405, %v2459, 0
      %v2511 = vsel %vm405, %v2461, 0
      %v2514 = vsel %vm405, %v2463, 0
      %v2517 = vsel %vm405, %v2465, 0
      %v2520 = vsel %vm405, %v2467, 0
      %2522 = vmatprep.subr.bf16.mxu0 0
      %2523 = vmatpush1.bf16.msra.mxu0 0
      %2524 = vmatprep.subr.bf16.mxu0 0
      %2525 = vmatpush1.bf16.msra.mxu0 0
      %2526 = vmatprep.subr.bf16.mxu0 0
      %2527 = vmatpush1.bf16.msra.mxu0 0
      %2528 = vmatprep.subr.bf16.mxu0 0
      %2529 = vmatpush1.bf16.msra.mxu0 0
      %2530 = vmatprep.subr.bf16.mxu0 0
      %2531 = vmatpush1.bf16.msra.mxu0 0
      %2532 = vmatprep.subr.bf16.mxu0 0
      %2533 = vmatpush1.bf16.msra.mxu0 0
      %2534 = vmatprep.subr.bf16.mxu0 0
      %2535 = vmatpush1.bf16.msra.mxu0 0
      %2536 = vmatprep.subr.bf16.mxu0 0
      %2537 = vmatpush1.bf16.msra.mxu0 %v2472
      %2538 = vmatprep.subr.bf16.mxu0 0
      %2539 = vmatpush2.bf16.msra.mxu0 0
      %2540 = vmatprep.subr.bf16.mxu0 0
      %2541 = vmatpush2.bf16.msra.mxu0 0
      %2542 = vmatprep.subr.bf16.mxu0 0
      %2543 = vmatpush2.bf16.msra.mxu0 0
      %2544 = vmatprep.subr.bf16.mxu0 0
      %2545 = vmatpush2.bf16.msra.mxu0 0
      %2546 = vmatprep.subr.bf16.mxu0 0
      %2547 = vmatpush2.bf16.msra.mxu0 0
      %2548 = vmatprep.subr.bf16.mxu0 0
      %2549 = vmatpush2.bf16.msra.mxu0 0
      %2550 = vmatprep.subr.bf16.mxu0 0
      %2551 = vmatpush2.bf16.msra.mxu0 0
      %2552 = vmatprep.subr.bf16.mxu0 0
      %2553 = vmatpush2.bf16.msra.mxu0 0
      %2554 = vmatprep.mubr.bf16.mxu0 0
      %2555 = vmatmul.mubr.bf16.gmra.mxu0 %v2475
      %v2556 = vpop.f32.mrf.mxu0
      %v2557 = vadd.f32 0.0, %v2556
      %v2558 = vpop.f32.mrf.mxu0
      %v2559 = vpop.f32.mrf.mxu0
      %v2560 = vadd.f32 0.0, %v2559
      %v2561 = vpop.f32.mrf.mxu0
      %2562 = vmatprep.mubr.bf16.mxu0 0
      %2563 = vmatmul.mubr.bf16.gmra.mxu0 %v2478
      %v2564 = vpop.f32.mrf.mxu0
      %v2565 = vadd.f32 0.0, %v2564
      %v2566 = vpop.f32.mrf.mxu0
      %v2567 = vpop.f32.mrf.mxu0
      %v2568 = vadd.f32 0.0, %v2567
      %v2569 = vpop.f32.mrf.mxu0
      %2570 = vmatprep.mubr.bf16.mxu0 0
      %2571 = vmatmul.mubr.bf16.gmra.mxu0 %v2481
      %v2572 = vpop.f32.mrf.mxu0
      %v2573 = vadd.f32 0.0, %v2572
      %v2574 = vpop.f32.mrf.mxu0
      %v2575 = vpop.f32.mrf.mxu0
      %v2576 = vadd.f32 0.0, %v2575
      %v2577 = vpop.f32.mrf.mxu0
      %2578 = vmatprep.mubr.bf16.mxu0 0
      %2579 = vmatmul.mubr.bf16.gmra.mxu0 %v2484
      %v2580 = vpop.f32.mrf.mxu0
      %v2581 = vadd.f32 0.0, %v2580
      %v2582 = vpop.f32.mrf.mxu0
      %v2583 = vpop.f32.mrf.mxu0
      %v2584 = vadd.f32 0.0, %v2583
      %v2585 = vpop.f32.mrf.mxu0
      %2586 = vmatprep.mubr.bf16.mxu0 0
      %2587 = vmatmul.mubr.bf16.gmra.mxu0 %v2487
      %v2588 = vpop.f32.mrf.mxu0
      %v2589 = vadd.f32 0.0, %v2588
      %v2590 = vpop.f32.mrf.mxu0
      %v2591 = vpop.f32.mrf.mxu0
      %v2592 = vadd.f32 0.0, %v2591
      %v2593 = vpop.f32.mrf.mxu0
      %2594 = vmatprep.mubr.bf16.mxu0 0
      %2595 = vmatmul.mubr.bf16.gmra.mxu0 %v2490
      %v2596 = vpop.f32.mrf.mxu0
      %v2597 = vadd.f32 0.0, %v2596
      %v2598 = vpop.f32.mrf.mxu0
      %v2599 = vpop.f32.mrf.mxu0
      %v2600 = vadd.f32 0.0, %v2599
      %v2601 = vpop.f32.mrf.mxu0
      %2602 = vmatprep.mubr.bf16.mxu0 0
      %2603 = vmatmul.mubr.bf16.gmra.mxu0 %v2493
      %v2604 = vpop.f32.mrf.mxu0
      %v2605 = vadd.f32 0.0, %v2604
      %v2606 = vpop.f32.mrf.mxu0
      %v2607 = vpop.f32.mrf.mxu0
      %v2608 = vadd.f32 0.0, %v2607
      %v2609 = vpop.f32.mrf.mxu0
      %2610 = vmatprep.mubr.bf16.mxu0 0
      %2611 = vmatmul.mubr.bf16.gmra.mxu0 %v2496
      %v2612 = vpop.f32.mrf.mxu0
      %v2613 = vadd.f32 0.0, %v2612
      %v2614 = vpop.f32.mrf.mxu0
      %v2615 = vpop.f32.mrf.mxu0
      %v2616 = vadd.f32 0.0, %v2615
      %v2617 = vpop.f32.mrf.mxu0
      %2618 = vmatprep.mubr.bf16.mxu0 0
      %2619 = vmatmul.mubr.bf16.gmra.mxu0 %v2499
      %v2620 = vpop.f32.mrf.mxu0
      %v2621 = vadd.f32 0.0, %v2620
      %v2622 = vpop.f32.mrf.mxu0
      %v2623 = vpop.f32.mrf.mxu0
      %v2624 = vadd.f32 0.0, %v2623
      %v2625 = vpop.f32.mrf.mxu0
      %2626 = vmatprep.mubr.bf16.mxu0 0
      %2627 = vmatmul.mubr.bf16.gmra.mxu0 %v2502
      %v2628 = vpop.f32.mrf.mxu0
      %v2629 = vadd.f32 0.0, %v2628
      %v2630 = vpop.f32.mrf.mxu0
      %v2631 = vpop.f32.mrf.mxu0
      %v2632 = vadd.f32 0.0, %v2631
      %v2633 = vpop.f32.mrf.mxu0
      %2634 = vmatprep.mubr.bf16.mxu0 0
      %2635 = vmatmul.mubr.bf16.gmra.mxu0 %v2505
      %v2636 = vpop.f32.mrf.mxu0
      %v2637 = vadd.f32 0.0, %v2636
      %v2638 = vpop.f32.mrf.mxu0
      %v2639 = vpop.f32.mrf.mxu0
      %v2640 = vadd.f32 0.0, %v2639
      %v2641 = vpop.f32.mrf.mxu0
      %2642 = vmatprep.mubr.bf16.mxu0 0
      %2643 = vmatmul.mubr.bf16.gmra.mxu0 %v2508
      %v2644 = vpop.f32.mrf.mxu0
      %v2645 = vadd.f32 0.0, %v2644
      %v2646 = vpop.f32.mrf.mxu0
      %v2647 = vpop.f32.mrf.mxu0
      %v2648 = vadd.f32 0.0, %v2647
      %v2649 = vpop.f32.mrf.mxu0
      %2650 = vmatprep.mubr.bf16.mxu0 0
      %2651 = vmatmul.mubr.bf16.gmra.mxu0 %v2511
      %v2652 = vpop.f32.mrf.mxu0
      %v2653 = vadd.f32 0.0, %v2652
      %v2654 = vpop.f32.mrf.mxu0
      %v2655 = vpop.f32.mrf.mxu0
      %v2656 = vadd.f32 0.0, %v2655
      %v2657 = vpop.f32.mrf.mxu0
      %2658 = vmatprep.mubr.bf16.mxu0 0
      %2659 = vmatmul.mubr.bf16.gmra.mxu0 %v2514
      %v2660 = vpop.f32.mrf.mxu0
      %v2661 = vadd.f32 0.0, %v2660
      %v2662 = vpop.f32.mrf.mxu0
      %v2663 = vpop.f32.mrf.mxu0
      %v2664 = vadd.f32 0.0, %v2663
      %v2665 = vpop.f32.mrf.mxu0
      %2666 = vmatprep.mubr.bf16.mxu0 0
      %2667 = vmatmul.mubr.bf16.gmra.mxu0 %v2517
      %v2668 = vpop.f32.mrf.mxu0
      %v2669 = vadd.f32 0.0, %v2668
      %v2670 = vpop.f32.mrf.mxu0
      %v2671 = vpop.f32.mrf.mxu0
      %v2672 = vadd.f32 0.0, %v2671
      %v2673 = vpop.f32.mrf.mxu0
      %2674 = vmatprep.mubr.bf16.mxu0 0
      %2675 = vmatmul.mubr.bf16.gmra.mxu0 %v2520
      %v2676 = vpop.f32.mrf.mxu0
      %v2677 = vadd.f32 0.0, %v2676
      %v2678 = vpop.f32.mrf.mxu0
      %v2679 = vpop.f32.mrf.mxu0
      %v2680 = vadd.f32 0.0, %v2679
      %v2681 = vpop.f32.mrf.mxu0
      %2682 = vdwg.mxu0
      %v2683 = vadd.f32 %v2275, %v2557
      %v2684 = vadd.f32 %v2278, %v2560
      %v2685 = vadd.f32 %v2283, %v2565
      %v2686 = vadd.f32 %v2286, %v2568
      %v2687 = vadd.f32 %v2291, %v2573
      %v2688 = vadd.f32 %v2294, %v2576
      %v2689 = vadd.f32 %v2299, %v2581
      %v2690 = vadd.f32 %v2302, %v2584
      %v2691 = vadd.f32 %v2307, %v2589
      %v2692 = vadd.f32 %v2310, %v2592
      %v2693 = vadd.f32 %v2315, %v2597
      %v2694 = vadd.f32 %v2318, %v2600
      %v2695 = vadd.f32 %v2323, %v2605
      %v2696 = vadd.f32 %v2326, %v2608
      %v2697 = vadd.f32 %v2331, %v2613
      %v2698 = vadd.f32 %v2334, %v2616
      %v2699 = vadd.f32 %v2339, %v2621
      %v2700 = vadd.f32 %v2342, %v2624
      %v2701 = vadd.f32 %v2347, %v2629
      %v2702 = vadd.f32 %v2350, %v2632
      %v2703 = vadd.f32 %v2355, %v2637
      %v2704 = vadd.f32 %v2358, %v2640
      %v2705 = vadd.f32 %v2363, %v2645
      %v2706 = vadd.f32 %v2366, %v2648
      %v2707 = vadd.f32 %v2371, %v2653
      %v2708 = vadd.f32 %v2374, %v2656
      %v2709 = vadd.f32 %v2379, %v2661
      %v2710 = vadd.f32 %v2382, %v2664
      %v2711 = vadd.f32 %v2387, %v2669
      %v2712 = vadd.f32 %v2390, %v2672
      %v2713 = vadd.f32 %v2395, %v2677
      %v2714 = vadd.f32 %v2398, %v2680
      %v2715 = vpack.c.bf16 %v1493, %v1491
      %v2718 = vunpack.c.l.b16 %v1795
      %v2719 = vunpack.c.l.b16 %v1796
      %v2720 = vpack.c.b16 %v2719, %v2718
      %v2723 = vsel %vm405, %v2715, 0
      %2725 = vmatprep.subr.bf16.mxu0 0
      %2726 = vmatpush1.bf16.msra.mxu0 0
      %2727 = vmatprep.subr.bf16.mxu0 0
      %2728 = vmatpush1.bf16.msra.mxu0 0
      %2729 = vmatprep.subr.bf16.mxu0 0
      %2730 = vmatpush1.bf16.msra.mxu0 0
      %2731 = vmatprep.subr.bf16.mxu0 0
      %2732 = vmatpush1.bf16.msra.mxu0 0
      %2733 = vmatprep.subr.bf16.mxu0 0
      %2734 = vmatpush1.bf16.msra.mxu0 0
      %2735 = vmatprep.subr.bf16.mxu0 0
      %2736 = vmatpush1.bf16.msra.mxu0 0
      %2737 = vmatprep.subr.bf16.mxu0 0
      %2738 = vmatpush1.bf16.msra.mxu0 0
      %2739 = vmatprep.subr.bf16.mxu0 0
      %2740 = vmatpush1.bf16.msra.mxu0 %v2720
      %2741 = vmatprep.subr.bf16.mxu0 0
      %2742 = vmatpush2.bf16.msra.mxu0 0
      %2743 = vmatprep.subr.bf16.mxu0 0
      %2744 = vmatpush2.bf16.msra.mxu0 0
      %2745 = vmatprep.subr.bf16.mxu0 0
      %2746 = vmatpush2.bf16.msra.mxu0 0
      %2747 = vmatprep.subr.bf16.mxu0 0
      %2748 = vmatpush2.bf16.msra.mxu0 0
      %2749 = vmatprep.subr.bf16.mxu0 0
      %2750 = vmatpush2.bf16.msra.mxu0 0
      %2751 = vmatprep.subr.bf16.mxu0 0
      %2752 = vmatpush2.bf16.msra.mxu0 0
      %2753 = vmatprep.subr.bf16.mxu0 0
      %2754 = vmatpush2.bf16.msra.mxu0 0
      %2755 = vmatprep.subr.bf16.mxu0 0
      %2756 = vmatpush2.bf16.msra.mxu0 0
      %2757 = vmatprep.mubr.bf16.mxu0 0
      %2758 = vmatmul.mubr.bf16.gmra.mxu0 %v2196
      %v2759 = vpop.f32.mrf.mxu0
      %v2760 = vadd.f32 0.0, %v2759
      %v2761 = vpop.f32.mrf.mxu0
      %v2762 = vpop.f32.mrf.mxu0
      %v2763 = vadd.f32 0.0, %v2762
      %v2764 = vpop.f32.mrf.mxu0
      %2765 = vmatprep.mubr.bf16.mxu0 0
      %2766 = vmatmul.mubr.bf16.gmra.mxu0 %v2199
      %v2767 = vpop.f32.mrf.mxu0
      %v2768 = vadd.f32 0.0, %v2767
      %v2769 = vpop.f32.mrf.mxu0
      %v2770 = vpop.f32.mrf.mxu0
      %v2771 = vadd.f32 0.0, %v2770
      %v2772 = vpop.f32.mrf.mxu0
      %2773 = vmatprep.mubr.bf16.mxu0 0
      %2774 = vmatmul.mubr.bf16.gmra.mxu0 %v2202
      %v2775 = vpop.f32.mrf.mxu0
      %v2776 = vadd.f32 0.0, %v2775
      %v2777 = vpop.f32.mrf.mxu0
      %v2778 = vpop.f32.mrf.mxu0
      %v2779 = vadd.f32 0.0, %v2778
      %v2780 = vpop.f32.mrf.mxu0
      %2781 = vmatprep.mubr.bf16.mxu0 0
      %2782 = vmatmul.mubr.bf16.gmra.mxu0 %v2205
      %v2783 = vpop.f32.mrf.mxu0
      %v2784 = vadd.f32 0.0, %v2783
      %v2785 = vpop.f32.mrf.mxu0
      %v2786 = vpop.f32.mrf.mxu0
      %v2787 = vadd.f32 0.0, %v2786
      %v2788 = vpop.f32.mrf.mxu0
      %2789 = vmatprep.mubr.bf16.mxu0 0
      %2790 = vmatmul.mubr.bf16.gmra.mxu0 %v2208
      %v2791 = vpop.f32.mrf.mxu0
      %v2792 = vadd.f32 0.0, %v2791
      %v2793 = vpop.f32.mrf.mxu0
      %v2794 = vpop.f32.mrf.mxu0
      %v2795 = vadd.f32 0.0, %v2794
      %v2796 = vpop.f32.mrf.mxu0
      %2797 = vmatprep.mubr.bf16.mxu0 0
      %2798 = vmatmul.mubr.bf16.gmra.mxu0 %v2211
      %v2799 = vpop.f32.mrf.mxu0
      %v2800 = vadd.f32 0.0, %v2799
      %v2801 = vpop.f32.mrf.mxu0
      %v2802 = vpop.f32.mrf.mxu0
      %v2803 = vadd.f32 0.0, %v2802
      %v2804 = vpop.f32.mrf.mxu0
      %2805 = vmatprep.mubr.bf16.mxu0 0
      %2806 = vmatmul.mubr.bf16.gmra.mxu0 %v2214
      %v2807 = vpop.f32.mrf.mxu0
      %v2808 = vadd.f32 0.0, %v2807
      %v2809 = vpop.f32.mrf.mxu0
      %v2810 = vpop.f32.mrf.mxu0
      %v2811 = vadd.f32 0.0, %v2810
      %v2812 = vpop.f32.mrf.mxu0
      %2813 = vmatprep.mubr.bf16.mxu0 0
      %2814 = vmatmul.mubr.bf16.gmra.mxu0 %v2217
      %v2815 = vpop.f32.mrf.mxu0
      %v2816 = vadd.f32 0.0, %v2815
      %v2817 = vpop.f32.mrf.mxu0
      %v2818 = vpop.f32.mrf.mxu0
      %v2819 = vadd.f32 0.0, %v2818
      %v2820 = vpop.f32.mrf.mxu0
      %2821 = vmatprep.mubr.bf16.mxu0 0
      %2822 = vmatmul.mubr.bf16.gmra.mxu0 %v2220
      %v2823 = vpop.f32.mrf.mxu0
      %v2824 = vadd.f32 0.0, %v2823
      %v2825 = vpop.f32.mrf.mxu0
      %v2826 = vpop.f32.mrf.mxu0
      %v2827 = vadd.f32 0.0, %v2826
      %v2828 = vpop.f32.mrf.mxu0
      %2829 = vmatprep.mubr.bf16.mxu0 0
      %2830 = vmatmul.mubr.bf16.gmra.mxu0 %v2223
      %v2831 = vpop.f32.mrf.mxu0
      %v2832 = vadd.f32 0.0, %v2831
      %v2833 = vpop.f32.mrf.mxu0
      %v2834 = vpop.f32.mrf.mxu0
      %v2835 = vadd.f32 0.0, %v2834
      %v2836 = vpop.f32.mrf.mxu0
      %2837 = vmatprep.mubr.bf16.mxu0 0
      %2838 = vmatmul.mubr.bf16.gmra.mxu0 %v2226
      %v2839 = vpop.f32.mrf.mxu0
      %v2840 = vadd.f32 0.0, %v2839
      %v2841 = vpop.f32.mrf.mxu0
      %v2842 = vpop.f32.mrf.mxu0
      %v2843 = vadd.f32 0.0, %v2842
      %v2844 = vpop.f32.mrf.mxu0
      %2845 = vmatprep.mubr.bf16.mxu0 0
      %2846 = vmatmul.mubr.bf16.gmra.mxu0 %v2229
      %v2847 = vpop.f32.mrf.mxu0
      %v2848 = vadd.f32 0.0, %v2847
      %v2849 = vpop.f32.mrf.mxu0
      %v2850 = vpop.f32.mrf.mxu0
      %v2851 = vadd.f32 0.0, %v2850
      %v2852 = vpop.f32.mrf.mxu0
      %2853 = vmatprep.mubr.bf16.mxu0 0
      %2854 = vmatmul.mubr.bf16.gmra.mxu0 %v2232
      %v2855 = vpop.f32.mrf.mxu0
      %v2856 = vadd.f32 0.0, %v2855
      %v2857 = vpop.f32.mrf.mxu0
      %v2858 = vpop.f32.mrf.mxu0
      %v2859 = vadd.f32 0.0, %v2858
      %v2860 = vpop.f32.mrf.mxu0
      %2861 = vmatprep.mubr.bf16.mxu0 0
      %2862 = vmatmul.mubr.bf16.gmra.mxu0 %v2235
      %v2863 = vpop.f32.mrf.mxu0
      %v2864 = vadd.f32 0.0, %v2863
      %v2865 = vpop.f32.mrf.mxu0
      %v2866 = vpop.f32.mrf.mxu0
      %v2867 = vadd.f32 0.0, %v2866
      %v2868 = vpop.f32.mrf.mxu0
      %2869 = vmatprep.mubr.bf16.mxu0 0
      %2870 = vmatmul.mubr.bf16.gmra.mxu0 %v2238
      %v2871 = vpop.f32.mrf.mxu0
      %v2872 = vadd.f32 0.0, %v2871
      %v2873 = vpop.f32.mrf.mxu0
      %v2874 = vpop.f32.mrf.mxu0
      %v2875 = vadd.f32 0.0, %v2874
      %v2876 = vpop.f32.mrf.mxu0
      %2877 = vmatprep.mubr.bf16.mxu0 0
      %2878 = vmatmul.mubr.bf16.gmra.mxu0 %v2723
      %v2879 = vpop.f32.mrf.mxu0
      %v2880 = vadd.f32 0.0, %v2879
      %v2881 = vpop.f32.mrf.mxu0
      %v2882 = vpop.f32.mrf.mxu0
      %v2883 = vadd.f32 0.0, %v2882
      %v2884 = vpop.f32.mrf.mxu0
      %2885 = vdwg.mxu0
      %v2886 = vadd.f32 %v2683, %v2760
      %v2887 = vadd.f32 %v2684, %v2763
      %v2888 = vadd.f32 %v2685, %v2768
      %v2889 = vadd.f32 %v2686, %v2771
      %v2890 = vadd.f32 %v2687, %v2776
      %v2891 = vadd.f32 %v2688, %v2779
      %v2892 = vadd.f32 %v2689, %v2784
      %v2893 = vadd.f32 %v2690, %v2787
      %v2894 = vadd.f32 %v2691, %v2792
      %v2895 = vadd.f32 %v2692, %v2795
      %v2896 = vadd.f32 %v2693, %v2800
      %v2897 = vadd.f32 %v2694, %v2803
      %v2898 = vadd.f32 %v2695, %v2808
      %v2899 = vadd.f32 %v2696, %v2811
      %v2900 = vadd.f32 %v2697, %v2816
      %v2901 = vadd.f32 %v2698, %v2819
      %v2902 = vadd.f32 %v2699, %v2824
      %v2903 = vadd.f32 %v2700, %v2827
      %v2904 = vadd.f32 %v2701, %v2832
      %v2905 = vadd.f32 %v2702, %v2835
      %v2906 = vadd.f32 %v2703, %v2840
      %v2907 = vadd.f32 %v2704, %v2843
      %v2908 = vadd.f32 %v2705, %v2848
      %v2909 = vadd.f32 %v2706, %v2851
      %v2910 = vadd.f32 %v2707, %v2856
      %v2911 = vadd.f32 %v2708, %v2859
      %v2912 = vadd.f32 %v2709, %v2864
      %v2913 = vadd.f32 %v2710, %v2867
      %v2914 = vadd.f32 %v2711, %v2872
      %v2915 = vadd.f32 %v2712, %v2875
      %v2916 = vadd.f32 %v2713, %v2880
      %v2917 = vadd.f32 %v2714, %v2883
      %v2918 = vpack.c.bf16 %v1623, %v1621
      %v2919 = vpack.c.bf16 %v1658, %v1658
      %v2921 = vshll.u32 %v2918, 16
      %v2923 = vrot.slane %v2921, 1
      %v2924 = vsel %vm1839, %v1966, %v2923
      %v2925 = vshrl.u32 %v2918, 16
      %v2927 = vor.u32 %v2925, %v2923
      %v2929 = vshll.u32 %v2919, 16
      %v2931 = vrot.slane %v2929, 1
      %v2932 = vsel %vm1839, %v2927, %v2931
      %v2935 = vunpack.c.l.b16 %v1797
      %v2936 = vunpack.c.l.b16 %v1798
      %v2937 = vpack.c.b16 %v2936, %v2935
      %v2940 = vsel %vm405, %v2924, 0
      %v2943 = vsel %vm405, %v2932, 0
      %2945 = vmatprep.subr.bf16.mxu0 0
      %2946 = vmatpush1.bf16.msra.mxu0 0
      %2947 = vmatprep.subr.bf16.mxu0 0
      %2948 = vmatpush1.bf16.msra.mxu0 0
      %2949 = vmatprep.subr.bf16.mxu0 0
      %2950 = vmatpush1.bf16.msra.mxu0 0
      %2951 = vmatprep.subr.bf16.mxu0 0
      %2952 = vmatpush1.bf16.msra.mxu0 0
      %2953 = vmatprep.subr.bf16.mxu0 0
      %2954 = vmatpush1.bf16.msra.mxu0 0
      %2955 = vmatprep.subr.bf16.mxu0 0
      %2956 = vmatpush1.bf16.msra.mxu0 0
      %2957 = vmatprep.subr.bf16.mxu0 0
      %2958 = vmatpush1.bf16.msra.mxu0 0
      %2959 = vmatprep.subr.bf16.mxu0 0
      %2960 = vmatpush1.bf16.msra.mxu0 %v2937
      %2961 = vmatprep.subr.bf16.mxu0 0
      %2962 = vmatpush2.bf16.msra.mxu0 0
      %2963 = vmatprep.subr.bf16.mxu0 0
      %2964 = vmatpush2.bf16.msra.mxu0 0
      %2965 = vmatprep.subr.bf16.mxu0 0
      %2966 = vmatpush2.bf16.msra.mxu0 0
      %2967 = vmatprep.subr.bf16.mxu0 0
      %2968 = vmatpush2.bf16.msra.mxu0 0
      %2969 = vmatprep.subr.bf16.mxu0 0
      %2970 = vmatpush2.bf16.msra.mxu0 0
      %2971 = vmatprep.subr.bf16.mxu0 0
      %2972 = vmatpush2.bf16.msra.mxu0 0
      %2973 = vmatprep.subr.bf16.mxu0 0
      %2974 = vmatpush2.bf16.msra.mxu0 0
      %2975 = vmatprep.subr.bf16.mxu0 0
      %2976 = vmatpush2.bf16.msra.mxu0 0
      %2977 = vmatprep.mubr.bf16.mxu0 0
      %2978 = vmatmul.mubr.bf16.gmra.mxu0 %v1982
      %v2979 = vpop.f32.mrf.mxu0
      %v2980 = vadd.f32 0.0, %v2979
      %v2981 = vpop.f32.mrf.mxu0
      %v2982 = vpop.f32.mrf.mxu0
      %v2983 = vadd.f32 0.0, %v2982
      %v2984 = vpop.f32.mrf.mxu0
      %2985 = vmatprep.mubr.bf16.mxu0 0
      %2986 = vmatmul.mubr.bf16.gmra.mxu0 %v1985
      %v2987 = vpop.f32.mrf.mxu0
      %v2988 = vadd.f32 0.0, %v2987
      %v2989 = vpop.f32.mrf.mxu0
      %v2990 = vpop.f32.mrf.mxu0
      %v2991 = vadd.f32 0.0, %v2990
      %v2992 = vpop.f32.mrf.mxu0
      %2993 = vmatprep.mubr.bf16.mxu0 0
      %2994 = vmatmul.mubr.bf16.gmra.mxu0 %v1988
      %v2995 = vpop.f32.mrf.mxu0
      %v2996 = vadd.f32 0.0, %v2995
      %v2997 = vpop.f32.mrf.mxu0
      %v2998 = vpop.f32.mrf.mxu0
      %v2999 = vadd.f32 0.0, %v2998
      %v3000 = vpop.f32.mrf.mxu0
      %3001 = vmatprep.mubr.bf16.mxu0 0
      %3002 = vmatmul.mubr.bf16.gmra.mxu0 %v1991
      %v3003 = vpop.f32.mrf.mxu0
      %v3004 = vadd.f32 0.0, %v3003
      %v3005 = vpop.f32.mrf.mxu0
      %v3006 = vpop.f32.mrf.mxu0
      %v3007 = vadd.f32 0.0, %v3006
      %v3008 = vpop.f32.mrf.mxu0
      %3009 = vmatprep.mubr.bf16.mxu0 0
      %3010 = vmatmul.mubr.bf16.gmra.mxu0 %v1994
      %v3011 = vpop.f32.mrf.mxu0
      %v3012 = vadd.f32 0.0, %v3011
      %v3013 = vpop.f32.mrf.mxu0
      %v3014 = vpop.f32.mrf.mxu0
      %v3015 = vadd.f32 0.0, %v3014
      %v3016 = vpop.f32.mrf.mxu0
      %3017 = vmatprep.mubr.bf16.mxu0 0
      %3018 = vmatmul.mubr.bf16.gmra.mxu0 %v1997
      %v3019 = vpop.f32.mrf.mxu0
      %v3020 = vadd.f32 0.0, %v3019
      %v3021 = vpop.f32.mrf.mxu0
      %v3022 = vpop.f32.mrf.mxu0
      %v3023 = vadd.f32 0.0, %v3022
      %v3024 = vpop.f32.mrf.mxu0
      %3025 = vmatprep.mubr.bf16.mxu0 0
      %3026 = vmatmul.mubr.bf16.gmra.mxu0 %v2000
      %v3027 = vpop.f32.mrf.mxu0
      %v3028 = vadd.f32 0.0, %v3027
      %v3029 = vpop.f32.mrf.mxu0
      %v3030 = vpop.f32.mrf.mxu0
      %v3031 = vadd.f32 0.0, %v3030
      %v3032 = vpop.f32.mrf.mxu0
      %3033 = vmatprep.mubr.bf16.mxu0 0
      %3034 = vmatmul.mubr.bf16.gmra.mxu0 %v2003
      %v3035 = vpop.f32.mrf.mxu0
      %v3036 = vadd.f32 0.0, %v3035
      %v3037 = vpop.f32.mrf.mxu0
      %v3038 = vpop.f32.mrf.mxu0
      %v3039 = vadd.f32 0.0, %v3038
      %v3040 = vpop.f32.mrf.mxu0
      %3041 = vmatprep.mubr.bf16.mxu0 0
      %3042 = vmatmul.mubr.bf16.gmra.mxu0 %v2006
      %v3043 = vpop.f32.mrf.mxu0
      %v3044 = vadd.f32 0.0, %v3043
      %v3045 = vpop.f32.mrf.mxu0
      %v3046 = vpop.f32.mrf.mxu0
      %v3047 = vadd.f32 0.0, %v3046
      %v3048 = vpop.f32.mrf.mxu0
      %3049 = vmatprep.mubr.bf16.mxu0 0
      %3050 = vmatmul.mubr.bf16.gmra.mxu0 %v2009
      %v3051 = vpop.f32.mrf.mxu0
      %v3052 = vadd.f32 0.0, %v3051
      %v3053 = vpop.f32.mrf.mxu0
      %v3054 = vpop.f32.mrf.mxu0
      %v3055 = vadd.f32 0.0, %v3054
      %v3056 = vpop.f32.mrf.mxu0
      %3057 = vmatprep.mubr.bf16.mxu0 0
      %3058 = vmatmul.mubr.bf16.gmra.mxu0 %v2012
      %v3059 = vpop.f32.mrf.mxu0
      %v3060 = vadd.f32 0.0, %v3059
      %v3061 = vpop.f32.mrf.mxu0
      %v3062 = vpop.f32.mrf.mxu0
      %v3063 = vadd.f32 0.0, %v3062
      %v3064 = vpop.f32.mrf.mxu0
      %3065 = vmatprep.mubr.bf16.mxu0 0
      %3066 = vmatmul.mubr.bf16.gmra.mxu0 %v2015
      %v3067 = vpop.f32.mrf.mxu0
      %v3068 = vadd.f32 0.0, %v3067
      %v3069 = vpop.f32.mrf.mxu0
      %v3070 = vpop.f32.mrf.mxu0
      %v3071 = vadd.f32 0.0, %v3070
      %v3072 = vpop.f32.mrf.mxu0
      %3073 = vmatprep.mubr.bf16.mxu0 0
      %3074 = vmatmul.mubr.bf16.gmra.mxu0 %v2018
      %v3075 = vpop.f32.mrf.mxu0
      %v3076 = vadd.f32 0.0, %v3075
      %v3077 = vpop.f32.mrf.mxu0
      %v3078 = vpop.f32.mrf.mxu0
      %v3079 = vadd.f32 0.0, %v3078
      %v3080 = vpop.f32.mrf.mxu0
      %3081 = vmatprep.mubr.bf16.mxu0 0
      %3082 = vmatmul.mubr.bf16.gmra.mxu0 %v2021
      %v3083 = vpop.f32.mrf.mxu0
      %v3084 = vadd.f32 0.0, %v3083
      %v3085 = vpop.f32.mrf.mxu0
      %v3086 = vpop.f32.mrf.mxu0
      %v3087 = vadd.f32 0.0, %v3086
      %v3088 = vpop.f32.mrf.mxu0
      %3089 = vmatprep.mubr.bf16.mxu0 0
      %3090 = vmatmul.mubr.bf16.gmra.mxu0 %v2940
      %v3091 = vpop.f32.mrf.mxu0
      %v3092 = vadd.f32 0.0, %v3091
      %v3093 = vpop.f32.mrf.mxu0
      %v3094 = vpop.f32.mrf.mxu0
      %v3095 = vadd.f32 0.0, %v3094
      %v3096 = vpop.f32.mrf.mxu0
      %3097 = vmatprep.mubr.bf16.mxu0 0
      %3098 = vmatmul.mubr.bf16.gmra.mxu0 %v2943
      %v3099 = vpop.f32.mrf.mxu0
      %v3100 = vadd.f32 0.0, %v3099
      %v3101 = vpop.f32.mrf.mxu0
      %v3102 = vpop.f32.mrf.mxu0
      %v3103 = vadd.f32 0.0, %v3102
      %v3104 = vpop.f32.mrf.mxu0
      %3105 = vdwg.mxu0
      %v3106 = vadd.f32 %v2886, %v2980
      %v3107 = vadd.f32 %v2887, %v2983
      %v3108 = vadd.f32 %v2888, %v2988
      %v3109 = vadd.f32 %v2889, %v2991
      %v3110 = vadd.f32 %v2890, %v2996
      %v3111 = vadd.f32 %v2891, %v2999
      %v3112 = vadd.f32 %v2892, %v3004
      %v3113 = vadd.f32 %v2893, %v3007
      %v3114 = vadd.f32 %v2894, %v3012
      %v3115 = vadd.f32 %v2895, %v3015
      %v3116 = vadd.f32 %v2896, %v3020
      %v3117 = vadd.f32 %v2897, %v3023
      %v3118 = vadd.f32 %v2898, %v3028
      %v3119 = vadd.f32 %v2899, %v3031
      %v3120 = vadd.f32 %v2900, %v3036
      %v3121 = vadd.f32 %v2901, %v3039
      %v3122 = vadd.f32 %v2902, %v3044
      %v3123 = vadd.f32 %v2903, %v3047
      %v3124 = vadd.f32 %v2904, %v3052
      %v3125 = vadd.f32 %v2905, %v3055
      %v3126 = vadd.f32 %v2906, %v3060
      %v3127 = vadd.f32 %v2907, %v3063
      %v3128 = vadd.f32 %v2908, %v3068
      %v3129 = vadd.f32 %v2909, %v3071
      %v3130 = vadd.f32 %v2910, %v3076
      %v3131 = vadd.f32 %v2911, %v3079
      %v3132 = vadd.f32 %v2912, %v3084
      %v3133 = vadd.f32 %v2913, %v3087
      %v3134 = vadd.f32 %v2914, %v3092
      %v3135 = vadd.f32 %v2915, %v3095
      %v3136 = vadd.f32 %v2916, %v3100
      %v3137 = vadd.f32 %v2917, %v3103
      %v3138 = vpack.c.bf16 %v1753, %v1751
      %v3139 = vpack.c.bf16 %v1788, %v1788
      %v3142 = vrot.slane %v3138, 1
      %v3143 = vsel %vm2434, %v2464, %v3142
      %v3144 = vrot.slane %v3139, 1
      %v3145 = vsel %vm2434, %v3142, %v3144
      %v3148 = vunpack.c.l.b16 %v1799
      %v3149 = vunpack.c.l.b16 %v1800
      %v3150 = vpack.c.b16 %v3149, %v3148
      %v3153 = vsel %vm405, %v3143, 0
      %v3156 = vsel %vm405, %v3145, 0
      %3158 = vmatprep.subr.bf16.mxu0 0
      %3159 = vmatpush1.bf16.msra.mxu0 0
      %3160 = vmatprep.subr.bf16.mxu0 0
      %3161 = vmatpush1.bf16.msra.mxu0 0
      %3162 = vmatprep.subr.bf16.mxu0 0
      %3163 = vmatpush1.bf16.msra.mxu0 0
      %3164 = vmatprep.subr.bf16.mxu0 0
      %3165 = vmatpush1.bf16.msra.mxu0 0
      %3166 = vmatprep.subr.bf16.mxu0 0
      %3167 = vmatpush1.bf16.msra.mxu0 0
      %3168 = vmatprep.subr.bf16.mxu0 0
      %3169 = vmatpush1.bf16.msra.mxu0 0
      %3170 = vmatprep.subr.bf16.mxu0 0
      %3171 = vmatpush1.bf16.msra.mxu0 0
      %3172 = vmatprep.subr.bf16.mxu0 0
      %3173 = vmatpush1.bf16.msra.mxu0 %v3150
      %3174 = vmatprep.subr.bf16.mxu0 0
      %3175 = vmatpush2.bf16.msra.mxu0 0
      %3176 = vmatprep.subr.bf16.mxu0 0
      %3177 = vmatpush2.bf16.msra.mxu0 0
      %3178 = vmatprep.subr.bf16.mxu0 0
      %3179 = vmatpush2.bf16.msra.mxu0 0
      %3180 = vmatprep.subr.bf16.mxu0 0
      %3181 = vmatpush2.bf16.msra.mxu0 0
      %3182 = vmatprep.subr.bf16.mxu0 0
      %3183 = vmatpush2.bf16.msra.mxu0 0
      %3184 = vmatprep.subr.bf16.mxu0 0
      %3185 = vmatpush2.bf16.msra.mxu0 0
      %3186 = vmatprep.subr.bf16.mxu0 0
      %3187 = vmatpush2.bf16.msra.mxu0 0
      %3188 = vmatprep.subr.bf16.mxu0 0
      %3189 = vmatpush2.bf16.msra.mxu0 0
      %3190 = vmatprep.mubr.bf16.mxu0 0
      %3191 = vmatmul.mubr.bf16.gmra.mxu0 %v2478
      %v3192 = vpop.f32.mrf.mxu0
      %v3193 = vadd.f32 0.0, %v3192
      %v3194 = vpop.f32.mrf.mxu0
      %v3195 = vpop.f32.mrf.mxu0
      %v3196 = vadd.f32 0.0, %v3195
      %v3197 = vpop.f32.mrf.mxu0
      %3198 = vmatprep.mubr.bf16.mxu0 0
      %3199 = vmatmul.mubr.bf16.gmra.mxu0 %v2481
      %v3200 = vpop.f32.mrf.mxu0
      %v3201 = vadd.f32 0.0, %v3200
      %v3202 = vpop.f32.mrf.mxu0
      %v3203 = vpop.f32.mrf.mxu0
      %v3204 = vadd.f32 0.0, %v3203
      %v3205 = vpop.f32.mrf.mxu0
      %3206 = vmatprep.mubr.bf16.mxu0 0
      %3207 = vmatmul.mubr.bf16.gmra.mxu0 %v2484
      %v3208 = vpop.f32.mrf.mxu0
      %v3209 = vadd.f32 0.0, %v3208
      %v3210 = vpop.f32.mrf.mxu0
      %v3211 = vpop.f32.mrf.mxu0
      %v3212 = vadd.f32 0.0, %v3211
      %v3213 = vpop.f32.mrf.mxu0
      %3214 = vmatprep.mubr.bf16.mxu0 0
      %3215 = vmatmul.mubr.bf16.gmra.mxu0 %v2487
      %v3216 = vpop.f32.mrf.mxu0
      %v3217 = vadd.f32 0.0, %v3216
      %v3218 = vpop.f32.mrf.mxu0
      %v3219 = vpop.f32.mrf.mxu0
      %v3220 = vadd.f32 0.0, %v3219
      %v3221 = vpop.f32.mrf.mxu0
      %3222 = vmatprep.mubr.bf16.mxu0 0
      %3223 = vmatmul.mubr.bf16.gmra.mxu0 %v2490
      %v3224 = vpop.f32.mrf.mxu0
      %v3225 = vadd.f32 0.0, %v3224
      %v3226 = vpop.f32.mrf.mxu0
      %v3227 = vpop.f32.mrf.mxu0
      %v3228 = vadd.f32 0.0, %v3227
      %v3229 = vpop.f32.mrf.mxu0
      %3230 = vmatprep.mubr.bf16.mxu0 0
      %3231 = vmatmul.mubr.bf16.gmra.mxu0 %v2493
      %v3232 = vpop.f32.mrf.mxu0
      %v3233 = vadd.f32 0.0, %v3232
      %v3234 = vpop.f32.mrf.mxu0
      %v3235 = vpop.f32.mrf.mxu0
      %v3236 = vadd.f32 0.0, %v3235
      %v3237 = vpop.f32.mrf.mxu0
      %3238 = vmatprep.mubr.bf16.mxu0 0
      %3239 = vmatmul.mubr.bf16.gmra.mxu0 %v2496
      %v3240 = vpop.f32.mrf.mxu0
      %v3241 = vadd.f32 0.0, %v3240
      %v3242 = vpop.f32.mrf.mxu0
      %v3243 = vpop.f32.mrf.mxu0
      %v3244 = vadd.f32 0.0, %v3243
      %v3245 = vpop.f32.mrf.mxu0
      %3246 = vmatprep.mubr.bf16.mxu0 0
      %3247 = vmatmul.mubr.bf16.gmra.mxu0 %v2499
      %v3248 = vpop.f32.mrf.mxu0
      %v3249 = vadd.f32 0.0, %v3248
      %v3250 = vpop.f32.mrf.mxu0
      %v3251 = vpop.f32.mrf.mxu0
      %v3252 = vadd.f32 0.0, %v3251
      %v3253 = vpop.f32.mrf.mxu0
      %3254 = vmatprep.mubr.bf16.mxu0 0
      %3255 = vmatmul.mubr.bf16.gmra.mxu0 %v2502
      %v3256 = vpop.f32.mrf.mxu0
      %v3257 = vadd.f32 0.0, %v3256
      %v3258 = vpop.f32.mrf.mxu0
      %v3259 = vpop.f32.mrf.mxu0
      %v3260 = vadd.f32 0.0, %v3259
      %v3261 = vpop.f32.mrf.mxu0
      %3262 = vmatprep.mubr.bf16.mxu0 0
      %3263 = vmatmul.mubr.bf16.gmra.mxu0 %v2505
      %v3264 = vpop.f32.mrf.mxu0
      %v3265 = vadd.f32 0.0, %v3264
      %v3266 = vpop.f32.mrf.mxu0
      %v3267 = vpop.f32.mrf.mxu0
      %v3268 = vadd.f32 0.0, %v3267
      %v3269 = vpop.f32.mrf.mxu0
      %3270 = vmatprep.mubr.bf16.mxu0 0
      %3271 = vmatmul.mubr.bf16.gmra.mxu0 %v2508
      %v3272 = vpop.f32.mrf.mxu0
      %v3273 = vadd.f32 0.0, %v3272
      %v3274 = vpop.f32.mrf.mxu0
      %v3275 = vpop.f32.mrf.mxu0
      %v3276 = vadd.f32 0.0, %v3275
      %v3277 = vpop.f32.mrf.mxu0
      %3278 = vmatprep.mubr.bf16.mxu0 0
      %3279 = vmatmul.mubr.bf16.gmra.mxu0 %v2511
      %v3280 = vpop.f32.mrf.mxu0
      %v3281 = vadd.f32 0.0, %v3280
      %v3282 = vpop.f32.mrf.mxu0
      %v3283 = vpop.f32.mrf.mxu0
      %v3284 = vadd.f32 0.0, %v3283
      %v3285 = vpop.f32.mrf.mxu0
      %3286 = vmatprep.mubr.bf16.mxu0 0
      %3287 = vmatmul.mubr.bf16.gmra.mxu0 %v2514
      %v3288 = vpop.f32.mrf.mxu0
      %v3289 = vadd.f32 0.0, %v3288
      %v3290 = vpop.f32.mrf.mxu0
      %v3291 = vpop.f32.mrf.mxu0
      %v3292 = vadd.f32 0.0, %v3291
      %v3293 = vpop.f32.mrf.mxu0
      %3294 = vmatprep.mubr.bf16.mxu0 0
      %3295 = vmatmul.mubr.bf16.gmra.mxu0 %v2517
      %v3296 = vpop.f32.mrf.mxu0
      %v3297 = vadd.f32 0.0, %v3296
      %v3298 = vpop.f32.mrf.mxu0
      %v3299 = vpop.f32.mrf.mxu0
      %v3300 = vadd.f32 0.0, %v3299
      %v3301 = vpop.f32.mrf.mxu0
      %3302 = vmatprep.mubr.bf16.mxu0 0
      %3303 = vmatmul.mubr.bf16.gmra.mxu0 %v3153
      %v3304 = vpop.f32.mrf.mxu0
      %v3305 = vadd.f32 0.0, %v3304
      %v3306 = vpop.f32.mrf.mxu0
      %v3307 = vpop.f32.mrf.mxu0
      %v3308 = vadd.f32 0.0, %v3307
      %v3309 = vpop.f32.mrf.mxu0
      %3310 = vmatprep.mubr.bf16.mxu0 0
      %3311 = vmatmul.mubr.bf16.gmra.mxu0 %v3156
      %v3312 = vpop.f32.mrf.mxu0
      %v3313 = vadd.f32 0.0, %v3312
      %v3314 = vpop.f32.mrf.mxu0
      %v3315 = vpop.f32.mrf.mxu0
      %v3316 = vadd.f32 0.0, %v3315
      %v3317 = vpop.f32.mrf.mxu0
      %3318 = vdwg.mxu0
      %v3319 = vadd.f32 %v3106, %v3193
      %v3320 = vadd.f32 %v3107, %v3196
      %v3321 = vadd.f32 %v3108, %v3201
      %v3322 = vadd.f32 %v3109, %v3204
      %v3323 = vadd.f32 %v3110, %v3209
      %v3324 = vadd.f32 %v3111, %v3212
      %v3325 = vadd.f32 %v3112, %v3217
      %v3326 = vadd.f32 %v3113, %v3220
      %v3327 = vadd.f32 %v3114, %v3225
      %v3328 = vadd.f32 %v3115, %v3228
      %v3329 = vadd.f32 %v3116, %v3233
      %v3330 = vadd.f32 %v3117, %v3236
      %v3331 = vadd.f32 %v3118, %v3241
      %v3332 = vadd.f32 %v3119, %v3244
      %v3333 = vadd.f32 %v3120, %v3249
      %v3334 = vadd.f32 %v3121, %v3252
      %v3335 = vadd.f32 %v3122, %v3257
      %v3336 = vadd.f32 %v3123, %v3260
      %v3337 = vadd.f32 %v3124, %v3265
      %v3338 = vadd.f32 %v3125, %v3268
      %v3339 = vadd.f32 %v3126, %v3273
      %v3340 = vadd.f32 %v3127, %v3276
      %v3341 = vadd.f32 %v3128, %v3281
      %v3342 = vadd.f32 %v3129, %v3284
      %v3343 = vadd.f32 %v3130, %v3289
      %v3344 = vadd.f32 %v3131, %v3292
      %v3345 = vadd.f32 %v3132, %v3297
      %v3346 = vadd.f32 %v3133, %v3300
      %v3347 = vadd.f32 %v3134, %v3305
      %v3348 = vadd.f32 %v3135, %v3308
      %v3349 = vadd.f32 %v3136, %v3313
      %v3350 = vadd.f32 %v3137, %v3316
      %v3351 = vpack.c.bf16 0.0, %v1528
      %v3354 = vunpack.c.l.b16 %v1801
      %v3355 = vunpack.c.l.b16 %v1802
      %v3356 = vpack.c.b16 %v3355, %v3354
      %v3359 = vsel %vm405, %v3351, 0
      %3361 = vmatprep.subr.bf16.mxu0 0
      %3362 = vmatpush1.bf16.msra.mxu0 0
      %3363 = vmatprep.subr.bf16.mxu0 0
      %3364 = vmatpush1.bf16.msra.mxu0 0
      %3365 = vmatprep.subr.bf16.mxu0 0
      %3366 = vmatpush1.bf16.msra.mxu0 0
      %3367 = vmatprep.subr.bf16.mxu0 0
      %3368 = vmatpush1.bf16.msra.mxu0 0
      %3369 = vmatprep.subr.bf16.mxu0 0
      %3370 = vmatpush1.bf16.msra.mxu0 0
      %3371 = vmatprep.subr.bf16.mxu0 0
      %3372 = vmatpush1.bf16.msra.mxu0 0
      %3373 = vmatprep.subr.bf16.mxu0 0
      %3374 = vmatpush1.bf16.msra.mxu0 0
      %3375 = vmatprep.subr.bf16.mxu0 0
      %3376 = vmatpush1.bf16.msra.mxu0 %v3356
      %3377 = vmatprep.subr.bf16.mxu0 0
      %3378 = vmatpush2.bf16.msra.mxu0 0
      %3379 = vmatprep.subr.bf16.mxu0 0
      %3380 = vmatpush2.bf16.msra.mxu0 0
      %3381 = vmatprep.subr.bf16.mxu0 0
      %3382 = vmatpush2.bf16.msra.mxu0 0
      %3383 = vmatprep.subr.bf16.mxu0 0
      %3384 = vmatpush2.bf16.msra.mxu0 0
      %3385 = vmatprep.subr.bf16.mxu0 0
      %3386 = vmatpush2.bf16.msra.mxu0 0
      %3387 = vmatprep.subr.bf16.mxu0 0
      %3388 = vmatpush2.bf16.msra.mxu0 0
      %3389 = vmatprep.subr.bf16.mxu0 0
      %3390 = vmatpush2.bf16.msra.mxu0 0
      %3391 = vmatprep.subr.bf16.mxu0 0
      %3392 = vmatpush2.bf16.msra.mxu0 0
      %3393 = vmatprep.mubr.bf16.mxu0 0
      %3394 = vmatmul.mubr.bf16.gmra.mxu0 %v2199
      %v3395 = vpop.f32.mrf.mxu0
      %v3396 = vadd.f32 0.0, %v3395
      %v3397 = vpop.f32.mrf.mxu0
      %v3398 = vpop.f32.mrf.mxu0
      %v3399 = vadd.f32 0.0, %v3398
      %v3400 = vpop.f32.mrf.mxu0
      %3401 = vmatprep.mubr.bf16.mxu0 0
      %3402 = vmatmul.mubr.bf16.gmra.mxu0 %v2202
      %v3403 = vpop.f32.mrf.mxu0
      %v3404 = vadd.f32 0.0, %v3403
      %v3405 = vpop.f32.mrf.mxu0
      %v3406 = vpop.f32.mrf.mxu0
      %v3407 = vadd.f32 0.0, %v3406
      %v3408 = vpop.f32.mrf.mxu0
      %3409 = vmatprep.mubr.bf16.mxu0 0
      %3410 = vmatmul.mubr.bf16.gmra.mxu0 %v2205
      %v3411 = vpop.f32.mrf.mxu0
      %v3412 = vadd.f32 0.0, %v3411
      %v3413 = vpop.f32.mrf.mxu0
      %v3414 = vpop.f32.mrf.mxu0
      %v3415 = vadd.f32 0.0, %v3414
      %v3416 = vpop.f32.mrf.mxu0
      %3417 = vmatprep.mubr.bf16.mxu0 0
      %3418 = vmatmul.mubr.bf16.gmra.mxu0 %v2208
      %v3419 = vpop.f32.mrf.mxu0
      %v3420 = vadd.f32 0.0, %v3419
      %v3421 = vpop.f32.mrf.mxu0
      %v3422 = vpop.f32.mrf.mxu0
      %v3423 = vadd.f32 0.0, %v3422
      %v3424 = vpop.f32.mrf.mxu0
      %3425 = vmatprep.mubr.bf16.mxu0 0
      %3426 = vmatmul.mubr.bf16.gmra.mxu0 %v2211
      %v3427 = vpop.f32.mrf.mxu0
      %v3428 = vadd.f32 0.0, %v3427
      %v3429 = vpop.f32.mrf.mxu0
      %v3430 = vpop.f32.mrf.mxu0
      %v3431 = vadd.f32 0.0, %v3430
      %v3432 = vpop.f32.mrf.mxu0
      %3433 = vmatprep.mubr.bf16.mxu0 0
      %3434 = vmatmul.mubr.bf16.gmra.mxu0 %v2214
      %v3435 = vpop.f32.mrf.mxu0
      %v3436 = vadd.f32 0.0, %v3435
      %v3437 = vpop.f32.mrf.mxu0
      %v3438 = vpop.f32.mrf.mxu0
      %v3439 = vadd.f32 0.0, %v3438
      %v3440 = vpop.f32.mrf.mxu0
      %3441 = vmatprep.mubr.bf16.mxu0 0
      %3442 = vmatmul.mubr.bf16.gmra.mxu0 %v2217
      %v3443 = vpop.f32.mrf.mxu0
      %v3444 = vadd.f32 0.0, %v3443
      %v3445 = vpop.f32.mrf.mxu0
      %v3446 = vpop.f32.mrf.mxu0
      %v3447 = vadd.f32 0.0, %v3446
      %v3448 = vpop.f32.mrf.mxu0
      %3449 = vmatprep.mubr.bf16.mxu0 0
      %3450 = vmatmul.mubr.bf16.gmra.mxu0 %v2220
      %v3451 = vpop.f32.mrf.mxu0
      %v3452 = vadd.f32 0.0, %v3451
      %v3453 = vpop.f32.mrf.mxu0
      %v3454 = vpop.f32.mrf.mxu0
      %v3455 = vadd.f32 0.0, %v3454
      %v3456 = vpop.f32.mrf.mxu0
      %3457 = vmatprep.mubr.bf16.mxu0 0
      %3458 = vmatmul.mubr.bf16.gmra.mxu0 %v2223
      %v3459 = vpop.f32.mrf.mxu0
      %v3460 = vadd.f32 0.0, %v3459
      %v3461 = vpop.f32.mrf.mxu0
      %v3462 = vpop.f32.mrf.mxu0
      %v3463 = vadd.f32 0.0, %v3462
      %v3464 = vpop.f32.mrf.mxu0
      %3465 = vmatprep.mubr.bf16.mxu0 0
      %3466 = vmatmul.mubr.bf16.gmra.mxu0 %v2226
      %v3467 = vpop.f32.mrf.mxu0
      %v3468 = vadd.f32 0.0, %v3467
      %v3469 = vpop.f32.mrf.mxu0
      %v3470 = vpop.f32.mrf.mxu0
      %v3471 = vadd.f32 0.0, %v3470
      %v3472 = vpop.f32.mrf.mxu0
      %3473 = vmatprep.mubr.bf16.mxu0 0
      %3474 = vmatmul.mubr.bf16.gmra.mxu0 %v2229
      %v3475 = vpop.f32.mrf.mxu0
      %v3476 = vadd.f32 0.0, %v3475
      %v3477 = vpop.f32.mrf.mxu0
      %v3478 = vpop.f32.mrf.mxu0
      %v3479 = vadd.f32 0.0, %v3478
      %v3480 = vpop.f32.mrf.mxu0
      %3481 = vmatprep.mubr.bf16.mxu0 0
      %3482 = vmatmul.mubr.bf16.gmra.mxu0 %v2232
      %v3483 = vpop.f32.mrf.mxu0
      %v3484 = vadd.f32 0.0, %v3483
      %v3485 = vpop.f32.mrf.mxu0
      %v3486 = vpop.f32.mrf.mxu0
      %v3487 = vadd.f32 0.0, %v3486
      %v3488 = vpop.f32.mrf.mxu0
      %3489 = vmatprep.mubr.bf16.mxu0 0
      %3490 = vmatmul.mubr.bf16.gmra.mxu0 %v2235
      %v3491 = vpop.f32.mrf.mxu0
      %v3492 = vadd.f32 0.0, %v3491
      %v3493 = vpop.f32.mrf.mxu0
      %v3494 = vpop.f32.mrf.mxu0
      %v3495 = vadd.f32 0.0, %v3494
      %v3496 = vpop.f32.mrf.mxu0
      %3497 = vmatprep.mubr.bf16.mxu0 0
      %3498 = vmatmul.mubr.bf16.gmra.mxu0 %v2238
      %v3499 = vpop.f32.mrf.mxu0
      %v3500 = vadd.f32 0.0, %v3499
      %v3501 = vpop.f32.mrf.mxu0
      %v3502 = vpop.f32.mrf.mxu0
      %v3503 = vadd.f32 0.0, %v3502
      %v3504 = vpop.f32.mrf.mxu0
      %3505 = vmatprep.mubr.bf16.mxu0 0
      %3506 = vmatmul.mubr.bf16.gmra.mxu0 %v2723
      %v3507 = vpop.f32.mrf.mxu0
      %v3508 = vadd.f32 0.0, %v3507
      %v3509 = vpop.f32.mrf.mxu0
      %v3510 = vpop.f32.mrf.mxu0
      %v3511 = vadd.f32 0.0, %v3510
      %v3512 = vpop.f32.mrf.mxu0
      %3513 = vmatprep.mubr.bf16.mxu0 0
      %3514 = vmatmul.mubr.bf16.gmra.mxu0 %v3359
      %v3515 = vpop.f32.mrf.mxu0
      %v3516 = vadd.f32 0.0, %v3515
      %v3517 = vpop.f32.mrf.mxu0
      %v3518 = vpop.f32.mrf.mxu0
      %v3519 = vadd.f32 0.0, %v3518
      %v3520 = vpop.f32.mrf.mxu0
      %3521 = vdwg.mxu0
      %v3522 = vadd.f32 %v3319, %v3396
      %v3523 = vadd.f32 %v3320, %v3399
      %v3524 = vadd.f32 %v3321, %v3404
      %v3525 = vadd.f32 %v3322, %v3407
      %v3526 = vadd.f32 %v3323, %v3412
      %v3527 = vadd.f32 %v3324, %v3415
      %v3528 = vadd.f32 %v3325, %v3420
      %v3529 = vadd.f32 %v3326, %v3423
      %v3530 = vadd.f32 %v3327, %v3428
      %v3531 = vadd.f32 %v3328, %v3431
      %v3532 = vadd.f32 %v3329, %v3436
      %v3533 = vadd.f32 %v3330, %v3439
      %v3534 = vadd.f32 %v3331, %v3444
      %v3535 = vadd.f32 %v3332, %v3447
      %v3536 = vadd.f32 %v3333, %v3452
      %v3537 = vadd.f32 %v3334, %v3455
      %v3538 = vadd.f32 %v3335, %v3460
      %v3539 = vadd.f32 %v3336, %v3463
      %v3540 = vadd.f32 %v3337, %v3468
      %v3541 = vadd.f32 %v3338, %v3471
      %v3542 = vadd.f32 %v3339, %v3476
      %v3543 = vadd.f32 %v3340, %v3479
      %v3544 = vadd.f32 %v3341, %v3484
      %v3545 = vadd.f32 %v3342, %v3487
      %v3546 = vadd.f32 %v3343, %v3492
      %v3547 = vadd.f32 %v3344, %v3495
      %v3548 = vadd.f32 %v3345, %v3500
      %v3549 = vadd.f32 %v3346, %v3503
      %v3550 = vadd.f32 %v3347, %v3508
      %v3551 = vadd.f32 %v3348, %v3511
      %v3552 = vadd.f32 %v3349, %v3516
      %v3553 = vadd.f32 %v3350, %v3519
      %v3554 = vpack.c.bf16 0.0, %v1658
      %v3556 = vshll.u32 %v3554, 16
      %v3558 = vrot.slane %v3556, 1
      %v3559 = vsel %vm1839, %v2927, %v3558
      %v3560 = vshrl.u32 %v3554, 16
      %v3562 = vor.u32 %v3560, %v3558
      %v3563 = vsel %vm1839, %v3562, %v1845
      %v3566 = vunpack.c.l.b16 %v1803
      %v3567 = vunpack.c.l.b16 %v1804
      %v3568 = vpack.c.b16 %v3567, %v3566
      %v3571 = vsel %vm405, %v3559, 0
      %v3574 = vsel %vm405, %v3563, 0
      %3576 = vmatprep.subr.bf16.mxu0 0
      %3577 = vmatpush1.bf16.msra.mxu0 0
      %3578 = vmatprep.subr.bf16.mxu0 0
      %3579 = vmatpush1.bf16.msra.mxu0 0
      %3580 = vmatprep.subr.bf16.mxu0 0
      %3581 = vmatpush1.bf16.msra.mxu0 0
      %3582 = vmatprep.subr.bf16.mxu0 0
      %3583 = vmatpush1.bf16.msra.mxu0 0
      %3584 = vmatprep.subr.bf16.mxu0 0
      %3585 = vmatpush1.bf16.msra.mxu0 0
      %3586 = vmatprep.subr.bf16.mxu0 0
      %3587 = vmatpush1.bf16.msra.mxu0 0
      %3588 = vmatprep.subr.bf16.mxu0 0
      %3589 = vmatpush1.bf16.msra.mxu0 0
      %3590 = vmatprep.subr.bf16.mxu0 0
      %3591 = vmatpush1.bf16.msra.mxu0 %v3568
      %3592 = vmatprep.subr.bf16.mxu0 0
      %3593 = vmatpush2.bf16.msra.mxu0 0
      %3594 = vmatprep.subr.bf16.mxu0 0
      %3595 = vmatpush2.bf16.msra.mxu0 0
      %3596 = vmatprep.subr.bf16.mxu0 0
      %3597 = vmatpush2.bf16.msra.mxu0 0
      %3598 = vmatprep.subr.bf16.mxu0 0
      %3599 = vmatpush2.bf16.msra.mxu0 0
      %3600 = vmatprep.subr.bf16.mxu0 0
      %3601 = vmatpush2.bf16.msra.mxu0 0
      %3602 = vmatprep.subr.bf16.mxu0 0
      %3603 = vmatpush2.bf16.msra.mxu0 0
      %3604 = vmatprep.subr.bf16.mxu0 0
      %3605 = vmatpush2.bf16.msra.mxu0 0
      %3606 = vmatprep.subr.bf16.mxu0 0
      %3607 = vmatpush2.bf16.msra.mxu0 0
      %3608 = vmatprep.mubr.bf16.mxu0 0
      %3609 = vmatmul.mubr.bf16.gmra.mxu0 %v1985
      %v3610 = vpop.f32.mrf.mxu0
      %v3611 = vadd.f32 0.0, %v3610
      %v3612 = vpop.f32.mrf.mxu0
      %v3613 = vpop.f32.mrf.mxu0
      %v3614 = vadd.f32 0.0, %v3613
      %v3615 = vpop.f32.mrf.mxu0
      %3616 = vmatprep.mubr.bf16.mxu0 0
      %3617 = vmatmul.mubr.bf16.gmra.mxu0 %v1988
      %v3618 = vpop.f32.mrf.mxu0
      %v3619 = vadd.f32 0.0, %v3618
      %v3620 = vpop.f32.mrf.mxu0
      %v3621 = vpop.f32.mrf.mxu0
      %v3622 = vadd.f32 0.0, %v3621
      %v3623 = vpop.f32.mrf.mxu0
      %3624 = vmatprep.mubr.bf16.mxu0 0
      %3625 = vmatmul.mubr.bf16.gmra.mxu0 %v1991
      %v3626 = vpop.f32.mrf.mxu0
      %v3627 = vadd.f32 0.0, %v3626
      %v3628 = vpop.f32.mrf.mxu0
      %v3629 = vpop.f32.mrf.mxu0
      %v3630 = vadd.f32 0.0, %v3629
      %v3631 = vpop.f32.mrf.mxu0
      %3632 = vmatprep.mubr.bf16.mxu0 0
      %3633 = vmatmul.mubr.bf16.gmra.mxu0 %v1994
      %v3634 = vpop.f32.mrf.mxu0
      %v3635 = vadd.f32 0.0, %v3634
      %v3636 = vpop.f32.mrf.mxu0
      %v3637 = vpop.f32.mrf.mxu0
      %v3638 = vadd.f32 0.0, %v3637
      %v3639 = vpop.f32.mrf.mxu0
      %3640 = vmatprep.mubr.bf16.mxu0 0
      %3641 = vmatmul.mubr.bf16.gmra.mxu0 %v1997
      %v3642 = vpop.f32.mrf.mxu0
      %v3643 = vadd.f32 0.0, %v3642
      %v3644 = vpop.f32.mrf.mxu0
      %v3645 = vpop.f32.mrf.mxu0
      %v3646 = vadd.f32 0.0, %v3645
      %v3647 = vpop.f32.mrf.mxu0
      %3648 = vmatprep.mubr.bf16.mxu0 0
      %3649 = vmatmul.mubr.bf16.gmra.mxu0 %v2000
      %v3650 = vpop.f32.mrf.mxu0
      %v3651 = vadd.f32 0.0, %v3650
      %v3652 = vpop.f32.mrf.mxu0
      %v3653 = vpop.f32.mrf.mxu0
      %v3654 = vadd.f32 0.0, %v3653
      %v3655 = vpop.f32.mrf.mxu0
      %3656 = vmatprep.mubr.bf16.mxu0 0
      %3657 = vmatmul.mubr.bf16.gmra.mxu0 %v2003
      %v3658 = vpop.f32.mrf.mxu0
      %v3659 = vadd.f32 0.0, %v3658
      %v3660 = vpop.f32.mrf.mxu0
      %v3661 = vpop.f32.mrf.mxu0
      %v3662 = vadd.f32 0.0, %v3661
      %v3663 = vpop.f32.mrf.mxu0
      %3664 = vmatprep.mubr.bf16.mxu0 0
      %3665 = vmatmul.mubr.bf16.gmra.mxu0 %v2006
      %v3666 = vpop.f32.mrf.mxu0
      %v3667 = vadd.f32 0.0, %v3666
      %v3668 = vpop.f32.mrf.mxu0
      %v3669 = vpop.f32.mrf.mxu0
      %v3670 = vadd.f32 0.0, %v3669
      %v3671 = vpop.f32.mrf.mxu0
      %3672 = vmatprep.mubr.bf16.mxu0 0
      %3673 = vmatmul.mubr.bf16.gmra.mxu0 %v2009
      %v3674 = vpop.f32.mrf.mxu0
      %v3675 = vadd.f32 0.0, %v3674
      %v3676 = vpop.f32.mrf.mxu0
      %v3677 = vpop.f32.mrf.mxu0
      %v3678 = vadd.f32 0.0, %v3677
      %v3679 = vpop.f32.mrf.mxu0
      %3680 = vmatprep.mubr.bf16.mxu0 0
      %3681 = vmatmul.mubr.bf16.gmra.mxu0 %v2012
      %v3682 = vpop.f32.mrf.mxu0
      %v3683 = vadd.f32 0.0, %v3682
      %v3684 = vpop.f32.mrf.mxu0
      %v3685 = vpop.f32.mrf.mxu0
      %v3686 = vadd.f32 0.0, %v3685
      %v3687 = vpop.f32.mrf.mxu0
      %3688 = vmatprep.mubr.bf16.mxu0 0
      %3689 = vmatmul.mubr.bf16.gmra.mxu0 %v2015
      %v3690 = vpop.f32.mrf.mxu0
      %v3691 = vadd.f32 0.0, %v3690
      %v3692 = vpop.f32.mrf.mxu0
      %v3693 = vpop.f32.mrf.mxu0
      %v3694 = vadd.f32 0.0, %v3693
      %v3695 = vpop.f32.mrf.mxu0
      %3696 = vmatprep.mubr.bf16.mxu0 0
      %3697 = vmatmul.mubr.bf16.gmra.mxu0 %v2018
      %v3698 = vpop.f32.mrf.mxu0
      %v3699 = vadd.f32 0.0, %v3698
      %v3700 = vpop.f32.mrf.mxu0
      %v3701 = vpop.f32.mrf.mxu0
      %v3702 = vadd.f32 0.0, %v3701
      %v3703 = vpop.f32.mrf.mxu0
      %3704 = vmatprep.mubr.bf16.mxu0 0
      %3705 = vmatmul.mubr.bf16.gmra.mxu0 %v2021
      %v3706 = vpop.f32.mrf.mxu0
      %v3707 = vadd.f32 0.0, %v3706
      %v3708 = vpop.f32.mrf.mxu0
      %v3709 = vpop.f32.mrf.mxu0
      %v3710 = vadd.f32 0.0, %v3709
      %v3711 = vpop.f32.mrf.mxu0
      %3712 = vmatprep.mubr.bf16.mxu0 0
      %3713 = vmatmul.mubr.bf16.gmra.mxu0 %v2940
      %v3714 = vpop.f32.mrf.mxu0
      %v3715 = vadd.f32 0.0, %v3714
      %v3716 = vpop.f32.mrf.mxu0
      %v3717 = vpop.f32.mrf.mxu0
      %v3718 = vadd.f32 0.0, %v3717
      %v3719 = vpop.f32.mrf.mxu0
      %3720 = vmatprep.mubr.bf16.mxu0 0
      %3721 = vmatmul.mubr.bf16.gmra.mxu0 %v3571
      %v3722 = vpop.f32.mrf.mxu0
      %v3723 = vadd.f32 0.0, %v3722
      %v3724 = vpop.f32.mrf.mxu0
      %v3725 = vpop.f32.mrf.mxu0
      %v3726 = vadd.f32 0.0, %v3725
      %v3727 = vpop.f32.mrf.mxu0
      %3728 = vmatprep.mubr.bf16.mxu0 0
      %3729 = vmatmul.mubr.bf16.gmra.mxu0 %v3574
      %v3730 = vpop.f32.mrf.mxu0
      %v3731 = vadd.f32 0.0, %v3730
      %v3732 = vpop.f32.mrf.mxu0
      %v3733 = vpop.f32.mrf.mxu0
      %v3734 = vadd.f32 0.0, %v3733
      %v3735 = vpop.f32.mrf.mxu0
      %3736 = vdwg.mxu0
      %v3737 = vadd.f32 %v3522, %v3611
      %v3738 = vadd.f32 %v3523, %v3614
      %v3739 = vadd.f32 %v3524, %v3619
      %v3740 = vadd.f32 %v3525, %v3622
      %v3741 = vadd.f32 %v3526, %v3627
      %v3742 = vadd.f32 %v3527, %v3630
      %v3743 = vadd.f32 %v3528, %v3635
      %v3744 = vadd.f32 %v3529, %v3638
      %v3745 = vadd.f32 %v3530, %v3643
      %v3746 = vadd.f32 %v3531, %v3646
      %v3747 = vadd.f32 %v3532, %v3651
      %v3748 = vadd.f32 %v3533, %v3654
      %v3749 = vadd.f32 %v3534, %v3659
      %v3750 = vadd.f32 %v3535, %v3662
      %v3751 = vadd.f32 %v3536, %v3667
      %v3752 = vadd.f32 %v3537, %v3670
      %v3753 = vadd.f32 %v3538, %v3675
      %v3754 = vadd.f32 %v3539, %v3678
      %v3755 = vadd.f32 %v3540, %v3683
      %v3756 = vadd.f32 %v3541, %v3686
      %v3757 = vadd.f32 %v3542, %v3691
      %v3758 = vadd.f32 %v3543, %v3694
      %v3759 = vadd.f32 %v3544, %v3699
      %v3760 = vadd.f32 %v3545, %v3702
      %v3761 = vadd.f32 %v3546, %v3707
      %v3762 = vadd.f32 %v3547, %v3710
      %v3763 = vadd.f32 %v3548, %v3715
      %v3764 = vadd.f32 %v3549, %v3718
      %v3765 = vadd.f32 %v3550, %v3723
      %v3766 = vadd.f32 %v3551, %v3726
      %v3767 = vadd.f32 %v3552, %v3731
      %v3768 = vadd.f32 %v3553, %v3734
      %v3769 = vpack.c.bf16 0.0, %v1788
      %v3771 = vrot.slane %v3769, 1
      %v3772 = vsel %vm2434, %v3142, %v3771
      %v3773 = vsel %vm2434, %v3771, %v2435
      %v3776 = vunpack.c.l.b16 %v1805
      %v3777 = vunpack.c.l.b16 %v1806
      %v3778 = vpack.c.b16 %v3777, %v3776
      %v3781 = vsel %vm405, %v3772, 0
      %v3784 = vsel %vm405, %v3773, 0
      %3786 = vmatprep.subr.bf16.mxu0 0
      %3787 = vmatpush1.bf16.msra.mxu0 0
      %3788 = vmatprep.subr.bf16.mxu0 0
      %3789 = vmatpush1.bf16.msra.mxu0 0
      %3790 = vmatprep.subr.bf16.mxu0 0
      %3791 = vmatpush1.bf16.msra.mxu0 0
      %3792 = vmatprep.subr.bf16.mxu0 0
      %3793 = vmatpush1.bf16.msra.mxu0 0
      %3794 = vmatprep.subr.bf16.mxu0 0
      %3795 = vmatpush1.bf16.msra.mxu0 0
      %3796 = vmatprep.subr.bf16.mxu0 0
      %3797 = vmatpush1.bf16.msra.mxu0 0
      %3798 = vmatprep.subr.bf16.mxu0 0
      %3799 = vmatpush1.bf16.msra.mxu0 0
      %3800 = vmatprep.subr.bf16.mxu0 0
      %3801 = vmatpush1.bf16.msra.mxu0 %v3778
      %3802 = vmatprep.subr.bf16.mxu0 0
      %3803 = vmatpush2.bf16.msra.mxu0 0
      %3804 = vmatprep.subr.bf16.mxu0 0
      %3805 = vmatpush2.bf16.msra.mxu0 0
      %3806 = vmatprep.subr.bf16.mxu0 0
      %3807 = vmatpush2.bf16.msra.mxu0 0
      %3808 = vmatprep.subr.bf16.mxu0 0
      %3809 = vmatpush2.bf16.msra.mxu0 0
      %3810 = vmatprep.subr.bf16.mxu0 0
      %3811 = vmatpush2.bf16.msra.mxu0 0
      %3812 = vmatprep.subr.bf16.mxu0 0
      %3813 = vmatpush2.bf16.msra.mxu0 0
      %3814 = vmatprep.subr.bf16.mxu0 0
      %3815 = vmatpush2.bf16.msra.mxu0 0
      %3816 = vmatprep.subr.bf16.mxu0 0
      %3817 = vmatpush2.bf16.msra.mxu0 0
      %3818 = vmatprep.mubr.bf16.mxu0 0
      %3819 = vmatmul.mubr.bf16.gmra.mxu0 %v2481
      %v3820 = vpop.f32.mrf.mxu0
      %v3821 = vadd.f32 0.0, %v3820
      %v3822 = vpop.f32.mrf.mxu0
      %v3823 = vpop.f32.mrf.mxu0
      %v3824 = vadd.f32 0.0, %v3823
      %v3825 = vpop.f32.mrf.mxu0
      %3826 = vmatprep.mubr.bf16.mxu0 0
      %3827 = vmatmul.mubr.bf16.gmra.mxu0 %v2484
      %v3828 = vpop.f32.mrf.mxu0
      %v3829 = vadd.f32 0.0, %v3828
      %v3830 = vpop.f32.mrf.mxu0
      %v3831 = vpop.f32.mrf.mxu0
      %v3832 = vadd.f32 0.0, %v3831
      %v3833 = vpop.f32.mrf.mxu0
      %3834 = vmatprep.mubr.bf16.mxu0 0
      %3835 = vmatmul.mubr.bf16.gmra.mxu0 %v2487
      %v3836 = vpop.f32.mrf.mxu0
      %v3837 = vadd.f32 0.0, %v3836
      %v3838 = vpop.f32.mrf.mxu0
      %v3839 = vpop.f32.mrf.mxu0
      %v3840 = vadd.f32 0.0, %v3839
      %v3841 = vpop.f32.mrf.mxu0
      %3842 = vmatprep.mubr.bf16.mxu0 0
      %3843 = vmatmul.mubr.bf16.gmra.mxu0 %v2490
      %v3844 = vpop.f32.mrf.mxu0
      %v3845 = vadd.f32 0.0, %v3844
      %v3846 = vpop.f32.mrf.mxu0
      %v3847 = vpop.f32.mrf.mxu0
      %v3848 = vadd.f32 0.0, %v3847
      %v3849 = vpop.f32.mrf.mxu0
      %3850 = vmatprep.mubr.bf16.mxu0 0
      %3851 = vmatmul.mubr.bf16.gmra.mxu0 %v2493
      %v3852 = vpop.f32.mrf.mxu0
      %v3853 = vadd.f32 0.0, %v3852
      %v3854 = vpop.f32.mrf.mxu0
      %v3855 = vpop.f32.mrf.mxu0
      %v3856 = vadd.f32 0.0, %v3855
      %v3857 = vpop.f32.mrf.mxu0
      %3858 = vmatprep.mubr.bf16.mxu0 0
      %3859 = vmatmul.mubr.bf16.gmra.mxu0 %v2496
      %v3860 = vpop.f32.mrf.mxu0
      %v3861 = vadd.f32 0.0, %v3860
      %v3862 = vpop.f32.mrf.mxu0
      %v3863 = vpop.f32.mrf.mxu0
      %v3864 = vadd.f32 0.0, %v3863
      %v3865 = vpop.f32.mrf.mxu0
      %3866 = vmatprep.mubr.bf16.mxu0 0
      %3867 = vmatmul.mubr.bf16.gmra.mxu0 %v2499
      %v3868 = vpop.f32.mrf.mxu0
      %v3869 = vadd.f32 0.0, %v3868
      %v3870 = vpop.f32.mrf.mxu0
      %v3871 = vpop.f32.mrf.mxu0
      %v3872 = vadd.f32 0.0, %v3871
      %v3873 = vpop.f32.mrf.mxu0
      %3874 = vmatprep.mubr.bf16.mxu0 0
      %3875 = vmatmul.mubr.bf16.gmra.mxu0 %v2502
      %v3876 = vpop.f32.mrf.mxu0
      %v3877 = vadd.f32 0.0, %v3876
      %v3878 = vpop.f32.mrf.mxu0
      %v3879 = vpop.f32.mrf.mxu0
      %v3880 = vadd.f32 0.0, %v3879
      %v3881 = vpop.f32.mrf.mxu0
      %3882 = vmatprep.mubr.bf16.mxu0 0
      %3883 = vmatmul.mubr.bf16.gmra.mxu0 %v2505
      %v3884 = vpop.f32.mrf.mxu0
      %v3885 = vadd.f32 0.0, %v3884
      %v3886 = vpop.f32.mrf.mxu0
      %v3887 = vpop.f32.mrf.mxu0
      %v3888 = vadd.f32 0.0, %v3887
      %v3889 = vpop.f32.mrf.mxu0
      %3890 = vmatprep.mubr.bf16.mxu0 0
      %3891 = vmatmul.mubr.bf16.gmra.mxu0 %v2508
      %v3892 = vpop.f32.mrf.mxu0
      %v3893 = vadd.f32 0.0, %v3892
      %v3894 = vpop.f32.mrf.mxu0
      %v3895 = vpop.f32.mrf.mxu0
      %v3896 = vadd.f32 0.0, %v3895
      %v3897 = vpop.f32.mrf.mxu0
      %3898 = vmatprep.mubr.bf16.mxu0 0
      %3899 = vmatmul.mubr.bf16.gmra.mxu0 %v2511
      %v3900 = vpop.f32.mrf.mxu0
      %v3901 = vadd.f32 0.0, %v3900
      %v3902 = vpop.f32.mrf.mxu0
      %v3903 = vpop.f32.mrf.mxu0
      %v3904 = vadd.f32 0.0, %v3903
      %v3905 = vpop.f32.mrf.mxu0
      %3906 = vmatprep.mubr.bf16.mxu0 0
      %3907 = vmatmul.mubr.bf16.gmra.mxu0 %v2514
      %v3908 = vpop.f32.mrf.mxu0
      %v3909 = vadd.f32 0.0, %v3908
      %v3910 = vpop.f32.mrf.mxu0
      %v3911 = vpop.f32.mrf.mxu0
      %v3912 = vadd.f32 0.0, %v3911
      %v3913 = vpop.f32.mrf.mxu0
      %3914 = vmatprep.mubr.bf16.mxu0 0
      %3915 = vmatmul.mubr.bf16.gmra.mxu0 %v2517
      %v3916 = vpop.f32.mrf.mxu0
      %v3917 = vadd.f32 0.0, %v3916
      %v3918 = vpop.f32.mrf.mxu0
      %v3919 = vpop.f32.mrf.mxu0
      %v3920 = vadd.f32 0.0, %v3919
      %v3921 = vpop.f32.mrf.mxu0
      %3922 = vmatprep.mubr.bf16.mxu0 0
      %3923 = vmatmul.mubr.bf16.gmra.mxu0 %v3153
      %v3924 = vpop.f32.mrf.mxu0
      %v3925 = vadd.f32 0.0, %v3924
      %v3926 = vpop.f32.mrf.mxu0
      %v3927 = vpop.f32.mrf.mxu0
      %v3928 = vadd.f32 0.0, %v3927
      %v3929 = vpop.f32.mrf.mxu0
      %3930 = vmatprep.mubr.bf16.mxu0 0
      %3931 = vmatmul.mubr.bf16.gmra.mxu0 %v3781
      %v3932 = vpop.f32.mrf.mxu0
      %v3933 = vadd.f32 0.0, %v3932
      %v3934 = vpop.f32.mrf.mxu0
      %v3935 = vpop.f32.mrf.mxu0
      %v3936 = vadd.f32 0.0, %v3935
      %v3937 = vpop.f32.mrf.mxu0
      %3938 = vmatprep.mubr.bf16.mxu0 0
      %3939 = vmatmul.mubr.bf16.gmra.mxu0 %v3784
      %v3940 = vpop.f32.mrf.mxu0
      %v3941 = vadd.f32 0.0, %v3940
      %v3942 = vpop.f32.mrf.mxu0
      %v3943 = vpop.f32.mrf.mxu0
      %v3944 = vadd.f32 0.0, %v3943
      %v3945 = vpop.f32.mrf.mxu0
      %3946 = vdwg.mxu0
      %v3947 = vadd.f32 %v3737, %v3821
      %v3948 = vadd.f32 %v3738, %v3824
      %v3949 = vadd.f32 %v3739, %v3829
      %v3950 = vadd.f32 %v3740, %v3832
      %v3951 = vadd.f32 %v3741, %v3837
      %v3952 = vadd.f32 %v3742, %v3840
      %v3953 = vadd.f32 %v3743, %v3845
      %v3954 = vadd.f32 %v3744, %v3848
      %v3955 = vadd.f32 %v3745, %v3853
      %v3956 = vadd.f32 %v3746, %v3856
      %v3957 = vadd.f32 %v3747, %v3861
      %v3958 = vadd.f32 %v3748, %v3864
      %v3959 = vadd.f32 %v3749, %v3869
      %v3960 = vadd.f32 %v3750, %v3872
      %v3961 = vadd.f32 %v3751, %v3877
      %v3962 = vadd.f32 %v3752, %v3880
      %v3963 = vadd.f32 %v3753, %v3885
      %v3964 = vadd.f32 %v3754, %v3888
      %v3965 = vadd.f32 %v3755, %v3893
      %v3966 = vadd.f32 %v3756, %v3896
      %v3967 = vadd.f32 %v3757, %v3901
      %v3968 = vadd.f32 %v3758, %v3904
      %v3969 = vadd.f32 %v3759, %v3909
      %v3970 = vadd.f32 %v3760, %v3912
      %v3971 = vadd.f32 %v3761, %v3917
      %v3972 = vadd.f32 %v3762, %v3920
      %v3973 = vadd.f32 %v3763, %v3925
      %v3974 = vadd.f32 %v3764, %v3928
      %v3975 = vadd.f32 %v3765, %v3933
      %v3976 = vadd.f32 %v3766, %v3936
      %v3977 = vadd.f32 %v3767, %v3941
      %v3978 = vadd.f32 %v3768, %v3944
      %vm3979 = vcmask 64512
      %3980 = vst.msk [vmem:[%s275] sm:$0xff] %vm3979, %v3947
      %3981 = vst.msk [vmem:[%s275 + $0x8] sm:$0xff] %vm3979, %v3948
      %3982 = vst.msk [vmem:[%s275 + $0x10] sm:$0xff] %vm3979, %v3949
      %3983 = vst.msk [vmem:[%s275 + $0x18] sm:$0xff] %vm3979, %v3950
      %3984 = vst.msk [vmem:[%s275 + $0x20] sm:$0xff] %vm3979, %v3951
      %3985 = vst.msk [vmem:[%s275 + $0x28] sm:$0xff] %vm3979, %v3952
      %3986 = vst.msk [vmem:[%s275 + $0x30] sm:$0xff] %vm3979, %v3953
      %3987 = vst.msk [vmem:[%s275 + $0x38] sm:$0xff] %vm3979, %v3954
      %3988 = vst.msk [vmem:[%s275 + $0x40] sm:$0xff] %vm3979, %v3955
      %3989 = vst.msk [vmem:[%s275 + $0x48] sm:$0xff] %vm3979, %v3956
      %3990 = vst.msk [vmem:[%s275 + $0x50] sm:$0xff] %vm3979, %v3957
      %3991 = vst.msk [vmem:[%s275 + $0x58] sm:$0xff] %vm3979, %v3958
      %3992 = vst.msk [vmem:[%s275 + $0x60] sm:$0xff] %vm3979, %v3959
      %3993 = vst.msk [vmem:[%s275 + $0x68] sm:$0xff] %vm3979, %v3960
      %3994 = vst.msk [vmem:[%s275 + $0x70] sm:$0xff] %vm3979, %v3961
      %3995 = vst.msk [vmem:[%s275 + $0x78] sm:$0xff] %vm3979, %v3962
      %3996 = vst.msk [vmem:[%s275 + $0x80] sm:$0xff] %vm3979, %v3963
      %3997 = vst.msk [vmem:[%s275 + $0x88] sm:$0xff] %vm3979, %v3964
      %3998 = vst.msk [vmem:[%s275 + $0x90] sm:$0xff] %vm3979, %v3965
      %3999 = vst.msk [vmem:[%s275 + $0x98] sm:$0xff] %vm3979, %v3966
      %4000 = vst.msk [vmem:[%s275 + $0xa0] sm:$0xff] %vm3979, %v3967
      %4001 = vst.msk [vmem:[%s275 + $0xa8] sm:$0xff] %vm3979, %v3968
      %4002 = vst.msk [vmem:[%s275 + $0xb0] sm:$0xff] %vm3979, %v3969
      %4003 = vst.msk [vmem:[%s275 + $0xb8] sm:$0xff] %vm3979, %v3970
      %4004 = vst.msk [vmem:[%s275 + $0xc0] sm:$0xff] %vm3979, %v3971
      %4005 = vst.msk [vmem:[%s275 + $0xc8] sm:$0xff] %vm3979, %v3972
      %4006 = vst.msk [vmem:[%s275 + $0xd0] sm:$0xff] %vm3979, %v3973
      %4007 = vst.msk [vmem:[%s275 + $0xd8] sm:$0xff] %vm3979, %v3974
      %4008 = vst.msk [vmem:[%s275 + $0xe0] sm:$0xff] %vm3979, %v3975
      %4009 = vst.msk [vmem:[%s275 + $0xe8] sm:$0xff] %vm3979, %v3976
      %4010 = vst.msk [vmem:[%s275 + $0xf0] sm:$0xff] %vm3979, %v3977
      %4011 = vst.msk [vmem:[%s275 + $0xf8] sm:$0xff] %vm3979, %v3978
      %v4012 = vld [vmem:[%s6] sm:$0x1]
      %v4013 = vsel %vm3979, %v3947, 0.0
      %v4014 = vsel %vm3979, %v3948, 0.0
      %v4015 = vadd.f32 %v4013, %v4014
      %v4016 = vsel %vm3979, %v3949, 0.0
      %v4017 = vadd.f32 %v4015, %v4016
      %v4018 = vsel %vm3979, %v3950, 0.0
      %v4019 = vadd.f32 %v4017, %v4018
      %v4020 = vsel %vm3979, %v3951, 0.0
      %v4021 = vadd.f32 %v4019, %v4020
      %v4022 = vsel %vm3979, %v3952, 0.0
      %v4023 = vadd.f32 %v4021, %v4022
      %v4024 = vsel %vm3979, %v3953, 0.0
      %v4025 = vadd.f32 %v4023, %v4024
      %v4026 = vsel %vm3979, %v3954, 0.0
      %v4027 = vadd.f32 %v4025, %v4026
      %v4028 = vsel %vm3979, %v3955, 0.0
      %v4029 = vadd.f32 %v4027, %v4028
      %v4030 = vsel %vm3979, %v3956, 0.0
      %v4031 = vadd.f32 %v4029, %v4030
      %v4032 = vsel %vm3979, %v3957, 0.0
      %v4033 = vadd.f32 %v4031, %v4032
      %v4034 = vsel %vm3979, %v3958, 0.0
      %v4035 = vadd.f32 %v4033, %v4034
      %v4036 = vsel %vm3979, %v3959, 0.0
      %v4037 = vadd.f32 %v4035, %v4036
      %v4038 = vsel %vm3979, %v3960, 0.0
      %v4039 = vadd.f32 %v4037, %v4038
      %v4040 = vsel %vm3979, %v3961, 0.0
      %v4041 = vadd.f32 %v4039, %v4040
      %v4042 = vsel %vm3979, %v3962, 0.0
      %v4043 = vadd.f32 %v4041, %v4042
      %v4044 = vsel %vm3979, %v3963, 0.0
      %v4045 = vadd.f32 %v4043, %v4044
      %v4046 = vsel %vm3979, %v3964, 0.0
      %v4047 = vadd.f32 %v4045, %v4046
      %v4048 = vsel %vm3979, %v3965, 0.0
      %v4049 = vadd.f32 %v4047, %v4048
      %v4050 = vsel %vm3979, %v3966, 0.0
      %v4051 = vadd.f32 %v4049, %v4050
      %v4052 = vsel %vm3979, %v3967, 0.0
      %v4053 = vadd.f32 %v4051, %v4052
      %v4054 = vsel %vm3979, %v3968, 0.0
      %v4055 = vadd.f32 %v4053, %v4054
      %v4056 = vsel %vm3979, %v3969, 0.0
      %v4057 = vadd.f32 %v4055, %v4056
      %v4058 = vsel %vm3979, %v3970, 0.0
      %v4059 = vadd.f32 %v4057, %v4058
      %v4060 = vsel %vm3979, %v3971, 0.0
      %v4061 = vadd.f32 %v4059, %v4060
      %v4062 = vsel %vm3979, %v3972, 0.0
      %v4063 = vadd.f32 %v4061, %v4062
      %v4064 = vsel %vm3979, %v3973, 0.0
      %v4065 = vadd.f32 %v4063, %v4064
      %v4066 = vsel %vm3979, %v3974, 0.0
      %v4067 = vadd.f32 %v4065, %v4066
      %v4068 = vsel %vm3979, %v3975, 0.0
      %v4069 = vadd.f32 %v4067, %v4068
      %v4070 = vsel %vm3979, %v3976, 0.0
      %v4071 = vadd.f32 %v4069, %v4070
      %v4072 = vsel %vm3979, %v3977, 0.0
      %v4073 = vadd.f32 %v4071, %v4072
      %v4074 = vsel %vm3979, %v3978, 0.0
      %v4075 = vadd.f32 %v4073, %v4074
      %v4076 = vrot.slane %v4075, 4
      %v4077 = vadd.f32 %v4075, %v4076
      %v4078 = vrot.slane %v4077, 2
      %v4079 = vadd.f32 %v4077, %v4078
      %v4080 = vrot.slane %v4079, 1
      %v4081 = vadd.f32 %v4079, %v4080
      %v4082 = vadd.f32 %v4012, %v4081
      %vm4083 = vcmask 57344
      %4084 = vst.msk [vmem:[%s6] sm:$0x1] %vm4083, %v4082
      %v4085 = vld [vmem:[%s7] sm:$0x1]
      %v4086 = vmul.f32 %v3947, %v3947
      %v4087 = vmul.f32 %v3948, %v3948
      %v4088 = vmul.f32 %v3949, %v3949
      %v4089 = vmul.f32 %v3950, %v3950
      %v4090 = vmul.f32 %v3951, %v3951
      %v4091 = vmul.f32 %v3952, %v3952
      %v4092 = vmul.f32 %v3953, %v3953
      %v4093 = vmul.f32 %v3954, %v3954
      %v4094 = vmul.f32 %v3955, %v3955
      %v4095 = vmul.f32 %v3956, %v3956
      %v4096 = vmul.f32 %v3957, %v3957
      %v4097 = vmul.f32 %v3958, %v3958
      %v4098 = vmul.f32 %v3959, %v3959
      %v4099 = vmul.f32 %v3960, %v3960
      %v4100 = vmul.f32 %v3961, %v3961
      %v4101 = vmul.f32 %v3962, %v3962
      %v4102 = vmul.f32 %v3963, %v3963
      %v4103 = vmul.f32 %v3964, %v3964
      %v4104 = vmul.f32 %v3965, %v3965
      %v4105 = vmul.f32 %v3966, %v3966
      %v4106 = vmul.f32 %v3967, %v3967
      %v4107 = vmul.f32 %v3968, %v3968
      %v4108 = vmul.f32 %v3969, %v3969
      %v4109 = vmul.f32 %v3970, %v3970
      %v4110 = vmul.f32 %v3971, %v3971
      %v4111 = vmul.f32 %v3972, %v3972
      %v4112 = vmul.f32 %v3973, %v3973
      %v4113 = vmul.f32 %v3974, %v3974
      %v4114 = vmul.f32 %v3975, %v3975
      %v4115 = vmul.f32 %v3976, %v3976
      %v4116 = vmul.f32 %v3977, %v3977
      %v4117 = vmul.f32 %v3978, %v3978
      %v4118 = vsel %vm3979, %v4086, 0.0
      %v4119 = vsel %vm3979, %v4087, 0.0
      %v4120 = vadd.f32 %v4118, %v4119
      %v4121 = vsel %vm3979, %v4088, 0.0
      %v4122 = vadd.f32 %v4120, %v4121
      %v4123 = vsel %vm3979, %v4089, 0.0
      %v4124 = vadd.f32 %v4122, %v4123
      %v4125 = vsel %vm3979, %v4090, 0.0
      %v4126 = vadd.f32 %v4124, %v4125
      %v4127 = vsel %vm3979, %v4091, 0.0
      %v4128 = vadd.f32 %v4126, %v4127
      %v4129 = vsel %vm3979, %v4092, 0.0
      %v4130 = vadd.f32 %v4128, %v4129
      %v4131 = vsel %vm3979, %v4093, 0.0
      %v4132 = vadd.f32 %v4130, %v4131
      %v4133 = vsel %vm3979, %v4094, 0.0
      %v4134 = vadd.f32 %v4132, %v4133
      %v4135 = vsel %vm3979, %v4095, 0.0
      %v4136 = vadd.f32 %v4134, %v4135
      %v4137 = vsel %vm3979, %v4096, 0.0
      %v4138 = vadd.f32 %v4136, %v4137
      %v4139 = vsel %vm3979, %v4097, 0.0
      %v4140 = vadd.f32 %v4138, %v4139
      %v4141 = vsel %vm3979, %v4098, 0.0
      %v4142 = vadd.f32 %v4140, %v4141
      %v4143 = vsel %vm3979, %v4099, 0.0
      %v4144 = vadd.f32 %v4142, %v4143
      %v4145 = vsel %vm3979, %v4100, 0.0
      %v4146 = vadd.f32 %v4144, %v4145
      %v4147 = vsel %vm3979, %v4101, 0.0
      %v4148 = vadd.f32 %v4146, %v4147
      %v4149 = vsel %vm3979, %v4102, 0.0
      %v4150 = vadd.f32 %v4148, %v4149
      %v4151 = vsel %vm3979, %v4103, 0.0
      %v4152 = vadd.f32 %v4150, %v4151
      %v4153 = vsel %vm3979, %v4104, 0.0
      %v4154 = vadd.f32 %v4152, %v4153
      %v4155 = vsel %vm3979, %v4105, 0.0
      %v4156 = vadd.f32 %v4154, %v4155
      %v4157 = vsel %vm3979, %v4106, 0.0
      %v4158 = vadd.f32 %v4156, %v4157
      %v4159 = vsel %vm3979, %v4107, 0.0
      %v4160 = vadd.f32 %v4158, %v4159
      %v4161 = vsel %vm3979, %v4108, 0.0
      %v4162 = vadd.f32 %v4160, %v4161
      %v4163 = vsel %vm3979, %v4109, 0.0
      %v4164 = vadd.f32 %v4162, %v4163
      %v4165 = vsel %vm3979, %v4110, 0.0
      %v4166 = vadd.f32 %v4164, %v4165
      %v4167 = vsel %vm3979, %v4111, 0.0
      %v4168 = vadd.f32 %v4166, %v4167
      %v4169 = vsel %vm3979, %v4112, 0.0
      %v4170 = vadd.f32 %v4168, %v4169
      %v4171 = vsel %vm3979, %v4113, 0.0
      %v4172 = vadd.f32 %v4170, %v4171
      %v4173 = vsel %vm3979, %v4114, 0.0
      %v4174 = vadd.f32 %v4172, %v4173
      %v4175 = vsel %vm3979, %v4115, 0.0
      %v4176 = vadd.f32 %v4174, %v4175
      %v4177 = vsel %vm3979, %v4116, 0.0
      %v4178 = vadd.f32 %v4176, %v4177
      %v4179 = vsel %vm3979, %v4117, 0.0
      %v4180 = vadd.f32 %v4178, %v4179
      %v4181 = vrot.slane %v4180, 4
      %v4182 = vadd.f32 %v4180, %v4181
      %v4183 = vrot.slane %v4182, 2
      %v4184 = vadd.f32 %v4182, %v4183
      %v4185 = vrot.slane %v4184, 1
      %v4186 = vadd.f32 %v4184, %v4185
      %v4187 = vadd.f32 %v4085, %v4186
      %4188 = vst.msk [vmem:[%s7] sm:$0x1] %vm4083, %v4187
      %s4189 = smul.u32 32, %s19
      %p4190 = scmp.lt.s32.totalorder %s4189, 63
      %s4191 = scalar_select %p4190, %s4189, 63
      %s4192 = smul.addr %s4191, 8
      %s4193 = scalar_lea.vmem %s5, %s4192
      // Predicated region
      $region45: #{bottleneck_forward.5} parent=39 // pred_check
        %p4194 = pneg %p147
      $region46: #{bottleneck_forward.5} parent=39 // pred_check_branch
        %4196 = sbr.rel (%p4194) target = $region48
      $region47: #{bottleneck_forward.5} parent=39 // pred_region
        %s4197 = smul.u32 32, %s19
      $region48: #{bottleneck_forward.5} parent=39 // pred_fallthru
        _
      // Predicated region
      $region49: #{bottleneck_forward.5} parent=39 // pred_check
        %p4198 = pneg %p168
      $region50: #{bottleneck_forward.5} parent=39 // pred_check_branch
        %4200 = sbr.rel (%p4198) target = $region52
      $region51: #{bottleneck_forward.5} parent=39 // pred_region
        _
      $region52: #{bottleneck_forward.5} parent=39 // pred_fallthru
        _
      // Predicated region
      $region53: #{bottleneck_forward.5} parent=39 // pred_check
        %p4201 = pneg %p189
      $region54: #{bottleneck_forward.5} parent=39 // pred_check_branch
        %4203 = sbr.rel (%p4201) target = $region56
      $region55: #{bottleneck_forward.5} parent=39 // pred_region
        _
      $region56: #{bottleneck_forward.5} parent=39 // pred_fallthru
        _
      // Predicated region
      $region57: #{bottleneck_forward.5} parent=39 // pred_check
        %p4204 = pneg %p168
      $region58: #{bottleneck_forward.5} parent=39 // pred_check_branch
        %4206 = sbr.rel (%p4204) target = $region60
      $region59: #{bottleneck_forward.5} parent=39 // pred_region
        _
      $region60: #{bottleneck_forward.5} parent=39 // pred_fallthru
        _
      // Predicated region
      $region61: #{bottleneck_forward.5} parent=39 // pred_check
        %p4207 = pneg %p189
      $region62: #{bottleneck_forward.5} parent=39 // pred_check_branch
        %4209 = sbr.rel (%p4207) target = $region64
      $region63: #{bottleneck_forward.5} parent=39 // pred_region
        _
      $region64: #{bottleneck_forward.5} parent=39 // pred_fallthru
        _
    $region40: #{bottleneck_forward.5} parent=5 // pred_fallthru
      _
    %p4210 = scmp.le.s32.totalorder 2, %s14
    // Predicated region
    $region65: #{bottleneck_forward.5} parent=5 // pred_check
      %p4211 = pneg %p4210
    $region66: #{bottleneck_forward.5} parent=5 // pred_check_branch
      %4213 = sbr.rel (%p4211) target = $region68
    $region67: #{bottleneck_forward.5} parent=5 // pred_region
      %s4214 = ssub.s32 %s14, 2
      // Predicated region
      $region69: #{bottleneck_forward.5} parent=67 // pred_check
        %p4215 = pneg %p153
      $region70: #{bottleneck_forward.5} parent=67 // pred_check_branch
        %4217 = sbr.rel (%p4215) target = $region72
      $region71: #{bottleneck_forward.5} parent=67 // pred_region
        %s4218 = smul.u32 32, %s20
        %p4219 = scmp.lt.s32.totalorder %s4218, 63
        %s4220 = scalar_select %p4219, %s4218, 63
        %s4221 = smul.addr %s4220, 8
        %s4222 = scalar_lea.vmem %s5, %s4221
      $region72: #{bottleneck_forward.5} parent=67 // pred_fallthru
        _
    $region68: #{bottleneck_forward.5} parent=5 // pred_fallthru
      _
  $region6: #{bottleneck_forward.5} parent=0 // loop_footer
    %s18 = sadd.s32 1, %s14
  $region7: #{bottleneck_forward.5} parent=0 // loop_footer_branch
    %13 = sbr.rel target = $region3
  $region8: #{bottleneck_forward.5} parent=0 // loop_exit
    _

// kernel: bottleneck_forward.7
$region0: #{bottleneck_forward.7}
  #allocation0 [shape = 'u32[]', space=smem, size = 0x4, offset = 0x4, fixed_abs, tag = 'smem constant byte address 0x4 - core index']
  #allocation1 [shape = 'u32[144,128]{1,0:T(1,128)}', space=vmem, size = 0x12000, scoped, tag = 'internal scratch']
  %s0 = inlined_call_operand.vmem [shape: f32[512,8], index: 0, kind: input, shape index: {}]
  %s1 = inlined_call_operand.vmem [shape: bf16[512,16], index: 1, kind: input, shape index: {}]
  %s2 = inlined_call_operand.vmem [shape: f32[1,8], index: 2, kind: input, shape index: {}]
  %s3 = inlined_call_operand.vmem [shape: f32[1,8], index: 3, kind: input, shape index: {}]
  %s4 = inlined_call_operand.vmem [shape: bf16[8,32], index: 4, kind: input, shape index: {}]
  %s5 = inlined_call_operand.vmem [shape: f32[1,32], index: 5, kind: input, shape index: {}]
  %s6 = inlined_call_operand.vmem [shape: f32[1,32], index: 6, kind: input, shape index: {}]
  %s7 = inlined_call_operand.vmem [shape: bf16[16,32], index: 7, kind: input, shape index: {}]
  %s8 = inlined_call_operand.vmem [shape: f32[1,32], index: 8, kind: input, shape index: {}]
  %s9 = inlined_call_operand.vmem [shape: f32[1,32], index: 9, kind: input, shape index: {}]
  %s10 = inlined_call_operand.hbm [shape: f32[512,32], index: 10, kind: output, shape index: {}]
  %s11 = sld [smem:[#allocation0]]
  $region73: #{bottleneck_forward.7} parent=0
    _
  %s13 = ssub.s32 1, %s11
  %s14 = scalar_select 0, %s13, %s11
  $region1: #{bottleneck_forward.7} parent=0
    #allocation2 [shape = 'u8[262144]{0}', space=vmem, size = 0x40000, scoped, tag = 'output window, operand 0']
    #allocation3 [shape = 's32[2]{0}', space=sflag, size = 0x8, scoped, tag = 'scoped memory for bottleneck_forward.7']
    %15 = vsyncpa [#allocation3], 0
    %s16 = scalar_lea.sflag [#allocation3], 1
    %17 = vsyncpa %s16, 0
    loop: start=0, step=1, limit=4
    $region2: #{bottleneck_forward.7} parent=1 // loop_pre_header
      _
    $region3: #{bottleneck_forward.7} parent=1 // loop_header
      %s19 = sphi 0, %s23
      %p20 = scmp.ge.s32.totalorder %s19, 4
      %s29 = sphi 0, %s31
      %s32 = sphi 0, %s29
      %s33 = sphi 0, %s32
      %s49 = sphi 0, %s33
      %s55 = sphi 0, %s57
      %s58 = sphi 0, %s55
      %s59 = sphi 0, %s58
      %s75 = sphi 0, %s59
      %s79 = sphi 0, %s79
      %s81 = sphi 0, %s79
      %s82 = sphi 0, %s81
      %s96 = sphi 0, %s82
      %s100 = sphi 0, %s100
      %s102 = sphi 0, %s100
      %s103 = sphi 0, %s102
      %s117 = sphi 0, %s103
      %s121 = sphi 0, %s121
      %s123 = sphi 0, %s121
      %s124 = sphi 0, %s123
      %s138 = sphi 0, %s124
      %s142 = sphi 0, %s142
      %s144 = sphi 0, %s142
      %s145 = sphi 0, %s144
      %s159 = sphi 0, %s145
      %s163 = sphi 0, %s163
      %s165 = sphi 0, %s163
      %s166 = sphi 0, %s165
      %s180 = sphi 0, %s166
      %s184 = sphi 0, %s184
      %s186 = sphi 0, %s184
      %s187 = sphi 0, %s186
      %s201 = sphi 0, %s187
      %s205 = sphi 0, %s205
      %s207 = sphi 0, %s205
      %s208 = sphi 0, %s207
      %s222 = sphi 0, %s208
      %s226 = sphi 0, %s226
      %s228 = sphi 0, %s226
      %s229 = sphi 0, %s228
      %s243 = sphi 0, %s229
      %s249 = sphi 0, %s251
      %s252 = sphi 0, %s249
      %s253 = sphi 0, %s252
      %s269 = sphi 0, %s253
    $region4: #{bottleneck_forward.7} parent=1 // loop_header_branch
      %22 = sbr.rel (%p20) target = $region8
    $region5: #{bottleneck_forward.7} parent=1 // loop_body
      %s24 = ssub.s32 %s19, 1
      %s25 = ssub.s32 %s19, 2
      %s26 = sadd.s32 %s19, 1
      %s27 = ssub.s32 %s19, %s26
      %p28 = scmp.eq.s32.totalorder %s27, 0
      %s30 = sadd.s32 %s29, 1
      %s31 = scalar_select %p28, %s29, %s30
      %p34 = pneg %p28
      %p35 = scmp.eq.s32.totalorder %s19, 1
      %p36 = por %p34, %p35
      %p37 = scmp.ne.s32.totalorder %s29, %s32
      %p38 = scmp.eq.s32.totalorder %s19, 0
      %p39 = por %p37, %p38
      %p40 = scmp.ne.s32.totalorder %s29, %s32
      %p41 = scmp.eq.s32.totalorder %s24, 1
      %p42 = por %p40, %p41
      %p43 = scmp.ne.s32.totalorder %s32, %s33
      %p44 = scmp.eq.s32.totalorder %s24, 0
      %p45 = por %p43, %p44
      %p46 = scmp.ne.s32.totalorder %s32, %s33
      %p47 = scmp.eq.s32.totalorder %s25, 1
      %p48 = por %p46, %p47
      %p50 = scmp.ne.s32.totalorder %s33, %s49
      %p51 = scmp.eq.s32.totalorder %s25, 0
      %p52 = por %p50, %p51
      %s53 = ssub.s32 %s19, %s26
      %p54 = scmp.eq.s32.totalorder %s53, 0
      %s56 = sadd.s32 %s55, 1
      %s57 = scalar_select %p54, %s55, %s56
      %p60 = pneg %p54
      %p61 = scmp.eq.s32.totalorder %s19, 1
      %p62 = por %p60, %p61
      %p63 = scmp.ne.s32.totalorder %s55, %s58
      %p64 = scmp.eq.s32.totalorder %s19, 0
      %p65 = por %p63, %p64
      %p66 = scmp.ne.s32.totalorder %s55, %s58
      %p67 = scmp.eq.s32.totalorder %s24, 1
      %p68 = por %p66, %p67
      %p69 = scmp.ne.s32.totalorder %s58, %s59
      %p70 = scmp.eq.s32.totalorder %s24, 0
      %p71 = por %p69, %p70
      %p72 = scmp.ne.s32.totalorder %s58, %s59
      %p73 = scmp.eq.s32.totalorder %s25, 1
      %p74 = por %p72, %p73
      %p76 = scmp.ne.s32.totalorder %s59, %s75
      %p77 = scmp.eq.s32.totalorder %s25, 0
      %p78 = por %p76, %p77
      %s80 = sadd.s32 %s79, 1
      %p83 = scmp.eq.s32.totalorder %s19, 1
      %p84 = scmp.ne.s32.totalorder %s79, %s81
      %p85 = scmp.eq.s32.totalorder %s19, 0
      %p86 = por %p84, %p85
      %p87 = scmp.ne.s32.totalorder %s79, %s81
      %p88 = scmp.eq.s32.totalorder %s24, 1
      %p89 = por %p87, %p88
      %p90 = scmp.ne.s32.totalorder %s81, %s82
      %p91 = scmp.eq.s32.totalorder %s24, 0
      %p92 = por %p90, %p91
      %p93 = scmp.ne.s32.totalorder %s81, %s82
      %p94 = scmp.eq.s32.totalorder %s25, 1
      %p95 = por %p93, %p94
      %p97 = scmp.ne.s32.totalorder %s82, %s96
      %p98 = scmp.eq.s32.totalorder %s25, 0
      %p99 = por %p97, %p98
      %s101 = sadd.s32 %s100, 1
      %p104 = scmp.eq.s32.totalorder %s19, 1
      %p105 = scmp.ne.s32.totalorder %s100, %s102
      %p106 = scmp.eq.s32.totalorder %s19, 0
      %p107 = por %p105, %p106
      %p108 = scmp.ne.s32.totalorder %s100, %s102
      %p109 = scmp.eq.s32.totalorder %s24, 1
      %p110 = por %p108, %p109
      %p111 = scmp.ne.s32.totalorder %s102, %s103
      %p112 = scmp.eq.s32.totalorder %s24, 0
      %p113 = por %p111, %p112
      %p114 = scmp.ne.s32.totalorder %s102, %s103
      %p115 = scmp.eq.s32.totalorder %s25, 1
      %p116 = por %p114, %p115
      %p118 = scmp.ne.s32.totalorder %s103, %s117
      %p119 = scmp.eq.s32.totalorder %s25, 0
      %p120 = por %p118, %p119
      %s122 = sadd.s32 %s121, 1
      %p125 = scmp.eq.s32.totalorder %s19, 1
      %p126 = scmp.ne.s32.totalorder %s121, %s123
      %p127 = scmp.eq.s32.totalorder %s19, 0
      %p128 = por %p126, %p127
      %p129 = scmp.ne.s32.totalorder %s121, %s123
      %p130 = scmp.eq.s32.totalorder %s24, 1
      %p131 = por %p129, %p130
      %p132 = scmp.ne.s32.totalorder %s123, %s124
      %p133 = scmp.eq.s32.totalorder %s24, 0
      %p134 = por %p132, %p133
      %p135 = scmp.ne.s32.totalorder %s123, %s124
      %p136 = scmp.eq.s32.totalorder %s25, 1
      %p137 = por %p135, %p136
      %p139 = scmp.ne.s32.totalorder %s124, %s138
      %p140 = scmp.eq.s32.totalorder %s25, 0
      %p141 = por %p139, %p140
      %s143 = sadd.s32 %s142, 1
      %p146 = scmp.eq.s32.totalorder %s19, 1
      %p147 = scmp.ne.s32.totalorder %s142, %s144
      %p148 = scmp.eq.s32.totalorder %s19, 0
      %p149 = por %p147, %p148
      %p150 = scmp.ne.s32.totalorder %s142, %s144
      %p151 = scmp.eq.s32.totalorder %s24, 1
      %p152 = por %p150, %p151
      %p153 = scmp.ne.s32.totalorder %s144, %s145
      %p154 = scmp.eq.s32.totalorder %s24, 0
      %p155 = por %p153, %p154
      %p156 = scmp.ne.s32.totalorder %s144, %s145
      %p157 = scmp.eq.s32.totalorder %s25, 1
      %p158 = por %p156, %p157
      %p160 = scmp.ne.s32.totalorder %s145, %s159
      %p161 = scmp.eq.s32.totalorder %s25, 0
      %p162 = por %p160, %p161
      %s164 = sadd.s32 %s163, 1
      %p167 = scmp.eq.s32.totalorder %s19, 1
      %p168 = scmp.ne.s32.totalorder %s163, %s165
      %p169 = scmp.eq.s32.totalorder %s19, 0
      %p170 = por %p168, %p169
      %p171 = scmp.ne.s32.totalorder %s163, %s165
      %p172 = scmp.eq.s32.totalorder %s24, 1
      %p173 = por %p171, %p172
      %p174 = scmp.ne.s32.totalorder %s165, %s166
      %p175 = scmp.eq.s32.totalorder %s24, 0
      %p176 = por %p174, %p175
      %p177 = scmp.ne.s32.totalorder %s165, %s166
      %p178 = scmp.eq.s32.totalorder %s25, 1
      %p179 = por %p177, %p178
      %p181 = scmp.ne.s32.totalorder %s166, %s180
      %p182 = scmp.eq.s32.totalorder %s25, 0
      %p183 = por %p181, %p182
      %s185 = sadd.s32 %s184, 1
      %p188 = scmp.eq.s32.totalorder %s19, 1
      %p189 = scmp.ne.s32.totalorder %s184, %s186
      %p190 = scmp.eq.s32.totalorder %s19, 0
      %p191 = por %p189, %p190
      %p192 = scmp.ne.s32.totalorder %s184, %s186
      %p193 = scmp.eq.s32.totalorder %s24, 1
      %p194 = por %p192, %p193
      %p195 = scmp.ne.s32.totalorder %s186, %s187
      %p196 = scmp.eq.s32.totalorder %s24, 0
      %p197 = por %p195, %p196
      %p198 = scmp.ne.s32.totalorder %s186, %s187
      %p199 = scmp.eq.s32.totalorder %s25, 1
      %p200 = por %p198, %p199
      %p202 = scmp.ne.s32.totalorder %s187, %s201
      %p203 = scmp.eq.s32.totalorder %s25, 0
      %p204 = por %p202, %p203
      %s206 = sadd.s32 %s205, 1
      %p209 = scmp.eq.s32.totalorder %s19, 1
      %p210 = scmp.ne.s32.totalorder %s205, %s207
      %p211 = scmp.eq.s32.totalorder %s19, 0
      %p212 = por %p210, %p211
      %p213 = scmp.ne.s32.totalorder %s205, %s207
      %p214 = scmp.eq.s32.totalorder %s24, 1
      %p215 = por %p213, %p214
      %p216 = scmp.ne.s32.totalorder %s207, %s208
      %p217 = scmp.eq.s32.totalorder %s24, 0
      %p218 = por %p216, %p217
      %p219 = scmp.ne.s32.totalorder %s207, %s208
      %p220 = scmp.eq.s32.totalorder %s25, 1
      %p221 = por %p219, %p220
      %p223 = scmp.ne.s32.totalorder %s208, %s222
      %p224 = scmp.eq.s32.totalorder %s25, 0
      %p225 = por %p223, %p224
      %s227 = sadd.s32 %s226, 1
      %p230 = scmp.eq.s32.totalorder %s19, 1
      %p231 = scmp.ne.s32.totalorder %s226, %s228
      %p232 = scmp.eq.s32.totalorder %s19, 0
      %p233 = por %p231, %p232
      %p234 = scmp.ne.s32.totalorder %s226, %s228
      %p235 = scmp.eq.s32.totalorder %s24, 1
      %p236 = por %p234, %p235
      %p237 = scmp.ne.s32.totalorder %s228, %s229
      %p238 = scmp.eq.s32.totalorder %s24, 0
      %p239 = por %p237, %p238
      %p240 = scmp.ne.s32.totalorder %s228, %s229
      %p241 = scmp.eq.s32.totalorder %s25, 1
      %p242 = por %p240, %p241
      %p244 = scmp.ne.s32.totalorder %s229, %s243
      %p245 = scmp.eq.s32.totalorder %s25, 0
      %p246 = por %p244, %p245
      %s247 = ssub.s32 %s19, %s26
      %p248 = scmp.eq.s32.totalorder %s247, 0
      %s250 = sadd.s32 %s249, 1
      %s251 = scalar_select %p248, %s249, %s250
      %p254 = pneg %p248
      %p255 = scmp.eq.s32.totalorder %s19, 1
      %p256 = por %p254, %p255
      %p257 = scmp.ne.s32.totalorder %s249, %s252
      %p258 = scmp.eq.s32.totalorder %s19, 0
      %p259 = por %p257, %p258
      %p260 = scmp.ne.s32.totalorder %s249, %s252
      %p261 = scmp.eq.s32.totalorder %s24, 1
      %p262 = por %p260, %p261
      %p263 = scmp.ne.s32.totalorder %s252, %s253
      %p264 = scmp.eq.s32.totalorder %s24, 0
      %p265 = por %p263, %p264
      %p266 = scmp.ne.s32.totalorder %s252, %s253
      %p267 = scmp.eq.s32.totalorder %s25, 1
      %p268 = por %p266, %p267
      %p270 = scmp.ne.s32.totalorder %s253, %s269
      %p271 = scmp.eq.s32.totalorder %s25, 0
      %p272 = por %p270, %p271
      %p273 = scmp.le.s32.totalorder 1, %s19
      %p274 = scmp.lt.s32.totalorder %s19, 3
      %p275 = pnand %p273, %p274
      %p276 = pneg %p275
      // Predicated region
      $region9: #{bottleneck_forward.7} parent=5 // pred_check
        _
      $region10: #{bottleneck_forward.7} parent=5 // pred_check_branch
        %278 = sbr.rel (%p275) target = $region12
      $region11: #{bottleneck_forward.7} parent=5 // pred_region
        %s279 = ssub.s32 %s19, 1
        // Predicated region
        $region13: #{bottleneck_forward.7} parent=11 // pred_check
          %p280 = pneg %p92
        $region14: #{bottleneck_forward.7} parent=11 // pred_check_branch
          %282 = sbr.rel (%p280) target = $region16
        $region15: #{bottleneck_forward.7} parent=11 // pred_region
          _
        $region16: #{bottleneck_forward.7} parent=11 // pred_fallthru
          _
        // Predicated region
        $region17: #{bottleneck_forward.7} parent=11 // pred_check
          %p283 = pneg %p113
        $region18: #{bottleneck_forward.7} parent=11 // pred_check_branch
          %285 = sbr.rel (%p283) target = $region20
        $region19: #{bottleneck_forward.7} parent=11 // pred_region
          _
        $region20: #{bottleneck_forward.7} parent=11 // pred_fallthru
          _
        // Predicated region
        $region21: #{bottleneck_forward.7} parent=11 // pred_check
          %p286 = pneg %p134
        $region22: #{bottleneck_forward.7} parent=11 // pred_check_branch
          %288 = sbr.rel (%p286) target = $region24
        $region23: #{bottleneck_forward.7} parent=11 // pred_region
          _
        $region24: #{bottleneck_forward.7} parent=11 // pred_fallthru
          _
        // Predicated region
        $region25: #{bottleneck_forward.7} parent=11 // pred_check
          %p289 = pneg %p155
        $region26: #{bottleneck_forward.7} parent=11 // pred_check_branch
          %291 = sbr.rel (%p289) target = $region28
        $region27: #{bottleneck_forward.7} parent=11 // pred_region
          _
        $region28: #{bottleneck_forward.7} parent=11 // pred_fallthru
          _
        // Predicated region
        $region29: #{bottleneck_forward.7} parent=11 // pred_check
          %p292 = pneg %p176
        $region30: #{bottleneck_forward.7} parent=11 // pred_check_branch
          %294 = sbr.rel (%p292) target = $region32
        $region31: #{bottleneck_forward.7} parent=11 // pred_region
          _
        $region32: #{bottleneck_forward.7} parent=11 // pred_fallthru
          _
        // Predicated region
        $region33: #{bottleneck_forward.7} parent=11 // pred_check
          %p295 = pneg %p197
        $region34: #{bottleneck_forward.7} parent=11 // pred_check_branch
          %297 = sbr.rel (%p295) target = $region36
        $region35: #{bottleneck_forward.7} parent=11 // pred_region
          _
        $region36: #{bottleneck_forward.7} parent=11 // pred_fallthru
          _
        // Predicated region
        $region37: #{bottleneck_forward.7} parent=11 // pred_check
          %p298 = pneg %p218
        $region38: #{bottleneck_forward.7} parent=11 // pred_check_branch
          %300 = sbr.rel (%p298) target = $region40
        $region39: #{bottleneck_forward.7} parent=11 // pred_region
          _
        $region40: #{bottleneck_forward.7} parent=11 // pred_fallthru
          _
        // Predicated region
        $region41: #{bottleneck_forward.7} parent=11 // pred_check
          %p301 = pneg %p239
        $region42: #{bottleneck_forward.7} parent=11 // pred_check_branch
          %303 = sbr.rel (%p301) target = $region44
        $region43: #{bottleneck_forward.7} parent=11 // pred_region
          _
        $region44: #{bottleneck_forward.7} parent=11 // pred_fallthru
          _
      $region12: #{bottleneck_forward.7} parent=5 // pred_fallthru
        _
      %p304 = scmp.lt.s32.totalorder %s19, 2
      // Predicated region
      $region45: #{bottleneck_forward.7} parent=5 // pred_check
        %p305 = pneg %p304
      $region46: #{bottleneck_forward.7} parent=5 // pred_check_branch
        %307 = sbr.rel (%p305) target = $region48
      $region47: #{bottleneck_forward.7} parent=5 // pred_region
        // Predicated region
        $region49: #{bottleneck_forward.7} parent=47 // pred_check
          %p308 = pneg %p39
        $region50: #{bottleneck_forward.7} parent=47 // pred_check_branch
          %310 = sbr.rel (%p308) target = $region52
        $region51: #{bottleneck_forward.7} parent=47 // pred_region
          %s311 = smul.u32 32, %s19
          %p312 = scmp.lt.s32.totalorder %s311, 63
          %s313 = scalar_select %p312, %s311, 63
          %s314 = smul.addr %s313, 8
          %s315 = scalar_lea.vmem %s0, %s314
          %s316 = smul.u32 32, %s19
        $region52: #{bottleneck_forward.7} parent=47 // pred_fallthru
          _
        // Predicated region
        $region53: #{bottleneck_forward.7} parent=47 // pred_check
          %p317 = pneg %p65
        $region54: #{bottleneck_forward.7} parent=47 // pred_check_branch
          %319 = sbr.rel (%p317) target = $region56
        $region55: #{bottleneck_forward.7} parent=47 // pred_region
          %s320 = smul.u32 32, %s19
          %p321 = scmp.lt.s32.totalorder %s320, 63
          %s322 = scalar_select %p321, %s320, 63
          %s323 = smul.addr %s322, 4
          %s324 = scalar_lea.vmem %s1, %s323
          %s325 = smul.u32 32, %s19
        $region56: #{bottleneck_forward.7} parent=47 // pred_fallthru
          _
      $region48: #{bottleneck_forward.7} parent=5 // pred_fallthru
        _
      %p326 = scmp.le.s32.totalorder 1, %s19
      %p327 = scmp.lt.s32.totalorder %s19, 3
      %p328 = pnand %p326, %p327
      %p329 = pneg %p328
      // Predicated region
      $region57: #{bottleneck_forward.7} parent=5 // pred_check
        _
      $region58: #{bottleneck_forward.7} parent=5 // pred_check_branch
        %331 = sbr.rel (%p328) target = $region60
      $region59: #{bottleneck_forward.7} parent=5 // pred_region
        %s332 = ssub.s32 %s19, 1
        %s333 = smul.u32 32, %s24
        %p334 = scmp.lt.s32.totalorder %s333, 63
        %s335 = scalar_select %p334, %s333, 63
        %s336 = smul.addr %s335, 8
        %s337 = scalar_lea.vmem %s0, %s336
        %p338 = pneg %p45
        %p339 = pneg %p42
        %s340 = smul.u32 32, %s24
        %p341 = scmp.lt.s32.totalorder %s340, 63
        %s342 = scalar_select %p341, %s340, 63
        %s343 = smul.addr %s342, 4
        %s344 = scalar_lea.vmem %s1, %s343
        %p345 = pneg %p71
        %p346 = pneg %p68
        %p347 = pneg %p92
        %p348 = pneg %p89
        %p349 = pneg %p113
        %p350 = pneg %p110
        %p351 = pneg %p134
        %p352 = pneg %p131
        %p353 = pneg %p155
        %p354 = pneg %p152
        %p355 = pneg %p176
        %p356 = pneg %p173
        %p357 = pneg %p197
        %p358 = pneg %p194
        %p359 = pneg %p218
        %p360 = pneg %p215
        %p361 = pneg %p239
        %p362 = pneg %p236
        %p363 = pneg %p265
        %p364 = pneg %p262
        %s365 = sand.u32 %s252, 1
        %s366 = scalar_lea.sflag [#allocation3], %s365
        %s367 = sand.u32 %s252, 1
        %s368 = smul.addr %s367, 256
        %s369 = scalar_lea.vmem [#allocation2], %s368
        %s370 = smul.u32 32, %s24
        %p371 = scmp.lt.s32.totalorder %s370, 63
        %s372 = scalar_select %p371, %s370, 63
        %s373 = smul.addr %s372, 8
        %s374 = scalar_lea.vmem %s0, %s373
        %s375 = smul.u32 32, %s24
        %s376 = smul.u32 32, %s24
        %p377 = scmp.lt.s32.totalorder %s376, 63
        %s378 = scalar_select %p377, %s376, 63
        %s379 = smul.addr %s378, 4
        %s380 = scalar_lea.vmem %s1, %s379
        %s381 = smul.u32 32, %s24
        %s382 = smul.u32 32, %s24
        %v384 = vld [vmem:[%s374] sm:$0xff]
        %v385 = vld [vmem:[%s374 + $0x8] sm:$0xff]
        %v386 = vld [vmem:[%s374 + $0x10] sm:$0xff]
        %v387 = vld [vmem:[%s374 + $0x18] sm:$0xff]
        %v388 = vld [vmem:[%s374 + $0x20] sm:$0xff]
        %v389 = vld [vmem:[%s374 + $0x28] sm:$0xff]
        %v390 = vld [vmem:[%s374 + $0x30] sm:$0xff]
        %v391 = vld [vmem:[%s374 + $0x38] sm:$0xff]
        %v392 = vld [vmem:[%s374 + $0x40] sm:$0xff]
        %v393 = vld [vmem:[%s374 + $0x48] sm:$0xff]
        %v394 = vld [vmem:[%s374 + $0x50] sm:$0xff]
        %v395 = vld [vmem:[%s374 + $0x58] sm:$0xff]
        %v396 = vld [vmem:[%s374 + $0x60] sm:$0xff]
        %v397 = vld [vmem:[%s374 + $0x68] sm:$0xff]
        %v398 = vld [vmem:[%s374 + $0x70] sm:$0xff]
        %v399 = vld [vmem:[%s374 + $0x78] sm:$0xff]
        %v400 = vld [vmem:[%s374 + $0x80] sm:$0xff]
        %v401 = vld [vmem:[%s374 + $0x88] sm:$0xff]
        %v402 = vld [vmem:[%s374 + $0x90] sm:$0xff]
        %v403 = vld [vmem:[%s374 + $0x98] sm:$0xff]
        %v404 = vld [vmem:[%s374 + $0xa0] sm:$0xff]
        %v405 = vld [vmem:[%s374 + $0xa8] sm:$0xff]
        %v406 = vld [vmem:[%s374 + $0xb0] sm:$0xff]
        %v407 = vld [vmem:[%s374 + $0xb8] sm:$0xff]
        %v408 = vld [vmem:[%s374 + $0xc0] sm:$0xff]
        %v409 = vld [vmem:[%s374 + $0xc8] sm:$0xff]
        %v410 = vld [vmem:[%s374 + $0xd0] sm:$0xff]
        %v411 = vld [vmem:[%s374 + $0xd8] sm:$0xff]
        %v412 = vld [vmem:[%s374 + $0xe0] sm:$0xff]
        %v413 = vld [vmem:[%s374 + $0xe8] sm:$0xff]
        %v414 = vld [vmem:[%s374 + $0xf0] sm:$0xff]
        %v415 = vld [vmem:[%s374 + $0xf8] sm:$0xff]
        %v416 = vld [vmem:[%s2] sm:$0x1]
        %v418 = vlaneseq
        %v419 = vshrl.u32 %v418, 7
        %v420 = vsub.s32 0, %v419
        %v421 = vrot.slane %v416, %v420
        %v423 = vmul.f32 %v384, %v421
        %v424 = vmul.f32 %v385, %v421
        %v425 = vmul.f32 %v386, %v421
        %v426 = vmul.f32 %v387, %v421
        %v427 = vmul.f32 %v388, %v421
        %v428 = vmul.f32 %v389, %v421
        %v429 = vmul.f32 %v390, %v421
        %v430 = vmul.f32 %v391, %v421
        %v431 = vmul.f32 %v392, %v421
        %v432 = vmul.f32 %v393, %v421
        %v433 = vmul.f32 %v394, %v421
        %v434 = vmul.f32 %v395, %v421
        %v435 = vmul.f32 %v396, %v421
        %v436 = vmul.f32 %v397, %v421
        %v437 = vmul.f32 %v398, %v421
        %v438 = vmul.f32 %v399, %v421
        %v439 = vmul.f32 %v400, %v421
        %v440 = vmul.f32 %v401, %v421
        %v441 = vmul.f32 %v402, %v421
        %v442 = vmul.f32 %v403, %v421
        %v443 = vmul.f32 %v404, %v421
        %v444 = vmul.f32 %v405, %v421
        %v445 = vmul.f32 %v406, %v421
        %v446 = vmul.f32 %v407, %v421
        %v447 = vmul.f32 %v408, %v421
        %v448 = vmul.f32 %v409, %v421
        %v449 = vmul.f32 %v410, %v421
        %v450 = vmul.f32 %v411, %v421
        %v451 = vmul.f32 %v412, %v421
        %v452 = vmul.f32 %v413, %v421
        %v453 = vmul.f32 %v414, %v421
        %v454 = vmul.f32 %v415, %v421
        %v455 = vld [vmem:[%s3] sm:$0x1]
        %v457 = vlaneseq
        %v458 = vshrl.u32 %v457, 7
        %v459 = vsub.s32 0, %v458
        %v460 = vrot.slane %v455, %v459
        %v462 = vadd.f32 %v423, %v460
        %v463 = vadd.f32 %v424, %v460
        %v464 = vadd.f32 %v425, %v460
        %v465 = vadd.f32 %v426, %v460
        %v466 = vadd.f32 %v427, %v460
        %v467 = vadd.f32 %v428, %v460
        %v468 = vadd.f32 %v429, %v460
        %v469 = vadd.f32 %v430, %v460
        %v470 = vadd.f32 %v431, %v460
        %v471 = vadd.f32 %v432, %v460
        %v472 = vadd.f32 %v433, %v460
        %v473 = vadd.f32 %v434, %v460
        %v474 = vadd.f32 %v435, %v460
        %v475 = vadd.f32 %v436, %v460
        %v476 = vadd.f32 %v437, %v460
        %v477 = vadd.f32 %v438, %v460
        %v478 = vadd.f32 %v439, %v460
        %v479 = vadd.f32 %v440, %v460
        %v480 = vadd.f32 %v441, %v460
        %v481 = vadd.f32 %v442, %v460
        %v482 = vadd.f32 %v443, %v460
        %v483 = vadd.f32 %v444, %v460
        %v484 = vadd.f32 %v445, %v460
        %v485 = vadd.f32 %v446, %v460
        %v486 = vadd.f32 %v447, %v460
        %v487 = vadd.f32 %v448, %v460
        %v488 = vadd.f32 %v449, %v460
        %v489 = vadd.f32 %v450, %v460
        %v490 = vadd.f32 %v451, %v460
        %v491 = vadd.f32 %v452, %v460
        %v492 = vadd.f32 %v453, %v460
        %v493 = vadd.f32 %v454, %v460
        %v494 = vmax.f32 %v462, 0.0
        %v495 = vmax.f32 %v463, 0.0
        %v496 = vmax.f32 %v464, 0.0
        %v497 = vmax.f32 %v465, 0.0
        %v498 = vmax.f32 %v466, 0.0
        %v499 = vmax.f32 %v467, 0.0
        %v500 = vmax.f32 %v468, 0.0
        %v501 = vmax.f32 %v469, 0.0
        %v502 = vmax.f32 %v470, 0.0
        %v503 = vmax.f32 %v471, 0.0
        %v504 = vmax.f32 %v472, 0.0
        %v505 = vmax.f32 %v473, 0.0
        %v506 = vmax.f32 %v474, 0.0
        %v507 = vmax.f32 %v475, 0.0
        %v508 = vmax.f32 %v476, 0.0
        %v509 = vmax.f32 %v477, 0.0
        %v510 = vmax.f32 %v478, 0.0
        %v511 = vmax.f32 %v479, 0.0
        %v512 = vmax.f32 %v480, 0.0
        %v513 = vmax.f32 %v481, 0.0
        %v514 = vmax.f32 %v482, 0.0
        %v515 = vmax.f32 %v483, 0.0
        %v516 = vmax.f32 %v484, 0.0
        %v517 = vmax.f32 %v485, 0.0
        %v518 = vmax.f32 %v486, 0.0
        %v519 = vmax.f32 %v487, 0.0
        %v520 = vmax.f32 %v488, 0.0
        %v521 = vmax.f32 %v489, 0.0
        %v522 = vmax.f32 %v490, 0.0
        %v523 = vmax.f32 %v491, 0.0
        %v524 = vmax.f32 %v492, 0.0
        %v525 = vmax.f32 %v493, 0.0
        %v526 = vpack.c.bf16 %v495, %v494
        %v527 = vpack.c.bf16 %v497, %v496
        %v528 = vpack.c.bf16 %v499, %v498
        %v529 = vpack.c.bf16 %v501, %v500
        %v530 = vpack.c.bf16 %v503, %v502
        %v531 = vpack.c.bf16 %v505, %v504
        %v532 = vpack.c.bf16 %v507, %v506
        %v533 = vpack.c.bf16 %v509, %v508
        %v534 = vpack.c.bf16 %v511, %v510
        %v535 = vpack.c.bf16 %v513, %v512
        %v536 = vpack.c.bf16 %v515, %v514
        %v537 = vpack.c.bf16 %v517, %v516
        %v538 = vpack.c.bf16 %v519, %v518
        %v539 = vpack.c.bf16 %v521, %v520
        %v540 = vpack.c.bf16 %v523, %v522
        %v541 = vpack.c.bf16 %v525, %v524
        %v542 = vld [vmem:[%s4] sm:$0xf]
        %vm543 = vcmask 64512
        %v545 = vsel %vm543, %v526, 0
        %v548 = vsel %vm543, %v527, 0
        %v551 = vsel %vm543, %v528, 0
        %v554 = vsel %vm543, %v529, 0
        %v557 = vsel %vm543, %v530, 0
        %v560 = vsel %vm543, %v531, 0
        %v563 = vsel %vm543, %v532, 0
        %v566 = vsel %vm543, %v533, 0
        %v569 = vsel %vm543, %v534, 0
        %v572 = vsel %vm543, %v535, 0
        %v575 = vsel %vm543, %v536, 0
        %v578 = vsel %vm543, %v537, 0
        %v581 = vsel %vm543, %v538, 0
        %v584 = vsel %vm543, %v539, 0
        %v587 = vsel %vm543, %v540, 0
        %v590 = vsel %vm543, %v541, 0
        %vm592 = vcmask 1043456
        %v594 = vsel %vm592, %v542, 0
        %596 = vmatprep.subr.bf16.mxu0 0
        %597 = vmatpush1.bf16.msra.mxu0 0
        %598 = vmatprep.subr.bf16.mxu0 0
        %599 = vmatpush1.bf16.msra.mxu0 0
        %600 = vmatprep.subr.bf16.mxu0 0
        %601 = vmatpush1.bf16.msra.mxu0 0
        %602 = vmatprep.subr.bf16.mxu0 0
        %603 = vmatpush1.bf16.msra.mxu0 0
        %604 = vmatprep.subr.bf16.mxu0 0
        %605 = vmatpush1.bf16.msra.mxu0 0
        %606 = vmatprep.subr.bf16.mxu0 0
        %607 = vmatpush1.bf16.msra.mxu0 0
        %608 = vmatprep.subr.bf16.mxu0 0
        %609 = vmatpush1.bf16.msra.mxu0 0
        %610 = vmatprep.subr.bf16.mxu0 0
        %611 = vmatpush1.bf16.msra.mxu0 %v594
        %612 = vmatprep.subr.bf16.mxu0 0
        %613 = vmatpush2.bf16.msra.mxu0 0
        %614 = vmatprep.subr.bf16.mxu0 0
        %615 = vmatpush2.bf16.msra.mxu0 0
        %616 = vmatprep.subr.bf16.mxu0 0
        %617 = vmatpush2.bf16.msra.mxu0 0
        %618 = vmatprep.subr.bf16.mxu0 0
        %619 = vmatpush2.bf16.msra.mxu0 0
        %620 = vmatprep.subr.bf16.mxu0 0
        %621 = vmatpush2.bf16.msra.mxu0 0
        %622 = vmatprep.subr.bf16.mxu0 0
        %623 = vmatpush2.bf16.msra.mxu0 0
        %624 = vmatprep.subr.bf16.mxu0 0
        %625 = vmatpush2.bf16.msra.mxu0 0
        %626 = vmatprep.subr.bf16.mxu0 0
        %627 = vmatpush2.bf16.msra.mxu0 0
        %628 = vmatprep.mubr.bf16.mxu0 0
        %629 = vmatmul.mubr.bf16.gmra.mxu0 %v545
        %v630 = vpop.f32.mrf.mxu0
        %v631 = vadd.f32 0.0, %v630
        %v632 = vpop.f32.mrf.mxu0
        %v633 = vpop.f32.mrf.mxu0
        %v634 = vadd.f32 0.0, %v633
        %v635 = vpop.f32.mrf.mxu0
        %636 = vmatprep.mubr.bf16.mxu0 0
        %637 = vmatmul.mubr.bf16.gmra.mxu0 %v548
        %v638 = vpop.f32.mrf.mxu0
        %v639 = vadd.f32 0.0, %v638
        %v640 = vpop.f32.mrf.mxu0
        %v641 = vpop.f32.mrf.mxu0
        %v642 = vadd.f32 0.0, %v641
        %v643 = vpop.f32.mrf.mxu0
        %644 = vmatprep.mubr.bf16.mxu0 0
        %645 = vmatmul.mubr.bf16.gmra.mxu0 %v551
        %v646 = vpop.f32.mrf.mxu0
        %v647 = vadd.f32 0.0, %v646
        %v648 = vpop.f32.mrf.mxu0
        %v649 = vpop.f32.mrf.mxu0
        %v650 = vadd.f32 0.0, %v649
        %v651 = vpop.f32.mrf.mxu0
        %652 = vmatprep.mubr.bf16.mxu0 0
        %653 = vmatmul.mubr.bf16.gmra.mxu0 %v554
        %v654 = vpop.f32.mrf.mxu0
        %v655 = vadd.f32 0.0, %v654
        %v656 = vpop.f32.mrf.mxu0
        %v657 = vpop.f32.mrf.mxu0
        %v658 = vadd.f32 0.0, %v657
        %v659 = vpop.f32.mrf.mxu0
        %660 = vmatprep.mubr.bf16.mxu0 0
        %661 = vmatmul.mubr.bf16.gmra.mxu0 %v557
        %v662 = vpop.f32.mrf.mxu0
        %v663 = vadd.f32 0.0, %v662
        %v664 = vpop.f32.mrf.mxu0
        %v665 = vpop.f32.mrf.mxu0
        %v666 = vadd.f32 0.0, %v665
        %v667 = vpop.f32.mrf.mxu0
        %668 = vmatprep.mubr.bf16.mxu0 0
        %669 = vmatmul.mubr.bf16.gmra.mxu0 %v560
        %v670 = vpop.f32.mrf.mxu0
        %v671 = vadd.f32 0.0, %v670
        %v672 = vpop.f32.mrf.mxu0
        %v673 = vpop.f32.mrf.mxu0
        %v674 = vadd.f32 0.0, %v673
        %v675 = vpop.f32.mrf.mxu0
        %676 = vmatprep.mubr.bf16.mxu0 0
        %677 = vmatmul.mubr.bf16.gmra.mxu0 %v563
        %v678 = vpop.f32.mrf.mxu0
        %v679 = vadd.f32 0.0, %v678
        %v680 = vpop.f32.mrf.mxu0
        %v681 = vpop.f32.mrf.mxu0
        %v682 = vadd.f32 0.0, %v681
        %v683 = vpop.f32.mrf.mxu0
        %684 = vmatprep.mubr.bf16.mxu0 0
        %685 = vmatmul.mubr.bf16.gmra.mxu0 %v566
        %v686 = vpop.f32.mrf.mxu0
        %v687 = vadd.f32 0.0, %v686
        %v688 = vpop.f32.mrf.mxu0
        %v689 = vpop.f32.mrf.mxu0
        %v690 = vadd.f32 0.0, %v689
        %v691 = vpop.f32.mrf.mxu0
        %692 = vmatprep.mubr.bf16.mxu0 0
        %693 = vmatmul.mubr.bf16.gmra.mxu0 %v569
        %v694 = vpop.f32.mrf.mxu0
        %v695 = vadd.f32 0.0, %v694
        %v696 = vpop.f32.mrf.mxu0
        %v697 = vpop.f32.mrf.mxu0
        %v698 = vadd.f32 0.0, %v697
        %v699 = vpop.f32.mrf.mxu0
        %700 = vmatprep.mubr.bf16.mxu0 0
        %701 = vmatmul.mubr.bf16.gmra.mxu0 %v572
        %v702 = vpop.f32.mrf.mxu0
        %v703 = vadd.f32 0.0, %v702
        %v704 = vpop.f32.mrf.mxu0
        %v705 = vpop.f32.mrf.mxu0
        %v706 = vadd.f32 0.0, %v705
        %v707 = vpop.f32.mrf.mxu0
        %708 = vmatprep.mubr.bf16.mxu0 0
        %709 = vmatmul.mubr.bf16.gmra.mxu0 %v575
        %v710 = vpop.f32.mrf.mxu0
        %v711 = vadd.f32 0.0, %v710
        %v712 = vpop.f32.mrf.mxu0
        %v713 = vpop.f32.mrf.mxu0
        %v714 = vadd.f32 0.0, %v713
        %v715 = vpop.f32.mrf.mxu0
        %716 = vmatprep.mubr.bf16.mxu0 0
        %717 = vmatmul.mubr.bf16.gmra.mxu0 %v578
        %v718 = vpop.f32.mrf.mxu0
        %v719 = vadd.f32 0.0, %v718
        %v720 = vpop.f32.mrf.mxu0
        %v721 = vpop.f32.mrf.mxu0
        %v722 = vadd.f32 0.0, %v721
        %v723 = vpop.f32.mrf.mxu0
        %724 = vmatprep.mubr.bf16.mxu0 0
        %725 = vmatmul.mubr.bf16.gmra.mxu0 %v581
        %v726 = vpop.f32.mrf.mxu0
        %v727 = vadd.f32 0.0, %v726
        %v728 = vpop.f32.mrf.mxu0
        %v729 = vpop.f32.mrf.mxu0
        %v730 = vadd.f32 0.0, %v729
        %v731 = vpop.f32.mrf.mxu0
        %732 = vmatprep.mubr.bf16.mxu0 0
        %733 = vmatmul.mubr.bf16.gmra.mxu0 %v584
        %v734 = vpop.f32.mrf.mxu0
        %v735 = vadd.f32 0.0, %v734
        %v736 = vpop.f32.mrf.mxu0
        %v737 = vpop.f32.mrf.mxu0
        %v738 = vadd.f32 0.0, %v737
        %v739 = vpop.f32.mrf.mxu0
        %740 = vmatprep.mubr.bf16.mxu0 0
        %741 = vmatmul.mubr.bf16.gmra.mxu0 %v587
        %v742 = vpop.f32.mrf.mxu0
        %v743 = vadd.f32 0.0, %v742
        %v744 = vpop.f32.mrf.mxu0
        %v745 = vpop.f32.mrf.mxu0
        %v746 = vadd.f32 0.0, %v745
        %v747 = vpop.f32.mrf.mxu0
        %748 = vmatprep.mubr.bf16.mxu0 0
        %749 = vmatmul.mubr.bf16.gmra.mxu0 %v590
        %v750 = vpop.f32.mrf.mxu0
        %v751 = vadd.f32 0.0, %v750
        %v752 = vpop.f32.mrf.mxu0
        %v753 = vpop.f32.mrf.mxu0
        %v754 = vadd.f32 0.0, %v753
        %v755 = vpop.f32.mrf.mxu0
        %756 = vdwg.mxu0
        %v757 = vld [vmem:[%s5] sm:$0x1]
        %v759 = vlaneseq
        %v760 = vshrl.u32 %v759, 7
        %v761 = vsub.s32 0, %v760
        %v762 = vrot.slane %v757, %v761
        %v764 = vmul.f32 %v631, %v762
        %v765 = vmul.f32 %v634, %v762
        %v766 = vmul.f32 %v639, %v762
        %v767 = vmul.f32 %v642, %v762
        %v768 = vmul.f32 %v647, %v762
        %v769 = vmul.f32 %v650, %v762
        %v770 = vmul.f32 %v655, %v762
        %v771 = vmul.f32 %v658, %v762
        %v772 = vmul.f32 %v663, %v762
        %v773 = vmul.f32 %v666, %v762
        %v774 = vmul.f32 %v671, %v762
        %v775 = vmul.f32 %v674, %v762
        %v776 = vmul.f32 %v679, %v762
        %v777 = vmul.f32 %v682, %v762
        %v778 = vmul.f32 %v687, %v762
        %v779 = vmul.f32 %v690, %v762
        %v780 = vmul.f32 %v695, %v762
        %v781 = vmul.f32 %v698, %v762
        %v782 = vmul.f32 %v703, %v762
        %v783 = vmul.f32 %v706, %v762
        %v784 = vmul.f32 %v711, %v762
        %v785 = vmul.f32 %v714, %v762
        %v786 = vmul.f32 %v719, %v762
        %v787 = vmul.f32 %v722, %v762
        %v788 = vmul.f32 %v727, %v762
        %v789 = vmul.f32 %v730, %v762
        %v790 = vmul.f32 %v735, %v762
        %v791 = vmul.f32 %v738, %v762
        %v792 = vmul.f32 %v743, %v762
        %v793 = vmul.f32 %v746, %v762
        %v794 = vmul.f32 %v751, %v762
        %v795 = vmul.f32 %v754, %v762
        %v796 = vld [vmem:[%s6] sm:$0x1]
        %v798 = vlaneseq
        %v799 = vshrl.u32 %v798, 7
        %v800 = vsub.s32 0, %v799
        %v801 = vrot.slane %v796, %v800
        %v803 = vadd.f32 %v764, %v801
        %v804 = vadd.f32 %v765, %v801
        %v805 = vadd.f32 %v766, %v801
        %v806 = vadd.f32 %v767, %v801
        %v807 = vadd.f32 %v768, %v801
        %v808 = vadd.f32 %v769, %v801
        %v809 = vadd.f32 %v770, %v801
        %v810 = vadd.f32 %v771, %v801
        %v811 = vadd.f32 %v772, %v801
        %v812 = vadd.f32 %v773, %v801
        %v813 = vadd.f32 %v774, %v801
        %v814 = vadd.f32 %v775, %v801
        %v815 = vadd.f32 %v776, %v801
        %v816 = vadd.f32 %v777, %v801
        %v817 = vadd.f32 %v778, %v801
        %v818 = vadd.f32 %v779, %v801
        %v819 = vadd.f32 %v780, %v801
        %v820 = vadd.f32 %v781, %v801
        %v821 = vadd.f32 %v782, %v801
        %v822 = vadd.f32 %v783, %v801
        %v823 = vadd.f32 %v784, %v801
        %v824 = vadd.f32 %v785, %v801
        %v825 = vadd.f32 %v786, %v801
        %v826 = vadd.f32 %v787, %v801
        %v827 = vadd.f32 %v788, %v801
        %v828 = vadd.f32 %v789, %v801
        %v829 = vadd.f32 %v790, %v801
        %v830 = vadd.f32 %v791, %v801
        %v831 = vadd.f32 %v792, %v801
        %v832 = vadd.f32 %v793, %v801
        %v833 = vadd.f32 %v794, %v801
        %v834 = vadd.f32 %v795, %v801
        %v835 = vld [vmem:[%s380] sm:$0xf]
        %v836 = vld [vmem:[%s380 + $0x4] sm:$0xf]
        %v837 = vld [vmem:[%s380 + $0x8] sm:$0xf]
        %v838 = vld [vmem:[%s380 + $0xc] sm:$0xf]
        %v839 = vld [vmem:[%s380 + $0x10] sm:$0xf]
        %v840 = vld [vmem:[%s380 + $0x14] sm:$0xf]
        %v841 = vld [vmem:[%s380 + $0x18] sm:$0xf]
        %v842 = vld [vmem:[%s380 + $0x1c] sm:$0xf]
        %v843 = vld [vmem:[%s380 + $0x20] sm:$0xf]
        %v844 = vld [vmem:[%s380 + $0x24] sm:$0xf]
        %v845 = vld [vmem:[%s380 + $0x28] sm:$0xf]
        %v846 = vld [vmem:[%s380 + $0x2c] sm:$0xf]
        %v847 = vld [vmem:[%s380 + $0x30] sm:$0xf]
        %v848 = vld [vmem:[%s380 + $0x34] sm:$0xf]
        %v849 = vld [vmem:[%s380 + $0x38] sm:$0xf]
        %v850 = vld [vmem:[%s380 + $0x3c] sm:$0xf]
        %v851 = vld [vmem:[%s380 + $0x40] sm:$0xf]
        %v852 = vld [vmem:[%s380 + $0x44] sm:$0xf]
        %v853 = vld [vmem:[%s380 + $0x48] sm:$0xf]
        %v854 = vld [vmem:[%s380 + $0x4c] sm:$0xf]
        %v855 = vld [vmem:[%s380 + $0x50] sm:$0xf]
        %v856 = vld [vmem:[%s380 + $0x54] sm:$0xf]
        %v857 = vld [vmem:[%s380 + $0x58] sm:$0xf]
        %v858 = vld [vmem:[%s380 + $0x5c] sm:$0xf]
        %v859 = vld [vmem:[%s380 + $0x60] sm:$0xf]
        %v860 = vld [vmem:[%s380 + $0x64] sm:$0xf]
        %v861 = vld [vmem:[%s380 + $0x68] sm:$0xf]
        %v862 = vld [vmem:[%s380 + $0x6c] sm:$0xf]
        %v863 = vld [vmem:[%s380 + $0x70] sm:$0xf]
        %v864 = vld [vmem:[%s380 + $0x74] sm:$0xf]
        %v865 = vld [vmem:[%s380 + $0x78] sm:$0xf]
        %v866 = vld [vmem:[%s380 + $0x7c] sm:$0xf]
        %v867 = vld [vmem:[%s7] sm:$0xf]
        %v868 = vld [vmem:[%s7 + $0x4] sm:$0xf]
        %v901 = vunpack.c.l.b16 %v835
        %v902 = vunpack.c.l.b16 %v836
        %v903 = vunpack.c.l.b16 %v837
        %v904 = vunpack.c.l.b16 %v838
        %v905 = vunpack.c.l.b16 %v839
        %v906 = vunpack.c.l.b16 %v840
        %v907 = vunpack.c.l.b16 %v841
        %v908 = vunpack.c.l.b16 %v842
        %v909 = vunpack.c.l.b16 %v843
        %v910 = vunpack.c.l.b16 %v844
        %v911 = vunpack.c.l.b16 %v845
        %v912 = vunpack.c.l.b16 %v846
        %v913 = vunpack.c.l.b16 %v847
        %v914 = vunpack.c.l.b16 %v848
        %v915 = vunpack.c.l.b16 %v849
        %v916 = vunpack.c.l.b16 %v850
        %v917 = vunpack.c.l.b16 %v851
        %v918 = vunpack.c.l.b16 %v852
        %v919 = vunpack.c.l.b16 %v853
        %v920 = vunpack.c.l.b16 %v854
        %v921 = vunpack.c.l.b16 %v855
        %v922 = vunpack.c.l.b16 %v856
        %v923 = vunpack.c.l.b16 %v857
        %v924 = vunpack.c.l.b16 %v858
        %v925 = vunpack.c.l.b16 %v859
        %v926 = vunpack.c.l.b16 %v860
        %v927 = vunpack.c.l.b16 %v861
        %v928 = vunpack.c.l.b16 %v862
        %v929 = vunpack.c.l.b16 %v863
        %v930 = vunpack.c.l.b16 %v864
        %v931 = vunpack.c.l.b16 %v865
        %v932 = vunpack.c.l.b16 %v866
        %v933 = vpack.c.b16 %v902, %v901
        %v934 = vpack.c.b16 %v904, %v903
        %v935 = vpack.c.b16 %v906, %v905
        %v936 = vpack.c.b16 %v908, %v907
        %v937 = vpack.c.b16 %v910, %v909
        %v938 = vpack.c.b16 %v912, %v911
        %v939 = vpack.c.b16 %v914, %v913
        %v940 = vpack.c.b16 %v916, %v915
        %v941 = vpack.c.b16 %v918, %v917
        %v942 = vpack.c.b16 %v920, %v919
        %v943 = vpack.c.b16 %v922, %v921
        %v944 = vpack.c.b16 %v924, %v923
        %v945 = vpack.c.b16 %v926, %v925
        %v946 = vpack.c.b16 %v928, %v927
        %v947 = vpack.c.b16 %v930, %v929
        %v948 = vpack.c.b16 %v932, %v931
        %v951 = vunpack.c.l.b16 %v867
        %v952 = vunpack.c.l.b16 %v868
        %v953 = vpack.c.b16 %v952, %v951
        %vm955 = vcmask 130048
        %v957 = vsel %vm955, %v933, 0
        %v960 = vsel %vm955, %v934, 0
        %v963 = vsel %vm955, %v935, 0
        %v966 = vsel %vm955, %v936, 0
        %v969 = vsel %vm955, %v937, 0
        %v972 = vsel %vm955, %v938, 0
        %v975 = vsel %vm955, %v939, 0
        %v978 = vsel %vm955, %v940, 0
        %v981 = vsel %vm955, %v941, 0
        %v984 = vsel %vm955, %v942, 0
        %v987 = vsel %vm955, %v943, 0
        %v990 = vsel %vm955, %v944, 0
        %v993 = vsel %vm955, %v945, 0
        %v996 = vsel %vm955, %v946, 0
        %v999 = vsel %vm955, %v947, 0
        %v1002 = vsel %vm955, %v948, 0
        %1004 = vmatprep.subr.bf16.mxu0 0
        %1005 = vmatpush1.bf16.msra.mxu0 0
        %1006 = vmatprep.subr.bf16.mxu0 0
        %1007 = vmatpush1.bf16.msra.mxu0 0
        %1008 = vmatprep.subr.bf16.mxu0 0
        %1009 = vmatpush1.bf16.msra.mxu0 0
        %1010 = vmatprep.subr.bf16.mxu0 0
        %1011 = vmatpush1.bf16.msra.mxu0 0
        %1012 = vmatprep.subr.bf16.mxu0 0
        %1013 = vmatpush1.bf16.msra.mxu0 0
        %1014 = vmatprep.subr.bf16.mxu0 0
        %1015 = vmatpush1.bf16.msra.mxu0 0
        %1016 = vmatprep.subr.bf16.mxu0 0
        %1017 = vmatpush1.bf16.msra.mxu0 0
        %1018 = vmatprep.subr.bf16.mxu0 0
        %1019 = vmatpush1.bf16.msra.mxu0 %v953
        %1020 = vmatprep.subr.bf16.mxu0 0
        %1021 = vmatpush2.bf16.msra.mxu0 0
        %1022 = vmatprep.subr.bf16.mxu0 0
        %1023 = vmatpush2.bf16.msra.mxu0 0
        %1024 = vmatprep.subr.bf16.mxu0 0
        %1025 = vmatpush2.bf16.msra.mxu0 0
        %1026 = vmatprep.subr.bf16.mxu0 0
        %1027 = vmatpush2.bf16.msra.mxu0 0
        %1028 = vmatprep.subr.bf16.mxu0 0
        %1029 = vmatpush2.bf16.msra.mxu0 0
        %1030 = vmatprep.subr.bf16.mxu0 0
        %1031 = vmatpush2.bf16.msra.mxu0 0
        %1032 = vmatprep.subr.bf16.mxu0 0
        %1033 = vmatpush2.bf16.msra.mxu0 0
        %1034 = vmatprep.subr.bf16.mxu0 0
        %1035 = vmatpush2.bf16.msra.mxu0 0
        %1036 = vmatprep.mubr.bf16.mxu0 0
        %1037 = vmatmul.mubr.bf16.gmra.mxu0 %v957
        %v1038 = vpop.f32.mrf.mxu0
        %v1039 = vadd.f32 0.0, %v1038
        %v1040 = vpop.f32.mrf.mxu0
        %v1041 = vpop.f32.mrf.mxu0
        %v1042 = vadd.f32 0.0, %v1041
        %v1043 = vpop.f32.mrf.mxu0
        %1044 = vmatprep.mubr.bf16.mxu0 0
        %1045 = vmatmul.mubr.bf16.gmra.mxu0 %v960
        %v1046 = vpop.f32.mrf.mxu0
        %v1047 = vadd.f32 0.0, %v1046
        %v1048 = vpop.f32.mrf.mxu0
        %v1049 = vpop.f32.mrf.mxu0
        %v1050 = vadd.f32 0.0, %v1049
        %v1051 = vpop.f32.mrf.mxu0
        %1052 = vmatprep.mubr.bf16.mxu0 0
        %1053 = vmatmul.mubr.bf16.gmra.mxu0 %v963
        %v1054 = vpop.f32.mrf.mxu0
        %v1055 = vadd.f32 0.0, %v1054
        %v1056 = vpop.f32.mrf.mxu0
        %v1057 = vpop.f32.mrf.mxu0
        %v1058 = vadd.f32 0.0, %v1057
        %v1059 = vpop.f32.mrf.mxu0
        %1060 = vmatprep.mubr.bf16.mxu0 0
        %1061 = vmatmul.mubr.bf16.gmra.mxu0 %v966
        %v1062 = vpop.f32.mrf.mxu0
        %v1063 = vadd.f32 0.0, %v1062
        %v1064 = vpop.f32.mrf.mxu0
        %v1065 = vpop.f32.mrf.mxu0
        %v1066 = vadd.f32 0.0, %v1065
        %v1067 = vpop.f32.mrf.mxu0
        %1068 = vmatprep.mubr.bf16.mxu0 0
        %1069 = vmatmul.mubr.bf16.gmra.mxu0 %v969
        %v1070 = vpop.f32.mrf.mxu0
        %v1071 = vadd.f32 0.0, %v1070
        %v1072 = vpop.f32.mrf.mxu0
        %v1073 = vpop.f32.mrf.mxu0
        %v1074 = vadd.f32 0.0, %v1073
        %v1075 = vpop.f32.mrf.mxu0
        %1076 = vmatprep.mubr.bf16.mxu0 0
        %1077 = vmatmul.mubr.bf16.gmra.mxu0 %v972
        %v1078 = vpop.f32.mrf.mxu0
        %v1079 = vadd.f32 0.0, %v1078
        %v1080 = vpop.f32.mrf.mxu0
        %v1081 = vpop.f32.mrf.mxu0
        %v1082 = vadd.f32 0.0, %v1081
        %v1083 = vpop.f32.mrf.mxu0
        %1084 = vmatprep.mubr.bf16.mxu0 0
        %1085 = vmatmul.mubr.bf16.gmra.mxu0 %v975
        %v1086 = vpop.f32.mrf.mxu0
        %v1087 = vadd.f32 0.0, %v1086
        %v1088 = vpop.f32.mrf.mxu0
        %v1089 = vpop.f32.mrf.mxu0
        %v1090 = vadd.f32 0.0, %v1089
        %v1091 = vpop.f32.mrf.mxu0
        %1092 = vmatprep.mubr.bf16.mxu0 0
        %1093 = vmatmul.mubr.bf16.gmra.mxu0 %v978
        %v1094 = vpop.f32.mrf.mxu0
        %v1095 = vadd.f32 0.0, %v1094
        %v1096 = vpop.f32.mrf.mxu0
        %v1097 = vpop.f32.mrf.mxu0
        %v1098 = vadd.f32 0.0, %v1097
        %v1099 = vpop.f32.mrf.mxu0
        %1100 = vmatprep.mubr.bf16.mxu0 0
        %1101 = vmatmul.mubr.bf16.gmra.mxu0 %v981
        %v1102 = vpop.f32.mrf.mxu0
        %v1103 = vadd.f32 0.0, %v1102
        %v1104 = vpop.f32.mrf.mxu0
        %v1105 = vpop.f32.mrf.mxu0
        %v1106 = vadd.f32 0.0, %v1105
        %v1107 = vpop.f32.mrf.mxu0
        %1108 = vmatprep.mubr.bf16.mxu0 0
        %1109 = vmatmul.mubr.bf16.gmra.mxu0 %v984
        %v1110 = vpop.f32.mrf.mxu0
        %v1111 = vadd.f32 0.0, %v1110
        %v1112 = vpop.f32.mrf.mxu0
        %v1113 = vpop.f32.mrf.mxu0
        %v1114 = vadd.f32 0.0, %v1113
        %v1115 = vpop.f32.mrf.mxu0
        %1116 = vmatprep.mubr.bf16.mxu0 0
        %1117 = vmatmul.mubr.bf16.gmra.mxu0 %v987
        %v1118 = vpop.f32.mrf.mxu0
        %v1119 = vadd.f32 0.0, %v1118
        %v1120 = vpop.f32.mrf.mxu0
        %v1121 = vpop.f32.mrf.mxu0
        %v1122 = vadd.f32 0.0, %v1121
        %v1123 = vpop.f32.mrf.mxu0
        %1124 = vmatprep.mubr.bf16.mxu0 0
        %1125 = vmatmul.mubr.bf16.gmra.mxu0 %v990
        %v1126 = vpop.f32.mrf.mxu0
        %v1127 = vadd.f32 0.0, %v1126
        %v1128 = vpop.f32.mrf.mxu0
        %v1129 = vpop.f32.mrf.mxu0
        %v1130 = vadd.f32 0.0, %v1129
        %v1131 = vpop.f32.mrf.mxu0
        %1132 = vmatprep.mubr.bf16.mxu0 0
        %1133 = vmatmul.mubr.bf16.gmra.mxu0 %v993
        %v1134 = vpop.f32.mrf.mxu0
        %v1135 = vadd.f32 0.0, %v1134
        %v1136 = vpop.f32.mrf.mxu0
        %v1137 = vpop.f32.mrf.mxu0
        %v1138 = vadd.f32 0.0, %v1137
        %v1139 = vpop.f32.mrf.mxu0
        %1140 = vmatprep.mubr.bf16.mxu0 0
        %1141 = vmatmul.mubr.bf16.gmra.mxu0 %v996
        %v1142 = vpop.f32.mrf.mxu0
        %v1143 = vadd.f32 0.0, %v1142
        %v1144 = vpop.f32.mrf.mxu0
        %v1145 = vpop.f32.mrf.mxu0
        %v1146 = vadd.f32 0.0, %v1145
        %v1147 = vpop.f32.mrf.mxu0
        %1148 = vmatprep.mubr.bf16.mxu0 0
        %1149 = vmatmul.mubr.bf16.gmra.mxu0 %v999
        %v1150 = vpop.f32.mrf.mxu0
        %v1151 = vadd.f32 0.0, %v1150
        %v1152 = vpop.f32.mrf.mxu0
        %v1153 = vpop.f32.mrf.mxu0
        %v1154 = vadd.f32 0.0, %v1153
        %v1155 = vpop.f32.mrf.mxu0
        %1156 = vmatprep.mubr.bf16.mxu0 0
        %1157 = vmatmul.mubr.bf16.gmra.mxu0 %v1002
        %v1158 = vpop.f32.mrf.mxu0
        %v1159 = vadd.f32 0.0, %v1158
        %v1160 = vpop.f32.mrf.mxu0
        %v1161 = vpop.f32.mrf.mxu0
        %v1162 = vadd.f32 0.0, %v1161
        %v1163 = vpop.f32.mrf.mxu0
        %1164 = vdwg.mxu0
        %v1165 = vld [vmem:[%s8] sm:$0x1]
        %v1167 = vlaneseq
        %v1168 = vshrl.u32 %v1167, 7
        %v1169 = vsub.s32 0, %v1168
        %v1170 = vrot.slane %v1165, %v1169
        %v1172 = vmul.f32 %v1039, %v1170
        %v1173 = vmul.f32 %v1042, %v1170
        %v1174 = vmul.f32 %v1047, %v1170
        %v1175 = vmul.f32 %v1050, %v1170
        %v1176 = vmul.f32 %v1055, %v1170
        %v1177 = vmul.f32 %v1058, %v1170
        %v1178 = vmul.f32 %v1063, %v1170
        %v1179 = vmul.f32 %v1066, %v1170
        %v1180 = vmul.f32 %v1071, %v1170
        %v1181 = vmul.f32 %v1074, %v1170
        %v1182 = vmul.f32 %v1079, %v1170
        %v1183 = vmul.f32 %v1082, %v1170
        %v1184 = vmul.f32 %v1087, %v1170
        %v1185 = vmul.f32 %v1090, %v1170
        %v1186 = vmul.f32 %v1095, %v1170
        %v1187 = vmul.f32 %v1098, %v1170
        %v1188 = vmul.f32 %v1103, %v1170
        %v1189 = vmul.f32 %v1106, %v1170
        %v1190 = vmul.f32 %v1111, %v1170
        %v1191 = vmul.f32 %v1114, %v1170
        %v1192 = vmul.f32 %v1119, %v1170
        %v1193 = vmul.f32 %v1122, %v1170
        %v1194 = vmul.f32 %v1127, %v1170
        %v1195 = vmul.f32 %v1130, %v1170
        %v1196 = vmul.f32 %v1135, %v1170
        %v1197 = vmul.f32 %v1138, %v1170
        %v1198 = vmul.f32 %v1143, %v1170
        %v1199 = vmul.f32 %v1146, %v1170
        %v1200 = vmul.f32 %v1151, %v1170
        %v1201 = vmul.f32 %v1154, %v1170
        %v1202 = vmul.f32 %v1159, %v1170
        %v1203 = vmul.f32 %v1162, %v1170
        %v1204 = vld [vmem:[%s9] sm:$0x1]
        %v1206 = vlaneseq
        %v1207 = vshrl.u32 %v1206, 7
        %v1208 = vsub.s32 0, %v1207
        %v1209 = vrot.slane %v1204, %v1208
        %v1211 = vadd.f32 %v1172, %v1209
        %v1212 = vadd.f32 %v1173, %v1209
        %v1213 = vadd.f32 %v1174, %v1209
        %v1214 = vadd.f32 %v1175, %v1209
        %v1215 = vadd.f32 %v1176, %v1209
        %v1216 = vadd.f32 %v1177, %v1209
        %v1217 = vadd.f32 %v1178, %v1209
        %v1218 = vadd.f32 %v1179, %v1209
        %v1219 = vadd.f32 %v1180, %v1209
        %v1220 = vadd.f32 %v1181, %v1209
        %v1221 = vadd.f32 %v1182, %v1209
        %v1222 = vadd.f32 %v1183, %v1209
        %v1223 = vadd.f32 %v1184, %v1209
        %v1224 = vadd.f32 %v1185, %v1209
        %v1225 = vadd.f32 %v1186, %v1209
        %v1226 = vadd.f32 %v1187, %v1209
        %v1227 = vadd.f32 %v1188, %v1209
        %v1228 = vadd.f32 %v1189, %v1209
        %v1229 = vadd.f32 %v1190, %v1209
        %v1230 = vadd.f32 %v1191, %v1209
        %v1231 = vadd.f32 %v1192, %v1209
        %v1232 = vadd.f32 %v1193, %v1209
        %v1233 = vadd.f32 %v1194, %v1209
        %v1234 = vadd.f32 %v1195, %v1209
        %v1235 = vadd.f32 %v1196, %v1209
        %v1236 = vadd.f32 %v1197, %v1209
        %v1237 = vadd.f32 %v1198, %v1209
        %v1238 = vadd.f32 %v1199, %v1209
        %v1239 = vadd.f32 %v1200, %v1209
        %v1240 = vadd.f32 %v1201, %v1209
        %v1241 = vadd.f32 %v1202, %v1209
        %v1242 = vadd.f32 %v1203, %v1209
        %v1243 = vadd.f32 %v803, %v1211
        %v1244 = vadd.f32 %v804, %v1212
        %v1245 = vadd.f32 %v805, %v1213
        %v1246 = vadd.f32 %v806, %v1214
        %v1247 = vadd.f32 %v807, %v1215
        %v1248 = vadd.f32 %v808, %v1216
        %v1249 = vadd.f32 %v809, %v1217
        %v1250 = vadd.f32 %v810, %v1218
        %v1251 = vadd.f32 %v811, %v1219
        %v1252 = vadd.f32 %v812, %v1220
        %v1253 = vadd.f32 %v813, %v1221
        %v1254 = vadd.f32 %v814, %v1222
        %v1255 = vadd.f32 %v815, %v1223
        %v1256 = vadd.f32 %v816, %v1224
        %v1257 = vadd.f32 %v817, %v1225
        %v1258 = vadd.f32 %v818, %v1226
        %v1259 = vadd.f32 %v819, %v1227
        %v1260 = vadd.f32 %v820, %v1228
        %v1261 = vadd.f32 %v821, %v1229
        %v1262 = vadd.f32 %v822, %v1230
        %v1263 = vadd.f32 %v823, %v1231
        %v1264 = vadd.f32 %v824, %v1232
        %v1265 = vadd.f32 %v825, %v1233
        %v1266 = vadd.f32 %v826, %v1234
        %v1267 = vadd.f32 %v827, %v1235
        %v1268 = vadd.f32 %v828, %v1236
        %v1269 = vadd.f32 %v829, %v1237
        %v1270 = vadd.f32 %v830, %v1238
        %v1271 = vadd.f32 %v831, %v1239
        %v1272 = vadd.f32 %v832, %v1240
        %v1273 = vadd.f32 %v833, %v1241
        %v1274 = vadd.f32 %v834, %v1242
        %v1275 = vmax.f32 %v1243, 0.0
        %v1276 = vmax.f32 %v1244, 0.0
        %v1277 = vmax.f32 %v1245, 0.0
        %v1278 = vmax.f32 %v1246, 0.0
        %v1279 = vmax.f32 %v1247, 0.0
        %v1280 = vmax.f32 %v1248, 0.0
        %v1281 = vmax.f32 %v1249, 0.0
        %v1282 = vmax.f32 %v1250, 0.0
        %v1283 = vmax.f32 %v1251, 0.0
        %v1284 = vmax.f32 %v1252, 0.0
        %v1285 = vmax.f32 %v1253, 0.0
        %v1286 = vmax.f32 %v1254, 0.0
        %v1287 = vmax.f32 %v1255, 0.0
        %v1288 = vmax.f32 %v1256, 0.0
        %v1289 = vmax.f32 %v1257, 0.0
        %v1290 = vmax.f32 %v1258, 0.0
        %v1291 = vmax.f32 %v1259, 0.0
        %v1292 = vmax.f32 %v1260, 0.0
        %v1293 = vmax.f32 %v1261, 0.0
        %v1294 = vmax.f32 %v1262, 0.0
        %v1295 = vmax.f32 %v1263, 0.0
        %v1296 = vmax.f32 %v1264, 0.0
        %v1297 = vmax.f32 %v1265, 0.0
        %v1298 = vmax.f32 %v1266, 0.0
        %v1299 = vmax.f32 %v1267, 0.0
        %v1300 = vmax.f32 %v1268, 0.0
        %v1301 = vmax.f32 %v1269, 0.0
        %v1302 = vmax.f32 %v1270, 0.0
        %v1303 = vmax.f32 %v1271, 0.0
        %v1304 = vmax.f32 %v1272, 0.0
        %v1305 = vmax.f32 %v1273, 0.0
        %v1306 = vmax.f32 %v1274, 0.0
        %vm1307 = vcmask 261120
        %1308 = vst.msk [vmem:[%s369] sm:$0xff] %vm1307, %v1275
        %1309 = vst.msk [vmem:[%s369 + $0x8] sm:$0xff] %vm1307, %v1276
        %1310 = vst.msk [vmem:[%s369 + $0x10] sm:$0xff] %vm1307, %v1277
        %1311 = vst.msk [vmem:[%s369 + $0x18] sm:$0xff] %vm1307, %v1278
        %1312 = vst.msk [vmem:[%s369 + $0x20] sm:$0xff] %vm1307, %v1279
        %1313 = vst.msk [vmem:[%s369 + $0x28] sm:$0xff] %vm1307, %v1280
        %1314 = vst.msk [vmem:[%s369 + $0x30] sm:$0xff] %vm1307, %v1281
        %1315 = vst.msk [vmem:[%s369 + $0x38] sm:$0xff] %vm1307, %v1282
        %1316 = vst.msk [vmem:[%s369 + $0x40] sm:$0xff] %vm1307, %v1283
        %1317 = vst.msk [vmem:[%s369 + $0x48] sm:$0xff] %vm1307, %v1284
        %1318 = vst.msk [vmem:[%s369 + $0x50] sm:$0xff] %vm1307, %v1285
        %1319 = vst.msk [vmem:[%s369 + $0x58] sm:$0xff] %vm1307, %v1286
        %1320 = vst.msk [vmem:[%s369 + $0x60] sm:$0xff] %vm1307, %v1287
        %1321 = vst.msk [vmem:[%s369 + $0x68] sm:$0xff] %vm1307, %v1288
        %1322 = vst.msk [vmem:[%s369 + $0x70] sm:$0xff] %vm1307, %v1289
        %1323 = vst.msk [vmem:[%s369 + $0x78] sm:$0xff] %vm1307, %v1290
        %1324 = vst.msk [vmem:[%s369 + $0x80] sm:$0xff] %vm1307, %v1291
        %1325 = vst.msk [vmem:[%s369 + $0x88] sm:$0xff] %vm1307, %v1292
        %1326 = vst.msk [vmem:[%s369 + $0x90] sm:$0xff] %vm1307, %v1293
        %1327 = vst.msk [vmem:[%s369 + $0x98] sm:$0xff] %vm1307, %v1294
        %1328 = vst.msk [vmem:[%s369 + $0xa0] sm:$0xff] %vm1307, %v1295
        %1329 = vst.msk [vmem:[%s369 + $0xa8] sm:$0xff] %vm1307, %v1296
        %1330 = vst.msk [vmem:[%s369 + $0xb0] sm:$0xff] %vm1307, %v1297
        %1331 = vst.msk [vmem:[%s369 + $0xb8] sm:$0xff] %vm1307, %v1298
        %1332 = vst.msk [vmem:[%s369 + $0xc0] sm:$0xff] %vm1307, %v1299
        %1333 = vst.msk [vmem:[%s369 + $0xc8] sm:$0xff] %vm1307, %v1300
        %1334 = vst.msk [vmem:[%s369 + $0xd0] sm:$0xff] %vm1307, %v1301
        %1335 = vst.msk [vmem:[%s369 + $0xd8] sm:$0xff] %vm1307, %v1302
        %1336 = vst.msk [vmem:[%s369 + $0xe0] sm:$0xff] %vm1307, %v1303
        %1337 = vst.msk [vmem:[%s369 + $0xe8] sm:$0xff] %vm1307, %v1304
        %1338 = vst.msk [vmem:[%s369 + $0xf0] sm:$0xff] %vm1307, %v1305
        %1339 = vst.msk [vmem:[%s369 + $0xf8] sm:$0xff] %vm1307, %v1306
        %s1340 = sand.u32 %s252, 1
        %s1341 = scalar_lea.sflag [#allocation3], %s1340
        %s1342 = sand.u32 %s252, 1
        %s1343 = smul.addr %s1342, 256
        %s1344 = scalar_lea.vmem [#allocation2], %s1343
        // Predicated region
        $region61: #{bottleneck_forward.7} parent=59 // pred_check
          %p1345 = pneg %p262
        $region62: #{bottleneck_forward.7} parent=59 // pred_check_branch
          %1347 = sbr.rel (%p1345) target = $region64
        $region63: #{bottleneck_forward.7} parent=59 // pred_region
          %s1348 = smul.u32 32, %s24
          %s1350 = ssub.s32 4096, 4096
          %1351 = vsyncadd %s1341, %s1350
          %s1352 = smul.addr %s1348, 128
          %s1353 = scalar_lea.hbm %s10, %s1352
          %s1354 = sshll.u32 %s1344, 4
          %s1355 = int_to_ptr.vmem [resolvable:$true] %s1354
          %1360 = dma.vmem_to_hbm [thread:$0]  %s1355, 4096, %s1353, %s1341, 128, 128, 8
        $region64: #{bottleneck_forward.7} parent=59 // pred_fallthru
          _
      $region60: #{bottleneck_forward.7} parent=5 // pred_fallthru
        _
      %p1361 = scmp.le.s32.totalorder 2, %s19
      // Predicated region
      $region65: #{bottleneck_forward.7} parent=5 // pred_check
        %p1362 = pneg %p1361
      $region66: #{bottleneck_forward.7} parent=5 // pred_check_branch
        %1364 = sbr.rel (%p1362) target = $region68
      $region67: #{bottleneck_forward.7} parent=5 // pred_region
        %s1365 = ssub.s32 %s19, 2
        // Predicated region
        $region69: #{bottleneck_forward.7} parent=67 // pred_check
          %p1366 = pneg %p268
        $region70: #{bottleneck_forward.7} parent=67 // pred_check_branch
          %1368 = sbr.rel (%p1366) target = $region72
        $region71: #{bottleneck_forward.7} parent=67 // pred_region
          %s1369 = sand.u32 %s253, 1
          %s1370 = scalar_lea.sflag [#allocation3], %s1369
          %s1371 = sand.u32 %s253, 1
          %s1372 = smul.addr %s1371, 256
          %s1373 = scalar_lea.vmem [#allocation2], %s1372
          %1374 = dma.done %s1370, 4096
        $region72: #{bottleneck_forward.7} parent=67 // pred_fallthru
          _
      $region68: #{bottleneck_forward.7} parent=5 // pred_fallthru
        _
    $region6: #{bottleneck_forward.7} parent=1 // loop_footer
      %s23 = sadd.s32 1, %s19
    $region7: #{bottleneck_forward.7} parent=1 // loop_footer_branch
      %18 = sbr.rel target = $region3
    $region8: #{bottleneck_forward.7} parent=1 // loop_exit
      _
    %1375 = vsyncpa [#allocation3], 1
    %s1376 = scalar_lea.sflag [#allocation3], 1
    %1377 = vsyncpa %s1376, 1

</llo_original>
